<compile_context>
chip_gen: v7x
topology: tpu7x:2x2x1
jax: 0.10.0
libtpu: 0.0.40
codegen_flags: <defaults>
</compile_context>

<pallas_src>
import functools

import jax
import jax.numpy as jnp
import numpy as np
from jax.experimental import pallas as pl
from jax.experimental.pallas import tpu as pltpu

DILATIONS = (1, 2, 4, 6)      # conv2..conv5 (padding == dilation -> "same")
MAXPAD = 6                    # pad once by the largest dilation
EPS = 1e-5
OC = 64                       # per-branch output channels
VMEM_LIMIT = 32 * 1024 * 1024


# ----------------------------- in-kernel helpers -------------------------------
def _branch_convs(win, w1_ref, wd_ref, TH, W, C):
    """Yield the 5 pre-BN conv outputs, each (P, 64) f32, for one row tile.

    win: (THp, Wp, C) f32 window (output rows + 2*MAXPAD halo rows, padded W).
    Conv biases are intentionally omitted (cancelled by training-mode BN).
    """
    P = TH * W

    def tap(oy, ox):
        # (TH, W, C) shifted view -> (P, C) pixel-major im2col column group.
        return win[oy:oy + TH, ox:ox + W, :].reshape(P, C)

    center = tap(MAXPAD, MAXPAD)

    # branch 1: 1x1 conv (K = C)
    yield jnp.dot(center.astype(jnp.bfloat16), w1_ref[...],
                  preferred_element_type=jnp.float32)

    # branches 2..5: 3x3 dilated convs, 9 taps fused into one K = 9*C matmul
    for bi, d in enumerate(DILATIONS):
        taps = []
        for ky in (-1, 0, 1):
            for kx in (-1, 0, 1):
                taps.append(center if (ky == 0 and kx == 0)
                            else tap(MAXPAD + ky * d, MAXPAD + kx * d))
        a = jnp.concatenate(taps, axis=1).astype(jnp.bfloat16)     # (P, 9C)
        yield jnp.dot(a, wd_ref[bi], preferred_element_type=jnp.float32)


# --------------------------------- kernels -------------------------------------
def _stats_kernel(xw_ref, w1_ref, wd_ref, stats_ref, *, TH, W, C):
    """Pass 1: accumulate per-branch [sum, sum_sq] over all pixels."""
    @pl.when(pl.program_id(0) == 0)
    def _init():
        stats_ref[...] = jnp.zeros_like(stats_ref)

    win = xw_ref[0]                                       # (THp, Wp, C)
    sums, sqs = [], []
    for z in _branch_convs(win, w1_ref, wd_ref, TH, W, C):
        sums.append(jnp.sum(z, axis=0, keepdims=True))     # (1, 64)
        sqs.append(jnp.sum(z * z, axis=0, keepdims=True))  # (1, 64)
    tile_stats = jnp.stack([jnp.concatenate(sums, axis=0),
                            jnp.concatenate(sqs, axis=0)])  # (2, 5, 64)
    stats_ref[...] = stats_ref[...] + tile_stats


def _apply_kernel(xw_ref, w1_ref, wd_ref, scale_ref, shift_ref, w6_ref, b6_ref,
                  out_ref, *, TH, W, C):
    """Pass 2: conv -> folded BN affine -> ReLU -> w6 projection -> sigmoid."""
    win = xw_ref[0]                                       # (THp, Wp, C)
    P = TH * W
    acc = jnp.zeros((P, OC), jnp.float32)
    for b, z in enumerate(_branch_convs(win, w1_ref, wd_ref, TH, W, C)):
        r = jnp.maximum(z * scale_ref[b:b + 1, :] + shift_ref[b:b + 1, :], 0.0)
        acc = acc + r * w6_ref[b:b + 1, :]                 # fold conv6 weight
    # single fused cross-lane reduction over the 64 channels, lane-dense store
    y = jnp.sum(acc.reshape(TH, W, OC), axis=-1) + b6_ref[...]   # (TH, W)
    out_ref[...] = jax.nn.sigmoid(y)[None]                 # (1, TH, W)


# --------------------------------- wrapper --------------------------------------
def _full_spec(a):
    nd = a.ndim
    return pl.BlockSpec(a.shape, lambda g, _nd=nd: (0,) * _nd)


def _pick_row_tile(H, W):
    """Rows per tile: multiple of 8, divides H, ~<=2K pixels, >=2 tiles if possible."""
    budget = max(8, min(64, 2048 // max(W, 1)))
    cands = [th for th in (64, 48, 40, 32, 24, 16, 8)
             if th <= budget and H % th == 0]
    for th in cands:
        if H // th >= 2:
            return th
    if cands:
        return cands[0]
    return H    # TODO(synk): H not a multiple of 8 -> one row-tile per image


def bpb_forward(x_nchw, params):
    """x_nchw: (N, C, H, W) float32  ->  (N, 1, H, W) float32."""
    N, C, H, W = x_nchw.shape
    TH = _pick_row_tile(H, W)
    T = H // TH
    THp = TH + 2 * MAXPAD
    Wp = W + 2 * MAXPAD
    G = N * T

    # glue: NCHW -> padded NHWC -> overlapping row windows (halo baked in so the
    # kernel only needs plain Blocked BlockSpecs and gets auto-pipelined DMAs).
    x = jnp.transpose(x_nchw, (0, 2, 3, 1)).astype(jnp.float32)          # NHWC
    xp = jnp.pad(x, ((0, 0), (MAXPAD, MAXPAD), (MAXPAD, MAXPAD), (0, 0)))
    xw = jnp.concatenate([xp[:, t * TH:t * TH + THp][:, None] for t in range(T)],
                         axis=1)                                          # (N,T,THp,Wp,C)
    xw = xw.reshape(G, THp, Wp, C)

    # glue: weights in kernel-friendly layouts (matmul operands pre-cast to bf16).
    w1 = params['conv1_w'].reshape(OC, C).T.astype(jnp.bfloat16)          # (C, 64)
    wd = jnp.stack([params[f'conv{i}_w'].transpose(2, 3, 1, 0).reshape(9 * C, OC)
                    for i in range(2, 6)]).astype(jnp.bfloat16)           # (4, 9C, 64)
    gamma = jnp.stack([params[f'bn{i}_g'] for i in range(1, 6)])          # (5, 64)
    beta = jnp.stack([params[f'bn{i}_b'] for i in range(1, 6)])           # (5, 64)
    w6 = params['conv6_w'].reshape(5, OC)                                 # (5, 64)
    b6 = params['conv6_b'].reshape(1, 1)                                  # (1, 1)

    xw_spec = pl.BlockSpec((1, THp, Wp, C), lambda g: (g, 0, 0, 0))

    # ---- pass 1: per-branch batch statistics (resident accumulator) -----------
    stats = pl.pallas_call(
        functools.partial(_stats_kernel, TH=TH, W=W, C=C),
        out_shape=jax.ShapeDtypeStruct((2, 5, OC), jnp.float32),
        grid=(G,),
        in_specs=[xw_spec, _full_spec(w1), _full_spec(wd)],
        out_specs=pl.BlockSpec((2, 5, OC), lambda g: (0, 0, 0)),
        compiler_params=pltpu.CompilerParams(
            dimension_semantics=("arbitrary",), vmem_limit_bytes=VMEM_LIMIT),
    )(xw, w1, wd)

    # glue: fold training-mode BN (batch stats, biased var) into scale/shift.
    cnt = jnp.float32(N * H * W)
    mean = stats[0] / cnt
    var = jnp.maximum(stats[1] / cnt - mean * mean, 0.0)
    scale = gamma * jax.lax.rsqrt(var + EPS)                              # (5, 64)
    shift = beta - mean * scale                                           # (5, 64)

    # ---- pass 2: normalize, ReLU, conv6 1x1, sigmoid ---------------------------
    out = pl.pallas_call(
        functools.partial(_apply_kernel, TH=TH, W=W, C=C),
        out_shape=jax.ShapeDtypeStruct((G, TH, W), jnp.float32),
        grid=(G,),
        in_specs=[xw_spec, _full_spec(w1), _full_spec(wd), _full_spec(scale),
                  _full_spec(shift), _full_spec(w6), _full_spec(b6)],
        out_specs=pl.BlockSpec((1, TH, W), lambda g: (g, 0, 0)),
        compiler_params=pltpu.CompilerParams(
            dimension_semantics=("parallel",), vmem_limit_bytes=VMEM_LIMIT),
    )(xw, w1, wd, scale, shift, w6, b6)

    return out.reshape(N, H, W)[:, None, :, :]                            # NCHW


# ----------------------------- reference (pure JAX) ----------------------------
def ref_forward(x, params):
    def conv(x, w, b, dil, pad):
        out = jax.lax.conv_general_dilated(
            x, w, (1, 1), [(pad, pad), (pad, pad)],
            rhs_dilation=(dil, dil),
            dimension_numbers=('NCHW', 'OIHW', 'NCHW'),
            precision=jax.lax.Precision.HIGHEST)
        return out + b[None, :, None, None]

    def bn_relu(z, g, b):
        mean = jnp.mean(z, axis=(0, 2, 3), keepdims=True)
        var = jnp.mean((z - mean) ** 2, axis=(0, 2, 3), keepdims=True)
        zn = (z - mean) / jnp.sqrt(var + EPS)
        return jnp.maximum(zn * g[None, :, None, None] + b[None, :, None, None], 0.0)

    branches = [bn_relu(conv(x, params['conv1_w'], params['conv1_b'], 1, 0),
                        params['bn1_g'], params['bn1_b'])]
    for bi, d in enumerate(DILATIONS):
        i = bi + 2
        branches.append(bn_relu(conv(x, params[f'conv{i}_w'], params[f'conv{i}_b'], d, d),
                                params[f'bn{i}_g'], params[f'bn{i}_b']))
    cat = jnp.concatenate(branches, axis=1)
    y = conv(cat, params['conv6_w'], params['conv6_b'], 1, 0)
    return jax.nn.sigmoid(y)


# ------------------------------- parameter init --------------------------------
def init_params(key, in_ch):
    keys = jax.random.split(key, 24)
    p = {}
    p['conv1_w'] = 0.2 * jax.random.normal(keys[0], (OC, in_ch, 1, 1), jnp.float32)
    p['conv1_b'] = 0.1 * jax.random.normal(keys[1], (OC,), jnp.float32)
    for bi, i in enumerate(range(2, 6)):
        p[f'conv{i}_w'] = 0.2 * jax.random.normal(keys[2 + 2 * bi], (OC, in_ch, 3, 3), jnp.float32)
        p[f'conv{i}_b'] = 0.1 * jax.random.normal(keys[3 + 2 * bi], (OC,), jnp.float32)
    for i in range(1, 6):
        p[f'bn{i}_g'] = 1.0 + 0.1 * jax.random.normal(keys[9 + i], (OC,), jnp.float32)
        p[f'bn{i}_b'] = 0.1 * jax.random.normal(keys[14 + i], (OC,), jnp.float32)
    p['conv6_w'] = 0.2 * jax.random.normal(keys[20], (1, 5 * OC, 1, 1), jnp.float32)
    p['conv6_b'] = 0.1 * jax.random.normal(keys[21], (1,), jnp.float32)
    return p


if __name__ == "__main__":
    key = jax.random.PRNGKey(0)
    k_x, k_p = jax.random.split(key)

    N, C, H, W = 2, 4, 16, 16
    x = jax.random.normal(k_x, (N, C, H, W), jnp.float32)
    params = init_params(k_p, C)

    fwd = jax.jit(bpb_forward)
    out = jax.block_until_ready(fwd(x, params))
    assert out.shape == (N, 1, H, W), out.shape

    ref = jax.block_until_ready(ref_forward(x, params))
    # Kernel matmuls use bf16 operands with f32 accumulation (per perf review);
    # vs the f32 HIGHEST-precision reference the post-sigmoid deviation is ~1e-3.
    np.testing.assert_allclose(np.asarray(out), np.asarray(ref), atol=2e-2, rtol=0)

    print("KERNEL_OK")
</pallas_src>

<mosaic_0001>
module attributes {stable_mosaic.version = 11 : i64} {
  func.func @_stats_kernel(%arg0: i32, %arg1: memref<1x20x28x4xf32, #tpu.memory_space<vmem>>, %arg2: memref<4x64xbf16, #tpu.memory_space<vmem>>, %arg3: memref<4x36x64xbf16, #tpu.memory_space<vmem>>, %arg4: memref<2x5x64xf32, #tpu.memory_space<vmem>>) attributes {dimension_semantics = [#tpu.dimension_semantics<arbitrary>], iteration_bounds = array<i64: 4>, scalar_prefetch = 0 : i64, scratch_operands = 0 : i64, tpu.core_type = #tpu.core_type<tc>, window_params = [{transform_indices = @transform_0, window_bounds = array<i64: 1, 20, 28, 4>}, {pipeline_mode = #tpu.pipeline_mode<synchronous>, transform_indices = @transform_1, window_bounds = array<i64: 4, 64>}, {pipeline_mode = #tpu.pipeline_mode<synchronous>, transform_indices = @transform_2, window_bounds = array<i64: 4, 36, 64>}, {pipeline_mode = #tpu.pipeline_mode<synchronous>, transform_indices = @transform_3, window_bounds = array<i64: 2, 5, 64>}]} {
    %c0_i32 = arith.constant 0 : i32
    %0 = arith.cmpi eq, %arg0, %c0_i32 : i32
    %1 = arith.extui %0 : i1 to i32
    %c0_i32_0 = arith.constant 0 : i32
    %2 = arith.cmpi ne, %1, %c0_i32_0 : i32
    scf.if %2 {
      %cst_35 = arith.constant 0.000000e+00 : f32
      %127 = vector.broadcast %cst_35 : f32 to vector<2x5x64xf32>
      %c0_36 = arith.constant 0 : index
      %c0_37 = arith.constant 0 : index
      %c0_38 = arith.constant 0 : index
      %128 = vector.load %arg4[%c0_36, %c0_37, %c0_38] : memref<2x5x64xf32, #tpu.memory_space<vmem>>, vector<2x5x64xf32>
      tpu.vector_store %arg4[%c0_36, %c0_37, %c0_38], %127 {strides = array<i32>} : memref<2x5x64xf32, #tpu.memory_space<vmem>>, vector<2x5x64xf32>,
    } else {
    }
    %c0 = arith.constant 0 : index
    %c0_1 = arith.constant 0 : index
    %c0_2 = arith.constant 0 : index
    %c0_3 = arith.constant 0 : index
    %3 = vector.load %arg1[%c0, %c0_1, %c0_2, %c0_3] : memref<1x20x28x4xf32, #tpu.memory_space<vmem>>, vector<1x20x28x4xf32>
    %4 = vector.shape_cast %3 : vector<1x20x28x4xf32> to vector<20x28x4xf32>
    %5 = vector.extract_strided_slice %4 {offsets = [6, 6, 0], sizes = [8, 16, 4], strides = [1, 1, 1]} : vector<20x28x4xf32> to vector<8x16x4xf32>
    %6 = vector.shape_cast %5 : vector<8x16x4xf32> to vector<128x4xf32>
    %7 = arith.truncf %6 : vector<128x4xf32> to vector<128x4xbf16>
    %c0_4 = arith.constant 0 : index
    %c0_5 = arith.constant 0 : index
    %8 = vector.load %arg2[%c0_4, %c0_5] : memref<4x64xbf16, #tpu.memory_space<vmem>>, vector<4x64xbf16>
    %cst = arith.constant dense<0.000000e+00> : vector<128x64xf32>
    %9 = tpu.matmul %7, %8, %cst {dimension_numbers = #tpu.dot_dimension_numbers<[1], [0], [0], [1], [0, 0, 1, 1], [], []>} : vector<128x4xbf16>, vector<4x64xbf16>, vector<128x64xf32> -> vector<128x64xf32>
    %cst_6 = arith.constant dense<0.000000e+00> : vector<64xf32>
    %10 = vector.multi_reduction <add>, %9, %cst_6 [0] : vector<128x64xf32> to vector<64xf32>
    %11 = vector.shape_cast %10 : vector<64xf32> to vector<1x64xf32>
    %12 = arith.mulf %9, %9 : vector<128x64xf32>
    %cst_7 = arith.constant dense<0.000000e+00> : vector<64xf32>
    %13 = vector.multi_reduction <add>, %12, %cst_7 [0] : vector<128x64xf32> to vector<64xf32>
    %14 = vector.shape_cast %13 : vector<64xf32> to vector<1x64xf32>
    %15 = vector.extract_strided_slice %4 {offsets = [5, 5, 0], sizes = [8, 16, 4], strides = [1, 1, 1]} : vector<20x28x4xf32> to vector<8x16x4xf32>
    %16 = vector.shape_cast %15 : vector<8x16x4xf32> to vector<128x4xf32>
    %17 = vector.extract_strided_slice %4 {offsets = [5, 6, 0], sizes = [8, 16, 4], strides = [1, 1, 1]} : vector<20x28x4xf32> to vector<8x16x4xf32>
    %18 = vector.shape_cast %17 : vector<8x16x4xf32> to vector<128x4xf32>
    %19 = vector.extract_strided_slice %4 {offsets = [5, 7, 0], sizes = [8, 16, 4], strides = [1, 1, 1]} : vector<20x28x4xf32> to vector<8x16x4xf32>
    %20 = vector.shape_cast %19 : vector<8x16x4xf32> to vector<128x4xf32>
    %21 = vector.extract_strided_slice %4 {offsets = [6, 5, 0], sizes = [8, 16, 4], strides = [1, 1, 1]} : vector<20x28x4xf32> to vector<8x16x4xf32>
    %22 = vector.shape_cast %21 : vector<8x16x4xf32> to vector<128x4xf32>
    %23 = vector.extract_strided_slice %4 {offsets = [6, 7, 0], sizes = [8, 16, 4], strides = [1, 1, 1]} : vector<20x28x4xf32> to vector<8x16x4xf32>
    %24 = vector.shape_cast %23 : vector<8x16x4xf32> to vector<128x4xf32>
    %25 = vector.extract_strided_slice %4 {offsets = [7, 5, 0], sizes = [8, 16, 4], strides = [1, 1, 1]} : vector<20x28x4xf32> to vector<8x16x4xf32>
    %26 = vector.shape_cast %25 : vector<8x16x4xf32> to vector<128x4xf32>
    %27 = vector.extract_strided_slice %4 {offsets = [7, 6, 0], sizes = [8, 16, 4], strides = [1, 1, 1]} : vector<20x28x4xf32> to vector<8x16x4xf32>
    %28 = vector.shape_cast %27 : vector<8x16x4xf32> to vector<128x4xf32>
    %29 = vector.extract_strided_slice %4 {offsets = [7, 7, 0], sizes = [8, 16, 4], strides = [1, 1, 1]} : vector<20x28x4xf32> to vector<8x16x4xf32>
    %30 = vector.shape_cast %29 : vector<8x16x4xf32> to vector<128x4xf32>
    %31 = tpu.concatenate %16, %18, %20, %22, %6, %24, %26, %28, %30 in 1 : vector<128x4xf32>, vector<128x4xf32>, vector<128x4xf32>, vector<128x4xf32>, vector<128x4xf32>, vector<128x4xf32>, vector<128x4xf32>, vector<128x4xf32>, vector<128x4xf32> -> vector<128x36xf32>
    %32 = arith.truncf %31 : vector<128x36xf32> to vector<128x36xbf16>
    %c0_8 = arith.constant 0 : index
    %c0_9 = arith.constant 0 : index
    %c0_10 = arith.constant 0 : index
    %33 = vector.load %arg3[%c0_8, %c0_9, %c0_10] : memref<4x36x64xbf16, #tpu.memory_space<vmem>>, vector<1x36x64xbf16>
    %34 = vector.shape_cast %33 : vector<1x36x64xbf16> to vector<36x64xbf16>
    %cst_11 = arith.constant dense<0.000000e+00> : vector<128x64xf32>
    %35 = tpu.matmul %32, %34, %cst_11 {dimension_numbers = #tpu.dot_dimension_numbers<[1], [0], [0], [1], [0, 0, 1, 1], [], []>} : vector<128x36xbf16>, vector<36x64xbf16>, vector<128x64xf32> -> vector<128x64xf32>
    %cst_12 = arith.constant dense<0.000000e+00> : vector<64xf32>
    %36 = vector.multi_reduction <add>, %35, %cst_12 [0] : vector<128x64xf32> to vector<64xf32>
    %37 = vector.shape_cast %36 : vector<64xf32> to vector<1x64xf32>
    %38 = arith.mulf %35, %35 : vector<128x64xf32>
    %cst_13 = arith.constant dense<0.000000e+00> : vector<64xf32>
    %39 = vector.multi_reduction <add>, %38, %cst_13 [0] : vector<128x64xf32> to vector<64xf32>
    %40 = vector.shape_cast %39 : vector<64xf32> to vector<1x64xf32>
    %41 = vector.extract_strided_slice %4 {offsets = [4, 4, 0], sizes = [8, 16, 4], strides = [1, 1, 1]} : vector<20x28x4xf32> to vector<8x16x4xf32>
    %42 = vector.shape_cast %41 : vector<8x16x4xf32> to vector<128x4xf32>
    %43 = vector.extract_strided_slice %4 {offsets = [4, 6, 0], sizes = [8, 16, 4], strides = [1, 1, 1]} : vector<20x28x4xf32> to vector<8x16x4xf32>
    %44 = vector.shape_cast %43 : vector<8x16x4xf32> to vector<128x4xf32>
    %45 = vector.extract_strided_slice %4 {offsets = [4, 8, 0], sizes = [8, 16, 4], strides = [1, 1, 1]} : vector<20x28x4xf32> to vector<8x16x4xf32>
    %46 = vector.shape_cast %45 : vector<8x16x4xf32> to vector<128x4xf32>
    %47 = vector.extract_strided_slice %4 {offsets = [6, 4, 0], sizes = [8, 16, 4], strides = [1, 1, 1]} : vector<20x28x4xf32> to vector<8x16x4xf32>
    %48 = vector.shape_cast %47 : vector<8x16x4xf32> to vector<128x4xf32>
    %49 = vector.extract_strided_slice %4 {offsets = [6, 8, 0], sizes = [8, 16, 4], strides = [1, 1, 1]} : vector<20x28x4xf32> to vector<8x16x4xf32>
    %50 = vector.shape_cast %49 : vector<8x16x4xf32> to vector<128x4xf32>
    %51 = vector.extract_strided_slice %4 {offsets = [8, 4, 0], sizes = [8, 16, 4], strides = [1, 1, 1]} : vector<20x28x4xf32> to vector<8x16x4xf32>
    %52 = vector.shape_cast %51 : vector<8x16x4xf32> to vector<128x4xf32>
    %53 = vector.extract_strided_slice %4 {offsets = [8, 6, 0], sizes = [8, 16, 4], strides = [1, 1, 1]} : vector<20x28x4xf32> to vector<8x16x4xf32>
    %54 = vector.shape_cast %53 : vector<8x16x4xf32> to vector<128x4xf32>
    %55 = vector.extract_strided_slice %4 {offsets = [8, 8, 0], sizes = [8, 16, 4], strides = [1, 1, 1]} : vector<20x28x4xf32> to vector<8x16x4xf32>
    %56 = vector.shape_cast %55 : vector<8x16x4xf32> to vector<128x4xf32>
    %57 = tpu.concatenate %42, %44, %46, %48, %6, %50, %52, %54, %56 in 1 : vector<128x4xf32>, vector<128x4xf32>, vector<128x4xf32>, vector<128x4xf32>, vector<128x4xf32>, vector<128x4xf32>, vector<128x4xf32>, vector<128x4xf32>, vector<128x4xf32> -> vector<128x36xf32>
    %58 = arith.truncf %57 : vector<128x36xf32> to vector<128x36xbf16>
    %c1 = arith.constant 1 : index
    %c0_14 = arith.constant 0 : index
    %c0_15 = arith.constant 0 : index
    %59 = vector.load %arg3[%c1, %c0_14, %c0_15] : memref<4x36x64xbf16, #tpu.memory_space<vmem>>, vector<1x36x64xbf16>
    %60 = vector.shape_cast %59 : vector<1x36x64xbf16> to vector<36x64xbf16>
    %cst_16 = arith.constant dense<0.000000e+00> : vector<128x64xf32>
    %61 = tpu.matmul %58, %60, %cst_16 {dimension_numbers = #tpu.dot_dimension_numbers<[1], [0], [0], [1], [0, 0, 1, 1], [], []>} : vector<128x36xbf16>, vector<36x64xbf16>, vector<128x64xf32> -> vector<128x64xf32>
    %cst_17 = arith.constant dense<0.000000e+00> : vector<64xf32>
    %62 = vector.multi_reduction <add>, %61, %cst_17 [0] : vector<128x64xf32> to vector<64xf32>
    %63 = vector.shape_cast %62 : vector<64xf32> to vector<1x64xf32>
    %64 = arith.mulf %61, %61 : vector<128x64xf32>
    %cst_18 = arith.constant dense<0.000000e+00> : vector<64xf32>
    %65 = vector.multi_reduction <add>, %64, %cst_18 [0] : vector<128x64xf32> to vector<64xf32>
    %66 = vector.shape_cast %65 : vector<64xf32> to vector<1x64xf32>
    %67 = vector.extract_strided_slice %4 {offsets = [2, 2, 0], sizes = [8, 16, 4], strides = [1, 1, 1]} : vector<20x28x4xf32> to vector<8x16x4xf32>
    %68 = vector.shape_cast %67 : vector<8x16x4xf32> to vector<128x4xf32>
    %69 = vector.extract_strided_slice %4 {offsets = [2, 6, 0], sizes = [8, 16, 4], strides = [1, 1, 1]} : vector<20x28x4xf32> to vector<8x16x4xf32>
    %70 = vector.shape_cast %69 : vector<8x16x4xf32> to vector<128x4xf32>
    %71 = vector.extract_strided_slice %4 {offsets = [2, 10, 0], sizes = [8, 16, 4], strides = [1, 1, 1]} : vector<20x28x4xf32> to vector<8x16x4xf32>
    %72 = vector.shape_cast %71 : vector<8x16x4xf32> to vector<128x4xf32>
    %73 = vector.extract_strided_slice %4 {offsets = [6, 2, 0], sizes = [8, 16, 4], strides = [1, 1, 1]} : vector<20x28x4xf32> to vector<8x16x4xf32>
    %74 = vector.shape_cast %73 : vector<8x16x4xf32> to vector<128x4xf32>
    %75 = vector.extract_strided_slice %4 {offsets = [6, 10, 0], sizes = [8, 16, 4], strides = [1, 1, 1]} : vector<20x28x4xf32> to vector<8x16x4xf32>
    %76 = vector.shape_cast %75 : vector<8x16x4xf32> to vector<128x4xf32>
    %77 = vector.extract_strided_slice %4 {offsets = [10, 2, 0], sizes = [8, 16, 4], strides = [1, 1, 1]} : vector<20x28x4xf32> to vector<8x16x4xf32>
    %78 = vector.shape_cast %77 : vector<8x16x4xf32> to vector<128x4xf32>
    %79 = vector.extract_strided_slice %4 {offsets = [10, 6, 0], sizes = [8, 16, 4], strides = [1, 1, 1]} : vector<20x28x4xf32> to vector<8x16x4xf32>
    %80 = vector.shape_cast %79 : vector<8x16x4xf32> to vector<128x4xf32>
    %81 = vector.extract_strided_slice %4 {offsets = [10, 10, 0], sizes = [8, 16, 4], strides = [1, 1, 1]} : vector<20x28x4xf32> to vector<8x16x4xf32>
    %82 = vector.shape_cast %81 : vector<8x16x4xf32> to vector<128x4xf32>
    %83 = tpu.concatenate %68, %70, %72, %74, %6, %76, %78, %80, %82 in 1 : vector<128x4xf32>, vector<128x4xf32>, vector<128x4xf32>, vector<128x4xf32>, vector<128x4xf32>, vector<128x4xf32>, vector<128x4xf32>, vector<128x4xf32>, vector<128x4xf32> -> vector<128x36xf32>
    %84 = arith.truncf %83 : vector<128x36xf32> to vector<128x36xbf16>
    %c2 = arith.constant 2 : index
    %c0_19 = arith.constant 0 : index
    %c0_20 = arith.constant 0 : index
    %85 = vector.load %arg3[%c2, %c0_19, %c0_20] : memref<4x36x64xbf16, #tpu.memory_space<vmem>>, vector<1x36x64xbf16>
    %86 = vector.shape_cast %85 : vector<1x36x64xbf16> to vector<36x64xbf16>
    %cst_21 = arith.constant dense<0.000000e+00> : vector<128x64xf32>
    %87 = tpu.matmul %84, %86, %cst_21 {dimension_numbers = #tpu.dot_dimension_numbers<[1], [0], [0], [1], [0, 0, 1, 1], [], []>} : vector<128x36xbf16>, vector<36x64xbf16>, vector<128x64xf32> -> vector<128x64xf32>
    %cst_22 = arith.constant dense<0.000000e+00> : vector<64xf32>
    %88 = vector.multi_reduction <add>, %87, %cst_22 [0] : vector<128x64xf32> to vector<64xf32>
    %89 = vector.shape_cast %88 : vector<64xf32> to vector<1x64xf32>
    %90 = arith.mulf %87, %87 : vector<128x64xf32>
    %cst_23 = arith.constant dense<0.000000e+00> : vector<64xf32>
    %91 = vector.multi_reduction <add>, %90, %cst_23 [0] : vector<128x64xf32> to vector<64xf32>
    %92 = vector.shape_cast %91 : vector<64xf32> to vector<1x64xf32>
    %93 = vector.extract_strided_slice %4 {offsets = [0, 0, 0], sizes = [8, 16, 4], strides = [1, 1, 1]} : vector<20x28x4xf32> to vector<8x16x4xf32>
    %94 = vector.shape_cast %93 : vector<8x16x4xf32> to vector<128x4xf32>
    %95 = vector.extract_strided_slice %4 {offsets = [0, 6, 0], sizes = [8, 16, 4], strides = [1, 1, 1]} : vector<20x28x4xf32> to vector<8x16x4xf32>
    %96 = vector.shape_cast %95 : vector<8x16x4xf32> to vector<128x4xf32>
    %97 = vector.extract_strided_slice %4 {offsets = [0, 12, 0], sizes = [8, 16, 4], strides = [1, 1, 1]} : vector<20x28x4xf32> to vector<8x16x4xf32>
    %98 = vector.shape_cast %97 : vector<8x16x4xf32> to vector<128x4xf32>
    %99 = vector.extract_strided_slice %4 {offsets = [6, 0, 0], sizes = [8, 16, 4], strides = [1, 1, 1]} : vector<20x28x4xf32> to vector<8x16x4xf32>
    %100 = vector.shape_cast %99 : vector<8x16x4xf32> to vector<128x4xf32>
    %101 = vector.extract_strided_slice %4 {offsets = [6, 12, 0], sizes = [8, 16, 4], strides = [1, 1, 1]} : vector<20x28x4xf32> to vector<8x16x4xf32>
    %102 = vector.shape_cast %101 : vector<8x16x4xf32> to vector<128x4xf32>
    %103 = vector.extract_strided_slice %4 {offsets = [12, 0, 0], sizes = [8, 16, 4], strides = [1, 1, 1]} : vector<20x28x4xf32> to vector<8x16x4xf32>
    %104 = vector.shape_cast %103 : vector<8x16x4xf32> to vector<128x4xf32>
    %105 = vector.extract_strided_slice %4 {offsets = [12, 6, 0], sizes = [8, 16, 4], strides = [1, 1, 1]} : vector<20x28x4xf32> to vector<8x16x4xf32>
    %106 = vector.shape_cast %105 : vector<8x16x4xf32> to vector<128x4xf32>
    %107 = vector.extract_strided_slice %4 {offsets = [12, 12, 0], sizes = [8, 16, 4], strides = [1, 1, 1]} : vector<20x28x4xf32> to vector<8x16x4xf32>
    %108 = vector.shape_cast %107 : vector<8x16x4xf32> to vector<128x4xf32>
    %109 = tpu.concatenate %94, %96, %98, %100, %6, %102, %104, %106, %108 in 1 : vector<128x4xf32>, vector<128x4xf32>, vector<128x4xf32>, vector<128x4xf32>, vector<128x4xf32>, vector<128x4xf32>, vector<128x4xf32>, vector<128x4xf32>, vector<128x4xf32> -> vector<128x36xf32>
    %110 = arith.truncf %109 : vector<128x36xf32> to vector<128x36xbf16>
    %c3 = arith.constant 3 : index
    %c0_24 = arith.constant 0 : index
    %c0_25 = arith.constant 0 : index
    %111 = vector.load %arg3[%c3, %c0_24, %c0_25] : memref<4x36x64xbf16, #tpu.memory_space<vmem>>, vector<1x36x64xbf16>
    %112 = vector.shape_cast %111 : vector<1x36x64xbf16> to vector<36x64xbf16>
    %cst_26 = arith.constant dense<0.000000e+00> : vector<128x64xf32>
    %113 = tpu.matmul %110, %112, %cst_26 {dimension_numbers = #tpu.dot_dimension_numbers<[1], [0], [0], [1], [0, 0, 1, 1], [], []>} : vector<128x36xbf16>, vector<36x64xbf16>, vector<128x64xf32> -> vector<128x64xf32>
    %cst_27 = arith.constant dense<0.000000e+00> : vector<64xf32>
    %114 = vector.multi_reduction <add>, %113, %cst_27 [0] : vector<128x64xf32> to vector<64xf32>
    %115 = vector.shape_cast %114 : vector<64xf32> to vector<1x64xf32>
    %116 = arith.mulf %113, %113 : vector<128x64xf32>
    %cst_28 = arith.constant dense<0.000000e+00> : vector<64xf32>
    %117 = vector.multi_reduction <add>, %116, %cst_28 [0] : vector<128x64xf32> to vector<64xf32>
    %118 = vector.shape_cast %117 : vector<64xf32> to vector<1x64xf32>
    %119 = tpu.concatenate %11, %37, %63, %89, %115 in 0 : vector<1x64xf32>, vector<1x64xf32>, vector<1x64xf32>, vector<1x64xf32>, vector<1x64xf32> -> vector<5x64xf32>
    %120 = tpu.concatenate %14, %40, %66, %92, %118 in 0 : vector<1x64xf32>, vector<1x64xf32>, vector<1x64xf32>, vector<1x64xf32>, vector<1x64xf32> -> vector<5x64xf32>
    %121 = vector.shape_cast %119 : vector<5x64xf32> to vector<1x5x64xf32>
    %122 = vector.shape_cast %120 : vector<5x64xf32> to vector<1x5x64xf32>
    %123 = tpu.concatenate %121, %122 in 0 : vector<1x5x64xf32>, vector<1x5x64xf32> -> vector<2x5x64xf32>
    %c0_29 = arith.constant 0 : index
    %c0_30 = arith.constant 0 : index
    %c0_31 = arith.constant 0 : index
    %124 = vector.load %arg4[%c0_29, %c0_30, %c0_31] : memref<2x5x64xf32, #tpu.memory_space<vmem>>, vector<2x5x64xf32>
    %125 = arith.addf %124, %123 : vector<2x5x64xf32>
    %c0_32 = arith.constant 0 : index
    %c0_33 = arith.constant 0 : index
    %c0_34 = arith.constant 0 : index
    %126 = vector.load %arg4[%c0_32, %c0_33, %c0_34] : memref<2x5x64xf32, #tpu.memory_space<vmem>>, vector<2x5x64xf32>
    tpu.vector_store %arg4[%c0_32, %c0_33, %c0_34], %125 {strides = array<i32>} : memref<2x5x64xf32, #tpu.memory_space<vmem>>, vector<2x5x64xf32>,
    return
  }
  func.func @transform_0(%arg0: i32) -> (i32, i32, i32, i32) {
    %c0_i32 = arith.constant 0 : i32
    %c0_i32_0 = arith.constant 0 : i32
    %c0_i32_1 = arith.constant 0 : i32
    %c0_i32_2 = arith.constant 0 : i32
    return %arg0, %c0_i32, %c0_i32_0, %c0_i32_1 : i32, i32, i32, i32
  }
  func.func @transform_1(%arg0: i32) -> (i32, i32) {
    %c0_i32 = arith.constant 0 : i32
    %c0_i32_0 = arith.constant 0 : i32
    %c0_i32_1 = arith.constant 0 : i32
    return %c0_i32, %c0_i32_0 : i32, i32
  }
  func.func @transform_2(%arg0: i32) -> (i32, i32, i32) {
    %c0_i32 = arith.constant 0 : i32
    %c0_i32_0 = arith.constant 0 : i32
    %c0_i32_1 = arith.constant 0 : i32
    %c0_i32_2 = arith.constant 0 : i32
    return %c0_i32, %c0_i32_0, %c0_i32_1 : i32, i32, i32
  }
  func.func @transform_3(%arg0: i32) -> (i32, i32, i32) {
    %c0_i32 = arith.constant 0 : i32
    %c0_i32_0 = arith.constant 0 : i32
    %c0_i32_1 = arith.constant 0 : i32
    %c0_i32_2 = arith.constant 0 : i32
    return %c0_i32, %c0_i32_0, %c0_i32_1 : i32, i32, i32
  }
}

module attributes {stable_mosaic.version = 11 : i64} {
  func.func @_apply_kernel(%arg0: i32, %arg1: memref<1x20x28x4xf32, #tpu.memory_space<vmem>>, %arg2: memref<4x64xbf16, #tpu.memory_space<vmem>>, %arg3: memref<4x36x64xbf16, #tpu.memory_space<vmem>>, %arg4: memref<5x64xf32, #tpu.memory_space<vmem>>, %arg5: memref<5x64xf32, #tpu.memory_space<vmem>>, %arg6: memref<5x64xf32, #tpu.memory_space<vmem>>, %arg7: memref<1x1xf32, #tpu.memory_space<vmem>>, %arg8: memref<1x8x16xf32, #tpu.memory_space<vmem>>) attributes {dimension_semantics = [#tpu.dimension_semantics<parallel>], iteration_bounds = array<i64: 4>, scalar_prefetch = 0 : i64, scratch_operands = 0 : i64, tpu.core_type = #tpu.core_type<tc>, window_params = [{transform_indices = @transform_0, window_bounds = array<i64: 1, 20, 28, 4>}, {pipeline_mode = #tpu.pipeline_mode<synchronous>, transform_indices = @transform_1, window_bounds = array<i64: 4, 64>}, {pipeline_mode = #tpu.pipeline_mode<synchronous>, transform_indices = @transform_2, window_bounds = array<i64: 4, 36, 64>}, {pipeline_mode = #tpu.pipeline_mode<synchronous>, transform_indices = @transform_3, window_bounds = array<i64: 5, 64>}, {pipeline_mode = #tpu.pipeline_mode<synchronous>, transform_indices = @transform_4, window_bounds = array<i64: 5, 64>}, {pipeline_mode = #tpu.pipeline_mode<synchronous>, transform_indices = @transform_5, window_bounds = array<i64: 5, 64>}, {pipeline_mode = #tpu.pipeline_mode<synchronous>, transform_indices = @transform_6, window_bounds = array<i64: 1, 1>}, {transform_indices = @transform_7, window_bounds = array<i64: 1, 8, 16>}]} {
    %c0 = arith.constant 0 : index
    %c0_0 = arith.constant 0 : index
    %c0_1 = arith.constant 0 : index
    %c0_2 = arith.constant 0 : index
    %0 = vector.load %arg1[%c0, %c0_0, %c0_1, %c0_2] : memref<1x20x28x4xf32, #tpu.memory_space<vmem>>, vector<1x20x28x4xf32>
    %1 = vector.shape_cast %0 : vector<1x20x28x4xf32> to vector<20x28x4xf32>
    %cst = arith.constant 0.000000e+00 : f32
    %2 = vector.broadcast %cst : f32 to vector<128x64xf32>
    %3 = vector.extract_strided_slice %1 {offsets = [6, 6, 0], sizes = [8, 16, 4], strides = [1, 1, 1]} : vector<20x28x4xf32> to vector<8x16x4xf32>
    %4 = vector.shape_cast %3 : vector<8x16x4xf32> to vector<128x4xf32>
    %5 = arith.truncf %4 : vector<128x4xf32> to vector<128x4xbf16>
    %c0_3 = arith.constant 0 : index
    %c0_4 = arith.constant 0 : index
    %6 = vector.load %arg2[%c0_3, %c0_4] : memref<4x64xbf16, #tpu.memory_space<vmem>>, vector<4x64xbf16>
    %cst_5 = arith.constant dense<0.000000e+00> : vector<128x64xf32>
    %7 = tpu.matmul %5, %6, %cst_5 {dimension_numbers = #tpu.dot_dimension_numbers<[1], [0], [0], [1], [0, 0, 1, 1], [], []>} : vector<128x4xbf16>, vector<4x64xbf16>, vector<128x64xf32> -> vector<128x64xf32>
    %c0_6 = arith.constant 0 : index
    %c0_7 = arith.constant 0 : index
    %8 = vector.load %arg4[%c0_6, %c0_7] : memref<5x64xf32, #tpu.memory_space<vmem>>, vector<1x64xf32>
    %9 = vector.broadcast %8 : vector<1x64xf32> to vector<128x64xf32>
    %10 = arith.mulf %7, %9 : vector<128x64xf32>
    %c0_8 = arith.constant 0 : index
    %c0_9 = arith.constant 0 : index
    %11 = vector.load %arg5[%c0_8, %c0_9] : memref<5x64xf32, #tpu.memory_space<vmem>>, vector<1x64xf32>
    %12 = vector.broadcast %11 : vector<1x64xf32> to vector<128x64xf32>
    %13 = arith.addf %10, %12 : vector<128x64xf32>
    %cst_10 = arith.constant 0.000000e+00 : f32
    %14 = vector.broadcast %cst_10 : f32 to vector<128x64xf32>
    %15 = arith.maximumf %13, %14 : vector<128x64xf32>
    %c0_11 = arith.constant 0 : index
    %c0_12 = arith.constant 0 : index
    %16 = vector.load %arg6[%c0_11, %c0_12] : memref<5x64xf32, #tpu.memory_space<vmem>>, vector<1x64xf32>
    %17 = vector.broadcast %16 : vector<1x64xf32> to vector<128x64xf32>
    %18 = arith.mulf %15, %17 : vector<128x64xf32>
    %19 = arith.addf %2, %18 : vector<128x64xf32>
    %20 = vector.extract_strided_slice %1 {offsets = [5, 5, 0], sizes = [8, 16, 4], strides = [1, 1, 1]} : vector<20x28x4xf32> to vector<8x16x4xf32>
    %21 = vector.shape_cast %20 : vector<8x16x4xf32> to vector<128x4xf32>
    %22 = vector.extract_strided_slice %1 {offsets = [5, 6, 0], sizes = [8, 16, 4], strides = [1, 1, 1]} : vector<20x28x4xf32> to vector<8x16x4xf32>
    %23 = vector.shape_cast %22 : vector<8x16x4xf32> to vector<128x4xf32>
    %24 = vector.extract_strided_slice %1 {offsets = [5, 7, 0], sizes = [8, 16, 4], strides = [1, 1, 1]} : vector<20x28x4xf32> to vector<8x16x4xf32>
    %25 = vector.shape_cast %24 : vector<8x16x4xf32> to vector<128x4xf32>
    %26 = vector.extract_strided_slice %1 {offsets = [6, 5, 0], sizes = [8, 16, 4], strides = [1, 1, 1]} : vector<20x28x4xf32> to vector<8x16x4xf32>
    %27 = vector.shape_cast %26 : vector<8x16x4xf32> to vector<128x4xf32>
    %28 = vector.extract_strided_slice %1 {offsets = [6, 7, 0], sizes = [8, 16, 4], strides = [1, 1, 1]} : vector<20x28x4xf32> to vector<8x16x4xf32>
    %29 = vector.shape_cast %28 : vector<8x16x4xf32> to vector<128x4xf32>
    %30 = vector.extract_strided_slice %1 {offsets = [7, 5, 0], sizes = [8, 16, 4], strides = [1, 1, 1]} : vector<20x28x4xf32> to vector<8x16x4xf32>
    %31 = vector.shape_cast %30 : vector<8x16x4xf32> to vector<128x4xf32>
    %32 = vector.extract_strided_slice %1 {offsets = [7, 6, 0], sizes = [8, 16, 4], strides = [1, 1, 1]} : vector<20x28x4xf32> to vector<8x16x4xf32>
    %33 = vector.shape_cast %32 : vector<8x16x4xf32> to vector<128x4xf32>
    %34 = vector.extract_strided_slice %1 {offsets = [7, 7, 0], sizes = [8, 16, 4], strides = [1, 1, 1]} : vector<20x28x4xf32> to vector<8x16x4xf32>
    %35 = vector.shape_cast %34 : vector<8x16x4xf32> to vector<128x4xf32>
    %36 = tpu.concatenate %21, %23, %25, %27, %4, %29, %31, %33, %35 in 1 : vector<128x4xf32>, vector<128x4xf32>, vector<128x4xf32>, vector<128x4xf32>, vector<128x4xf32>, vector<128x4xf32>, vector<128x4xf32>, vector<128x4xf32>, vector<128x4xf32> -> vector<128x36xf32>
    %37 = arith.truncf %36 : vector<128x36xf32> to vector<128x36xbf16>
    %c0_13 = arith.constant 0 : index
    %c0_14 = arith.constant 0 : index
    %c0_15 = arith.constant 0 : index
    %38 = vector.load %arg3[%c0_13, %c0_14, %c0_15] : memref<4x36x64xbf16, #tpu.memory_space<vmem>>, vector<1x36x64xbf16>
    %39 = vector.shape_cast %38 : vector<1x36x64xbf16> to vector<36x64xbf16>
    %cst_16 = arith.constant dense<0.000000e+00> : vector<128x64xf32>
    %40 = tpu.matmul %37, %39, %cst_16 {dimension_numbers = #tpu.dot_dimension_numbers<[1], [0], [0], [1], [0, 0, 1, 1], [], []>} : vector<128x36xbf16>, vector<36x64xbf16>, vector<128x64xf32> -> vector<128x64xf32>
    %c1 = arith.constant 1 : index
    %c0_17 = arith.constant 0 : index
    %41 = vector.load %arg4[%c1, %c0_17] : memref<5x64xf32, #tpu.memory_space<vmem>>, vector<1x64xf32>
    %42 = vector.broadcast %41 : vector<1x64xf32> to vector<128x64xf32>
    %43 = arith.mulf %40, %42 : vector<128x64xf32>
    %c1_18 = arith.constant 1 : index
    %c0_19 = arith.constant 0 : index
    %44 = vector.load %arg5[%c1_18, %c0_19] : memref<5x64xf32, #tpu.memory_space<vmem>>, vector<1x64xf32>
    %45 = vector.broadcast %44 : vector<1x64xf32> to vector<128x64xf32>
    %46 = arith.addf %43, %45 : vector<128x64xf32>
    %cst_20 = arith.constant 0.000000e+00 : f32
    %47 = vector.broadcast %cst_20 : f32 to vector<128x64xf32>
    %48 = arith.maximumf %46, %47 : vector<128x64xf32>
    %c1_21 = arith.constant 1 : index
    %c0_22 = arith.constant 0 : index
    %49 = vector.load %arg6[%c1_21, %c0_22] : memref<5x64xf32, #tpu.memory_space<vmem>>, vector<1x64xf32>
    %50 = vector.broadcast %49 : vector<1x64xf32> to vector<128x64xf32>
    %51 = arith.mulf %48, %50 : vector<128x64xf32>
    %52 = arith.addf %19, %51 : vector<128x64xf32>
    %53 = vector.extract_strided_slice %1 {offsets = [4, 4, 0], sizes = [8, 16, 4], strides = [1, 1, 1]} : vector<20x28x4xf32> to vector<8x16x4xf32>
    %54 = vector.shape_cast %53 : vector<8x16x4xf32> to vector<128x4xf32>
    %55 = vector.extract_strided_slice %1 {offsets = [4, 6, 0], sizes = [8, 16, 4], strides = [1, 1, 1]} : vector<20x28x4xf32> to vector<8x16x4xf32>
    %56 = vector.shape_cast %55 : vector<8x16x4xf32> to vector<128x4xf32>
    %57 = vector.extract_strided_slice %1 {offsets = [4, 8, 0], sizes = [8, 16, 4], strides = [1, 1, 1]} : vector<20x28x4xf32> to vector<8x16x4xf32>
    %58 = vector.shape_cast %57 : vector<8x16x4xf32> to vector<128x4xf32>
    %59 = vector.extract_strided_slice %1 {offsets = [6, 4, 0], sizes = [8, 16, 4], strides = [1, 1, 1]} : vector<20x28x4xf32> to vector<8x16x4xf32>
    %60 = vector.shape_cast %59 : vector<8x16x4xf32> to vector<128x4xf32>
    %61 = vector.extract_strided_slice %1 {offsets = [6, 8, 0], sizes = [8, 16, 4], strides = [1, 1, 1]} : vector<20x28x4xf32> to vector<8x16x4xf32>
    %62 = vector.shape_cast %61 : vector<8x16x4xf32> to vector<128x4xf32>
    %63 = vector.extract_strided_slice %1 {offsets = [8, 4, 0], sizes = [8, 16, 4], strides = [1, 1, 1]} : vector<20x28x4xf32> to vector<8x16x4xf32>
    %64 = vector.shape_cast %63 : vector<8x16x4xf32> to vector<128x4xf32>
    %65 = vector.extract_strided_slice %1 {offsets = [8, 6, 0], sizes = [8, 16, 4], strides = [1, 1, 1]} : vector<20x28x4xf32> to vector<8x16x4xf32>
    %66 = vector.shape_cast %65 : vector<8x16x4xf32> to vector<128x4xf32>
    %67 = vector.extract_strided_slice %1 {offsets = [8, 8, 0], sizes = [8, 16, 4], strides = [1, 1, 1]} : vector<20x28x4xf32> to vector<8x16x4xf32>
    %68 = vector.shape_cast %67 : vector<8x16x4xf32> to vector<128x4xf32>
    %69 = tpu.concatenate %54, %56, %58, %60, %4, %62, %64, %66, %68 in 1 : vector<128x4xf32>, vector<128x4xf32>, vector<128x4xf32>, vector<128x4xf32>, vector<128x4xf32>, vector<128x4xf32>, vector<128x4xf32>, vector<128x4xf32>, vector<128x4xf32> -> vector<128x36xf32>
    %70 = arith.truncf %69 : vector<128x36xf32> to vector<128x36xbf16>
    %c1_23 = arith.constant 1 : index
    %c0_24 = arith.constant 0 : index
    %c0_25 = arith.constant 0 : index
    %71 = vector.load %arg3[%c1_23, %c0_24, %c0_25] : memref<4x36x64xbf16, #tpu.memory_space<vmem>>, vector<1x36x64xbf16>
    %72 = vector.shape_cast %71 : vector<1x36x64xbf16> to vector<36x64xbf16>
    %cst_26 = arith.constant dense<0.000000e+00> : vector<128x64xf32>
    %73 = tpu.matmul %70, %72, %cst_26 {dimension_numbers = #tpu.dot_dimension_numbers<[1], [0], [0], [1], [0, 0, 1, 1], [], []>} : vector<128x36xbf16>, vector<36x64xbf16>, vector<128x64xf32> -> vector<128x64xf32>
    %c2 = arith.constant 2 : index
    %c0_27 = arith.constant 0 : index
    %74 = vector.load %arg4[%c2, %c0_27] : memref<5x64xf32, #tpu.memory_space<vmem>>, vector<1x64xf32>
    %75 = vector.broadcast %74 : vector<1x64xf32> to vector<128x64xf32>
    %76 = arith.mulf %73, %75 : vector<128x64xf32>
    %c2_28 = arith.constant 2 : index
    %c0_29 = arith.constant 0 : index
    %77 = vector.load %arg5[%c2_28, %c0_29] : memref<5x64xf32, #tpu.memory_space<vmem>>, vector<1x64xf32>
    %78 = vector.broadcast %77 : vector<1x64xf32> to vector<128x64xf32>
    %79 = arith.addf %76, %78 : vector<128x64xf32>
    %cst_30 = arith.constant 0.000000e+00 : f32
    %80 = vector.broadcast %cst_30 : f32 to vector<128x64xf32>
    %81 = arith.maximumf %79, %80 : vector<128x64xf32>
    %c2_31 = arith.constant 2 : index
    %c0_32 = arith.constant 0 : index
    %82 = vector.load %arg6[%c2_31, %c0_32] : memref<5x64xf32, #tpu.memory_space<vmem>>, vector<1x64xf32>
    %83 = vector.broadcast %82 : vector<1x64xf32> to vector<128x64xf32>
    %84 = arith.mulf %81, %83 : vector<128x64xf32>
    %85 = arith.addf %52, %84 : vector<128x64xf32>
    %86 = vector.extract_strided_slice %1 {offsets = [2, 2, 0], sizes = [8, 16, 4], strides = [1, 1, 1]} : vector<20x28x4xf32> to vector<8x16x4xf32>
    %87 = vector.shape_cast %86 : vector<8x16x4xf32> to vector<128x4xf32>
    %88 = vector.extract_strided_slice %1 {offsets = [2, 6, 0], sizes = [8, 16, 4], strides = [1, 1, 1]} : vector<20x28x4xf32> to vector<8x16x4xf32>
    %89 = vector.shape_cast %88 : vector<8x16x4xf32> to vector<128x4xf32>
    %90 = vector.extract_strided_slice %1 {offsets = [2, 10, 0], sizes = [8, 16, 4], strides = [1, 1, 1]} : vector<20x28x4xf32> to vector<8x16x4xf32>
    %91 = vector.shape_cast %90 : vector<8x16x4xf32> to vector<128x4xf32>
    %92 = vector.extract_strided_slice %1 {offsets = [6, 2, 0], sizes = [8, 16, 4], strides = [1, 1, 1]} : vector<20x28x4xf32> to vector<8x16x4xf32>
    %93 = vector.shape_cast %92 : vector<8x16x4xf32> to vector<128x4xf32>
    %94 = vector.extract_strided_slice %1 {offsets = [6, 10, 0], sizes = [8, 16, 4], strides = [1, 1, 1]} : vector<20x28x4xf32> to vector<8x16x4xf32>
    %95 = vector.shape_cast %94 : vector<8x16x4xf32> to vector<128x4xf32>
    %96 = vector.extract_strided_slice %1 {offsets = [10, 2, 0], sizes = [8, 16, 4], strides = [1, 1, 1]} : vector<20x28x4xf32> to vector<8x16x4xf32>
    %97 = vector.shape_cast %96 : vector<8x16x4xf32> to vector<128x4xf32>
    %98 = vector.extract_strided_slice %1 {offsets = [10, 6, 0], sizes = [8, 16, 4], strides = [1, 1, 1]} : vector<20x28x4xf32> to vector<8x16x4xf32>
    %99 = vector.shape_cast %98 : vector<8x16x4xf32> to vector<128x4xf32>
    %100 = vector.extract_strided_slice %1 {offsets = [10, 10, 0], sizes = [8, 16, 4], strides = [1, 1, 1]} : vector<20x28x4xf32> to vector<8x16x4xf32>
    %101 = vector.shape_cast %100 : vector<8x16x4xf32> to vector<128x4xf32>
    %102 = tpu.concatenate %87, %89, %91, %93, %4, %95, %97, %99, %101 in 1 : vector<128x4xf32>, vector<128x4xf32>, vector<128x4xf32>, vector<128x4xf32>, vector<128x4xf32>, vector<128x4xf32>, vector<128x4xf32>, vector<128x4xf32>, vector<128x4xf32> -> vector<128x36xf32>
    %103 = arith.truncf %102 : vector<128x36xf32> to vector<128x36xbf16>
    %c2_33 = arith.constant 2 : index
    %c0_34 = arith.constant 0 : index
    %c0_35 = arith.constant 0 : index
    %104 = vector.load %arg3[%c2_33, %c0_34, %c0_35] : memref<4x36x64xbf16, #tpu.memory_space<vmem>>, vector<1x36x64xbf16>
    %105 = vector.shape_cast %104 : vector<1x36x64xbf16> to vector<36x64xbf16>
    %cst_36 = arith.constant dense<0.000000e+00> : vector<128x64xf32>
    %106 = tpu.matmul %103, %105, %cst_36 {dimension_numbers = #tpu.dot_dimension_numbers<[1], [0], [0], [1], [0, 0, 1, 1], [], []>} : vector<128x36xbf16>, vector<36x64xbf16>, vector<128x64xf32> -> vector<128x64xf32>
    %c3 = arith.constant 3 : index
    %c0_37 = arith.constant 0 : index
    %107 = vector.load %arg4[%c3, %c0_37] : memref<5x64xf32, #tpu.memory_space<vmem>>, vector<1x64xf32>
    %108 = vector.broadcast %107 : vector<1x64xf32> to vector<128x64xf32>
    %109 = arith.mulf %106, %108 : vector<128x64xf32>
    %c3_38 = arith.constant 3 : index
    %c0_39 = arith.constant 0 : index
    %110 = vector.load %arg5[%c3_38, %c0_39] : memref<5x64xf32, #tpu.memory_space<vmem>>, vector<1x64xf32>
    %111 = vector.broadcast %110 : vector<1x64xf32> to vector<128x64xf32>
    %112 = arith.addf %109, %111 : vector<128x64xf32>
    %cst_40 = arith.constant 0.000000e+00 : f32
    %113 = vector.broadcast %cst_40 : f32 to vector<128x64xf32>
    %114 = arith.maximumf %112, %113 : vector<128x64xf32>
    %c3_41 = arith.constant 3 : index
    %c0_42 = arith.constant 0 : index
    %115 = vector.load %arg6[%c3_41, %c0_42] : memref<5x64xf32, #tpu.memory_space<vmem>>, vector<1x64xf32>
    %116 = vector.broadcast %115 : vector<1x64xf32> to vector<128x64xf32>
    %117 = arith.mulf %114, %116 : vector<128x64xf32>
    %118 = arith.addf %85, %117 : vector<128x64xf32>
    %119 = vector.extract_strided_slice %1 {offsets = [0, 0, 0], sizes = [8, 16, 4], strides = [1, 1, 1]} : vector<20x28x4xf32> to vector<8x16x4xf32>
    %120 = vector.shape_cast %119 : vector<8x16x4xf32> to vector<128x4xf32>
    %121 = vector.extract_strided_slice %1 {offsets = [0, 6, 0], sizes = [8, 16, 4], strides = [1, 1, 1]} : vector<20x28x4xf32> to vector<8x16x4xf32>
    %122 = vector.shape_cast %121 : vector<8x16x4xf32> to vector<128x4xf32>
    %123 = vector.extract_strided_slice %1 {offsets = [0, 12, 0], sizes = [8, 16, 4], strides = [1, 1, 1]} : vector<20x28x4xf32> to vector<8x16x4xf32>
    %124 = vector.shape_cast %123 : vector<8x16x4xf32> to vector<128x4xf32>
    %125 = vector.extract_strided_slice %1 {offsets = [6, 0, 0], sizes = [8, 16, 4], strides = [1, 1, 1]} : vector<20x28x4xf32> to vector<8x16x4xf32>
    %126 = vector.shape_cast %125 : vector<8x16x4xf32> to vector<128x4xf32>
    %127 = vector.extract_strided_slice %1 {offsets = [6, 12, 0], sizes = [8, 16, 4], strides = [1, 1, 1]} : vector<20x28x4xf32> to vector<8x16x4xf32>
    %128 = vector.shape_cast %127 : vector<8x16x4xf32> to vector<128x4xf32>
    %129 = vector.extract_strided_slice %1 {offsets = [12, 0, 0], sizes = [8, 16, 4], strides = [1, 1, 1]} : vector<20x28x4xf32> to vector<8x16x4xf32>
    %130 = vector.shape_cast %129 : vector<8x16x4xf32> to vector<128x4xf32>
    %131 = vector.extract_strided_slice %1 {offsets = [12, 6, 0], sizes = [8, 16, 4], strides = [1, 1, 1]} : vector<20x28x4xf32> to vector<8x16x4xf32>
    %132 = vector.shape_cast %131 : vector<8x16x4xf32> to vector<128x4xf32>
    %133 = vector.extract_strided_slice %1 {offsets = [12, 12, 0], sizes = [8, 16, 4], strides = [1, 1, 1]} : vector<20x28x4xf32> to vector<8x16x4xf32>
    %134 = vector.shape_cast %133 : vector<8x16x4xf32> to vector<128x4xf32>
    %135 = tpu.concatenate %120, %122, %124, %126, %4, %128, %130, %132, %134 in 1 : vector<128x4xf32>, vector<128x4xf32>, vector<128x4xf32>, vector<128x4xf32>, vector<128x4xf32>, vector<128x4xf32>, vector<128x4xf32>, vector<128x4xf32>, vector<128x4xf32> -> vector<128x36xf32>
    %136 = arith.truncf %135 : vector<128x36xf32> to vector<128x36xbf16>
    %c3_43 = arith.constant 3 : index
    %c0_44 = arith.constant 0 : index
    %c0_45 = arith.constant 0 : index
    %137 = vector.load %arg3[%c3_43, %c0_44, %c0_45] : memref<4x36x64xbf16, #tpu.memory_space<vmem>>, vector<1x36x64xbf16>
    %138 = vector.shape_cast %137 : vector<1x36x64xbf16> to vector<36x64xbf16>
    %cst_46 = arith.constant dense<0.000000e+00> : vector<128x64xf32>
    %139 = tpu.matmul %136, %138, %cst_46 {dimension_numbers = #tpu.dot_dimension_numbers<[1], [0], [0], [1], [0, 0, 1, 1], [], []>} : vector<128x36xbf16>, vector<36x64xbf16>, vector<128x64xf32> -> vector<128x64xf32>
    %c4 = arith.constant 4 : index
    %c0_47 = arith.constant 0 : index
    %140 = vector.load %arg4[%c4, %c0_47] : memref<5x64xf32, #tpu.memory_space<vmem>>, vector<1x64xf32>
    %141 = vector.broadcast %140 : vector<1x64xf32> to vector<128x64xf32>
    %142 = arith.mulf %139, %141 : vector<128x64xf32>
    %c4_48 = arith.constant 4 : index
    %c0_49 = arith.constant 0 : index
    %143 = vector.load %arg5[%c4_48, %c0_49] : memref<5x64xf32, #tpu.memory_space<vmem>>, vector<1x64xf32>
    %144 = vector.broadcast %143 : vector<1x64xf32> to vector<128x64xf32>
    %145 = arith.addf %142, %144 : vector<128x64xf32>
    %cst_50 = arith.constant 0.000000e+00 : f32
    %146 = vector.broadcast %cst_50 : f32 to vector<128x64xf32>
    %147 = arith.maximumf %145, %146 : vector<128x64xf32>
    %c4_51 = arith.constant 4 : index
    %c0_52 = arith.constant 0 : index
    %148 = vector.load %arg6[%c4_51, %c0_52] : memref<5x64xf32, #tpu.memory_space<vmem>>, vector<1x64xf32>
    %149 = vector.broadcast %148 : vector<1x64xf32> to vector<128x64xf32>
    %150 = arith.mulf %147, %149 : vector<128x64xf32>
    %151 = arith.addf %118, %150 : vector<128x64xf32>
    %152 = vector.shape_cast %151 : vector<128x64xf32> to vector<8x16x64xf32>
    %cst_53 = arith.constant dense<0.000000e+00> : vector<8x16xf32>
    %153 = vector.multi_reduction <add>, %152, %cst_53 [2] : vector<8x16x64xf32> to vector<8x16xf32>
    %c0_54 = arith.constant 0 : index
    %c0_55 = arith.constant 0 : index
    %154 = vector.load %arg7[%c0_54, %c0_55] : memref<1x1xf32, #tpu.memory_space<vmem>>, vector<1x1xf32>
    %155 = vector.broadcast %154 : vector<1x1xf32> to vector<8x16xf32>
    %156 = arith.addf %153, %155 : vector<8x16xf32>
    %157 = arith.negf %156 : vector<8x16xf32>
    %158 = math.exp %157 : vector<8x16xf32>
    %cst_56 = arith.constant 1.000000e+00 : f32
    %159 = vector.broadcast %cst_56 : f32 to vector<8x16xf32>
    %160 = arith.addf %159, %158 : vector<8x16xf32>
    %161 = arith.divf %159, %160 : vector<8x16xf32>
    %162 = vector.shape_cast %161 : vector<8x16xf32> to vector<1x8x16xf32>
    %c0_57 = arith.constant 0 : index
    %c0_58 = arith.constant 0 : index
    %c0_59 = arith.constant 0 : index
    %163 = vector.load %arg8[%c0_57, %c0_58, %c0_59] : memref<1x8x16xf32, #tpu.memory_space<vmem>>, vector<1x8x16xf32>
    tpu.vector_store %arg8[%c0_57, %c0_58, %c0_59], %162 {strides = array<i32>} : memref<1x8x16xf32, #tpu.memory_space<vmem>>, vector<1x8x16xf32>,
    return
  }
  func.func @transform_0(%arg0: i32) -> (i32, i32, i32, i32) {
    %c0_i32 = arith.constant 0 : i32
    %c0_i32_0 = arith.constant 0 : i32
    %c0_i32_1 = arith.constant 0 : i32
    %c0_i32_2 = arith.constant 0 : i32
    return %arg0, %c0_i32, %c0_i32_0, %c0_i32_1 : i32, i32, i32, i32
  }
  func.func @transform_1(%arg0: i32) -> (i32, i32) {
    %c0_i32 = arith.constant 0 : i32
    %c0_i32_0 = arith.constant 0 : i32
    %c0_i32_1 = arith.constant 0 : i32
    return %c0_i32, %c0_i32_0 : i32, i32
  }
  func.func @transform_2(%arg0: i32) -> (i32, i32, i32) {
    %c0_i32 = arith.constant 0 : i32
    %c0_i32_0 = arith.constant 0 : i32
    %c0_i32_1 = arith.constant 0 : i32
    %c0_i32_2 = arith.constant 0 : i32
    return %c0_i32, %c0_i32_0, %c0_i32_1 : i32, i32, i32
  }
  func.func @transform_3(%arg0: i32) -> (i32, i32) {
    %c0_i32 = arith.constant 0 : i32
    %c0_i32_0 = arith.constant 0 : i32
    %c0_i32_1 = arith.constant 0 : i32
    return %c0_i32, %c0_i32_0 : i32, i32
  }
  func.func @transform_4(%arg0: i32) -> (i32, i32) {
    %c0_i32 = arith.constant 0 : i32
    %c0_i32_0 = arith.constant 0 : i32
    %c0_i32_1 = arith.constant 0 : i32
    return %c0_i32, %c0_i32_0 : i32, i32
  }
  func.func @transform_5(%arg0: i32) -> (i32, i32) {
    %c0_i32 = arith.constant 0 : i32
    %c0_i32_0 = arith.constant 0 : i32
    %c0_i32_1 = arith.constant 0 : i32
    return %c0_i32, %c0_i32_0 : i32, i32
  }
  func.func @transform_6(%arg0: i32) -> (i32, i32) {
    %c0_i32 = arith.constant 0 : i32
    %c0_i32_0 = arith.constant 0 : i32
    %c0_i32_1 = arith.constant 0 : i32
    return %c0_i32, %c0_i32_0 : i32, i32
  }
  func.func @transform_7(%arg0: i32) -> (i32, i32, i32) {
    %c0_i32 = arith.constant 0 : i32
    %c0_i32_0 = arith.constant 0 : i32
    %c0_i32_1 = arith.constant 0 : i32
    return %arg0, %c0_i32, %c0_i32_0 : i32, i32, i32
  }
}

</mosaic_0001>

<llo_original>
// kernel: bpb_forward.2
$region0: #{bpb_forward.2}
  #allocation0 [shape = 'u32[]', space=smem, size = 0x4, offset = 0x4, fixed_abs, tag = 'smem constant byte address 0x4 - core index']
  #allocation1 [shape = 'u32[144,128]{1,0:T(1,128)}', space=vmem, size = 0x12000, scoped, tag = 'internal scratch']
  %s0 = inlined_call_operand.vmem [shape: f32[4,20,28,4], index: 0, kind: input, shape index: {}]
  %s1 = inlined_call_operand.vmem [shape: bf16[4,64], index: 1, kind: input, shape index: {}]
  %s2 = inlined_call_operand.vmem [shape: bf16[4,36,64], index: 2, kind: input, shape index: {}]
  %s3 = inlined_call_operand.vmem [shape: f32[2,5,64], index: 3, kind: output, shape index: {}]
  %s4 = sld [smem:[#allocation0]]
  $region49: #{bpb_forward.2} parent=0
    _
  %s6 = ssub.s32 1, %s4
  %s7 = scalar_select 0, %s6, %s4
  loop: start=0, step=1, limit=6
  $region2: #{bpb_forward.2} parent=0 // loop_pre_header
    _
  $region3: #{bpb_forward.2} parent=0 // loop_header
    %s9 = sphi 0, %s13
    %p10 = scmp.ge.s32.totalorder %s9, 6
    %s19 = sphi 0, %s21
    %s22 = sphi 0, %s19
    %s23 = sphi 0, %s22
    %s39 = sphi 0, %s23
    %s43 = sphi 0, %s43
    %s45 = sphi 0, %s43
    %s46 = sphi 0, %s45
    %s60 = sphi 0, %s46
    %s64 = sphi 0, %s64
    %s66 = sphi 0, %s64
    %s67 = sphi 0, %s66
    %s81 = sphi 0, %s67
    %s85 = sphi 0, %s85
    %s87 = sphi 0, %s85
    %s88 = sphi 0, %s87
    %s102 = sphi 0, %s88
  $region4: #{bpb_forward.2} parent=0 // loop_header_branch
    %12 = sbr.rel (%p10) target = $region8
  $region5: #{bpb_forward.2} parent=0 // loop_body
    %s14 = ssub.s32 %s9, 1
    %s15 = ssub.s32 %s9, 2
    %s16 = sadd.s32 %s9, 1
    %s17 = ssub.s32 %s9, %s16
    %p18 = scmp.eq.s32.totalorder %s17, 0
    %s20 = sadd.s32 %s19, 1
    %s21 = scalar_select %p18, %s19, %s20
    %p24 = pneg %p18
    %p25 = scmp.eq.s32.totalorder %s9, 3
    %p26 = por %p24, %p25
    %p27 = scmp.ne.s32.totalorder %s19, %s22
    %p28 = scmp.eq.s32.totalorder %s9, 0
    %p29 = por %p27, %p28
    %p30 = scmp.ne.s32.totalorder %s19, %s22
    %p31 = scmp.eq.s32.totalorder %s14, 3
    %p32 = por %p30, %p31
    %p33 = scmp.ne.s32.totalorder %s22, %s23
    %p34 = scmp.eq.s32.totalorder %s14, 0
    %p35 = por %p33, %p34
    %p36 = scmp.ne.s32.totalorder %s22, %s23
    %p37 = scmp.eq.s32.totalorder %s15, 3
    %p38 = por %p36, %p37
    %p40 = scmp.ne.s32.totalorder %s23, %s39
    %p41 = scmp.eq.s32.totalorder %s15, 0
    %p42 = por %p40, %p41
    %s44 = sadd.s32 %s43, 1
    %p47 = scmp.eq.s32.totalorder %s9, 3
    %p48 = scmp.ne.s32.totalorder %s43, %s45
    %p49 = scmp.eq.s32.totalorder %s9, 0
    %p50 = por %p48, %p49
    %p51 = scmp.ne.s32.totalorder %s43, %s45
    %p52 = scmp.eq.s32.totalorder %s14, 3
    %p53 = por %p51, %p52
    %p54 = scmp.ne.s32.totalorder %s45, %s46
    %p55 = scmp.eq.s32.totalorder %s14, 0
    %p56 = por %p54, %p55
    %p57 = scmp.ne.s32.totalorder %s45, %s46
    %p58 = scmp.eq.s32.totalorder %s15, 3
    %p59 = por %p57, %p58
    %p61 = scmp.ne.s32.totalorder %s46, %s60
    %p62 = scmp.eq.s32.totalorder %s15, 0
    %p63 = por %p61, %p62
    %s65 = sadd.s32 %s64, 1
    %p68 = scmp.eq.s32.totalorder %s9, 3
    %p69 = scmp.ne.s32.totalorder %s64, %s66
    %p70 = scmp.eq.s32.totalorder %s9, 0
    %p71 = por %p69, %p70
    %p72 = scmp.ne.s32.totalorder %s64, %s66
    %p73 = scmp.eq.s32.totalorder %s14, 3
    %p74 = por %p72, %p73
    %p75 = scmp.ne.s32.totalorder %s66, %s67
    %p76 = scmp.eq.s32.totalorder %s14, 0
    %p77 = por %p75, %p76
    %p78 = scmp.ne.s32.totalorder %s66, %s67
    %p79 = scmp.eq.s32.totalorder %s15, 3
    %p80 = por %p78, %p79
    %p82 = scmp.ne.s32.totalorder %s67, %s81
    %p83 = scmp.eq.s32.totalorder %s15, 0
    %p84 = por %p82, %p83
    %s86 = sadd.s32 %s85, 1
    %p89 = scmp.eq.s32.totalorder %s9, 3
    %p90 = scmp.ne.s32.totalorder %s85, %s87
    %p91 = scmp.eq.s32.totalorder %s9, 0
    %p92 = por %p90, %p91
    %p93 = scmp.ne.s32.totalorder %s85, %s87
    %p94 = scmp.eq.s32.totalorder %s14, 3
    %p95 = por %p93, %p94
    %p96 = scmp.ne.s32.totalorder %s87, %s88
    %p97 = scmp.eq.s32.totalorder %s14, 0
    %p98 = por %p96, %p97
    %p99 = scmp.ne.s32.totalorder %s87, %s88
    %p100 = scmp.eq.s32.totalorder %s15, 3
    %p101 = por %p99, %p100
    %p103 = scmp.ne.s32.totalorder %s88, %s102
    %p104 = scmp.eq.s32.totalorder %s15, 0
    %p105 = por %p103, %p104
    %p106 = scmp.le.s32.totalorder 1, %s9
    %p107 = scmp.lt.s32.totalorder %s9, 5
    %p108 = pnand %p106, %p107
    %p109 = pneg %p108
    // Predicated region
    $region9: #{bpb_forward.2} parent=5 // pred_check
      _
    $region10: #{bpb_forward.2} parent=5 // pred_check_branch
      %111 = sbr.rel (%p108) target = $region12
    $region11: #{bpb_forward.2} parent=5 // pred_region
      %s112 = ssub.s32 %s9, 1
      // Predicated region
      $region13: #{bpb_forward.2} parent=11 // pred_check
        %p113 = pneg %p56
      $region14: #{bpb_forward.2} parent=11 // pred_check_branch
        %115 = sbr.rel (%p113) target = $region16
      $region15: #{bpb_forward.2} parent=11 // pred_region
        _
      $region16: #{bpb_forward.2} parent=11 // pred_fallthru
        _
      // Predicated region
      $region17: #{bpb_forward.2} parent=11 // pred_check
        %p116 = pneg %p77
      $region18: #{bpb_forward.2} parent=11 // pred_check_branch
        %118 = sbr.rel (%p116) target = $region20
      $region19: #{bpb_forward.2} parent=11 // pred_region
        _
      $region20: #{bpb_forward.2} parent=11 // pred_fallthru
        _
    $region12: #{bpb_forward.2} parent=5 // pred_fallthru
      _
    %p119 = scmp.lt.s32.totalorder %s9, 4
    // Predicated region
    $region21: #{bpb_forward.2} parent=5 // pred_check
      %p120 = pneg %p119
    $region22: #{bpb_forward.2} parent=5 // pred_check_branch
      %122 = sbr.rel (%p120) target = $region24
    $region23: #{bpb_forward.2} parent=5 // pred_region
      // Predicated region
      $region25: #{bpb_forward.2} parent=23 // pred_check
        %p123 = pneg %p29
      $region26: #{bpb_forward.2} parent=23 // pred_check_branch
        %125 = sbr.rel (%p123) target = $region28
      $region27: #{bpb_forward.2} parent=23 // pred_region
        %p126 = scmp.lt.s32.totalorder %s9, 3
        %s127 = scalar_select %p126, %s9, 3
        %s128 = smul.addr %s127, 80
        %s129 = smul.addr %s128, 8
        %s130 = scalar_lea.vmem %s0, %s129
      $region28: #{bpb_forward.2} parent=23 // pred_fallthru
        _
    $region24: #{bpb_forward.2} parent=5 // pred_fallthru
      _
    %p131 = scmp.le.s32.totalorder 1, %s9
    %p132 = scmp.lt.s32.totalorder %s9, 5
    %p133 = pnand %p131, %p132
    %p134 = pneg %p133
    // Predicated region
    $region29: #{bpb_forward.2} parent=5 // pred_check
      _
    $region30: #{bpb_forward.2} parent=5 // pred_check_branch
      %136 = sbr.rel (%p133) target = $region32
    $region31: #{bpb_forward.2} parent=5 // pred_region
      %s137 = ssub.s32 %s9, 1
      %p138 = scmp.lt.s32.totalorder %s14, 3
      %s139 = scalar_select %p138, %s14, 3
      %s140 = smul.addr %s139, 80
      %s141 = smul.addr %s140, 8
      %s142 = scalar_lea.vmem %s0, %s141
      %p143 = pneg %p35
      %p144 = pneg %p32
      %p145 = pneg %p56
      %p146 = pneg %p53
      %p147 = pneg %p77
      %p148 = pneg %p74
      %p149 = pneg %p98
      %p150 = pneg %p95
      %p151 = scmp.lt.s32.totalorder %s14, 3
      %s152 = scalar_select %p151, %s14, 3
      %s153 = smul.addr %s152, 80
      %s154 = smul.addr %s153, 8
      %s155 = scalar_lea.vmem %s0, %s154
      %p157 = scmp.eq.s32.totalorder %s14, 0
      // Predicated region
      $region33: #{bpb_forward.2} parent=31 // pred_check
        %p158 = pneg %p157
      $region34: #{bpb_forward.2} parent=31 // pred_check_branch
        %160 = sbr.rel (%p158) target = $region36
      $region35: #{bpb_forward.2} parent=31 // pred_region
        %vm161 = vcmask 520192
        %162 = vst.msk [vmem:[%s3] sm:$0x1f] %vm161, 0.0
        %163 = vst.msk [vmem:[%s3 + $0x8] sm:$0x1f] %vm161, 0.0
      $region36: #{bpb_forward.2} parent=31 // pred_fallthru
        _
      %v164 = vld [vmem:[%s155] sm:$0xff]
      %v165 = vld [vmem:[%s155 + $0x8] sm:$0xff]
      %v166 = vld [vmem:[%s155 + $0x10] sm:$0xff]
      %v167 = vld [vmem:[%s155 + $0x18] sm:$0xf]
      %v168 = vld [vmem:[%s155 + $0x20] sm:$0xff]
      %v169 = vld [vmem:[%s155 + $0x28] sm:$0xff]
      %v170 = vld [vmem:[%s155 + $0x30] sm:$0xff]
      %v171 = vld [vmem:[%s155 + $0x38] sm:$0xf]
      %v172 = vld [vmem:[%s155 + $0x40] sm:$0xff]
      %v173 = vld [vmem:[%s155 + $0x48] sm:$0xff]
      %v174 = vld [vmem:[%s155 + $0x50] sm:$0xff]
      %v175 = vld [vmem:[%s155 + $0x58] sm:$0xf]
      %v176 = vld [vmem:[%s155 + $0x60] sm:$0xff]
      %v177 = vld [vmem:[%s155 + $0x68] sm:$0xff]
      %v178 = vld [vmem:[%s155 + $0x70] sm:$0xff]
      %v179 = vld [vmem:[%s155 + $0x78] sm:$0xf]
      %v180 = vld [vmem:[%s155 + $0x80] sm:$0xff]
      %v181 = vld [vmem:[%s155 + $0x88] sm:$0xff]
      %v182 = vld [vmem:[%s155 + $0x90] sm:$0xff]
      %v183 = vld [vmem:[%s155 + $0x98] sm:$0xf]
      %v184 = vld [vmem:[%s155 + $0xa0] sm:$0xff]
      %v185 = vld [vmem:[%s155 + $0xa8] sm:$0xff]
      %v186 = vld [vmem:[%s155 + $0xb0] sm:$0xff]
      %v187 = vld [vmem:[%s155 + $0xb8] sm:$0xf]
      %v188 = vld [vmem:[%s155 + $0xc0] sm:$0xff]
      %v189 = vld [vmem:[%s155 + $0xc8] sm:$0xff]
      %v190 = vld [vmem:[%s155 + $0xd0] sm:$0xff]
      %v191 = vld [vmem:[%s155 + $0xd8] sm:$0xf]
      %v192 = vld [vmem:[%s155 + $0xe0] sm:$0xff]
      %v193 = vld [vmem:[%s155 + $0xe8] sm:$0xff]
      %v194 = vld [vmem:[%s155 + $0xf0] sm:$0xff]
      %v195 = vld [vmem:[%s155 + $0xf8] sm:$0xf]
      %v196 = vld [vmem:[%s155 + $0x100] sm:$0xff]
      %v197 = vld [vmem:[%s155 + $0x108] sm:$0xff]
      %v198 = vld [vmem:[%s155 + $0x110] sm:$0xff]
      %v199 = vld [vmem:[%s155 + $0x118] sm:$0xf]
      %v200 = vld [vmem:[%s155 + $0x120] sm:$0xff]
      %v201 = vld [vmem:[%s155 + $0x128] sm:$0xff]
      %v202 = vld [vmem:[%s155 + $0x130] sm:$0xff]
      %v203 = vld [vmem:[%s155 + $0x138] sm:$0xf]
      %v204 = vld [vmem:[%s155 + $0x140] sm:$0xff]
      %v205 = vld [vmem:[%s155 + $0x148] sm:$0xff]
      %v206 = vld [vmem:[%s155 + $0x150] sm:$0xff]
      %v207 = vld [vmem:[%s155 + $0x158] sm:$0xf]
      %v208 = vld [vmem:[%s155 + $0x160] sm:$0xff]
      %v209 = vld [vmem:[%s155 + $0x168] sm:$0xff]
      %v210 = vld [vmem:[%s155 + $0x170] sm:$0xff]
      %v211 = vld [vmem:[%s155 + $0x178] sm:$0xf]
      %v212 = vld [vmem:[%s155 + $0x180] sm:$0xff]
      %v213 = vld [vmem:[%s155 + $0x188] sm:$0xff]
      %v214 = vld [vmem:[%s155 + $0x190] sm:$0xff]
      %v215 = vld [vmem:[%s155 + $0x198] sm:$0xf]
      %v216 = vld [vmem:[%s155 + $0x1a0] sm:$0xff]
      %v217 = vld [vmem:[%s155 + $0x1a8] sm:$0xff]
      %v218 = vld [vmem:[%s155 + $0x1b0] sm:$0xff]
      %v219 = vld [vmem:[%s155 + $0x1b8] sm:$0xf]
      %v220 = vld [vmem:[%s155 + $0x1c0] sm:$0xff]
      %v221 = vld [vmem:[%s155 + $0x1c8] sm:$0xff]
      %v222 = vld [vmem:[%s155 + $0x1d0] sm:$0xff]
      %v223 = vld [vmem:[%s155 + $0x1d8] sm:$0xf]
      %v224 = vld [vmem:[%s155 + $0x1e0] sm:$0xff]
      %v225 = vld [vmem:[%s155 + $0x1e8] sm:$0xff]
      %v226 = vld [vmem:[%s155 + $0x1f0] sm:$0xff]
      %v227 = vld [vmem:[%s155 + $0x1f8] sm:$0xf]
      %v228 = vld [vmem:[%s155 + $0x200] sm:$0xff]
      %v229 = vld [vmem:[%s155 + $0x208] sm:$0xff]
      %v230 = vld [vmem:[%s155 + $0x210] sm:$0xff]
      %v231 = vld [vmem:[%s155 + $0x218] sm:$0xf]
      %v232 = vld [vmem:[%s155 + $0x220] sm:$0xff]
      %v233 = vld [vmem:[%s155 + $0x228] sm:$0xff]
      %v234 = vld [vmem:[%s155 + $0x230] sm:$0xff]
      %v235 = vld [vmem:[%s155 + $0x238] sm:$0xf]
      %v236 = vld [vmem:[%s155 + $0x240] sm:$0xff]
      %v237 = vld [vmem:[%s155 + $0x248] sm:$0xff]
      %v238 = vld [vmem:[%s155 + $0x250] sm:$0xff]
      %v239 = vld [vmem:[%s155 + $0x258] sm:$0xf]
      %v240 = vld [vmem:[%s155 + $0x260] sm:$0xff]
      %v241 = vld [vmem:[%s155 + $0x268] sm:$0xff]
      %v242 = vld [vmem:[%s155 + $0x270] sm:$0xff]
      %v243 = vld [vmem:[%s155 + $0x278] sm:$0xf]
      %vm268 = vcmask 1041408
      %v269 = vrot.slane %v188, 6
      %v270 = vrot.slane %v189, 6
      %v271 = vsel %vm268, %v269, %v270
      %v272 = vrot.slane %v190, 6
      %v273 = vsel %vm268, %v270, %v272
      %v274 = vrot.slane %v192, 6
      %v275 = vrot.slane %v193, 6
      %v276 = vsel %vm268, %v274, %v275
      %v277 = vrot.slane %v194, 6
      %v278 = vsel %vm268, %v275, %v277
      %v279 = vrot.slane %v196, 6
      %v280 = vrot.slane %v197, 6
      %v281 = vsel %vm268, %v279, %v280
      %v282 = vrot.slane %v198, 6
      %v283 = vsel %vm268, %v280, %v282
      %v284 = vrot.slane %v200, 6
      %v285 = vrot.slane %v201, 6
      %v286 = vsel %vm268, %v284, %v285
      %v287 = vrot.slane %v202, 6
      %v288 = vsel %vm268, %v285, %v287
      %v289 = vrot.slane %v204, 6
      %v290 = vrot.slane %v205, 6
      %v291 = vsel %vm268, %v289, %v290
      %v292 = vrot.slane %v206, 6
      %v293 = vsel %vm268, %v290, %v292
      %v294 = vrot.slane %v208, 6
      %v295 = vrot.slane %v209, 6
      %v296 = vsel %vm268, %v294, %v295
      %v297 = vrot.slane %v210, 6
      %v298 = vsel %vm268, %v295, %v297
      %v299 = vrot.slane %v212, 6
      %v300 = vrot.slane %v213, 6
      %v301 = vsel %vm268, %v299, %v300
      %v302 = vrot.slane %v214, 6
      %v303 = vsel %vm268, %v300, %v302
      %v304 = vrot.slane %v216, 6
      %v305 = vrot.slane %v217, 6
      %v306 = vsel %vm268, %v304, %v305
      %v307 = vrot.slane %v218, 6
      %v308 = vsel %vm268, %v305, %v307
      %v325 = vpack.c.bf16 %v273, %v271
      %v326 = vpack.c.bf16 %v278, %v276
      %v327 = vpack.c.bf16 %v283, %v281
      %v328 = vpack.c.bf16 %v288, %v286
      %v329 = vpack.c.bf16 %v293, %v291
      %v330 = vpack.c.bf16 %v298, %v296
      %v331 = vpack.c.bf16 %v303, %v301
      %v332 = vpack.c.bf16 %v308, %v306
      %v333 = vld [vmem:[%s1] sm:$0x3]
      %vm334 = vcmask 31744
      %v336 = vsel %vm334, %v325, 0
      %v339 = vsel %vm334, %v326, 0
      %v342 = vsel %vm334, %v327, 0
      %v345 = vsel %vm334, %v328, 0
      %v348 = vsel %vm334, %v329, 0
      %v351 = vsel %vm334, %v330, 0
      %v354 = vsel %vm334, %v331, 0
      %v357 = vsel %vm334, %v332, 0
      %v360 = vsel %vm268, %v333, 0
      %362 = vmatprep.subr.bf16.mxu0 0
      %363 = vmatpush1.bf16.msra.mxu0 %v360
      %364 = vmatprep.subr.bf16.mxu0 0
      %365 = vmatpush1.bf16.msra.mxu0 0
      %366 = vmatprep.subr.bf16.mxu0 0
      %367 = vmatpush1.bf16.msra.mxu0 0
      %368 = vmatprep.subr.bf16.mxu0 0
      %369 = vmatpush1.bf16.msra.mxu0 0
      %370 = vmatprep.subr.bf16.mxu0 0
      %371 = vmatpush1.bf16.msra.mxu0 0
      %372 = vmatprep.subr.bf16.mxu0 0
      %373 = vmatpush1.bf16.msra.mxu0 0
      %374 = vmatprep.subr.bf16.mxu0 0
      %375 = vmatpush1.bf16.msra.mxu0 0
      %376 = vmatprep.subr.bf16.mxu0 0
      %377 = vmatpush1.bf16.msra.mxu0 0
      %378 = vmatprep.subr.bf16.mxu0 0
      %379 = vmatpush1.bf16.msra.mxu0 0
      %380 = vmatprep.subr.bf16.mxu0 0
      %381 = vmatpush1.bf16.msra.mxu0 0
      %382 = vmatprep.subr.bf16.mxu0 0
      %383 = vmatpush1.bf16.msra.mxu0 0
      %384 = vmatprep.subr.bf16.mxu0 0
      %385 = vmatpush1.bf16.msra.mxu0 0
      %386 = vmatprep.subr.bf16.mxu0 0
      %387 = vmatpush1.bf16.msra.mxu0 0
      %388 = vmatprep.subr.bf16.mxu0 0
      %389 = vmatpush1.bf16.msra.mxu0 0
      %390 = vmatprep.subr.bf16.mxu0 0
      %391 = vmatpush1.bf16.msra.mxu0 0
      %392 = vmatprep.subr.bf16.mxu0 0
      %393 = vmatpush1.bf16.msra.mxu0 0
      %394 = vmatprep.mubr.bf16.mxu0 0
      %395 = vmatmul.mubr.bf16.gmra.mrb[0].mxu0 %v336
      %v396 = vpop.f32.mrb[0].mxu0
      %v397 = vadd.f32 0.0, %v396
      %v398 = vpop.f32.mrb[0].mxu0
      %v399 = vpop.f32.mrb[0].mxu0
      %v400 = vadd.f32 0.0, %v399
      %v401 = vpop.f32.mrb[0].mxu0
      %402 = vmatprep.mubr.bf16.mxu0 0
      %403 = vmatmul.mubr.bf16.gmra.mrb[0].mxu0 %v339
      %v404 = vpop.f32.mrb[0].mxu0
      %v405 = vadd.f32 0.0, %v404
      %v406 = vpop.f32.mrb[0].mxu0
      %v407 = vpop.f32.mrb[0].mxu0
      %v408 = vadd.f32 0.0, %v407
      %v409 = vpop.f32.mrb[0].mxu0
      %410 = vmatprep.mubr.bf16.mxu0 0
      %411 = vmatmul.mubr.bf16.gmra.mrb[0].mxu0 %v342
      %v412 = vpop.f32.mrb[0].mxu0
      %v413 = vadd.f32 0.0, %v412
      %v414 = vpop.f32.mrb[0].mxu0
      %v415 = vpop.f32.mrb[0].mxu0
      %v416 = vadd.f32 0.0, %v415
      %v417 = vpop.f32.mrb[0].mxu0
      %418 = vmatprep.mubr.bf16.mxu0 0
      %419 = vmatmul.mubr.bf16.gmra.mrb[0].mxu0 %v345
      %v420 = vpop.f32.mrb[0].mxu0
      %v421 = vadd.f32 0.0, %v420
      %v422 = vpop.f32.mrb[0].mxu0
      %v423 = vpop.f32.mrb[0].mxu0
      %v424 = vadd.f32 0.0, %v423
      %v425 = vpop.f32.mrb[0].mxu0
      %426 = vmatprep.mubr.bf16.mxu0 0
      %427 = vmatmul.mubr.bf16.gmra.mrb[0].mxu0 %v348
      %v428 = vpop.f32.mrb[0].mxu0
      %v429 = vadd.f32 0.0, %v428
      %v430 = vpop.f32.mrb[0].mxu0
      %v431 = vpop.f32.mrb[0].mxu0
      %v432 = vadd.f32 0.0, %v431
      %v433 = vpop.f32.mrb[0].mxu0
      %434 = vmatprep.mubr.bf16.mxu0 0
      %435 = vmatmul.mubr.bf16.gmra.mrb[0].mxu0 %v351
      %v436 = vpop.f32.mrb[0].mxu0
      %v437 = vadd.f32 0.0, %v436
      %v438 = vpop.f32.mrb[0].mxu0
      %v439 = vpop.f32.mrb[0].mxu0
      %v440 = vadd.f32 0.0, %v439
      %v441 = vpop.f32.mrb[0].mxu0
      %442 = vmatprep.mubr.bf16.mxu0 0
      %443 = vmatmul.mubr.bf16.gmra.mrb[0].mxu0 %v354
      %v444 = vpop.f32.mrb[0].mxu0
      %v445 = vadd.f32 0.0, %v444
      %v446 = vpop.f32.mrb[0].mxu0
      %v447 = vpop.f32.mrb[0].mxu0
      %v448 = vadd.f32 0.0, %v447
      %v449 = vpop.f32.mrb[0].mxu0
      %450 = vmatprep.mubr.bf16.mxu0 0
      %451 = vmatmul.mubr.bf16.gmra.mrb[0].mxu0 %v357
      %v452 = vpop.f32.mrb[0].mxu0
      %v453 = vadd.f32 0.0, %v452
      %v454 = vpop.f32.mrb[0].mxu0
      %v455 = vpop.f32.mrb[0].mxu0
      %v456 = vadd.f32 0.0, %v455
      %v457 = vpop.f32.mrb[0].mxu0
      %458 = vdwg.mxu0
      %vm459 = vcmask 523264
      %v460 = vsel %vm459, %v397, 0.0
      %v461 = vsel %vm459, %v400, 0.0
      %v462 = vadd.f32 %v460, %v461
      %v463 = vsel %vm459, %v405, 0.0
      %v464 = vadd.f32 %v462, %v463
      %v465 = vsel %vm459, %v408, 0.0
      %v466 = vadd.f32 %v464, %v465
      %v467 = vsel %vm459, %v413, 0.0
      %v468 = vadd.f32 %v466, %v467
      %v469 = vsel %vm459, %v416, 0.0
      %v470 = vadd.f32 %v468, %v469
      %v471 = vsel %vm459, %v421, 0.0
      %v472 = vadd.f32 %v470, %v471
      %v473 = vsel %vm459, %v424, 0.0
      %v474 = vadd.f32 %v472, %v473
      %v475 = vsel %vm459, %v429, 0.0
      %v476 = vadd.f32 %v474, %v475
      %v477 = vsel %vm459, %v432, 0.0
      %v478 = vadd.f32 %v476, %v477
      %v479 = vsel %vm459, %v437, 0.0
      %v480 = vadd.f32 %v478, %v479
      %v481 = vsel %vm459, %v440, 0.0
      %v482 = vadd.f32 %v480, %v481
      %v483 = vsel %vm459, %v445, 0.0
      %v484 = vadd.f32 %v482, %v483
      %v485 = vsel %vm459, %v448, 0.0
      %v486 = vadd.f32 %v484, %v485
      %v487 = vsel %vm459, %v453, 0.0
      %v488 = vadd.f32 %v486, %v487
      %v489 = vsel %vm459, %v456, 0.0
      %v490 = vadd.f32 %v488, %v489
      %v491 = vrot.slane %v490, 4
      %v492 = vadd.f32 %v490, %v491
      %v493 = vrot.slane %v492, 2
      %v494 = vadd.f32 %v492, %v493
      %v495 = vrot.slane %v494, 1
      %v496 = vadd.f32 %v494, %v495
      %v497 = vmul.f32 %v397, %v397
      %v498 = vmul.f32 %v400, %v400
      %v499 = vmul.f32 %v405, %v405
      %v500 = vmul.f32 %v408, %v408
      %v501 = vmul.f32 %v413, %v413
      %v502 = vmul.f32 %v416, %v416
      %v503 = vmul.f32 %v421, %v421
      %v504 = vmul.f32 %v424, %v424
      %v505 = vmul.f32 %v429, %v429
      %v506 = vmul.f32 %v432, %v432
      %v507 = vmul.f32 %v437, %v437
      %v508 = vmul.f32 %v440, %v440
      %v509 = vmul.f32 %v445, %v445
      %v510 = vmul.f32 %v448, %v448
      %v511 = vmul.f32 %v453, %v453
      %v512 = vmul.f32 %v456, %v456
      %v513 = vsel %vm459, %v497, 0.0
      %v514 = vsel %vm459, %v498, 0.0
      %v515 = vadd.f32 %v513, %v514
      %v516 = vsel %vm459, %v499, 0.0
      %v517 = vadd.f32 %v515, %v516
      %v518 = vsel %vm459, %v500, 0.0
      %v519 = vadd.f32 %v517, %v518
      %v520 = vsel %vm459, %v501, 0.0
      %v521 = vadd.f32 %v519, %v520
      %v522 = vsel %vm459, %v502, 0.0
      %v523 = vadd.f32 %v521, %v522
      %v524 = vsel %vm459, %v503, 0.0
      %v525 = vadd.f32 %v523, %v524
      %v526 = vsel %vm459, %v504, 0.0
      %v527 = vadd.f32 %v525, %v526
      %v528 = vsel %vm459, %v505, 0.0
      %v529 = vadd.f32 %v527, %v528
      %v530 = vsel %vm459, %v506, 0.0
      %v531 = vadd.f32 %v529, %v530
      %v532 = vsel %vm459, %v507, 0.0
      %v533 = vadd.f32 %v531, %v532
      %v534 = vsel %vm459, %v508, 0.0
      %v535 = vadd.f32 %v533, %v534
      %v536 = vsel %vm459, %v509, 0.0
      %v537 = vadd.f32 %v535, %v536
      %v538 = vsel %vm459, %v510, 0.0
      %v539 = vadd.f32 %v537, %v538
      %v540 = vsel %vm459, %v511, 0.0
      %v541 = vadd.f32 %v539, %v540
      %v542 = vsel %vm459, %v512, 0.0
      %v543 = vadd.f32 %v541, %v542
      %v544 = vrot.slane %v543, 4
      %v545 = vadd.f32 %v543, %v544
      %v546 = vrot.slane %v545, 2
      %v547 = vadd.f32 %v545, %v546
      %v548 = vrot.slane %v547, 1
      %v549 = vadd.f32 %v547, %v548
      %vm553 = vcmask 1042432
      %v554 = vrot.slane %v184, 5
      %v555 = vrot.slane %v185, 5
      %v556 = vsel %vm553, %v554, %v555
      %v557 = vrot.slane %v186, 5
      %v558 = vsel %vm553, %v555, %v557
      %v559 = vrot.slane %v188, 5
      %v560 = vrot.slane %v189, 5
      %v561 = vsel %vm553, %v559, %v560
      %v562 = vrot.slane %v190, 5
      %v563 = vsel %vm553, %v560, %v562
      %v564 = vrot.slane %v192, 5
      %v565 = vrot.slane %v193, 5
      %v566 = vsel %vm553, %v564, %v565
      %v567 = vrot.slane %v194, 5
      %v568 = vsel %vm553, %v565, %v567
      %v569 = vrot.slane %v196, 5
      %v570 = vrot.slane %v197, 5
      %v571 = vsel %vm553, %v569, %v570
      %v572 = vrot.slane %v198, 5
      %v573 = vsel %vm553, %v570, %v572
      %v574 = vrot.slane %v200, 5
      %v575 = vrot.slane %v201, 5
      %v576 = vsel %vm553, %v574, %v575
      %v577 = vrot.slane %v202, 5
      %v578 = vsel %vm553, %v575, %v577
      %v579 = vrot.slane %v204, 5
      %v580 = vrot.slane %v205, 5
      %v581 = vsel %vm553, %v579, %v580
      %v582 = vrot.slane %v206, 5
      %v583 = vsel %vm553, %v580, %v582
      %v584 = vrot.slane %v208, 5
      %v585 = vrot.slane %v209, 5
      %v586 = vsel %vm553, %v584, %v585
      %v587 = vrot.slane %v210, 5
      %v588 = vsel %vm553, %v585, %v587
      %v589 = vrot.slane %v212, 5
      %v590 = vrot.slane %v213, 5
      %v591 = vsel %vm553, %v589, %v590
      %v592 = vrot.slane %v214, 5
      %v593 = vsel %vm553, %v590, %v592
      %v610 = vrot.slane %v184, 6
      %v611 = vrot.slane %v185, 6
      %v612 = vsel %vm268, %v610, %v611
      %v613 = vrot.slane %v186, 6
      %v614 = vsel %vm268, %v611, %v613
      %vm615 = vcmask 1040384
      %v616 = vrot.slane %v184, 7
      %v617 = vrot.slane %v185, 7
      %v618 = vsel %vm615, %v616, %v617
      %v619 = vrot.slane %v186, 7
      %v620 = vsel %vm615, %v617, %v619
      %v621 = vrot.slane %v188, 7
      %v622 = vrot.slane %v189, 7
      %v623 = vsel %vm615, %v621, %v622
      %v624 = vrot.slane %v190, 7
      %v625 = vsel %vm615, %v622, %v624
      %v626 = vrot.slane %v192, 7
      %v627 = vrot.slane %v193, 7
      %v628 = vsel %vm615, %v626, %v627
      %v629 = vrot.slane %v194, 7
      %v630 = vsel %vm615, %v627, %v629
      %v631 = vrot.slane %v196, 7
      %v632 = vrot.slane %v197, 7
      %v633 = vsel %vm615, %v631, %v632
      %v634 = vrot.slane %v198, 7
      %v635 = vsel %vm615, %v632, %v634
      %v636 = vrot.slane %v200, 7
      %v637 = vrot.slane %v201, 7
      %v638 = vsel %vm615, %v636, %v637
      %v639 = vrot.slane %v202, 7
      %v640 = vsel %vm615, %v637, %v639
      %v641 = vrot.slane %v204, 7
      %v642 = vrot.slane %v205, 7
      %v643 = vsel %vm615, %v641, %v642
      %v644 = vrot.slane %v206, 7
      %v645 = vsel %vm615, %v642, %v644
      %v646 = vrot.slane %v208, 7
      %v647 = vrot.slane %v209, 7
      %v648 = vsel %vm615, %v646, %v647
      %v649 = vrot.slane %v210, 7
      %v650 = vsel %vm615, %v647, %v649
      %v651 = vrot.slane %v212, 7
      %v652 = vrot.slane %v213, 7
      %v653 = vsel %vm615, %v651, %v652
      %v654 = vrot.slane %v214, 7
      %v655 = vsel %vm615, %v652, %v654
      %v656 = vrot.slane %v216, 5
      %v657 = vrot.slane %v217, 5
      %v658 = vsel %vm553, %v656, %v657
      %v659 = vrot.slane %v218, 5
      %v660 = vsel %vm553, %v657, %v659
      %v661 = vrot.slane %v216, 7
      %v662 = vrot.slane %v217, 7
      %v663 = vsel %vm615, %v661, %v662
      %v664 = vrot.slane %v218, 7
      %v665 = vsel %vm615, %v662, %v664
      %v669 = vrot.slane %v220, 5
      %v670 = vrot.slane %v221, 5
      %v671 = vsel %vm553, %v669, %v670
      %v672 = vrot.slane %v222, 5
      %v673 = vsel %vm553, %v670, %v672
      %v674 = vrot.slane %v220, 6
      %v675 = vrot.slane %v221, 6
      %v676 = vsel %vm268, %v674, %v675
      %v677 = vrot.slane %v222, 6
      %v678 = vsel %vm268, %v675, %v677
      %v679 = vrot.slane %v220, 7
      %v680 = vrot.slane %v221, 7
      %v681 = vsel %vm615, %v679, %v680
      %v682 = vrot.slane %v222, 7
      %v683 = vsel %vm615, %v680, %v682
      %684 = vrot.lane.b32.xlu0 %v612, 4
      %v685 = vpop.permute.xlu0 %684
      %686 = vrot.lane.b32.xlu0 %v614, 4
      %v687 = vpop.permute.xlu0 %686
      %688 = vrot.lane.b32.xlu0 %v271, 4
      %v689 = vpop.permute.xlu0 %688
      %690 = vrot.lane.b32.xlu0 %v273, 4
      %v691 = vpop.permute.xlu0 %690
      %692 = vrot.lane.b32.xlu0 %v276, 4
      %v693 = vpop.permute.xlu0 %692
      %694 = vrot.lane.b32.xlu0 %v278, 4
      %v695 = vpop.permute.xlu0 %694
      %696 = vrot.lane.b32.xlu0 %v281, 4
      %v697 = vpop.permute.xlu0 %696
      %698 = vrot.lane.b32.xlu0 %v283, 4
      %v699 = vpop.permute.xlu0 %698
      %700 = vrot.lane.b32.xlu0 %v286, 4
      %v701 = vpop.permute.xlu0 %700
      %702 = vrot.lane.b32.xlu0 %v288, 4
      %v703 = vpop.permute.xlu0 %702
      %704 = vrot.lane.b32.xlu0 %v291, 4
      %v705 = vpop.permute.xlu0 %704
      %706 = vrot.lane.b32.xlu0 %v293, 4
      %v707 = vpop.permute.xlu0 %706
      %708 = vrot.lane.b32.xlu0 %v296, 4
      %v709 = vpop.permute.xlu0 %708
      %710 = vrot.lane.b32.xlu0 %v298, 4
      %v711 = vpop.permute.xlu0 %710
      %712 = vrot.lane.b32.xlu0 %v301, 4
      %v713 = vpop.permute.xlu0 %712
      %714 = vrot.lane.b32.xlu0 %v303, 4
      %v715 = vpop.permute.xlu0 %714
      %732 = vrot.lane.b32.xlu0 %v618, 8
      %v733 = vpop.permute.xlu0 %732
      %734 = vrot.lane.b32.xlu0 %v620, 8
      %v735 = vpop.permute.xlu0 %734
      %736 = vrot.lane.b32.xlu0 %v623, 8
      %v737 = vpop.permute.xlu0 %736
      %738 = vrot.lane.b32.xlu0 %v625, 8
      %v739 = vpop.permute.xlu0 %738
      %740 = vrot.lane.b32.xlu0 %v628, 8
      %v741 = vpop.permute.xlu0 %740
      %742 = vrot.lane.b32.xlu0 %v630, 8
      %v743 = vpop.permute.xlu0 %742
      %744 = vrot.lane.b32.xlu0 %v633, 8
      %v745 = vpop.permute.xlu0 %744
      %746 = vrot.lane.b32.xlu0 %v635, 8
      %v747 = vpop.permute.xlu0 %746
      %748 = vrot.lane.b32.xlu0 %v638, 8
      %v749 = vpop.permute.xlu0 %748
      %750 = vrot.lane.b32.xlu0 %v640, 8
      %v751 = vpop.permute.xlu0 %750
      %752 = vrot.lane.b32.xlu0 %v643, 8
      %v753 = vpop.permute.xlu0 %752
      %754 = vrot.lane.b32.xlu0 %v645, 8
      %v755 = vpop.permute.xlu0 %754
      %756 = vrot.lane.b32.xlu0 %v648, 8
      %v757 = vpop.permute.xlu0 %756
      %758 = vrot.lane.b32.xlu0 %v650, 8
      %v759 = vpop.permute.xlu0 %758
      %760 = vrot.lane.b32.xlu0 %v653, 8
      %v761 = vpop.permute.xlu0 %760
      %762 = vrot.lane.b32.xlu0 %v655, 8
      %v763 = vpop.permute.xlu0 %762
      %780 = vrot.lane.b32.xlu0 %v561, 12
      %v781 = vpop.permute.xlu0 %780
      %782 = vrot.lane.b32.xlu0 %v563, 12
      %v783 = vpop.permute.xlu0 %782
      %784 = vrot.lane.b32.xlu0 %v566, 12
      %v785 = vpop.permute.xlu0 %784
      %786 = vrot.lane.b32.xlu0 %v568, 12
      %v787 = vpop.permute.xlu0 %786
      %788 = vrot.lane.b32.xlu0 %v571, 12
      %v789 = vpop.permute.xlu0 %788
      %790 = vrot.lane.b32.xlu0 %v573, 12
      %v791 = vpop.permute.xlu0 %790
      %792 = vrot.lane.b32.xlu0 %v576, 12
      %v793 = vpop.permute.xlu0 %792
      %794 = vrot.lane.b32.xlu0 %v578, 12
      %v795 = vpop.permute.xlu0 %794
      %796 = vrot.lane.b32.xlu0 %v581, 12
      %v797 = vpop.permute.xlu0 %796
      %798 = vrot.lane.b32.xlu0 %v583, 12
      %v799 = vpop.permute.xlu0 %798
      %800 = vrot.lane.b32.xlu0 %v586, 12
      %v801 = vpop.permute.xlu0 %800
      %802 = vrot.lane.b32.xlu0 %v588, 12
      %v803 = vpop.permute.xlu0 %802
      %804 = vrot.lane.b32.xlu0 %v591, 12
      %v805 = vpop.permute.xlu0 %804
      %806 = vrot.lane.b32.xlu0 %v593, 12
      %v807 = vpop.permute.xlu0 %806
      %808 = vrot.lane.b32.xlu0 %v658, 12
      %v809 = vpop.permute.xlu0 %808
      %810 = vrot.lane.b32.xlu0 %v660, 12
      %v811 = vpop.permute.xlu0 %810
      %828 = vrot.lane.b32.xlu0 %v271, 16
      %v829 = vpop.permute.xlu0 %828
      %830 = vrot.lane.b32.xlu0 %v273, 16
      %v831 = vpop.permute.xlu0 %830
      %832 = vrot.lane.b32.xlu0 %v276, 16
      %v833 = vpop.permute.xlu0 %832
      %834 = vrot.lane.b32.xlu0 %v278, 16
      %v835 = vpop.permute.xlu0 %834
      %836 = vrot.lane.b32.xlu0 %v281, 16
      %v837 = vpop.permute.xlu0 %836
      %838 = vrot.lane.b32.xlu0 %v283, 16
      %v839 = vpop.permute.xlu0 %838
      %840 = vrot.lane.b32.xlu0 %v286, 16
      %v841 = vpop.permute.xlu0 %840
      %842 = vrot.lane.b32.xlu0 %v288, 16
      %v843 = vpop.permute.xlu0 %842
      %844 = vrot.lane.b32.xlu0 %v291, 16
      %v845 = vpop.permute.xlu0 %844
      %846 = vrot.lane.b32.xlu0 %v293, 16
      %v847 = vpop.permute.xlu0 %846
      %848 = vrot.lane.b32.xlu0 %v296, 16
      %v849 = vpop.permute.xlu0 %848
      %850 = vrot.lane.b32.xlu0 %v298, 16
      %v851 = vpop.permute.xlu0 %850
      %852 = vrot.lane.b32.xlu0 %v301, 16
      %v853 = vpop.permute.xlu0 %852
      %854 = vrot.lane.b32.xlu0 %v303, 16
      %v855 = vpop.permute.xlu0 %854
      %856 = vrot.lane.b32.xlu0 %v306, 16
      %v857 = vpop.permute.xlu0 %856
      %858 = vrot.lane.b32.xlu0 %v308, 16
      %v859 = vpop.permute.xlu0 %858
      %876 = vrot.lane.b32.xlu0 %v623, 20
      %v877 = vpop.permute.xlu0 %876
      %878 = vrot.lane.b32.xlu0 %v625, 20
      %v879 = vpop.permute.xlu0 %878
      %880 = vrot.lane.b32.xlu0 %v628, 20
      %v881 = vpop.permute.xlu0 %880
      %882 = vrot.lane.b32.xlu0 %v630, 20
      %v883 = vpop.permute.xlu0 %882
      %884 = vrot.lane.b32.xlu0 %v633, 20
      %v885 = vpop.permute.xlu0 %884
      %886 = vrot.lane.b32.xlu0 %v635, 20
      %v887 = vpop.permute.xlu0 %886
      %888 = vrot.lane.b32.xlu0 %v638, 20
      %v889 = vpop.permute.xlu0 %888
      %890 = vrot.lane.b32.xlu0 %v640, 20
      %v891 = vpop.permute.xlu0 %890
      %892 = vrot.lane.b32.xlu0 %v643, 20
      %v893 = vpop.permute.xlu0 %892
      %894 = vrot.lane.b32.xlu0 %v645, 20
      %v895 = vpop.permute.xlu0 %894
      %896 = vrot.lane.b32.xlu0 %v648, 20
      %v897 = vpop.permute.xlu0 %896
      %898 = vrot.lane.b32.xlu0 %v650, 20
      %v899 = vpop.permute.xlu0 %898
      %900 = vrot.lane.b32.xlu0 %v653, 20
      %v901 = vpop.permute.xlu0 %900
      %902 = vrot.lane.b32.xlu0 %v655, 20
      %v903 = vpop.permute.xlu0 %902
      %904 = vrot.lane.b32.xlu0 %v663, 20
      %v905 = vpop.permute.xlu0 %904
      %906 = vrot.lane.b32.xlu0 %v665, 20
      %v907 = vpop.permute.xlu0 %906
      %924 = vrot.lane.b32.xlu0 %v566, 24
      %v925 = vpop.permute.xlu0 %924
      %926 = vrot.lane.b32.xlu0 %v568, 24
      %v927 = vpop.permute.xlu0 %926
      %928 = vrot.lane.b32.xlu0 %v571, 24
      %v929 = vpop.permute.xlu0 %928
      %930 = vrot.lane.b32.xlu0 %v573, 24
      %v931 = vpop.permute.xlu0 %930
      %932 = vrot.lane.b32.xlu0 %v576, 24
      %v933 = vpop.permute.xlu0 %932
      %934 = vrot.lane.b32.xlu0 %v578, 24
      %v935 = vpop.permute.xlu0 %934
      %936 = vrot.lane.b32.xlu0 %v581, 24
      %v937 = vpop.permute.xlu0 %936
      %938 = vrot.lane.b32.xlu0 %v583, 24
      %v939 = vpop.permute.xlu0 %938
      %940 = vrot.lane.b32.xlu0 %v586, 24
      %v941 = vpop.permute.xlu0 %940
      %942 = vrot.lane.b32.xlu0 %v588, 24
      %v943 = vpop.permute.xlu0 %942
      %944 = vrot.lane.b32.xlu0 %v591, 24
      %v945 = vpop.permute.xlu0 %944
      %946 = vrot.lane.b32.xlu0 %v593, 24
      %v947 = vpop.permute.xlu0 %946
      %948 = vrot.lane.b32.xlu0 %v658, 24
      %v949 = vpop.permute.xlu0 %948
      %950 = vrot.lane.b32.xlu0 %v660, 24
      %v951 = vpop.permute.xlu0 %950
      %952 = vrot.lane.b32.xlu0 %v671, 24
      %v953 = vpop.permute.xlu0 %952
      %954 = vrot.lane.b32.xlu0 %v673, 24
      %v955 = vpop.permute.xlu0 %954
      %972 = vrot.lane.b32.xlu0 %v276, 28
      %v973 = vpop.permute.xlu0 %972
      %974 = vrot.lane.b32.xlu0 %v278, 28
      %v975 = vpop.permute.xlu0 %974
      %976 = vrot.lane.b32.xlu0 %v281, 28
      %v977 = vpop.permute.xlu0 %976
      %978 = vrot.lane.b32.xlu0 %v283, 28
      %v979 = vpop.permute.xlu0 %978
      %980 = vrot.lane.b32.xlu0 %v286, 28
      %v981 = vpop.permute.xlu0 %980
      %982 = vrot.lane.b32.xlu0 %v288, 28
      %v983 = vpop.permute.xlu0 %982
      %984 = vrot.lane.b32.xlu0 %v291, 28
      %v985 = vpop.permute.xlu0 %984
      %986 = vrot.lane.b32.xlu0 %v293, 28
      %v987 = vpop.permute.xlu0 %986
      %988 = vrot.lane.b32.xlu0 %v296, 28
      %v989 = vpop.permute.xlu0 %988
      %990 = vrot.lane.b32.xlu0 %v298, 28
      %v991 = vpop.permute.xlu0 %990
      %992 = vrot.lane.b32.xlu0 %v301, 28
      %v993 = vpop.permute.xlu0 %992
      %994 = vrot.lane.b32.xlu0 %v303, 28
      %v995 = vpop.permute.xlu0 %994
      %996 = vrot.lane.b32.xlu0 %v306, 28
      %v997 = vpop.permute.xlu0 %996
      %998 = vrot.lane.b32.xlu0 %v308, 28
      %v999 = vpop.permute.xlu0 %998
      %1000 = vrot.lane.b32.xlu0 %v676, 28
      %v1001 = vpop.permute.xlu0 %1000
      %1002 = vrot.lane.b32.xlu0 %v678, 28
      %v1003 = vpop.permute.xlu0 %1002
      %1020 = vrot.lane.b32.xlu0 %v628, 32
      %v1021 = vpop.permute.xlu0 %1020
      %1022 = vrot.lane.b32.xlu0 %v630, 32
      %v1023 = vpop.permute.xlu0 %1022
      %1024 = vrot.lane.b32.xlu0 %v633, 32
      %v1025 = vpop.permute.xlu0 %1024
      %1026 = vrot.lane.b32.xlu0 %v635, 32
      %v1027 = vpop.permute.xlu0 %1026
      %1028 = vrot.lane.b32.xlu0 %v638, 32
      %v1029 = vpop.permute.xlu0 %1028
      %1030 = vrot.lane.b32.xlu0 %v640, 32
      %v1031 = vpop.permute.xlu0 %1030
      %1032 = vrot.lane.b32.xlu0 %v643, 32
      %v1033 = vpop.permute.xlu0 %1032
      %1034 = vrot.lane.b32.xlu0 %v645, 32
      %v1035 = vpop.permute.xlu0 %1034
      %1036 = vrot.lane.b32.xlu0 %v648, 32
      %v1037 = vpop.permute.xlu0 %1036
      %1038 = vrot.lane.b32.xlu0 %v650, 32
      %v1039 = vpop.permute.xlu0 %1038
      %1040 = vrot.lane.b32.xlu0 %v653, 32
      %v1041 = vpop.permute.xlu0 %1040
      %1042 = vrot.lane.b32.xlu0 %v655, 32
      %v1043 = vpop.permute.xlu0 %1042
      %1044 = vrot.lane.b32.xlu0 %v663, 32
      %v1045 = vpop.permute.xlu0 %1044
      %1046 = vrot.lane.b32.xlu0 %v665, 32
      %v1047 = vpop.permute.xlu0 %1046
      %1048 = vrot.lane.b32.xlu0 %v681, 32
      %v1049 = vpop.permute.xlu0 %1048
      %1050 = vrot.lane.b32.xlu0 %v683, 32
      %v1051 = vpop.permute.xlu0 %1050
      %v1068 = vsel %vm334, %v556, %v685
      %v1069 = vsel %vm334, %v558, %v687
      %v1070 = vsel %vm334, %v561, %v689
      %v1071 = vsel %vm334, %v563, %v691
      %v1072 = vsel %vm334, %v566, %v693
      %v1073 = vsel %vm334, %v568, %v695
      %v1074 = vsel %vm334, %v571, %v697
      %v1075 = vsel %vm334, %v573, %v699
      %v1076 = vsel %vm334, %v576, %v701
      %v1077 = vsel %vm334, %v578, %v703
      %v1078 = vsel %vm334, %v581, %v705
      %v1079 = vsel %vm334, %v583, %v707
      %v1080 = vsel %vm334, %v586, %v709
      %v1081 = vsel %vm334, %v588, %v711
      %v1082 = vsel %vm334, %v591, %v713
      %v1083 = vsel %vm334, %v593, %v715
      %vm1084 = vcmask 64512
      %v1085 = vsel %vm1084, %v1068, %v733
      %v1086 = vsel %vm1084, %v1069, %v735
      %v1087 = vsel %vm1084, %v1070, %v737
      %v1088 = vsel %vm1084, %v1071, %v739
      %v1089 = vsel %vm1084, %v1072, %v741
      %v1090 = vsel %vm1084, %v1073, %v743
      %v1091 = vsel %vm1084, %v1074, %v745
      %v1092 = vsel %vm1084, %v1075, %v747
      %v1093 = vsel %vm1084, %v1076, %v749
      %v1094 = vsel %vm1084, %v1077, %v751
      %v1095 = vsel %vm1084, %v1078, %v753
      %v1096 = vsel %vm1084, %v1079, %v755
      %v1097 = vsel %vm1084, %v1080, %v757
      %v1098 = vsel %vm1084, %v1081, %v759
      %v1099 = vsel %vm1084, %v1082, %v761
      %v1100 = vsel %vm1084, %v1083, %v763
      %vm1101 = vcmask 97280
      %v1102 = vsel %vm1101, %v1085, %v781
      %v1103 = vsel %vm1101, %v1086, %v783
      %v1104 = vsel %vm1101, %v1087, %v785
      %v1105 = vsel %vm1101, %v1088, %v787
      %v1106 = vsel %vm1101, %v1089, %v789
      %v1107 = vsel %vm1101, %v1090, %v791
      %v1108 = vsel %vm1101, %v1091, %v793
      %v1109 = vsel %vm1101, %v1092, %v795
      %v1110 = vsel %vm1101, %v1093, %v797
      %v1111 = vsel %vm1101, %v1094, %v799
      %v1112 = vsel %vm1101, %v1095, %v801
      %v1113 = vsel %vm1101, %v1096, %v803
      %v1114 = vsel %vm1101, %v1097, %v805
      %v1115 = vsel %vm1101, %v1098, %v807
      %v1116 = vsel %vm1101, %v1099, %v809
      %v1117 = vsel %vm1101, %v1100, %v811
      %vm1118 = vcmask 130048
      %v1119 = vsel %vm1118, %v1102, %v829
      %v1120 = vsel %vm1118, %v1103, %v831
      %v1121 = vsel %vm1118, %v1104, %v833
      %v1122 = vsel %vm1118, %v1105, %v835
      %v1123 = vsel %vm1118, %v1106, %v837
      %v1124 = vsel %vm1118, %v1107, %v839
      %v1125 = vsel %vm1118, %v1108, %v841
      %v1126 = vsel %vm1118, %v1109, %v843
      %v1127 = vsel %vm1118, %v1110, %v845
      %v1128 = vsel %vm1118, %v1111, %v847
      %v1129 = vsel %vm1118, %v1112, %v849
      %v1130 = vsel %vm1118, %v1113, %v851
      %v1131 = vsel %vm1118, %v1114, %v853
      %v1132 = vsel %vm1118, %v1115, %v855
      %v1133 = vsel %vm1118, %v1116, %v857
      %v1134 = vsel %vm1118, %v1117, %v859
      %vm1135 = vcmask 162816
      %v1136 = vsel %vm1135, %v1119, %v877
      %v1137 = vsel %vm1135, %v1120, %v879
      %v1138 = vsel %vm1135, %v1121, %v881
      %v1139 = vsel %vm1135, %v1122, %v883
      %v1140 = vsel %vm1135, %v1123, %v885
      %v1141 = vsel %vm1135, %v1124, %v887
      %v1142 = vsel %vm1135, %v1125, %v889
      %v1143 = vsel %vm1135, %v1126, %v891
      %v1144 = vsel %vm1135, %v1127, %v893
      %v1145 = vsel %vm1135, %v1128, %v895
      %v1146 = vsel %vm1135, %v1129, %v897
      %v1147 = vsel %vm1135, %v1130, %v899
      %v1148 = vsel %vm1135, %v1131, %v901
      %v1149 = vsel %vm1135, %v1132, %v903
      %v1150 = vsel %vm1135, %v1133, %v905
      %v1151 = vsel %vm1135, %v1134, %v907
      %vm1152 = vcmask 195584
      %v1153 = vsel %vm1152, %v1136, %v925
      %v1154 = vsel %vm1152, %v1137, %v927
      %v1155 = vsel %vm1152, %v1138, %v929
      %v1156 = vsel %vm1152, %v1139, %v931
      %v1157 = vsel %vm1152, %v1140, %v933
      %v1158 = vsel %vm1152, %v1141, %v935
      %v1159 = vsel %vm1152, %v1142, %v937
      %v1160 = vsel %vm1152, %v1143, %v939
      %v1161 = vsel %vm1152, %v1144, %v941
      %v1162 = vsel %vm1152, %v1145, %v943
      %v1163 = vsel %vm1152, %v1146, %v945
      %v1164 = vsel %vm1152, %v1147, %v947
      %v1165 = vsel %vm1152, %v1148, %v949
      %v1166 = vsel %vm1152, %v1149, %v951
      %v1167 = vsel %vm1152, %v1150, %v953
      %v1168 = vsel %vm1152, %v1151, %v955
      %vm1169 = vcmask 228352
      %v1170 = vsel %vm1169, %v1153, %v973
      %v1171 = vsel %vm1169, %v1154, %v975
      %v1172 = vsel %vm1169, %v1155, %v977
      %v1173 = vsel %vm1169, %v1156, %v979
      %v1174 = vsel %vm1169, %v1157, %v981
      %v1175 = vsel %vm1169, %v1158, %v983
      %v1176 = vsel %vm1169, %v1159, %v985
      %v1177 = vsel %vm1169, %v1160, %v987
      %v1178 = vsel %vm1169, %v1161, %v989
      %v1179 = vsel %vm1169, %v1162, %v991
      %v1180 = vsel %vm1169, %v1163, %v993
      %v1181 = vsel %vm1169, %v1164, %v995
      %v1182 = vsel %vm1169, %v1165, %v997
      %v1183 = vsel %vm1169, %v1166, %v999
      %v1184 = vsel %vm1169, %v1167, %v1001
      %v1185 = vsel %vm1169, %v1168, %v1003
      %vm1186 = vcmask 261120
      %v1187 = vsel %vm1186, %v1170, %v1021
      %v1188 = vsel %vm1186, %v1171, %v1023
      %v1189 = vsel %vm1186, %v1172, %v1025
      %v1190 = vsel %vm1186, %v1173, %v1027
      %v1191 = vsel %vm1186, %v1174, %v1029
      %v1192 = vsel %vm1186, %v1175, %v1031
      %v1193 = vsel %vm1186, %v1176, %v1033
      %v1194 = vsel %vm1186, %v1177, %v1035
      %v1195 = vsel %vm1186, %v1178, %v1037
      %v1196 = vsel %vm1186, %v1179, %v1039
      %v1197 = vsel %vm1186, %v1180, %v1041
      %v1198 = vsel %vm1186, %v1181, %v1043
      %v1199 = vsel %vm1186, %v1182, %v1045
      %v1200 = vsel %vm1186, %v1183, %v1047
      %v1201 = vsel %vm1186, %v1184, %v1049
      %v1202 = vsel %vm1186, %v1185, %v1051
      %v1203 = vpack.c.bf16 %v1188, %v1187
      %v1204 = vpack.c.bf16 %v1190, %v1189
      %v1205 = vpack.c.bf16 %v1192, %v1191
      %v1206 = vpack.c.bf16 %v1194, %v1193
      %v1207 = vpack.c.bf16 %v1196, %v1195
      %v1208 = vpack.c.bf16 %v1198, %v1197
      %v1209 = vpack.c.bf16 %v1200, %v1199
      %v1210 = vpack.c.bf16 %v1202, %v1201
      %v1211 = vld [vmem:[%s2] sm:$0xf]
      %v1212 = vld [vmem:[%s2 + $0x4] sm:$0xf]
      %v1213 = vld [vmem:[%s2 + $0x8] sm:$0xf]
      %v1214 = vld [vmem:[%s2 + $0xc] sm:$0xf]
      %v1215 = vld [vmem:[%s2 + $0x10] sm:$0x3]
      %v1221 = vunpack.c.l.b16 %v1211
      %v1222 = vunpack.c.l.b16 %v1212
      %v1223 = vunpack.c.l.b16 %v1213
      %v1224 = vunpack.c.l.b16 %v1214
      %v1225 = vunpack.c.l.b16 %v1215
      %v1226 = vpack.c.b16 %v1222, %v1221
      %v1227 = vpack.c.b16 %v1224, %v1223
      %v1228 = vpack.c.b16 %v1225, %v1225
      %vm1231 = vcmask 293888
      %v1233 = vsel %vm1231, %v1203, 0
      %v1236 = vsel %vm1231, %v1204, 0
      %v1239 = vsel %vm1231, %v1205, 0
      %v1242 = vsel %vm1231, %v1206, 0
      %v1245 = vsel %vm1231, %v1207, 0
      %v1248 = vsel %vm1231, %v1208, 0
      %v1251 = vsel %vm1231, %v1209, 0
      %v1254 = vsel %vm1231, %v1210, 0
      %v1257 = vsel %vm268, %v1228, 0
      %1259 = vmatprep.subr.bf16.mxu0 0
      %1260 = vmatpush1.bf16.msra.mxu0 %v1226
      %1261 = vmatprep.subr.bf16.mxu0 0
      %1262 = vmatpush1.bf16.msra.mxu0 %v1227
      %1263 = vmatprep.subr.bf16.mxu0 0
      %1264 = vmatpush1.bf16.msra.mxu0 %v1257
      %1265 = vmatprep.subr.bf16.mxu0 0
      %1266 = vmatpush1.bf16.msra.mxu0 0
      %1267 = vmatprep.subr.bf16.mxu0 0
      %1268 = vmatpush1.bf16.msra.mxu0 0
      %1269 = vmatprep.subr.bf16.mxu0 0
      %1270 = vmatpush1.bf16.msra.mxu0 0
      %1271 = vmatprep.subr.bf16.mxu0 0
      %1272 = vmatpush1.bf16.msra.mxu0 0
      %1273 = vmatprep.subr.bf16.mxu0 0
      %1274 = vmatpush1.bf16.msra.mxu0 0
      %1275 = vmatprep.subr.bf16.mxu0 0
      %1276 = vmatpush1.bf16.msra.mxu0 0
      %1277 = vmatprep.subr.bf16.mxu0 0
      %1278 = vmatpush1.bf16.msra.mxu0 0
      %1279 = vmatprep.subr.bf16.mxu0 0
      %1280 = vmatpush1.bf16.msra.mxu0 0
      %1281 = vmatprep.subr.bf16.mxu0 0
      %1282 = vmatpush1.bf16.msra.mxu0 0
      %1283 = vmatprep.subr.bf16.mxu0 0
      %1284 = vmatpush1.bf16.msra.mxu0 0
      %1285 = vmatprep.subr.bf16.mxu0 0
      %1286 = vmatpush1.bf16.msra.mxu0 0
      %1287 = vmatprep.subr.bf16.mxu0 0
      %1288 = vmatpush1.bf16.msra.mxu0 0
      %1289 = vmatprep.subr.bf16.mxu0 0
      %1290 = vmatpush1.bf16.msra.mxu0 0
      %1291 = vmatprep.mubr.bf16.mxu0 0
      %1292 = vmatmul.mubr.bf16.gmra.mrb[0].mxu0 %v1233
      %v1293 = vpop.f32.mrb[0].mxu0
      %v1294 = vadd.f32 0.0, %v1293
      %v1295 = vpop.f32.mrb[0].mxu0
      %v1296 = vpop.f32.mrb[0].mxu0
      %v1297 = vadd.f32 0.0, %v1296
      %v1298 = vpop.f32.mrb[0].mxu0
      %1299 = vmatprep.mubr.bf16.mxu0 0
      %1300 = vmatmul.mubr.bf16.gmra.mrb[0].mxu0 %v1236
      %v1301 = vpop.f32.mrb[0].mxu0
      %v1302 = vadd.f32 0.0, %v1301
      %v1303 = vpop.f32.mrb[0].mxu0
      %v1304 = vpop.f32.mrb[0].mxu0
      %v1305 = vadd.f32 0.0, %v1304
      %v1306 = vpop.f32.mrb[0].mxu0
      %1307 = vmatprep.mubr.bf16.mxu0 0
      %1308 = vmatmul.mubr.bf16.gmra.mrb[0].mxu0 %v1239
      %v1309 = vpop.f32.mrb[0].mxu0
      %v1310 = vadd.f32 0.0, %v1309
      %v1311 = vpop.f32.mrb[0].mxu0
      %v1312 = vpop.f32.mrb[0].mxu0
      %v1313 = vadd.f32 0.0, %v1312
      %v1314 = vpop.f32.mrb[0].mxu0
      %1315 = vmatprep.mubr.bf16.mxu0 0
      %1316 = vmatmul.mubr.bf16.gmra.mrb[0].mxu0 %v1242
      %v1317 = vpop.f32.mrb[0].mxu0
      %v1318 = vadd.f32 0.0, %v1317
      %v1319 = vpop.f32.mrb[0].mxu0
      %v1320 = vpop.f32.mrb[0].mxu0
      %v1321 = vadd.f32 0.0, %v1320
      %v1322 = vpop.f32.mrb[0].mxu0
      %1323 = vmatprep.mubr.bf16.mxu0 0
      %1324 = vmatmul.mubr.bf16.gmra.mrb[0].mxu0 %v1245
      %v1325 = vpop.f32.mrb[0].mxu0
      %v1326 = vadd.f32 0.0, %v1325
      %v1327 = vpop.f32.mrb[0].mxu0
      %v1328 = vpop.f32.mrb[0].mxu0
      %v1329 = vadd.f32 0.0, %v1328
      %v1330 = vpop.f32.mrb[0].mxu0
      %1331 = vmatprep.mubr.bf16.mxu0 0
      %1332 = vmatmul.mubr.bf16.gmra.mrb[0].mxu0 %v1248
      %v1333 = vpop.f32.mrb[0].mxu0
      %v1334 = vadd.f32 0.0, %v1333
      %v1335 = vpop.f32.mrb[0].mxu0
      %v1336 = vpop.f32.mrb[0].mxu0
      %v1337 = vadd.f32 0.0, %v1336
      %v1338 = vpop.f32.mrb[0].mxu0
      %1339 = vmatprep.mubr.bf16.mxu0 0
      %1340 = vmatmul.mubr.bf16.gmra.mrb[0].mxu0 %v1251
      %v1341 = vpop.f32.mrb[0].mxu0
      %v1342 = vadd.f32 0.0, %v1341
      %v1343 = vpop.f32.mrb[0].mxu0
      %v1344 = vpop.f32.mrb[0].mxu0
      %v1345 = vadd.f32 0.0, %v1344
      %v1346 = vpop.f32.mrb[0].mxu0
      %1347 = vmatprep.mubr.bf16.mxu0 0
      %1348 = vmatmul.mubr.bf16.gmra.mrb[0].mxu0 %v1254
      %v1349 = vpop.f32.mrb[0].mxu0
      %v1350 = vadd.f32 0.0, %v1349
      %v1351 = vpop.f32.mrb[0].mxu0
      %v1352 = vpop.f32.mrb[0].mxu0
      %v1353 = vadd.f32 0.0, %v1352
      %v1354 = vpop.f32.mrb[0].mxu0
      %1355 = vdwg.mxu0
      %v1356 = vsel %vm459, %v1294, 0.0
      %v1357 = vsel %vm459, %v1297, 0.0
      %v1358 = vadd.f32 %v1356, %v1357
      %v1359 = vsel %vm459, %v1302, 0.0
      %v1360 = vadd.f32 %v1358, %v1359
      %v1361 = vsel %vm459, %v1305, 0.0
      %v1362 = vadd.f32 %v1360, %v1361
      %v1363 = vsel %vm459, %v1310, 0.0
      %v1364 = vadd.f32 %v1362, %v1363
      %v1365 = vsel %vm459, %v1313, 0.0
      %v1366 = vadd.f32 %v1364, %v1365
      %v1367 = vsel %vm459, %v1318, 0.0
      %v1368 = vadd.f32 %v1366, %v1367
      %v1369 = vsel %vm459, %v1321, 0.0
      %v1370 = vadd.f32 %v1368, %v1369
      %v1371 = vsel %vm459, %v1326, 0.0
      %v1372 = vadd.f32 %v1370, %v1371
      %v1373 = vsel %vm459, %v1329, 0.0
      %v1374 = vadd.f32 %v1372, %v1373
      %v1375 = vsel %vm459, %v1334, 0.0
      %v1376 = vadd.f32 %v1374, %v1375
      %v1377 = vsel %vm459, %v1337, 0.0
      %v1378 = vadd.f32 %v1376, %v1377
      %v1379 = vsel %vm459, %v1342, 0.0
      %v1380 = vadd.f32 %v1378, %v1379
      %v1381 = vsel %vm459, %v1345, 0.0
      %v1382 = vadd.f32 %v1380, %v1381
      %v1383 = vsel %vm459, %v1350, 0.0
      %v1384 = vadd.f32 %v1382, %v1383
      %v1385 = vsel %vm459, %v1353, 0.0
      %v1386 = vadd.f32 %v1384, %v1385
      %v1387 = vrot.slane %v1386, 4
      %v1388 = vadd.f32 %v1386, %v1387
      %v1389 = vrot.slane %v1388, 2
      %v1390 = vadd.f32 %v1388, %v1389
      %v1391 = vrot.slane %v1390, 1
      %v1392 = vadd.f32 %v1390, %v1391
      %v1393 = vmul.f32 %v1294, %v1294
      %v1394 = vmul.f32 %v1297, %v1297
      %v1395 = vmul.f32 %v1302, %v1302
      %v1396 = vmul.f32 %v1305, %v1305
      %v1397 = vmul.f32 %v1310, %v1310
      %v1398 = vmul.f32 %v1313, %v1313
      %v1399 = vmul.f32 %v1318, %v1318
      %v1400 = vmul.f32 %v1321, %v1321
      %v1401 = vmul.f32 %v1326, %v1326
      %v1402 = vmul.f32 %v1329, %v1329
      %v1403 = vmul.f32 %v1334, %v1334
      %v1404 = vmul.f32 %v1337, %v1337
      %v1405 = vmul.f32 %v1342, %v1342
      %v1406 = vmul.f32 %v1345, %v1345
      %v1407 = vmul.f32 %v1350, %v1350
      %v1408 = vmul.f32 %v1353, %v1353
      %v1409 = vsel %vm459, %v1393, 0.0
      %v1410 = vsel %vm459, %v1394, 0.0
      %v1411 = vadd.f32 %v1409, %v1410
      %v1412 = vsel %vm459, %v1395, 0.0
      %v1413 = vadd.f32 %v1411, %v1412
      %v1414 = vsel %vm459, %v1396, 0.0
      %v1415 = vadd.f32 %v1413, %v1414
      %v1416 = vsel %vm459, %v1397, 0.0
      %v1417 = vadd.f32 %v1415, %v1416
      %v1418 = vsel %vm459, %v1398, 0.0
      %v1419 = vadd.f32 %v1417, %v1418
      %v1420 = vsel %vm459, %v1399, 0.0
      %v1421 = vadd.f32 %v1419, %v1420
      %v1422 = vsel %vm459, %v1400, 0.0
      %v1423 = vadd.f32 %v1421, %v1422
      %v1424 = vsel %vm459, %v1401, 0.0
      %v1425 = vadd.f32 %v1423, %v1424
      %v1426 = vsel %vm459, %v1402, 0.0
      %v1427 = vadd.f32 %v1425, %v1426
      %v1428 = vsel %vm459, %v1403, 0.0
      %v1429 = vadd.f32 %v1427, %v1428
      %v1430 = vsel %vm459, %v1404, 0.0
      %v1431 = vadd.f32 %v1429, %v1430
      %v1432 = vsel %vm459, %v1405, 0.0
      %v1433 = vadd.f32 %v1431, %v1432
      %v1434 = vsel %vm459, %v1406, 0.0
      %v1435 = vadd.f32 %v1433, %v1434
      %v1436 = vsel %vm459, %v1407, 0.0
      %v1437 = vadd.f32 %v1435, %v1436
      %v1438 = vsel %vm459, %v1408, 0.0
      %v1439 = vadd.f32 %v1437, %v1438
      %v1440 = vrot.slane %v1439, 4
      %v1441 = vadd.f32 %v1439, %v1440
      %v1442 = vrot.slane %v1441, 2
      %v1443 = vadd.f32 %v1441, %v1442
      %v1444 = vrot.slane %v1443, 1
      %v1445 = vadd.f32 %v1443, %v1444
      %vm1449 = vcmask 1043456
      %v1450 = vrot.slane %v180, 4
      %v1451 = vrot.slane %v181, 4
      %v1452 = vsel %vm1449, %v1450, %v1451
      %v1453 = vrot.slane %v182, 4
      %v1454 = vsel %vm1449, %v1451, %v1453
      %v1455 = vrot.slane %v184, 4
      %v1456 = vrot.slane %v185, 4
      %v1457 = vsel %vm1449, %v1455, %v1456
      %v1458 = vrot.slane %v186, 4
      %v1459 = vsel %vm1449, %v1456, %v1458
      %v1460 = vrot.slane %v188, 4
      %v1461 = vrot.slane %v189, 4
      %v1462 = vsel %vm1449, %v1460, %v1461
      %v1463 = vrot.slane %v190, 4
      %v1464 = vsel %vm1449, %v1461, %v1463
      %v1465 = vrot.slane %v192, 4
      %v1466 = vrot.slane %v193, 4
      %v1467 = vsel %vm1449, %v1465, %v1466
      %v1468 = vrot.slane %v194, 4
      %v1469 = vsel %vm1449, %v1466, %v1468
      %v1470 = vrot.slane %v196, 4
      %v1471 = vrot.slane %v197, 4
      %v1472 = vsel %vm1449, %v1470, %v1471
      %v1473 = vrot.slane %v198, 4
      %v1474 = vsel %vm1449, %v1471, %v1473
      %v1475 = vrot.slane %v200, 4
      %v1476 = vrot.slane %v201, 4
      %v1477 = vsel %vm1449, %v1475, %v1476
      %v1478 = vrot.slane %v202, 4
      %v1479 = vsel %vm1449, %v1476, %v1478
      %v1480 = vrot.slane %v204, 4
      %v1481 = vrot.slane %v205, 4
      %v1482 = vsel %vm1449, %v1480, %v1481
      %v1483 = vrot.slane %v206, 4
      %v1484 = vsel %vm1449, %v1481, %v1483
      %v1485 = vrot.slane %v208, 4
      %v1486 = vrot.slane %v209, 4
      %v1487 = vsel %vm1449, %v1485, %v1486
      %v1488 = vrot.slane %v210, 4
      %v1489 = vsel %vm1449, %v1486, %v1488
      %v1506 = vrot.slane %v180, 6
      %v1507 = vrot.slane %v181, 6
      %v1508 = vsel %vm268, %v1506, %v1507
      %v1509 = vrot.slane %v182, 6
      %v1510 = vsel %vm268, %v1507, %v1509
      %v1511 = vrot.slane %v212, 4
      %v1512 = vrot.slane %v213, 4
      %v1513 = vsel %vm1449, %v1511, %v1512
      %v1514 = vrot.slane %v214, 4
      %v1515 = vsel %vm1449, %v1512, %v1514
      %v1516 = vrot.slane %v216, 4
      %v1517 = vrot.slane %v217, 4
      %v1518 = vsel %vm1449, %v1516, %v1517
      %v1519 = vrot.slane %v218, 4
      %v1520 = vsel %vm1449, %v1517, %v1519
      %v1524 = vrot.slane %v220, 4
      %v1525 = vrot.slane %v221, 4
      %v1526 = vsel %vm1449, %v1524, %v1525
      %v1527 = vrot.slane %v222, 4
      %v1528 = vsel %vm1449, %v1525, %v1527
      %v1529 = vrot.slane %v224, 4
      %v1530 = vrot.slane %v225, 4
      %v1531 = vsel %vm1449, %v1529, %v1530
      %v1532 = vrot.slane %v226, 4
      %v1533 = vsel %vm1449, %v1530, %v1532
      %v1534 = vrot.slane %v224, 6
      %v1535 = vrot.slane %v225, 6
      %v1536 = vsel %vm268, %v1534, %v1535
      %v1537 = vrot.slane %v226, 6
      %v1538 = vsel %vm268, %v1535, %v1537
      %1539 = vrot.lane.b32.xlu0 %v1508, 4
      %v1540 = vpop.permute.xlu0 %1539
      %1541 = vrot.lane.b32.xlu0 %v1510, 4
      %v1542 = vpop.permute.xlu0 %1541
      %1545 = vrot.lane.b32.xlu0 %v181, 8
      %v1546 = vpop.permute.xlu0 %1545
      %1547 = vrot.lane.b32.xlu0 %v182, 8
      %v1548 = vpop.permute.xlu0 %1547
      %1549 = vrot.lane.b32.xlu0 %v185, 8
      %v1550 = vpop.permute.xlu0 %1549
      %1551 = vrot.lane.b32.xlu0 %v186, 8
      %v1552 = vpop.permute.xlu0 %1551
      %1553 = vrot.lane.b32.xlu0 %v189, 8
      %v1554 = vpop.permute.xlu0 %1553
      %1555 = vrot.lane.b32.xlu0 %v190, 8
      %v1556 = vpop.permute.xlu0 %1555
      %1557 = vrot.lane.b32.xlu0 %v193, 8
      %v1558 = vpop.permute.xlu0 %1557
      %1559 = vrot.lane.b32.xlu0 %v194, 8
      %v1560 = vpop.permute.xlu0 %1559
      %1561 = vrot.lane.b32.xlu0 %v197, 8
      %v1562 = vpop.permute.xlu0 %1561
      %1563 = vrot.lane.b32.xlu0 %v198, 8
      %v1564 = vpop.permute.xlu0 %1563
      %1565 = vrot.lane.b32.xlu0 %v201, 8
      %v1566 = vpop.permute.xlu0 %1565
      %1567 = vrot.lane.b32.xlu0 %v202, 8
      %v1568 = vpop.permute.xlu0 %1567
      %1569 = vrot.lane.b32.xlu0 %v205, 8
      %v1570 = vpop.permute.xlu0 %1569
      %1571 = vrot.lane.b32.xlu0 %v206, 8
      %v1572 = vpop.permute.xlu0 %1571
      %1573 = vrot.lane.b32.xlu0 %v209, 8
      %v1574 = vpop.permute.xlu0 %1573
      %1575 = vrot.lane.b32.xlu0 %v210, 8
      %v1576 = vpop.permute.xlu0 %1575
      %1593 = vrot.lane.b32.xlu0 %v1462, 12
      %v1594 = vpop.permute.xlu0 %1593
      %1595 = vrot.lane.b32.xlu0 %v1464, 12
      %v1596 = vpop.permute.xlu0 %1595
      %1597 = vrot.lane.b32.xlu0 %v1467, 12
      %v1598 = vpop.permute.xlu0 %1597
      %1599 = vrot.lane.b32.xlu0 %v1469, 12
      %v1600 = vpop.permute.xlu0 %1599
      %1601 = vrot.lane.b32.xlu0 %v1472, 12
      %v1602 = vpop.permute.xlu0 %1601
      %1603 = vrot.lane.b32.xlu0 %v1474, 12
      %v1604 = vpop.permute.xlu0 %1603
      %1605 = vrot.lane.b32.xlu0 %v1477, 12
      %v1606 = vpop.permute.xlu0 %1605
      %1607 = vrot.lane.b32.xlu0 %v1479, 12
      %v1608 = vpop.permute.xlu0 %1607
      %1609 = vrot.lane.b32.xlu0 %v1482, 12
      %v1610 = vpop.permute.xlu0 %1609
      %1611 = vrot.lane.b32.xlu0 %v1484, 12
      %v1612 = vpop.permute.xlu0 %1611
      %1613 = vrot.lane.b32.xlu0 %v1487, 12
      %v1614 = vpop.permute.xlu0 %1613
      %1615 = vrot.lane.b32.xlu0 %v1489, 12
      %v1616 = vpop.permute.xlu0 %1615
      %1617 = vrot.lane.b32.xlu0 %v1513, 12
      %v1618 = vpop.permute.xlu0 %1617
      %1619 = vrot.lane.b32.xlu0 %v1515, 12
      %v1620 = vpop.permute.xlu0 %1619
      %1621 = vrot.lane.b32.xlu0 %v1518, 12
      %v1622 = vpop.permute.xlu0 %1621
      %1623 = vrot.lane.b32.xlu0 %v1520, 12
      %v1624 = vpop.permute.xlu0 %1623
      %1641 = vrot.lane.b32.xlu0 %v189, 20
      %v1642 = vpop.permute.xlu0 %1641
      %1643 = vrot.lane.b32.xlu0 %v190, 20
      %v1644 = vpop.permute.xlu0 %1643
      %1645 = vrot.lane.b32.xlu0 %v193, 20
      %v1646 = vpop.permute.xlu0 %1645
      %1647 = vrot.lane.b32.xlu0 %v194, 20
      %v1648 = vpop.permute.xlu0 %1647
      %1649 = vrot.lane.b32.xlu0 %v197, 20
      %v1650 = vpop.permute.xlu0 %1649
      %1651 = vrot.lane.b32.xlu0 %v198, 20
      %v1652 = vpop.permute.xlu0 %1651
      %1653 = vrot.lane.b32.xlu0 %v201, 20
      %v1654 = vpop.permute.xlu0 %1653
      %1655 = vrot.lane.b32.xlu0 %v202, 20
      %v1656 = vpop.permute.xlu0 %1655
      %1657 = vrot.lane.b32.xlu0 %v205, 20
      %v1658 = vpop.permute.xlu0 %1657
      %1659 = vrot.lane.b32.xlu0 %v206, 20
      %v1660 = vpop.permute.xlu0 %1659
      %1661 = vrot.lane.b32.xlu0 %v209, 20
      %v1662 = vpop.permute.xlu0 %1661
      %1663 = vrot.lane.b32.xlu0 %v210, 20
      %v1664 = vpop.permute.xlu0 %1663
      %1665 = vrot.lane.b32.xlu0 %v213, 20
      %v1666 = vpop.permute.xlu0 %1665
      %1667 = vrot.lane.b32.xlu0 %v214, 20
      %v1668 = vpop.permute.xlu0 %1667
      %1669 = vrot.lane.b32.xlu0 %v217, 20
      %v1670 = vpop.permute.xlu0 %1669
      %1671 = vrot.lane.b32.xlu0 %v218, 20
      %v1672 = vpop.permute.xlu0 %1671
      %1689 = vrot.lane.b32.xlu0 %v1472, 24
      %v1690 = vpop.permute.xlu0 %1689
      %1691 = vrot.lane.b32.xlu0 %v1474, 24
      %v1692 = vpop.permute.xlu0 %1691
      %1693 = vrot.lane.b32.xlu0 %v1477, 24
      %v1694 = vpop.permute.xlu0 %1693
      %1695 = vrot.lane.b32.xlu0 %v1479, 24
      %v1696 = vpop.permute.xlu0 %1695
      %1697 = vrot.lane.b32.xlu0 %v1482, 24
      %v1698 = vpop.permute.xlu0 %1697
      %1699 = vrot.lane.b32.xlu0 %v1484, 24
      %v1700 = vpop.permute.xlu0 %1699
      %1701 = vrot.lane.b32.xlu0 %v1487, 24
      %v1702 = vpop.permute.xlu0 %1701
      %1703 = vrot.lane.b32.xlu0 %v1489, 24
      %v1704 = vpop.permute.xlu0 %1703
      %1705 = vrot.lane.b32.xlu0 %v1513, 24
      %v1706 = vpop.permute.xlu0 %1705
      %1707 = vrot.lane.b32.xlu0 %v1515, 24
      %v1708 = vpop.permute.xlu0 %1707
      %1709 = vrot.lane.b32.xlu0 %v1518, 24
      %v1710 = vpop.permute.xlu0 %1709
      %1711 = vrot.lane.b32.xlu0 %v1520, 24
      %v1712 = vpop.permute.xlu0 %1711
      %1713 = vrot.lane.b32.xlu0 %v1526, 24
      %v1714 = vpop.permute.xlu0 %1713
      %1715 = vrot.lane.b32.xlu0 %v1528, 24
      %v1716 = vpop.permute.xlu0 %1715
      %1717 = vrot.lane.b32.xlu0 %v1531, 24
      %v1718 = vpop.permute.xlu0 %1717
      %1719 = vrot.lane.b32.xlu0 %v1533, 24
      %v1720 = vpop.permute.xlu0 %1719
      %1737 = vrot.lane.b32.xlu0 %v1536, 28
      %v1738 = vpop.permute.xlu0 %1737
      %1739 = vrot.lane.b32.xlu0 %v1538, 28
      %v1740 = vpop.permute.xlu0 %1739
      %1743 = vrot.lane.b32.xlu0 %v197, 32
      %v1744 = vpop.permute.xlu0 %1743
      %1745 = vrot.lane.b32.xlu0 %v198, 32
      %v1746 = vpop.permute.xlu0 %1745
      %1747 = vrot.lane.b32.xlu0 %v201, 32
      %v1748 = vpop.permute.xlu0 %1747
      %1749 = vrot.lane.b32.xlu0 %v202, 32
      %v1750 = vpop.permute.xlu0 %1749
      %1751 = vrot.lane.b32.xlu0 %v205, 32
      %v1752 = vpop.permute.xlu0 %1751
      %1753 = vrot.lane.b32.xlu0 %v206, 32
      %v1754 = vpop.permute.xlu0 %1753
      %1755 = vrot.lane.b32.xlu0 %v209, 32
      %v1756 = vpop.permute.xlu0 %1755
      %1757 = vrot.lane.b32.xlu0 %v210, 32
      %v1758 = vpop.permute.xlu0 %1757
      %1759 = vrot.lane.b32.xlu0 %v213, 32
      %v1760 = vpop.permute.xlu0 %1759
      %1761 = vrot.lane.b32.xlu0 %v214, 32
      %v1762 = vpop.permute.xlu0 %1761
      %1763 = vrot.lane.b32.xlu0 %v217, 32
      %v1764 = vpop.permute.xlu0 %1763
      %1765 = vrot.lane.b32.xlu0 %v218, 32
      %v1766 = vpop.permute.xlu0 %1765
      %1767 = vrot.lane.b32.xlu0 %v221, 32
      %v1768 = vpop.permute.xlu0 %1767
      %1769 = vrot.lane.b32.xlu0 %v222, 32
      %v1770 = vpop.permute.xlu0 %1769
      %1771 = vrot.lane.b32.xlu0 %v225, 32
      %v1772 = vpop.permute.xlu0 %1771
      %1773 = vrot.lane.b32.xlu0 %v226, 32
      %v1774 = vpop.permute.xlu0 %1773
      %v1791 = vsel %vm334, %v1452, %v1540
      %v1792 = vsel %vm334, %v1454, %v1542
      %v1793 = vsel %vm334, %v1457, %v685
      %v1794 = vsel %vm334, %v1459, %v687
      %v1795 = vsel %vm334, %v1462, %v689
      %v1796 = vsel %vm334, %v1464, %v691
      %v1797 = vsel %vm334, %v1467, %v693
      %v1798 = vsel %vm334, %v1469, %v695
      %v1799 = vsel %vm334, %v1472, %v697
      %v1800 = vsel %vm334, %v1474, %v699
      %v1801 = vsel %vm334, %v1477, %v701
      %v1802 = vsel %vm334, %v1479, %v703
      %v1803 = vsel %vm334, %v1482, %v705
      %v1804 = vsel %vm334, %v1484, %v707
      %v1805 = vsel %vm334, %v1487, %v709
      %v1806 = vsel %vm334, %v1489, %v711
      %v1807 = vsel %vm1084, %v1791, %v1546
      %v1808 = vsel %vm1084, %v1792, %v1548
      %v1809 = vsel %vm1084, %v1793, %v1550
      %v1810 = vsel %vm1084, %v1794, %v1552
      %v1811 = vsel %vm1084, %v1795, %v1554
      %v1812 = vsel %vm1084, %v1796, %v1556
      %v1813 = vsel %vm1084, %v1797, %v1558
      %v1814 = vsel %vm1084, %v1798, %v1560
      %v1815 = vsel %vm1084, %v1799, %v1562
      %v1816 = vsel %vm1084, %v1800, %v1564
      %v1817 = vsel %vm1084, %v1801, %v1566
      %v1818 = vsel %vm1084, %v1802, %v1568
      %v1819 = vsel %vm1084, %v1803, %v1570
      %v1820 = vsel %vm1084, %v1804, %v1572
      %v1821 = vsel %vm1084, %v1805, %v1574
      %v1822 = vsel %vm1084, %v1806, %v1576
      %v1823 = vsel %vm1101, %v1807, %v1594
      %v1824 = vsel %vm1101, %v1808, %v1596
      %v1825 = vsel %vm1101, %v1809, %v1598
      %v1826 = vsel %vm1101, %v1810, %v1600
      %v1827 = vsel %vm1101, %v1811, %v1602
      %v1828 = vsel %vm1101, %v1812, %v1604
      %v1829 = vsel %vm1101, %v1813, %v1606
      %v1830 = vsel %vm1101, %v1814, %v1608
      %v1831 = vsel %vm1101, %v1815, %v1610
      %v1832 = vsel %vm1101, %v1816, %v1612
      %v1833 = vsel %vm1101, %v1817, %v1614
      %v1834 = vsel %vm1101, %v1818, %v1616
      %v1835 = vsel %vm1101, %v1819, %v1618
      %v1836 = vsel %vm1101, %v1820, %v1620
      %v1837 = vsel %vm1101, %v1821, %v1622
      %v1838 = vsel %vm1101, %v1822, %v1624
      %v1839 = vsel %vm1118, %v1823, %v829
      %v1840 = vsel %vm1118, %v1824, %v831
      %v1841 = vsel %vm1118, %v1825, %v833
      %v1842 = vsel %vm1118, %v1826, %v835
      %v1843 = vsel %vm1118, %v1827, %v837
      %v1844 = vsel %vm1118, %v1828, %v839
      %v1845 = vsel %vm1118, %v1829, %v841
      %v1846 = vsel %vm1118, %v1830, %v843
      %v1847 = vsel %vm1118, %v1831, %v845
      %v1848 = vsel %vm1118, %v1832, %v847
      %v1849 = vsel %vm1118, %v1833, %v849
      %v1850 = vsel %vm1118, %v1834, %v851
      %v1851 = vsel %vm1118, %v1835, %v853
      %v1852 = vsel %vm1118, %v1836, %v855
      %v1853 = vsel %vm1118, %v1837, %v857
      %v1854 = vsel %vm1118, %v1838, %v859
      %v1855 = vsel %vm1135, %v1839, %v1642
      %v1856 = vsel %vm1135, %v1840, %v1644
      %v1857 = vsel %vm1135, %v1841, %v1646
      %v1858 = vsel %vm1135, %v1842, %v1648
      %v1859 = vsel %vm1135, %v1843, %v1650
      %v1860 = vsel %vm1135, %v1844, %v1652
      %v1861 = vsel %vm1135, %v1845, %v1654
      %v1862 = vsel %vm1135, %v1846, %v1656
      %v1863 = vsel %vm1135, %v1847, %v1658
      %v1864 = vsel %vm1135, %v1848, %v1660
      %v1865 = vsel %vm1135, %v1849, %v1662
      %v1866 = vsel %vm1135, %v1850, %v1664
      %v1867 = vsel %vm1135, %v1851, %v1666
      %v1868 = vsel %vm1135, %v1852, %v1668
      %v1869 = vsel %vm1135, %v1853, %v1670
      %v1870 = vsel %vm1135, %v1854, %v1672
      %v1871 = vsel %vm1152, %v1855, %v1690
      %v1872 = vsel %vm1152, %v1856, %v1692
      %v1873 = vsel %vm1152, %v1857, %v1694
      %v1874 = vsel %vm1152, %v1858, %v1696
      %v1875 = vsel %vm1152, %v1859, %v1698
      %v1876 = vsel %vm1152, %v1860, %v1700
      %v1877 = vsel %vm1152, %v1861, %v1702
      %v1878 = vsel %vm1152, %v1862, %v1704
      %v1879 = vsel %vm1152, %v1863, %v1706
      %v1880 = vsel %vm1152, %v1864, %v1708
      %v1881 = vsel %vm1152, %v1865, %v1710
      %v1882 = vsel %vm1152, %v1866, %v1712
      %v1883 = vsel %vm1152, %v1867, %v1714
      %v1884 = vsel %vm1152, %v1868, %v1716
      %v1885 = vsel %vm1152, %v1869, %v1718
      %v1886 = vsel %vm1152, %v1870, %v1720
      %v1887 = vsel %vm1169, %v1871, %v977
      %v1888 = vsel %vm1169, %v1872, %v979
      %v1889 = vsel %vm1169, %v1873, %v981
      %v1890 = vsel %vm1169, %v1874, %v983
      %v1891 = vsel %vm1169, %v1875, %v985
      %v1892 = vsel %vm1169, %v1876, %v987
      %v1893 = vsel %vm1169, %v1877, %v989
      %v1894 = vsel %vm1169, %v1878, %v991
      %v1895 = vsel %vm1169, %v1879, %v993
      %v1896 = vsel %vm1169, %v1880, %v995
      %v1897 = vsel %vm1169, %v1881, %v997
      %v1898 = vsel %vm1169, %v1882, %v999
      %v1899 = vsel %vm1169, %v1883, %v1001
      %v1900 = vsel %vm1169, %v1884, %v1003
      %v1901 = vsel %vm1169, %v1885, %v1738
      %v1902 = vsel %vm1169, %v1886, %v1740
      %v1903 = vsel %vm1186, %v1887, %v1744
      %v1904 = vsel %vm1186, %v1888, %v1746
      %v1905 = vsel %vm1186, %v1889, %v1748
      %v1906 = vsel %vm1186, %v1890, %v1750
      %v1907 = vsel %vm1186, %v1891, %v1752
      %v1908 = vsel %vm1186, %v1892, %v1754
      %v1909 = vsel %vm1186, %v1893, %v1756
      %v1910 = vsel %vm1186, %v1894, %v1758
      %v1911 = vsel %vm1186, %v1895, %v1760
      %v1912 = vsel %vm1186, %v1896, %v1762
      %v1913 = vsel %vm1186, %v1897, %v1764
      %v1914 = vsel %vm1186, %v1898, %v1766
      %v1915 = vsel %vm1186, %v1899, %v1768
      %v1916 = vsel %vm1186, %v1900, %v1770
      %v1917 = vsel %vm1186, %v1901, %v1772
      %v1918 = vsel %vm1186, %v1902, %v1774
      %v1919 = vpack.c.bf16 %v1904, %v1903
      %v1920 = vpack.c.bf16 %v1906, %v1905
      %v1921 = vpack.c.bf16 %v1908, %v1907
      %v1922 = vpack.c.bf16 %v1910, %v1909
      %v1923 = vpack.c.bf16 %v1912, %v1911
      %v1924 = vpack.c.bf16 %v1914, %v1913
      %v1925 = vpack.c.bf16 %v1916, %v1915
      %v1926 = vpack.c.bf16 %v1918, %v1917
      %s1927 = scalar_lea.vmem %s2, 20
      %v1928 = vld [vmem:[%s1927] sm:$0xf]
      %v1929 = vld [vmem:[%s1927 + $0x4] sm:$0xf]
      %v1930 = vld [vmem:[%s1927 + $0x8] sm:$0xf]
      %v1931 = vld [vmem:[%s1927 + $0xc] sm:$0xf]
      %v1932 = vld [vmem:[%s1927 + $0x10] sm:$0x3]
      %v1938 = vunpack.c.l.b16 %v1928
      %v1939 = vunpack.c.l.b16 %v1929
      %v1940 = vunpack.c.l.b16 %v1930
      %v1941 = vunpack.c.l.b16 %v1931
      %v1942 = vunpack.c.l.b16 %v1932
      %v1943 = vpack.c.b16 %v1939, %v1938
      %v1944 = vpack.c.b16 %v1941, %v1940
      %v1945 = vpack.c.b16 %v1942, %v1942
      %v1949 = vsel %vm1231, %v1919, 0
      %v1952 = vsel %vm1231, %v1920, 0
      %v1955 = vsel %vm1231, %v1921, 0
      %v1958 = vsel %vm1231, %v1922, 0
      %v1961 = vsel %vm1231, %v1923, 0
      %v1964 = vsel %vm1231, %v1924, 0
      %v1967 = vsel %vm1231, %v1925, 0
      %v1970 = vsel %vm1231, %v1926, 0
      %v1973 = vsel %vm268, %v1945, 0
      %1975 = vmatprep.subr.bf16.mxu0 0
      %1976 = vmatpush1.bf16.msra.mxu0 %v1943
      %1977 = vmatprep.subr.bf16.mxu0 0
      %1978 = vmatpush1.bf16.msra.mxu0 %v1944
      %1979 = vmatprep.subr.bf16.mxu0 0
      %1980 = vmatpush1.bf16.msra.mxu0 %v1973
      %1981 = vmatprep.subr.bf16.mxu0 0
      %1982 = vmatpush1.bf16.msra.mxu0 0
      %1983 = vmatprep.subr.bf16.mxu0 0
      %1984 = vmatpush1.bf16.msra.mxu0 0
      %1985 = vmatprep.subr.bf16.mxu0 0
      %1986 = vmatpush1.bf16.msra.mxu0 0
      %1987 = vmatprep.subr.bf16.mxu0 0
      %1988 = vmatpush1.bf16.msra.mxu0 0
      %1989 = vmatprep.subr.bf16.mxu0 0
      %1990 = vmatpush1.bf16.msra.mxu0 0
      %1991 = vmatprep.subr.bf16.mxu0 0
      %1992 = vmatpush1.bf16.msra.mxu0 0
      %1993 = vmatprep.subr.bf16.mxu0 0
      %1994 = vmatpush1.bf16.msra.mxu0 0
      %1995 = vmatprep.subr.bf16.mxu0 0
      %1996 = vmatpush1.bf16.msra.mxu0 0
      %1997 = vmatprep.subr.bf16.mxu0 0
      %1998 = vmatpush1.bf16.msra.mxu0 0
      %1999 = vmatprep.subr.bf16.mxu0 0
      %2000 = vmatpush1.bf16.msra.mxu0 0
      %2001 = vmatprep.subr.bf16.mxu0 0
      %2002 = vmatpush1.bf16.msra.mxu0 0
      %2003 = vmatprep.subr.bf16.mxu0 0
      %2004 = vmatpush1.bf16.msra.mxu0 0
      %2005 = vmatprep.subr.bf16.mxu0 0
      %2006 = vmatpush1.bf16.msra.mxu0 0
      %2007 = vmatprep.mubr.bf16.mxu0 0
      %2008 = vmatmul.mubr.bf16.gmra.mrb[0].mxu0 %v1949
      %v2009 = vpop.f32.mrb[0].mxu0
      %v2010 = vadd.f32 0.0, %v2009
      %v2011 = vpop.f32.mrb[0].mxu0
      %v2012 = vpop.f32.mrb[0].mxu0
      %v2013 = vadd.f32 0.0, %v2012
      %v2014 = vpop.f32.mrb[0].mxu0
      %2015 = vmatprep.mubr.bf16.mxu0 0
      %2016 = vmatmul.mubr.bf16.gmra.mrb[0].mxu0 %v1952
      %v2017 = vpop.f32.mrb[0].mxu0
      %v2018 = vadd.f32 0.0, %v2017
      %v2019 = vpop.f32.mrb[0].mxu0
      %v2020 = vpop.f32.mrb[0].mxu0
      %v2021 = vadd.f32 0.0, %v2020
      %v2022 = vpop.f32.mrb[0].mxu0
      %2023 = vmatprep.mubr.bf16.mxu0 0
      %2024 = vmatmul.mubr.bf16.gmra.mrb[0].mxu0 %v1955
      %v2025 = vpop.f32.mrb[0].mxu0
      %v2026 = vadd.f32 0.0, %v2025
      %v2027 = vpop.f32.mrb[0].mxu0
      %v2028 = vpop.f32.mrb[0].mxu0
      %v2029 = vadd.f32 0.0, %v2028
      %v2030 = vpop.f32.mrb[0].mxu0
      %2031 = vmatprep.mubr.bf16.mxu0 0
      %2032 = vmatmul.mubr.bf16.gmra.mrb[0].mxu0 %v1958
      %v2033 = vpop.f32.mrb[0].mxu0
      %v2034 = vadd.f32 0.0, %v2033
      %v2035 = vpop.f32.mrb[0].mxu0
      %v2036 = vpop.f32.mrb[0].mxu0
      %v2037 = vadd.f32 0.0, %v2036
      %v2038 = vpop.f32.mrb[0].mxu0
      %2039 = vmatprep.mubr.bf16.mxu0 0
      %2040 = vmatmul.mubr.bf16.gmra.mrb[0].mxu0 %v1961
      %v2041 = vpop.f32.mrb[0].mxu0
      %v2042 = vadd.f32 0.0, %v2041
      %v2043 = vpop.f32.mrb[0].mxu0
      %v2044 = vpop.f32.mrb[0].mxu0
      %v2045 = vadd.f32 0.0, %v2044
      %v2046 = vpop.f32.mrb[0].mxu0
      %2047 = vmatprep.mubr.bf16.mxu0 0
      %2048 = vmatmul.mubr.bf16.gmra.mrb[0].mxu0 %v1964
      %v2049 = vpop.f32.mrb[0].mxu0
      %v2050 = vadd.f32 0.0, %v2049
      %v2051 = vpop.f32.mrb[0].mxu0
      %v2052 = vpop.f32.mrb[0].mxu0
      %v2053 = vadd.f32 0.0, %v2052
      %v2054 = vpop.f32.mrb[0].mxu0
      %2055 = vmatprep.mubr.bf16.mxu0 0
      %2056 = vmatmul.mubr.bf16.gmra.mrb[0].mxu0 %v1967
      %v2057 = vpop.f32.mrb[0].mxu0
      %v2058 = vadd.f32 0.0, %v2057
      %v2059 = vpop.f32.mrb[0].mxu0
      %v2060 = vpop.f32.mrb[0].mxu0
      %v2061 = vadd.f32 0.0, %v2060
      %v2062 = vpop.f32.mrb[0].mxu0
      %2063 = vmatprep.mubr.bf16.mxu0 0
      %2064 = vmatmul.mubr.bf16.gmra.mrb[0].mxu0 %v1970
      %v2065 = vpop.f32.mrb[0].mxu0
      %v2066 = vadd.f32 0.0, %v2065
      %v2067 = vpop.f32.mrb[0].mxu0
      %v2068 = vpop.f32.mrb[0].mxu0
      %v2069 = vadd.f32 0.0, %v2068
      %v2070 = vpop.f32.mrb[0].mxu0
      %2071 = vdwg.mxu0
      %v2072 = vsel %vm459, %v2010, 0.0
      %v2073 = vsel %vm459, %v2013, 0.0
      %v2074 = vadd.f32 %v2072, %v2073
      %v2075 = vsel %vm459, %v2018, 0.0
      %v2076 = vadd.f32 %v2074, %v2075
      %v2077 = vsel %vm459, %v2021, 0.0
      %v2078 = vadd.f32 %v2076, %v2077
      %v2079 = vsel %vm459, %v2026, 0.0
      %v2080 = vadd.f32 %v2078, %v2079
      %v2081 = vsel %vm459, %v2029, 0.0
      %v2082 = vadd.f32 %v2080, %v2081
      %v2083 = vsel %vm459, %v2034, 0.0
      %v2084 = vadd.f32 %v2082, %v2083
      %v2085 = vsel %vm459, %v2037, 0.0
      %v2086 = vadd.f32 %v2084, %v2085
      %v2087 = vsel %vm459, %v2042, 0.0
      %v2088 = vadd.f32 %v2086, %v2087
      %v2089 = vsel %vm459, %v2045, 0.0
      %v2090 = vadd.f32 %v2088, %v2089
      %v2091 = vsel %vm459, %v2050, 0.0
      %v2092 = vadd.f32 %v2090, %v2091
      %v2093 = vsel %vm459, %v2053, 0.0
      %v2094 = vadd.f32 %v2092, %v2093
      %v2095 = vsel %vm459, %v2058, 0.0
      %v2096 = vadd.f32 %v2094, %v2095
      %v2097 = vsel %vm459, %v2061, 0.0
      %v2098 = vadd.f32 %v2096, %v2097
      %v2099 = vsel %vm459, %v2066, 0.0
      %v2100 = vadd.f32 %v2098, %v2099
      %v2101 = vsel %vm459, %v2069, 0.0
      %v2102 = vadd.f32 %v2100, %v2101
      %v2103 = vrot.slane %v2102, 4
      %v2104 = vadd.f32 %v2102, %v2103
      %v2105 = vrot.slane %v2104, 2
      %v2106 = vadd.f32 %v2104, %v2105
      %v2107 = vrot.slane %v2106, 1
      %v2108 = vadd.f32 %v2106, %v2107
      %v2109 = vmul.f32 %v2010, %v2010
      %v2110 = vmul.f32 %v2013, %v2013
      %v2111 = vmul.f32 %v2018, %v2018
      %v2112 = vmul.f32 %v2021, %v2021
      %v2113 = vmul.f32 %v2026, %v2026
      %v2114 = vmul.f32 %v2029, %v2029
      %v2115 = vmul.f32 %v2034, %v2034
      %v2116 = vmul.f32 %v2037, %v2037
      %v2117 = vmul.f32 %v2042, %v2042
      %v2118 = vmul.f32 %v2045, %v2045
      %v2119 = vmul.f32 %v2050, %v2050
      %v2120 = vmul.f32 %v2053, %v2053
      %v2121 = vmul.f32 %v2058, %v2058
      %v2122 = vmul.f32 %v2061, %v2061
      %v2123 = vmul.f32 %v2066, %v2066
      %v2124 = vmul.f32 %v2069, %v2069
      %v2125 = vsel %vm459, %v2109, 0.0
      %v2126 = vsel %vm459, %v2110, 0.0
      %v2127 = vadd.f32 %v2125, %v2126
      %v2128 = vsel %vm459, %v2111, 0.0
      %v2129 = vadd.f32 %v2127, %v2128
      %v2130 = vsel %vm459, %v2112, 0.0
      %v2131 = vadd.f32 %v2129, %v2130
      %v2132 = vsel %vm459, %v2113, 0.0
      %v2133 = vadd.f32 %v2131, %v2132
      %v2134 = vsel %vm459, %v2114, 0.0
      %v2135 = vadd.f32 %v2133, %v2134
      %v2136 = vsel %vm459, %v2115, 0.0
      %v2137 = vadd.f32 %v2135, %v2136
      %v2138 = vsel %vm459, %v2116, 0.0
      %v2139 = vadd.f32 %v2137, %v2138
      %v2140 = vsel %vm459, %v2117, 0.0
      %v2141 = vadd.f32 %v2139, %v2140
      %v2142 = vsel %vm459, %v2118, 0.0
      %v2143 = vadd.f32 %v2141, %v2142
      %v2144 = vsel %vm459, %v2119, 0.0
      %v2145 = vadd.f32 %v2143, %v2144
      %v2146 = vsel %vm459, %v2120, 0.0
      %v2147 = vadd.f32 %v2145, %v2146
      %v2148 = vsel %vm459, %v2121, 0.0
      %v2149 = vadd.f32 %v2147, %v2148
      %v2150 = vsel %vm459, %v2122, 0.0
      %v2151 = vadd.f32 %v2149, %v2150
      %v2152 = vsel %vm459, %v2123, 0.0
      %v2153 = vadd.f32 %v2151, %v2152
      %v2154 = vsel %vm459, %v2124, 0.0
      %v2155 = vadd.f32 %v2153, %v2154
      %v2156 = vrot.slane %v2155, 4
      %v2157 = vadd.f32 %v2155, %v2156
      %v2158 = vrot.slane %v2157, 2
      %v2159 = vadd.f32 %v2157, %v2158
      %v2160 = vrot.slane %v2159, 1
      %v2161 = vadd.f32 %v2159, %v2160
      %vm2168 = vcmask 1045504
      %v2169 = vrot.slane %v172, 2
      %v2170 = vrot.slane %v173, 2
      %v2171 = vsel %vm2168, %v2169, %v2170
      %v2172 = vrot.slane %v174, 2
      %v2173 = vsel %vm2168, %v2170, %v2172
      %v2174 = vrot.slane %v176, 2
      %v2175 = vrot.slane %v177, 2
      %v2176 = vsel %vm2168, %v2174, %v2175
      %v2177 = vrot.slane %v178, 2
      %v2178 = vsel %vm2168, %v2175, %v2177
      %v2179 = vrot.slane %v180, 2
      %v2180 = vrot.slane %v181, 2
      %v2181 = vsel %vm2168, %v2179, %v2180
      %v2182 = vrot.slane %v182, 2
      %v2183 = vsel %vm2168, %v2180, %v2182
      %v2184 = vrot.slane %v184, 2
      %v2185 = vrot.slane %v185, 2
      %v2186 = vsel %vm2168, %v2184, %v2185
      %v2187 = vrot.slane %v186, 2
      %v2188 = vsel %vm2168, %v2185, %v2187
      %v2189 = vrot.slane %v188, 2
      %v2190 = vrot.slane %v189, 2
      %v2191 = vsel %vm2168, %v2189, %v2190
      %v2192 = vrot.slane %v190, 2
      %v2193 = vsel %vm2168, %v2190, %v2192
      %v2194 = vrot.slane %v192, 2
      %v2195 = vrot.slane %v193, 2
      %v2196 = vsel %vm2168, %v2194, %v2195
      %v2197 = vrot.slane %v194, 2
      %v2198 = vsel %vm2168, %v2195, %v2197
      %v2199 = vrot.slane %v196, 2
      %v2200 = vrot.slane %v197, 2
      %v2201 = vsel %vm2168, %v2199, %v2200
      %v2202 = vrot.slane %v198, 2
      %v2203 = vsel %vm2168, %v2200, %v2202
      %v2204 = vrot.slane %v200, 2
      %v2205 = vrot.slane %v201, 2
      %v2206 = vsel %vm2168, %v2204, %v2205
      %v2207 = vrot.slane %v202, 2
      %v2208 = vsel %vm2168, %v2205, %v2207
      %v2225 = vrot.slane %v172, 6
      %v2226 = vrot.slane %v173, 6
      %v2227 = vsel %vm268, %v2225, %v2226
      %v2228 = vrot.slane %v174, 6
      %v2229 = vsel %vm268, %v2226, %v2228
      %v2230 = vrot.slane %v176, 6
      %v2231 = vrot.slane %v177, 6
      %v2232 = vsel %vm268, %v2230, %v2231
      %v2233 = vrot.slane %v178, 6
      %v2234 = vsel %vm268, %v2231, %v2233
      %v2243 = vrot.slane %v175, 2
      %v2244 = vsel %vm2168, %v2172, %v2243
      %v2245 = vrot.slane %v179, 2
      %v2246 = vsel %vm2168, %v2177, %v2245
      %v2247 = vrot.slane %v183, 2
      %v2248 = vsel %vm2168, %v2182, %v2247
      %v2249 = vrot.slane %v187, 2
      %v2250 = vsel %vm2168, %v2187, %v2249
      %v2251 = vrot.slane %v191, 2
      %v2252 = vsel %vm2168, %v2192, %v2251
      %v2253 = vrot.slane %v195, 2
      %v2254 = vsel %vm2168, %v2197, %v2253
      %v2255 = vrot.slane %v199, 2
      %v2256 = vsel %vm2168, %v2202, %v2255
      %v2257 = vrot.slane %v203, 2
      %v2258 = vsel %vm2168, %v2207, %v2257
      %v2259 = vrot.slane %v204, 2
      %v2260 = vrot.slane %v205, 2
      %v2261 = vsel %vm2168, %v2259, %v2260
      %v2262 = vrot.slane %v206, 2
      %v2263 = vsel %vm2168, %v2260, %v2262
      %v2264 = vrot.slane %v208, 2
      %v2265 = vrot.slane %v209, 2
      %v2266 = vsel %vm2168, %v2264, %v2265
      %v2267 = vrot.slane %v210, 2
      %v2268 = vsel %vm2168, %v2265, %v2267
      %v2269 = vrot.slane %v212, 2
      %v2270 = vrot.slane %v213, 2
      %v2271 = vsel %vm2168, %v2269, %v2270
      %v2272 = vrot.slane %v214, 2
      %v2273 = vsel %vm2168, %v2270, %v2272
      %v2274 = vrot.slane %v216, 2
      %v2275 = vrot.slane %v217, 2
      %v2276 = vsel %vm2168, %v2274, %v2275
      %v2277 = vrot.slane %v218, 2
      %v2278 = vsel %vm2168, %v2275, %v2277
      %v2283 = vrot.slane %v207, 2
      %v2284 = vsel %vm2168, %v2262, %v2283
      %v2285 = vrot.slane %v211, 2
      %v2286 = vsel %vm2168, %v2267, %v2285
      %v2287 = vrot.slane %v215, 2
      %v2288 = vsel %vm2168, %v2272, %v2287
      %v2289 = vrot.slane %v219, 2
      %v2290 = vsel %vm2168, %v2277, %v2289
      %v2297 = vrot.slane %v220, 2
      %v2298 = vrot.slane %v221, 2
      %v2299 = vsel %vm2168, %v2297, %v2298
      %v2300 = vrot.slane %v222, 2
      %v2301 = vsel %vm2168, %v2298, %v2300
      %v2302 = vrot.slane %v224, 2
      %v2303 = vrot.slane %v225, 2
      %v2304 = vsel %vm2168, %v2302, %v2303
      %v2305 = vrot.slane %v226, 2
      %v2306 = vsel %vm2168, %v2303, %v2305
      %v2307 = vrot.slane %v228, 2
      %v2308 = vrot.slane %v229, 2
      %v2309 = vsel %vm2168, %v2307, %v2308
      %v2310 = vrot.slane %v230, 2
      %v2311 = vsel %vm2168, %v2308, %v2310
      %v2312 = vrot.slane %v232, 2
      %v2313 = vrot.slane %v233, 2
      %v2314 = vsel %vm2168, %v2312, %v2313
      %v2315 = vrot.slane %v234, 2
      %v2316 = vsel %vm2168, %v2313, %v2315
      %v2317 = vrot.slane %v228, 6
      %v2318 = vrot.slane %v229, 6
      %v2319 = vsel %vm268, %v2317, %v2318
      %v2320 = vrot.slane %v230, 6
      %v2321 = vsel %vm268, %v2318, %v2320
      %v2322 = vrot.slane %v232, 6
      %v2323 = vrot.slane %v233, 6
      %v2324 = vsel %vm268, %v2322, %v2323
      %v2325 = vrot.slane %v234, 6
      %v2326 = vsel %vm268, %v2323, %v2325
      %v2331 = vrot.slane %v223, 2
      %v2332 = vsel %vm2168, %v2300, %v2331
      %v2333 = vrot.slane %v227, 2
      %v2334 = vsel %vm2168, %v2305, %v2333
      %v2335 = vrot.slane %v231, 2
      %v2336 = vsel %vm2168, %v2310, %v2335
      %v2337 = vrot.slane %v235, 2
      %v2338 = vsel %vm2168, %v2315, %v2337
      %2339 = vrot.lane.b32.xlu0 %v2227, 4
      %v2340 = vpop.permute.xlu0 %2339
      %2341 = vrot.lane.b32.xlu0 %v2229, 4
      %v2342 = vpop.permute.xlu0 %2341
      %2343 = vrot.lane.b32.xlu0 %v2232, 4
      %v2344 = vpop.permute.xlu0 %2343
      %2345 = vrot.lane.b32.xlu0 %v2234, 4
      %v2346 = vpop.permute.xlu0 %2345
      %2351 = vrot.lane.b32.xlu0 %v2173, 8
      %v2352 = vpop.permute.xlu0 %2351
      %2353 = vrot.lane.b32.xlu0 %v2244, 8
      %v2354 = vpop.permute.xlu0 %2353
      %2355 = vrot.lane.b32.xlu0 %v2178, 8
      %v2356 = vpop.permute.xlu0 %2355
      %2357 = vrot.lane.b32.xlu0 %v2246, 8
      %v2358 = vpop.permute.xlu0 %2357
      %2359 = vrot.lane.b32.xlu0 %v2183, 8
      %v2360 = vpop.permute.xlu0 %2359
      %2361 = vrot.lane.b32.xlu0 %v2248, 8
      %v2362 = vpop.permute.xlu0 %2361
      %2363 = vrot.lane.b32.xlu0 %v2188, 8
      %v2364 = vpop.permute.xlu0 %2363
      %2365 = vrot.lane.b32.xlu0 %v2250, 8
      %v2366 = vpop.permute.xlu0 %2365
      %2367 = vrot.lane.b32.xlu0 %v2193, 8
      %v2368 = vpop.permute.xlu0 %2367
      %2369 = vrot.lane.b32.xlu0 %v2252, 8
      %v2370 = vpop.permute.xlu0 %2369
      %2371 = vrot.lane.b32.xlu0 %v2198, 8
      %v2372 = vpop.permute.xlu0 %2371
      %2373 = vrot.lane.b32.xlu0 %v2254, 8
      %v2374 = vpop.permute.xlu0 %2373
      %2375 = vrot.lane.b32.xlu0 %v2203, 8
      %v2376 = vpop.permute.xlu0 %2375
      %2377 = vrot.lane.b32.xlu0 %v2256, 8
      %v2378 = vpop.permute.xlu0 %2377
      %2379 = vrot.lane.b32.xlu0 %v2208, 8
      %v2380 = vpop.permute.xlu0 %2379
      %2381 = vrot.lane.b32.xlu0 %v2258, 8
      %v2382 = vpop.permute.xlu0 %2381
      %2399 = vrot.lane.b32.xlu0 %v2191, 12
      %v2400 = vpop.permute.xlu0 %2399
      %2401 = vrot.lane.b32.xlu0 %v2193, 12
      %v2402 = vpop.permute.xlu0 %2401
      %2403 = vrot.lane.b32.xlu0 %v2196, 12
      %v2404 = vpop.permute.xlu0 %2403
      %2405 = vrot.lane.b32.xlu0 %v2198, 12
      %v2406 = vpop.permute.xlu0 %2405
      %2407 = vrot.lane.b32.xlu0 %v2201, 12
      %v2408 = vpop.permute.xlu0 %2407
      %2409 = vrot.lane.b32.xlu0 %v2203, 12
      %v2410 = vpop.permute.xlu0 %2409
      %2411 = vrot.lane.b32.xlu0 %v2206, 12
      %v2412 = vpop.permute.xlu0 %2411
      %2413 = vrot.lane.b32.xlu0 %v2208, 12
      %v2414 = vpop.permute.xlu0 %2413
      %2415 = vrot.lane.b32.xlu0 %v2261, 12
      %v2416 = vpop.permute.xlu0 %2415
      %2417 = vrot.lane.b32.xlu0 %v2263, 12
      %v2418 = vpop.permute.xlu0 %2417
      %2419 = vrot.lane.b32.xlu0 %v2266, 12
      %v2420 = vpop.permute.xlu0 %2419
      %2421 = vrot.lane.b32.xlu0 %v2268, 12
      %v2422 = vpop.permute.xlu0 %2421
      %2423 = vrot.lane.b32.xlu0 %v2271, 12
      %v2424 = vpop.permute.xlu0 %2423
      %2425 = vrot.lane.b32.xlu0 %v2273, 12
      %v2426 = vpop.permute.xlu0 %2425
      %2427 = vrot.lane.b32.xlu0 %v2276, 12
      %v2428 = vpop.permute.xlu0 %2427
      %2429 = vrot.lane.b32.xlu0 %v2278, 12
      %v2430 = vpop.permute.xlu0 %2429
      %2447 = vrot.lane.b32.xlu0 %v2193, 20
      %v2448 = vpop.permute.xlu0 %2447
      %2449 = vrot.lane.b32.xlu0 %v2252, 20
      %v2450 = vpop.permute.xlu0 %2449
      %2451 = vrot.lane.b32.xlu0 %v2198, 20
      %v2452 = vpop.permute.xlu0 %2451
      %2453 = vrot.lane.b32.xlu0 %v2254, 20
      %v2454 = vpop.permute.xlu0 %2453
      %2455 = vrot.lane.b32.xlu0 %v2203, 20
      %v2456 = vpop.permute.xlu0 %2455
      %2457 = vrot.lane.b32.xlu0 %v2256, 20
      %v2458 = vpop.permute.xlu0 %2457
      %2459 = vrot.lane.b32.xlu0 %v2208, 20
      %v2460 = vpop.permute.xlu0 %2459
      %2461 = vrot.lane.b32.xlu0 %v2258, 20
      %v2462 = vpop.permute.xlu0 %2461
      %2463 = vrot.lane.b32.xlu0 %v2263, 20
      %v2464 = vpop.permute.xlu0 %2463
      %2465 = vrot.lane.b32.xlu0 %v2284, 20
      %v2466 = vpop.permute.xlu0 %2465
      %2467 = vrot.lane.b32.xlu0 %v2268, 20
      %v2468 = vpop.permute.xlu0 %2467
      %2469 = vrot.lane.b32.xlu0 %v2286, 20
      %v2470 = vpop.permute.xlu0 %2469
      %2471 = vrot.lane.b32.xlu0 %v2273, 20
      %v2472 = vpop.permute.xlu0 %2471
      %2473 = vrot.lane.b32.xlu0 %v2288, 20
      %v2474 = vpop.permute.xlu0 %2473
      %2475 = vrot.lane.b32.xlu0 %v2278, 20
      %v2476 = vpop.permute.xlu0 %2475
      %2477 = vrot.lane.b32.xlu0 %v2290, 20
      %v2478 = vpop.permute.xlu0 %2477
      %2495 = vrot.lane.b32.xlu0 %v2261, 24
      %v2496 = vpop.permute.xlu0 %2495
      %2497 = vrot.lane.b32.xlu0 %v2263, 24
      %v2498 = vpop.permute.xlu0 %2497
      %2499 = vrot.lane.b32.xlu0 %v2266, 24
      %v2500 = vpop.permute.xlu0 %2499
      %2501 = vrot.lane.b32.xlu0 %v2268, 24
      %v2502 = vpop.permute.xlu0 %2501
      %2503 = vrot.lane.b32.xlu0 %v2271, 24
      %v2504 = vpop.permute.xlu0 %2503
      %2505 = vrot.lane.b32.xlu0 %v2273, 24
      %v2506 = vpop.permute.xlu0 %2505
      %2507 = vrot.lane.b32.xlu0 %v2276, 24
      %v2508 = vpop.permute.xlu0 %2507
      %2509 = vrot.lane.b32.xlu0 %v2278, 24
      %v2510 = vpop.permute.xlu0 %2509
      %2511 = vrot.lane.b32.xlu0 %v2299, 24
      %v2512 = vpop.permute.xlu0 %2511
      %2513 = vrot.lane.b32.xlu0 %v2301, 24
      %v2514 = vpop.permute.xlu0 %2513
      %2515 = vrot.lane.b32.xlu0 %v2304, 24
      %v2516 = vpop.permute.xlu0 %2515
      %2517 = vrot.lane.b32.xlu0 %v2306, 24
      %v2518 = vpop.permute.xlu0 %2517
      %2519 = vrot.lane.b32.xlu0 %v2309, 24
      %v2520 = vpop.permute.xlu0 %2519
      %2521 = vrot.lane.b32.xlu0 %v2311, 24
      %v2522 = vpop.permute.xlu0 %2521
      %2523 = vrot.lane.b32.xlu0 %v2314, 24
      %v2524 = vpop.permute.xlu0 %2523
      %2525 = vrot.lane.b32.xlu0 %v2316, 24
      %v2526 = vpop.permute.xlu0 %2525
      %2543 = vrot.lane.b32.xlu0 %v2319, 28
      %v2544 = vpop.permute.xlu0 %2543
      %2545 = vrot.lane.b32.xlu0 %v2321, 28
      %v2546 = vpop.permute.xlu0 %2545
      %2547 = vrot.lane.b32.xlu0 %v2324, 28
      %v2548 = vpop.permute.xlu0 %2547
      %2549 = vrot.lane.b32.xlu0 %v2326, 28
      %v2550 = vpop.permute.xlu0 %2549
      %2555 = vrot.lane.b32.xlu0 %v2263, 32
      %v2556 = vpop.permute.xlu0 %2555
      %2557 = vrot.lane.b32.xlu0 %v2284, 32
      %v2558 = vpop.permute.xlu0 %2557
      %2559 = vrot.lane.b32.xlu0 %v2268, 32
      %v2560 = vpop.permute.xlu0 %2559
      %2561 = vrot.lane.b32.xlu0 %v2286, 32
      %v2562 = vpop.permute.xlu0 %2561
      %2563 = vrot.lane.b32.xlu0 %v2273, 32
      %v2564 = vpop.permute.xlu0 %2563
      %2565 = vrot.lane.b32.xlu0 %v2288, 32
      %v2566 = vpop.permute.xlu0 %2565
      %2567 = vrot.lane.b32.xlu0 %v2278, 32
      %v2568 = vpop.permute.xlu0 %2567
      %2569 = vrot.lane.b32.xlu0 %v2290, 32
      %v2570 = vpop.permute.xlu0 %2569
      %2571 = vrot.lane.b32.xlu0 %v2301, 32
      %v2572 = vpop.permute.xlu0 %2571
      %2573 = vrot.lane.b32.xlu0 %v2332, 32
      %v2574 = vpop.permute.xlu0 %2573
      %2575 = vrot.lane.b32.xlu0 %v2306, 32
      %v2576 = vpop.permute.xlu0 %2575
      %2577 = vrot.lane.b32.xlu0 %v2334, 32
      %v2578 = vpop.permute.xlu0 %2577
      %2579 = vrot.lane.b32.xlu0 %v2311, 32
      %v2580 = vpop.permute.xlu0 %2579
      %2581 = vrot.lane.b32.xlu0 %v2336, 32
      %v2582 = vpop.permute.xlu0 %2581
      %2583 = vrot.lane.b32.xlu0 %v2316, 32
      %v2584 = vpop.permute.xlu0 %2583
      %2585 = vrot.lane.b32.xlu0 %v2338, 32
      %v2586 = vpop.permute.xlu0 %2585
      %v2603 = vsel %vm334, %v2171, %v2340
      %v2604 = vsel %vm334, %v2173, %v2342
      %v2605 = vsel %vm334, %v2176, %v2344
      %v2606 = vsel %vm334, %v2178, %v2346
      %v2607 = vsel %vm334, %v2181, %v1540
      %v2608 = vsel %vm334, %v2183, %v1542
      %v2609 = vsel %vm334, %v2186, %v685
      %v2610 = vsel %vm334, %v2188, %v687
      %v2611 = vsel %vm334, %v2191, %v689
      %v2612 = vsel %vm334, %v2193, %v691
      %v2613 = vsel %vm334, %v2196, %v693
      %v2614 = vsel %vm334, %v2198, %v695
      %v2615 = vsel %vm334, %v2201, %v697
      %v2616 = vsel %vm334, %v2203, %v699
      %v2617 = vsel %vm334, %v2206, %v701
      %v2618 = vsel %vm334, %v2208, %v703
      %v2619 = vsel %vm1084, %v2603, %v2352
      %v2620 = vsel %vm1084, %v2604, %v2354
      %v2621 = vsel %vm1084, %v2605, %v2356
      %v2622 = vsel %vm1084, %v2606, %v2358
      %v2623 = vsel %vm1084, %v2607, %v2360
      %v2624 = vsel %vm1084, %v2608, %v2362
      %v2625 = vsel %vm1084, %v2609, %v2364
      %v2626 = vsel %vm1084, %v2610, %v2366
      %v2627 = vsel %vm1084, %v2611, %v2368
      %v2628 = vsel %vm1084, %v2612, %v2370
      %v2629 = vsel %vm1084, %v2613, %v2372
      %v2630 = vsel %vm1084, %v2614, %v2374
      %v2631 = vsel %vm1084, %v2615, %v2376
      %v2632 = vsel %vm1084, %v2616, %v2378
      %v2633 = vsel %vm1084, %v2617, %v2380
      %v2634 = vsel %vm1084, %v2618, %v2382
      %v2635 = vsel %vm1101, %v2619, %v2400
      %v2636 = vsel %vm1101, %v2620, %v2402
      %v2637 = vsel %vm1101, %v2621, %v2404
      %v2638 = vsel %vm1101, %v2622, %v2406
      %v2639 = vsel %vm1101, %v2623, %v2408
      %v2640 = vsel %vm1101, %v2624, %v2410
      %v2641 = vsel %vm1101, %v2625, %v2412
      %v2642 = vsel %vm1101, %v2626, %v2414
      %v2643 = vsel %vm1101, %v2627, %v2416
      %v2644 = vsel %vm1101, %v2628, %v2418
      %v2645 = vsel %vm1101, %v2629, %v2420
      %v2646 = vsel %vm1101, %v2630, %v2422
      %v2647 = vsel %vm1101, %v2631, %v2424
      %v2648 = vsel %vm1101, %v2632, %v2426
      %v2649 = vsel %vm1101, %v2633, %v2428
      %v2650 = vsel %vm1101, %v2634, %v2430
      %v2651 = vsel %vm1118, %v2635, %v829
      %v2652 = vsel %vm1118, %v2636, %v831
      %v2653 = vsel %vm1118, %v2637, %v833
      %v2654 = vsel %vm1118, %v2638, %v835
      %v2655 = vsel %vm1118, %v2639, %v837
      %v2656 = vsel %vm1118, %v2640, %v839
      %v2657 = vsel %vm1118, %v2641, %v841
      %v2658 = vsel %vm1118, %v2642, %v843
      %v2659 = vsel %vm1118, %v2643, %v845
      %v2660 = vsel %vm1118, %v2644, %v847
      %v2661 = vsel %vm1118, %v2645, %v849
      %v2662 = vsel %vm1118, %v2646, %v851
      %v2663 = vsel %vm1118, %v2647, %v853
      %v2664 = vsel %vm1118, %v2648, %v855
      %v2665 = vsel %vm1118, %v2649, %v857
      %v2666 = vsel %vm1118, %v2650, %v859
      %v2667 = vsel %vm1135, %v2651, %v2448
      %v2668 = vsel %vm1135, %v2652, %v2450
      %v2669 = vsel %vm1135, %v2653, %v2452
      %v2670 = vsel %vm1135, %v2654, %v2454
      %v2671 = vsel %vm1135, %v2655, %v2456
      %v2672 = vsel %vm1135, %v2656, %v2458
      %v2673 = vsel %vm1135, %v2657, %v2460
      %v2674 = vsel %vm1135, %v2658, %v2462
      %v2675 = vsel %vm1135, %v2659, %v2464
      %v2676 = vsel %vm1135, %v2660, %v2466
      %v2677 = vsel %vm1135, %v2661, %v2468
      %v2678 = vsel %vm1135, %v2662, %v2470
      %v2679 = vsel %vm1135, %v2663, %v2472
      %v2680 = vsel %vm1135, %v2664, %v2474
      %v2681 = vsel %vm1135, %v2665, %v2476
      %v2682 = vsel %vm1135, %v2666, %v2478
      %v2683 = vsel %vm1152, %v2667, %v2496
      %v2684 = vsel %vm1152, %v2668, %v2498
      %v2685 = vsel %vm1152, %v2669, %v2500
      %v2686 = vsel %vm1152, %v2670, %v2502
      %v2687 = vsel %vm1152, %v2671, %v2504
      %v2688 = vsel %vm1152, %v2672, %v2506
      %v2689 = vsel %vm1152, %v2673, %v2508
      %v2690 = vsel %vm1152, %v2674, %v2510
      %v2691 = vsel %vm1152, %v2675, %v2512
      %v2692 = vsel %vm1152, %v2676, %v2514
      %v2693 = vsel %vm1152, %v2677, %v2516
      %v2694 = vsel %vm1152, %v2678, %v2518
      %v2695 = vsel %vm1152, %v2679, %v2520
      %v2696 = vsel %vm1152, %v2680, %v2522
      %v2697 = vsel %vm1152, %v2681, %v2524
      %v2698 = vsel %vm1152, %v2682, %v2526
      %v2699 = vsel %vm1169, %v2683, %v985
      %v2700 = vsel %vm1169, %v2684, %v987
      %v2701 = vsel %vm1169, %v2685, %v989
      %v2702 = vsel %vm1169, %v2686, %v991
      %v2703 = vsel %vm1169, %v2687, %v993
      %v2704 = vsel %vm1169, %v2688, %v995
      %v2705 = vsel %vm1169, %v2689, %v997
      %v2706 = vsel %vm1169, %v2690, %v999
      %v2707 = vsel %vm1169, %v2691, %v1001
      %v2708 = vsel %vm1169, %v2692, %v1003
      %v2709 = vsel %vm1169, %v2693, %v1738
      %v2710 = vsel %vm1169, %v2694, %v1740
      %v2711 = vsel %vm1169, %v2695, %v2544
      %v2712 = vsel %vm1169, %v2696, %v2546
      %v2713 = vsel %vm1169, %v2697, %v2548
      %v2714 = vsel %vm1169, %v2698, %v2550
      %v2715 = vsel %vm1186, %v2699, %v2556
      %v2716 = vsel %vm1186, %v2700, %v2558
      %v2717 = vsel %vm1186, %v2701, %v2560
      %v2718 = vsel %vm1186, %v2702, %v2562
      %v2719 = vsel %vm1186, %v2703, %v2564
      %v2720 = vsel %vm1186, %v2704, %v2566
      %v2721 = vsel %vm1186, %v2705, %v2568
      %v2722 = vsel %vm1186, %v2706, %v2570
      %v2723 = vsel %vm1186, %v2707, %v2572
      %v2724 = vsel %vm1186, %v2708, %v2574
      %v2725 = vsel %vm1186, %v2709, %v2576
      %v2726 = vsel %vm1186, %v2710, %v2578
      %v2727 = vsel %vm1186, %v2711, %v2580
      %v2728 = vsel %vm1186, %v2712, %v2582
      %v2729 = vsel %vm1186, %v2713, %v2584
      %v2730 = vsel %vm1186, %v2714, %v2586
      %v2731 = vpack.c.bf16 %v2716, %v2715
      %v2732 = vpack.c.bf16 %v2718, %v2717
      %v2733 = vpack.c.bf16 %v2720, %v2719
      %v2734 = vpack.c.bf16 %v2722, %v2721
      %v2735 = vpack.c.bf16 %v2724, %v2723
      %v2736 = vpack.c.bf16 %v2726, %v2725
      %v2737 = vpack.c.bf16 %v2728, %v2727
      %v2738 = vpack.c.bf16 %v2730, %v2729
      %s2739 = scalar_lea.vmem %s2, 40
      %v2740 = vld [vmem:[%s2739] sm:$0xf]
      %v2741 = vld [vmem:[%s2739 + $0x4] sm:$0xf]
      %v2742 = vld [vmem:[%s2739 + $0x8] sm:$0xf]
      %v2743 = vld [vmem:[%s2739 + $0xc] sm:$0xf]
      %v2744 = vld [vmem:[%s2739 + $0x10] sm:$0x3]
      %v2750 = vunpack.c.l.b16 %v2740
      %v2751 = vunpack.c.l.b16 %v2741
      %v2752 = vunpack.c.l.b16 %v2742
      %v2753 = vunpack.c.l.b16 %v2743
      %v2754 = vunpack.c.l.b16 %v2744
      %v2755 = vpack.c.b16 %v2751, %v2750
      %v2756 = vpack.c.b16 %v2753, %v2752
      %v2757 = vpack.c.b16 %v2754, %v2754
      %v2761 = vsel %vm1231, %v2731, 0
      %v2764 = vsel %vm1231, %v2732, 0
      %v2767 = vsel %vm1231, %v2733, 0
      %v2770 = vsel %vm1231, %v2734, 0
      %v2773 = vsel %vm1231, %v2735, 0
      %v2776 = vsel %vm1231, %v2736, 0
      %v2779 = vsel %vm1231, %v2737, 0
      %v2782 = vsel %vm1231, %v2738, 0
      %v2785 = vsel %vm268, %v2757, 0
      %2787 = vmatprep.subr.bf16.mxu0 0
      %2788 = vmatpush1.bf16.msra.mxu0 %v2755
      %2789 = vmatprep.subr.bf16.mxu0 0
      %2790 = vmatpush1.bf16.msra.mxu0 %v2756
      %2791 = vmatprep.subr.bf16.mxu0 0
      %2792 = vmatpush1.bf16.msra.mxu0 %v2785
      %2793 = vmatprep.subr.bf16.mxu0 0
      %2794 = vmatpush1.bf16.msra.mxu0 0
      %2795 = vmatprep.subr.bf16.mxu0 0
      %2796 = vmatpush1.bf16.msra.mxu0 0
      %2797 = vmatprep.subr.bf16.mxu0 0
      %2798 = vmatpush1.bf16.msra.mxu0 0
      %2799 = vmatprep.subr.bf16.mxu0 0
      %2800 = vmatpush1.bf16.msra.mxu0 0
      %2801 = vmatprep.subr.bf16.mxu0 0
      %2802 = vmatpush1.bf16.msra.mxu0 0
      %2803 = vmatprep.subr.bf16.mxu0 0
      %2804 = vmatpush1.bf16.msra.mxu0 0
      %2805 = vmatprep.subr.bf16.mxu0 0
      %2806 = vmatpush1.bf16.msra.mxu0 0
      %2807 = vmatprep.subr.bf16.mxu0 0
      %2808 = vmatpush1.bf16.msra.mxu0 0
      %2809 = vmatprep.subr.bf16.mxu0 0
      %2810 = vmatpush1.bf16.msra.mxu0 0
      %2811 = vmatprep.subr.bf16.mxu0 0
      %2812 = vmatpush1.bf16.msra.mxu0 0
      %2813 = vmatprep.subr.bf16.mxu0 0
      %2814 = vmatpush1.bf16.msra.mxu0 0
      %2815 = vmatprep.subr.bf16.mxu0 0
      %2816 = vmatpush1.bf16.msra.mxu0 0
      %2817 = vmatprep.subr.bf16.mxu0 0
      %2818 = vmatpush1.bf16.msra.mxu0 0
      %2819 = vmatprep.mubr.bf16.mxu0 0
      %2820 = vmatmul.mubr.bf16.gmra.mrb[0].mxu0 %v2761
      %v2821 = vpop.f32.mrb[0].mxu0
      %v2822 = vadd.f32 0.0, %v2821
      %v2823 = vpop.f32.mrb[0].mxu0
      %v2824 = vpop.f32.mrb[0].mxu0
      %v2825 = vadd.f32 0.0, %v2824
      %v2826 = vpop.f32.mrb[0].mxu0
      %2827 = vmatprep.mubr.bf16.mxu0 0
      %2828 = vmatmul.mubr.bf16.gmra.mrb[0].mxu0 %v2764
      %v2829 = vpop.f32.mrb[0].mxu0
      %v2830 = vadd.f32 0.0, %v2829
      %v2831 = vpop.f32.mrb[0].mxu0
      %v2832 = vpop.f32.mrb[0].mxu0
      %v2833 = vadd.f32 0.0, %v2832
      %v2834 = vpop.f32.mrb[0].mxu0
      %2835 = vmatprep.mubr.bf16.mxu0 0
      %2836 = vmatmul.mubr.bf16.gmra.mrb[0].mxu0 %v2767
      %v2837 = vpop.f32.mrb[0].mxu0
      %v2838 = vadd.f32 0.0, %v2837
      %v2839 = vpop.f32.mrb[0].mxu0
      %v2840 = vpop.f32.mrb[0].mxu0
      %v2841 = vadd.f32 0.0, %v2840
      %v2842 = vpop.f32.mrb[0].mxu0
      %2843 = vmatprep.mubr.bf16.mxu0 0
      %2844 = vmatmul.mubr.bf16.gmra.mrb[0].mxu0 %v2770
      %v2845 = vpop.f32.mrb[0].mxu0
      %v2846 = vadd.f32 0.0, %v2845
      %v2847 = vpop.f32.mrb[0].mxu0
      %v2848 = vpop.f32.mrb[0].mxu0
      %v2849 = vadd.f32 0.0, %v2848
      %v2850 = vpop.f32.mrb[0].mxu0
      %2851 = vmatprep.mubr.bf16.mxu0 0
      %2852 = vmatmul.mubr.bf16.gmra.mrb[0].mxu0 %v2773
      %v2853 = vpop.f32.mrb[0].mxu0
      %v2854 = vadd.f32 0.0, %v2853
      %v2855 = vpop.f32.mrb[0].mxu0
      %v2856 = vpop.f32.mrb[0].mxu0
      %v2857 = vadd.f32 0.0, %v2856
      %v2858 = vpop.f32.mrb[0].mxu0
      %2859 = vmatprep.mubr.bf16.mxu0 0
      %2860 = vmatmul.mubr.bf16.gmra.mrb[0].mxu0 %v2776
      %v2861 = vpop.f32.mrb[0].mxu0
      %v2862 = vadd.f32 0.0, %v2861
      %v2863 = vpop.f32.mrb[0].mxu0
      %v2864 = vpop.f32.mrb[0].mxu0
      %v2865 = vadd.f32 0.0, %v2864
      %v2866 = vpop.f32.mrb[0].mxu0
      %2867 = vmatprep.mubr.bf16.mxu0 0
      %2868 = vmatmul.mubr.bf16.gmra.mrb[0].mxu0 %v2779
      %v2869 = vpop.f32.mrb[0].mxu0
      %v2870 = vadd.f32 0.0, %v2869
      %v2871 = vpop.f32.mrb[0].mxu0
      %v2872 = vpop.f32.mrb[0].mxu0
      %v2873 = vadd.f32 0.0, %v2872
      %v2874 = vpop.f32.mrb[0].mxu0
      %2875 = vmatprep.mubr.bf16.mxu0 0
      %2876 = vmatmul.mubr.bf16.gmra.mrb[0].mxu0 %v2782
      %v2877 = vpop.f32.mrb[0].mxu0
      %v2878 = vadd.f32 0.0, %v2877
      %v2879 = vpop.f32.mrb[0].mxu0
      %v2880 = vpop.f32.mrb[0].mxu0
      %v2881 = vadd.f32 0.0, %v2880
      %v2882 = vpop.f32.mrb[0].mxu0
      %2883 = vdwg.mxu0
      %v2884 = vsel %vm459, %v2822, 0.0
      %v2885 = vsel %vm459, %v2825, 0.0
      %v2886 = vadd.f32 %v2884, %v2885
      %v2887 = vsel %vm459, %v2830, 0.0
      %v2888 = vadd.f32 %v2886, %v2887
      %v2889 = vsel %vm459, %v2833, 0.0
      %v2890 = vadd.f32 %v2888, %v2889
      %v2891 = vsel %vm459, %v2838, 0.0
      %v2892 = vadd.f32 %v2890, %v2891
      %v2893 = vsel %vm459, %v2841, 0.0
      %v2894 = vadd.f32 %v2892, %v2893
      %v2895 = vsel %vm459, %v2846, 0.0
      %v2896 = vadd.f32 %v2894, %v2895
      %v2897 = vsel %vm459, %v2849, 0.0
      %v2898 = vadd.f32 %v2896, %v2897
      %v2899 = vsel %vm459, %v2854, 0.0
      %v2900 = vadd.f32 %v2898, %v2899
      %v2901 = vsel %vm459, %v2857, 0.0
      %v2902 = vadd.f32 %v2900, %v2901
      %v2903 = vsel %vm459, %v2862, 0.0
      %v2904 = vadd.f32 %v2902, %v2903
      %v2905 = vsel %vm459, %v2865, 0.0
      %v2906 = vadd.f32 %v2904, %v2905
      %v2907 = vsel %vm459, %v2870, 0.0
      %v2908 = vadd.f32 %v2906, %v2907
      %v2909 = vsel %vm459, %v2873, 0.0
      %v2910 = vadd.f32 %v2908, %v2909
      %v2911 = vsel %vm459, %v2878, 0.0
      %v2912 = vadd.f32 %v2910, %v2911
      %v2913 = vsel %vm459, %v2881, 0.0
      %v2914 = vadd.f32 %v2912, %v2913
      %v2915 = vrot.slane %v2914, 4
      %v2916 = vadd.f32 %v2914, %v2915
      %v2917 = vrot.slane %v2916, 2
      %v2918 = vadd.f32 %v2916, %v2917
      %v2919 = vrot.slane %v2918, 1
      %v2920 = vadd.f32 %v2918, %v2919
      %v2921 = vmul.f32 %v2822, %v2822
      %v2922 = vmul.f32 %v2825, %v2825
      %v2923 = vmul.f32 %v2830, %v2830
      %v2924 = vmul.f32 %v2833, %v2833
      %v2925 = vmul.f32 %v2838, %v2838
      %v2926 = vmul.f32 %v2841, %v2841
      %v2927 = vmul.f32 %v2846, %v2846
      %v2928 = vmul.f32 %v2849, %v2849
      %v2929 = vmul.f32 %v2854, %v2854
      %v2930 = vmul.f32 %v2857, %v2857
      %v2931 = vmul.f32 %v2862, %v2862
      %v2932 = vmul.f32 %v2865, %v2865
      %v2933 = vmul.f32 %v2870, %v2870
      %v2934 = vmul.f32 %v2873, %v2873
      %v2935 = vmul.f32 %v2878, %v2878
      %v2936 = vmul.f32 %v2881, %v2881
      %v2937 = vsel %vm459, %v2921, 0.0
      %v2938 = vsel %vm459, %v2922, 0.0
      %v2939 = vadd.f32 %v2937, %v2938
      %v2940 = vsel %vm459, %v2923, 0.0
      %v2941 = vadd.f32 %v2939, %v2940
      %v2942 = vsel %vm459, %v2924, 0.0
      %v2943 = vadd.f32 %v2941, %v2942
      %v2944 = vsel %vm459, %v2925, 0.0
      %v2945 = vadd.f32 %v2943, %v2944
      %v2946 = vsel %vm459, %v2926, 0.0
      %v2947 = vadd.f32 %v2945, %v2946
      %v2948 = vsel %vm459, %v2927, 0.0
      %v2949 = vadd.f32 %v2947, %v2948
      %v2950 = vsel %vm459, %v2928, 0.0
      %v2951 = vadd.f32 %v2949, %v2950
      %v2952 = vsel %vm459, %v2929, 0.0
      %v2953 = vadd.f32 %v2951, %v2952
      %v2954 = vsel %vm459, %v2930, 0.0
      %v2955 = vadd.f32 %v2953, %v2954
      %v2956 = vsel %vm459, %v2931, 0.0
      %v2957 = vadd.f32 %v2955, %v2956
      %v2958 = vsel %vm459, %v2932, 0.0
      %v2959 = vadd.f32 %v2957, %v2958
      %v2960 = vsel %vm459, %v2933, 0.0
      %v2961 = vadd.f32 %v2959, %v2960
      %v2962 = vsel %vm459, %v2934, 0.0
      %v2963 = vadd.f32 %v2961, %v2962
      %v2964 = vsel %vm459, %v2935, 0.0
      %v2965 = vadd.f32 %v2963, %v2964
      %v2966 = vsel %vm459, %v2936, 0.0
      %v2967 = vadd.f32 %v2965, %v2966
      %v2968 = vrot.slane %v2967, 4
      %v2969 = vadd.f32 %v2967, %v2968
      %v2970 = vrot.slane %v2969, 2
      %v2971 = vadd.f32 %v2969, %v2970
      %v2972 = vrot.slane %v2971, 1
      %v2973 = vadd.f32 %v2971, %v2972
      %v2980 = vrot.slane %v164, 6
      %v2981 = vrot.slane %v165, 6
      %v2982 = vsel %vm268, %v2980, %v2981
      %v2983 = vrot.slane %v166, 6
      %v2984 = vsel %vm268, %v2981, %v2983
      %v2985 = vrot.slane %v168, 6
      %v2986 = vrot.slane %v169, 6
      %v2987 = vsel %vm268, %v2985, %v2986
      %v2988 = vrot.slane %v170, 6
      %v2989 = vsel %vm268, %v2986, %v2988
      %v2992 = vrot.slane %v165, 4
      %v2993 = vrot.slane %v166, 4
      %v2994 = vsel %vm1449, %v2992, %v2993
      %v2995 = vrot.slane %v167, 4
      %v2996 = vsel %vm1449, %v2993, %v2995
      %v2997 = vrot.slane %v169, 4
      %v2998 = vrot.slane %v170, 4
      %v2999 = vsel %vm1449, %v2997, %v2998
      %v3000 = vrot.slane %v171, 4
      %v3001 = vsel %vm1449, %v2998, %v3000
      %v3002 = vrot.slane %v173, 4
      %v3003 = vrot.slane %v174, 4
      %v3004 = vsel %vm1449, %v3002, %v3003
      %v3005 = vrot.slane %v175, 4
      %v3006 = vsel %vm1449, %v3003, %v3005
      %v3007 = vrot.slane %v177, 4
      %v3008 = vrot.slane %v178, 4
      %v3009 = vsel %vm1449, %v3007, %v3008
      %v3010 = vrot.slane %v179, 4
      %v3011 = vsel %vm1449, %v3008, %v3010
      %v3012 = vrot.slane %v183, 4
      %v3013 = vsel %vm1449, %v1453, %v3012
      %v3014 = vrot.slane %v187, 4
      %v3015 = vsel %vm1449, %v1458, %v3014
      %v3016 = vrot.slane %v191, 4
      %v3017 = vsel %vm1449, %v1463, %v3016
      %v3018 = vrot.slane %v195, 4
      %v3019 = vsel %vm1449, %v1468, %v3018
      %v3020 = vrot.slane %v199, 4
      %v3021 = vsel %vm1449, %v1473, %v3020
      %v3022 = vrot.slane %v203, 4
      %v3023 = vsel %vm1449, %v1478, %v3022
      %v3024 = vrot.slane %v207, 4
      %v3025 = vsel %vm1449, %v1483, %v3024
      %v3026 = vrot.slane %v211, 4
      %v3027 = vsel %vm1449, %v1488, %v3026
      %v3028 = vrot.slane %v215, 4
      %v3029 = vsel %vm1449, %v1514, %v3028
      %v3030 = vrot.slane %v219, 4
      %v3031 = vsel %vm1449, %v1519, %v3030
      %v3038 = vrot.slane %v236, 6
      %v3039 = vrot.slane %v237, 6
      %v3040 = vsel %vm268, %v3038, %v3039
      %v3041 = vrot.slane %v238, 6
      %v3042 = vsel %vm268, %v3039, %v3041
      %v3043 = vrot.slane %v240, 6
      %v3044 = vrot.slane %v241, 6
      %v3045 = vsel %vm268, %v3043, %v3044
      %v3046 = vrot.slane %v242, 6
      %v3047 = vsel %vm268, %v3044, %v3046
      %v3050 = vrot.slane %v223, 4
      %v3051 = vsel %vm1449, %v1527, %v3050
      %v3052 = vrot.slane %v227, 4
      %v3053 = vsel %vm1449, %v1532, %v3052
      %v3054 = vrot.slane %v229, 4
      %v3055 = vrot.slane %v230, 4
      %v3056 = vsel %vm1449, %v3054, %v3055
      %v3057 = vrot.slane %v231, 4
      %v3058 = vsel %vm1449, %v3055, %v3057
      %v3059 = vrot.slane %v233, 4
      %v3060 = vrot.slane %v234, 4
      %v3061 = vsel %vm1449, %v3059, %v3060
      %v3062 = vrot.slane %v235, 4
      %v3063 = vsel %vm1449, %v3060, %v3062
      %v3064 = vrot.slane %v237, 4
      %v3065 = vrot.slane %v238, 4
      %v3066 = vsel %vm1449, %v3064, %v3065
      %v3067 = vrot.slane %v239, 4
      %v3068 = vsel %vm1449, %v3065, %v3067
      %v3069 = vrot.slane %v241, 4
      %v3070 = vrot.slane %v242, 4
      %v3071 = vsel %vm1449, %v3069, %v3070
      %v3072 = vrot.slane %v243, 4
      %v3073 = vsel %vm1449, %v3070, %v3072
      %3074 = vrot.lane.b32.xlu0 %v2982, 4
      %v3075 = vpop.permute.xlu0 %3074
      %3076 = vrot.lane.b32.xlu0 %v2984, 4
      %v3077 = vpop.permute.xlu0 %3076
      %3078 = vrot.lane.b32.xlu0 %v2987, 4
      %v3079 = vpop.permute.xlu0 %3078
      %3080 = vrot.lane.b32.xlu0 %v2989, 4
      %v3081 = vpop.permute.xlu0 %3080
      %3086 = vrot.lane.b32.xlu0 %v2994, 8
      %v3087 = vpop.permute.xlu0 %3086
      %3088 = vrot.lane.b32.xlu0 %v2996, 8
      %v3089 = vpop.permute.xlu0 %3088
      %3090 = vrot.lane.b32.xlu0 %v2999, 8
      %v3091 = vpop.permute.xlu0 %3090
      %3092 = vrot.lane.b32.xlu0 %v3001, 8
      %v3093 = vpop.permute.xlu0 %3092
      %3094 = vrot.lane.b32.xlu0 %v3004, 8
      %v3095 = vpop.permute.xlu0 %3094
      %3096 = vrot.lane.b32.xlu0 %v3006, 8
      %v3097 = vpop.permute.xlu0 %3096
      %3098 = vrot.lane.b32.xlu0 %v3009, 8
      %v3099 = vpop.permute.xlu0 %3098
      %3100 = vrot.lane.b32.xlu0 %v3011, 8
      %v3101 = vpop.permute.xlu0 %3100
      %3102 = vrot.lane.b32.xlu0 %v1454, 8
      %v3103 = vpop.permute.xlu0 %3102
      %3104 = vrot.lane.b32.xlu0 %v3013, 8
      %v3105 = vpop.permute.xlu0 %3104
      %3106 = vrot.lane.b32.xlu0 %v1459, 8
      %v3107 = vpop.permute.xlu0 %3106
      %3108 = vrot.lane.b32.xlu0 %v3015, 8
      %v3109 = vpop.permute.xlu0 %3108
      %3110 = vrot.lane.b32.xlu0 %v1464, 8
      %v3111 = vpop.permute.xlu0 %3110
      %3112 = vrot.lane.b32.xlu0 %v3017, 8
      %v3113 = vpop.permute.xlu0 %3112
      %3114 = vrot.lane.b32.xlu0 %v1469, 8
      %v3115 = vpop.permute.xlu0 %3114
      %3116 = vrot.lane.b32.xlu0 %v3019, 8
      %v3117 = vpop.permute.xlu0 %3116
      %3134 = vrot.lane.b32.xlu0 %v188, 12
      %v3135 = vpop.permute.xlu0 %3134
      %3136 = vrot.lane.b32.xlu0 %v189, 12
      %v3137 = vpop.permute.xlu0 %3136
      %3138 = vrot.lane.b32.xlu0 %v192, 12
      %v3139 = vpop.permute.xlu0 %3138
      %3140 = vrot.lane.b32.xlu0 %v193, 12
      %v3141 = vpop.permute.xlu0 %3140
      %3142 = vrot.lane.b32.xlu0 %v196, 12
      %v3143 = vpop.permute.xlu0 %3142
      %3144 = vrot.lane.b32.xlu0 %v197, 12
      %v3145 = vpop.permute.xlu0 %3144
      %3146 = vrot.lane.b32.xlu0 %v200, 12
      %v3147 = vpop.permute.xlu0 %3146
      %3148 = vrot.lane.b32.xlu0 %v201, 12
      %v3149 = vpop.permute.xlu0 %3148
      %3150 = vrot.lane.b32.xlu0 %v204, 12
      %v3151 = vpop.permute.xlu0 %3150
      %3152 = vrot.lane.b32.xlu0 %v205, 12
      %v3153 = vpop.permute.xlu0 %3152
      %3154 = vrot.lane.b32.xlu0 %v208, 12
      %v3155 = vpop.permute.xlu0 %3154
      %3156 = vrot.lane.b32.xlu0 %v209, 12
      %v3157 = vpop.permute.xlu0 %3156
      %3158 = vrot.lane.b32.xlu0 %v212, 12
      %v3159 = vpop.permute.xlu0 %3158
      %3160 = vrot.lane.b32.xlu0 %v213, 12
      %v3161 = vpop.permute.xlu0 %3160
      %3162 = vrot.lane.b32.xlu0 %v216, 12
      %v3163 = vpop.permute.xlu0 %3162
      %3164 = vrot.lane.b32.xlu0 %v217, 12
      %v3165 = vpop.permute.xlu0 %3164
      %3182 = vrot.lane.b32.xlu0 %v1464, 20
      %v3183 = vpop.permute.xlu0 %3182
      %3184 = vrot.lane.b32.xlu0 %v3017, 20
      %v3185 = vpop.permute.xlu0 %3184
      %3186 = vrot.lane.b32.xlu0 %v1469, 20
      %v3187 = vpop.permute.xlu0 %3186
      %3188 = vrot.lane.b32.xlu0 %v3019, 20
      %v3189 = vpop.permute.xlu0 %3188
      %3190 = vrot.lane.b32.xlu0 %v1474, 20
      %v3191 = vpop.permute.xlu0 %3190
      %3192 = vrot.lane.b32.xlu0 %v3021, 20
      %v3193 = vpop.permute.xlu0 %3192
      %3194 = vrot.lane.b32.xlu0 %v1479, 20
      %v3195 = vpop.permute.xlu0 %3194
      %3196 = vrot.lane.b32.xlu0 %v3023, 20
      %v3197 = vpop.permute.xlu0 %3196
      %3198 = vrot.lane.b32.xlu0 %v1484, 20
      %v3199 = vpop.permute.xlu0 %3198
      %3200 = vrot.lane.b32.xlu0 %v3025, 20
      %v3201 = vpop.permute.xlu0 %3200
      %3202 = vrot.lane.b32.xlu0 %v1489, 20
      %v3203 = vpop.permute.xlu0 %3202
      %3204 = vrot.lane.b32.xlu0 %v3027, 20
      %v3205 = vpop.permute.xlu0 %3204
      %3206 = vrot.lane.b32.xlu0 %v1515, 20
      %v3207 = vpop.permute.xlu0 %3206
      %3208 = vrot.lane.b32.xlu0 %v3029, 20
      %v3209 = vpop.permute.xlu0 %3208
      %3210 = vrot.lane.b32.xlu0 %v1520, 20
      %v3211 = vpop.permute.xlu0 %3210
      %3212 = vrot.lane.b32.xlu0 %v3031, 20
      %v3213 = vpop.permute.xlu0 %3212
      %3230 = vrot.lane.b32.xlu0 %v212, 24
      %v3231 = vpop.permute.xlu0 %3230
      %3232 = vrot.lane.b32.xlu0 %v213, 24
      %v3233 = vpop.permute.xlu0 %3232
      %3234 = vrot.lane.b32.xlu0 %v216, 24
      %v3235 = vpop.permute.xlu0 %3234
      %3236 = vrot.lane.b32.xlu0 %v217, 24
      %v3237 = vpop.permute.xlu0 %3236
      %3238 = vrot.lane.b32.xlu0 %v220, 24
      %v3239 = vpop.permute.xlu0 %3238
      %3240 = vrot.lane.b32.xlu0 %v221, 24
      %v3241 = vpop.permute.xlu0 %3240
      %3242 = vrot.lane.b32.xlu0 %v224, 24
      %v3243 = vpop.permute.xlu0 %3242
      %3244 = vrot.lane.b32.xlu0 %v225, 24
      %v3245 = vpop.permute.xlu0 %3244
      %3246 = vrot.lane.b32.xlu0 %v228, 24
      %v3247 = vpop.permute.xlu0 %3246
      %3248 = vrot.lane.b32.xlu0 %v229, 24
      %v3249 = vpop.permute.xlu0 %3248
      %3250 = vrot.lane.b32.xlu0 %v232, 24
      %v3251 = vpop.permute.xlu0 %3250
      %3252 = vrot.lane.b32.xlu0 %v233, 24
      %v3253 = vpop.permute.xlu0 %3252
      %3254 = vrot.lane.b32.xlu0 %v236, 24
      %v3255 = vpop.permute.xlu0 %3254
      %3256 = vrot.lane.b32.xlu0 %v237, 24
      %v3257 = vpop.permute.xlu0 %3256
      %3258 = vrot.lane.b32.xlu0 %v240, 24
      %v3259 = vpop.permute.xlu0 %3258
      %3260 = vrot.lane.b32.xlu0 %v241, 24
      %v3261 = vpop.permute.xlu0 %3260
      %3278 = vrot.lane.b32.xlu0 %v3040, 28
      %v3279 = vpop.permute.xlu0 %3278
      %3280 = vrot.lane.b32.xlu0 %v3042, 28
      %v3281 = vpop.permute.xlu0 %3280
      %3282 = vrot.lane.b32.xlu0 %v3045, 28
      %v3283 = vpop.permute.xlu0 %3282
      %3284 = vrot.lane.b32.xlu0 %v3047, 28
      %v3285 = vpop.permute.xlu0 %3284
      %3290 = vrot.lane.b32.xlu0 %v1515, 32
      %v3291 = vpop.permute.xlu0 %3290
      %3292 = vrot.lane.b32.xlu0 %v3029, 32
      %v3293 = vpop.permute.xlu0 %3292
      %3294 = vrot.lane.b32.xlu0 %v1520, 32
      %v3295 = vpop.permute.xlu0 %3294
      %3296 = vrot.lane.b32.xlu0 %v3031, 32
      %v3297 = vpop.permute.xlu0 %3296
      %3298 = vrot.lane.b32.xlu0 %v1528, 32
      %v3299 = vpop.permute.xlu0 %3298
      %3300 = vrot.lane.b32.xlu0 %v3051, 32
      %v3301 = vpop.permute.xlu0 %3300
      %3302 = vrot.lane.b32.xlu0 %v1533, 32
      %v3303 = vpop.permute.xlu0 %3302
      %3304 = vrot.lane.b32.xlu0 %v3053, 32
      %v3305 = vpop.permute.xlu0 %3304
      %3306 = vrot.lane.b32.xlu0 %v3056, 32
      %v3307 = vpop.permute.xlu0 %3306
      %3308 = vrot.lane.b32.xlu0 %v3058, 32
      %v3309 = vpop.permute.xlu0 %3308
      %3310 = vrot.lane.b32.xlu0 %v3061, 32
      %v3311 = vpop.permute.xlu0 %3310
      %3312 = vrot.lane.b32.xlu0 %v3063, 32
      %v3313 = vpop.permute.xlu0 %3312
      %3314 = vrot.lane.b32.xlu0 %v3066, 32
      %v3315 = vpop.permute.xlu0 %3314
      %3316 = vrot.lane.b32.xlu0 %v3068, 32
      %v3317 = vpop.permute.xlu0 %3316
      %3318 = vrot.lane.b32.xlu0 %v3071, 32
      %v3319 = vpop.permute.xlu0 %3318
      %3320 = vrot.lane.b32.xlu0 %v3073, 32
      %v3321 = vpop.permute.xlu0 %3320
      %v3338 = vsel %vm334, %v164, %v3075
      %v3339 = vsel %vm334, %v165, %v3077
      %v3340 = vsel %vm334, %v168, %v3079
      %v3341 = vsel %vm334, %v169, %v3081
      %v3342 = vsel %vm334, %v172, %v2340
      %v3343 = vsel %vm334, %v173, %v2342
      %v3344 = vsel %vm334, %v176, %v2344
      %v3345 = vsel %vm334, %v177, %v2346
      %v3346 = vsel %vm334, %v180, %v1540
      %v3347 = vsel %vm334, %v181, %v1542
      %v3348 = vsel %vm334, %v184, %v685
      %v3349 = vsel %vm334, %v185, %v687
      %v3350 = vsel %vm334, %v188, %v689
      %v3351 = vsel %vm334, %v189, %v691
      %v3352 = vsel %vm334, %v192, %v693
      %v3353 = vsel %vm334, %v193, %v695
      %v3354 = vsel %vm1084, %v3338, %v3087
      %v3355 = vsel %vm1084, %v3339, %v3089
      %v3356 = vsel %vm1084, %v3340, %v3091
      %v3357 = vsel %vm1084, %v3341, %v3093
      %v3358 = vsel %vm1084, %v3342, %v3095
      %v3359 = vsel %vm1084, %v3343, %v3097
      %v3360 = vsel %vm1084, %v3344, %v3099
      %v3361 = vsel %vm1084, %v3345, %v3101
      %v3362 = vsel %vm1084, %v3346, %v3103
      %v3363 = vsel %vm1084, %v3347, %v3105
      %v3364 = vsel %vm1084, %v3348, %v3107
      %v3365 = vsel %vm1084, %v3349, %v3109
      %v3366 = vsel %vm1084, %v3350, %v3111
      %v3367 = vsel %vm1084, %v3351, %v3113
      %v3368 = vsel %vm1084, %v3352, %v3115
      %v3369 = vsel %vm1084, %v3353, %v3117
      %v3370 = vsel %vm1101, %v3354, %v3135
      %v3371 = vsel %vm1101, %v3355, %v3137
      %v3372 = vsel %vm1101, %v3356, %v3139
      %v3373 = vsel %vm1101, %v3357, %v3141
      %v3374 = vsel %vm1101, %v3358, %v3143
      %v3375 = vsel %vm1101, %v3359, %v3145
      %v3376 = vsel %vm1101, %v3360, %v3147
      %v3377 = vsel %vm1101, %v3361, %v3149
      %v3378 = vsel %vm1101, %v3362, %v3151
      %v3379 = vsel %vm1101, %v3363, %v3153
      %v3380 = vsel %vm1101, %v3364, %v3155
      %v3381 = vsel %vm1101, %v3365, %v3157
      %v3382 = vsel %vm1101, %v3366, %v3159
      %v3383 = vsel %vm1101, %v3367, %v3161
      %v3384 = vsel %vm1101, %v3368, %v3163
      %v3385 = vsel %vm1101, %v3369, %v3165
      %v3386 = vsel %vm1118, %v3370, %v829
      %v3387 = vsel %vm1118, %v3371, %v831
      %v3388 = vsel %vm1118, %v3372, %v833
      %v3389 = vsel %vm1118, %v3373, %v835
      %v3390 = vsel %vm1118, %v3374, %v837
      %v3391 = vsel %vm1118, %v3375, %v839
      %v3392 = vsel %vm1118, %v3376, %v841
      %v3393 = vsel %vm1118, %v3377, %v843
      %v3394 = vsel %vm1118, %v3378, %v845
      %v3395 = vsel %vm1118, %v3379, %v847
      %v3396 = vsel %vm1118, %v3380, %v849
      %v3397 = vsel %vm1118, %v3381, %v851
      %v3398 = vsel %vm1118, %v3382, %v853
      %v3399 = vsel %vm1118, %v3383, %v855
      %v3400 = vsel %vm1118, %v3384, %v857
      %v3401 = vsel %vm1118, %v3385, %v859
      %v3402 = vsel %vm1135, %v3386, %v3183
      %v3403 = vsel %vm1135, %v3387, %v3185
      %v3404 = vsel %vm1135, %v3388, %v3187
      %v3405 = vsel %vm1135, %v3389, %v3189
      %v3406 = vsel %vm1135, %v3390, %v3191
      %v3407 = vsel %vm1135, %v3391, %v3193
      %v3408 = vsel %vm1135, %v3392, %v3195
      %v3409 = vsel %vm1135, %v3393, %v3197
      %v3410 = vsel %vm1135, %v3394, %v3199
      %v3411 = vsel %vm1135, %v3395, %v3201
      %v3412 = vsel %vm1135, %v3396, %v3203
      %v3413 = vsel %vm1135, %v3397, %v3205
      %v3414 = vsel %vm1135, %v3398, %v3207
      %v3415 = vsel %vm1135, %v3399, %v3209
      %v3416 = vsel %vm1135, %v3400, %v3211
      %v3417 = vsel %vm1135, %v3401, %v3213
      %v3418 = vsel %vm1152, %v3402, %v3231
      %v3419 = vsel %vm1152, %v3403, %v3233
      %v3420 = vsel %vm1152, %v3404, %v3235
      %v3421 = vsel %vm1152, %v3405, %v3237
      %v3422 = vsel %vm1152, %v3406, %v3239
      %v3423 = vsel %vm1152, %v3407, %v3241
      %v3424 = vsel %vm1152, %v3408, %v3243
      %v3425 = vsel %vm1152, %v3409, %v3245
      %v3426 = vsel %vm1152, %v3410, %v3247
      %v3427 = vsel %vm1152, %v3411, %v3249
      %v3428 = vsel %vm1152, %v3412, %v3251
      %v3429 = vsel %vm1152, %v3413, %v3253
      %v3430 = vsel %vm1152, %v3414, %v3255
      %v3431 = vsel %vm1152, %v3415, %v3257
      %v3432 = vsel %vm1152, %v3416, %v3259
      %v3433 = vsel %vm1152, %v3417, %v3261
      %v3434 = vsel %vm1169, %v3418, %v993
      %v3435 = vsel %vm1169, %v3419, %v995
      %v3436 = vsel %vm1169, %v3420, %v997
      %v3437 = vsel %vm1169, %v3421, %v999
      %v3438 = vsel %vm1169, %v3422, %v1001
      %v3439 = vsel %vm1169, %v3423, %v1003
      %v3440 = vsel %vm1169, %v3424, %v1738
      %v3441 = vsel %vm1169, %v3425, %v1740
      %v3442 = vsel %vm1169, %v3426, %v2544
      %v3443 = vsel %vm1169, %v3427, %v2546
      %v3444 = vsel %vm1169, %v3428, %v2548
      %v3445 = vsel %vm1169, %v3429, %v2550
      %v3446 = vsel %vm1169, %v3430, %v3279
      %v3447 = vsel %vm1169, %v3431, %v3281
      %v3448 = vsel %vm1169, %v3432, %v3283
      %v3449 = vsel %vm1169, %v3433, %v3285
      %v3450 = vsel %vm1186, %v3434, %v3291
      %v3451 = vsel %vm1186, %v3435, %v3293
      %v3452 = vsel %vm1186, %v3436, %v3295
      %v3453 = vsel %vm1186, %v3437, %v3297
      %v3454 = vsel %vm1186, %v3438, %v3299
      %v3455 = vsel %vm1186, %v3439, %v3301
      %v3456 = vsel %vm1186, %v3440, %v3303
      %v3457 = vsel %vm1186, %v3441, %v3305
      %v3458 = vsel %vm1186, %v3442, %v3307
      %v3459 = vsel %vm1186, %v3443, %v3309
      %v3460 = vsel %vm1186, %v3444, %v3311
      %v3461 = vsel %vm1186, %v3445, %v3313
      %v3462 = vsel %vm1186, %v3446, %v3315
      %v3463 = vsel %vm1186, %v3447, %v3317
      %v3464 = vsel %vm1186, %v3448, %v3319
      %v3465 = vsel %vm1186, %v3449, %v3321
      %v3466 = vpack.c.bf16 %v3451, %v3450
      %v3467 = vpack.c.bf16 %v3453, %v3452
      %v3468 = vpack.c.bf16 %v3455, %v3454
      %v3469 = vpack.c.bf16 %v3457, %v3456
      %v3470 = vpack.c.bf16 %v3459, %v3458
      %v3471 = vpack.c.bf16 %v3461, %v3460
      %v3472 = vpack.c.bf16 %v3463, %v3462
      %v3473 = vpack.c.bf16 %v3465, %v3464
      %s3474 = scalar_lea.vmem %s2, 60
      %v3475 = vld [vmem:[%s3474] sm:$0xf]
      %v3476 = vld [vmem:[%s3474 + $0x4] sm:$0xf]
      %v3477 = vld [vmem:[%s3474 + $0x8] sm:$0xf]
      %v3478 = vld [vmem:[%s3474 + $0xc] sm:$0xf]
      %v3479 = vld [vmem:[%s3474 + $0x10] sm:$0x3]
      %v3485 = vunpack.c.l.b16 %v3475
      %v3486 = vunpack.c.l.b16 %v3476
      %v3487 = vunpack.c.l.b16 %v3477
      %v3488 = vunpack.c.l.b16 %v3478
      %v3489 = vunpack.c.l.b16 %v3479
      %v3490 = vpack.c.b16 %v3486, %v3485
      %v3491 = vpack.c.b16 %v3488, %v3487
      %v3492 = vpack.c.b16 %v3489, %v3489
      %v3496 = vsel %vm1231, %v3466, 0
      %v3499 = vsel %vm1231, %v3467, 0
      %v3502 = vsel %vm1231, %v3468, 0
      %v3505 = vsel %vm1231, %v3469, 0
      %v3508 = vsel %vm1231, %v3470, 0
      %v3511 = vsel %vm1231, %v3471, 0
      %v3514 = vsel %vm1231, %v3472, 0
      %v3517 = vsel %vm1231, %v3473, 0
      %v3520 = vsel %vm268, %v3492, 0
      %3522 = vmatprep.subr.bf16.mxu0 0
      %3523 = vmatpush1.bf16.msra.mxu0 %v3490
      %3524 = vmatprep.subr.bf16.mxu0 0
      %3525 = vmatpush1.bf16.msra.mxu0 %v3491
      %3526 = vmatprep.subr.bf16.mxu0 0
      %3527 = vmatpush1.bf16.msra.mxu0 %v3520
      %3528 = vmatprep.subr.bf16.mxu0 0
      %3529 = vmatpush1.bf16.msra.mxu0 0
      %3530 = vmatprep.subr.bf16.mxu0 0
      %3531 = vmatpush1.bf16.msra.mxu0 0
      %3532 = vmatprep.subr.bf16.mxu0 0
      %3533 = vmatpush1.bf16.msra.mxu0 0
      %3534 = vmatprep.subr.bf16.mxu0 0
      %3535 = vmatpush1.bf16.msra.mxu0 0
      %3536 = vmatprep.subr.bf16.mxu0 0
      %3537 = vmatpush1.bf16.msra.mxu0 0
      %3538 = vmatprep.subr.bf16.mxu0 0
      %3539 = vmatpush1.bf16.msra.mxu0 0
      %3540 = vmatprep.subr.bf16.mxu0 0
      %3541 = vmatpush1.bf16.msra.mxu0 0
      %3542 = vmatprep.subr.bf16.mxu0 0
      %3543 = vmatpush1.bf16.msra.mxu0 0
      %3544 = vmatprep.subr.bf16.mxu0 0
      %3545 = vmatpush1.bf16.msra.mxu0 0
      %3546 = vmatprep.subr.bf16.mxu0 0
      %3547 = vmatpush1.bf16.msra.mxu0 0
      %3548 = vmatprep.subr.bf16.mxu0 0
      %3549 = vmatpush1.bf16.msra.mxu0 0
      %3550 = vmatprep.subr.bf16.mxu0 0
      %3551 = vmatpush1.bf16.msra.mxu0 0
      %3552 = vmatprep.subr.bf16.mxu0 0
      %3553 = vmatpush1.bf16.msra.mxu0 0
      %3554 = vmatprep.mubr.bf16.mxu0 0
      %3555 = vmatmul.mubr.bf16.gmra.mrb[0].mxu0 %v3496
      %v3556 = vpop.f32.mrb[0].mxu0
      %v3557 = vadd.f32 0.0, %v3556
      %v3558 = vpop.f32.mrb[0].mxu0
      %v3559 = vpop.f32.mrb[0].mxu0
      %v3560 = vadd.f32 0.0, %v3559
      %v3561 = vpop.f32.mrb[0].mxu0
      %3562 = vmatprep.mubr.bf16.mxu0 0
      %3563 = vmatmul.mubr.bf16.gmra.mrb[0].mxu0 %v3499
      %v3564 = vpop.f32.mrb[0].mxu0
      %v3565 = vadd.f32 0.0, %v3564
      %v3566 = vpop.f32.mrb[0].mxu0
      %v3567 = vpop.f32.mrb[0].mxu0
      %v3568 = vadd.f32 0.0, %v3567
      %v3569 = vpop.f32.mrb[0].mxu0
      %3570 = vmatprep.mubr.bf16.mxu0 0
      %3571 = vmatmul.mubr.bf16.gmra.mrb[0].mxu0 %v3502
      %v3572 = vpop.f32.mrb[0].mxu0
      %v3573 = vadd.f32 0.0, %v3572
      %v3574 = vpop.f32.mrb[0].mxu0
      %v3575 = vpop.f32.mrb[0].mxu0
      %v3576 = vadd.f32 0.0, %v3575
      %v3577 = vpop.f32.mrb[0].mxu0
      %3578 = vmatprep.mubr.bf16.mxu0 0
      %3579 = vmatmul.mubr.bf16.gmra.mrb[0].mxu0 %v3505
      %v3580 = vpop.f32.mrb[0].mxu0
      %v3581 = vadd.f32 0.0, %v3580
      %v3582 = vpop.f32.mrb[0].mxu0
      %v3583 = vpop.f32.mrb[0].mxu0
      %v3584 = vadd.f32 0.0, %v3583
      %v3585 = vpop.f32.mrb[0].mxu0
      %3586 = vmatprep.mubr.bf16.mxu0 0
      %3587 = vmatmul.mubr.bf16.gmra.mrb[0].mxu0 %v3508
      %v3588 = vpop.f32.mrb[0].mxu0
      %v3589 = vadd.f32 0.0, %v3588
      %v3590 = vpop.f32.mrb[0].mxu0
      %v3591 = vpop.f32.mrb[0].mxu0
      %v3592 = vadd.f32 0.0, %v3591
      %v3593 = vpop.f32.mrb[0].mxu0
      %3594 = vmatprep.mubr.bf16.mxu0 0
      %3595 = vmatmul.mubr.bf16.gmra.mrb[0].mxu0 %v3511
      %v3596 = vpop.f32.mrb[0].mxu0
      %v3597 = vadd.f32 0.0, %v3596
      %v3598 = vpop.f32.mrb[0].mxu0
      %v3599 = vpop.f32.mrb[0].mxu0
      %v3600 = vadd.f32 0.0, %v3599
      %v3601 = vpop.f32.mrb[0].mxu0
      %3602 = vmatprep.mubr.bf16.mxu0 0
      %3603 = vmatmul.mubr.bf16.gmra.mrb[0].mxu0 %v3514
      %v3604 = vpop.f32.mrb[0].mxu0
      %v3605 = vadd.f32 0.0, %v3604
      %v3606 = vpop.f32.mrb[0].mxu0
      %v3607 = vpop.f32.mrb[0].mxu0
      %v3608 = vadd.f32 0.0, %v3607
      %v3609 = vpop.f32.mrb[0].mxu0
      %3610 = vmatprep.mubr.bf16.mxu0 0
      %3611 = vmatmul.mubr.bf16.gmra.mrb[0].mxu0 %v3517
      %v3612 = vpop.f32.mrb[0].mxu0
      %v3613 = vadd.f32 0.0, %v3612
      %v3614 = vpop.f32.mrb[0].mxu0
      %v3615 = vpop.f32.mrb[0].mxu0
      %v3616 = vadd.f32 0.0, %v3615
      %v3617 = vpop.f32.mrb[0].mxu0
      %3618 = vdwg.mxu0
      %v3619 = vsel %vm459, %v3557, 0.0
      %v3620 = vsel %vm459, %v3560, 0.0
      %v3621 = vadd.f32 %v3619, %v3620
      %v3622 = vsel %vm459, %v3565, 0.0
      %v3623 = vadd.f32 %v3621, %v3622
      %v3624 = vsel %vm459, %v3568, 0.0
      %v3625 = vadd.f32 %v3623, %v3624
      %v3626 = vsel %vm459, %v3573, 0.0
      %v3627 = vadd.f32 %v3625, %v3626
      %v3628 = vsel %vm459, %v3576, 0.0
      %v3629 = vadd.f32 %v3627, %v3628
      %v3630 = vsel %vm459, %v3581, 0.0
      %v3631 = vadd.f32 %v3629, %v3630
      %v3632 = vsel %vm459, %v3584, 0.0
      %v3633 = vadd.f32 %v3631, %v3632
      %v3634 = vsel %vm459, %v3589, 0.0
      %v3635 = vadd.f32 %v3633, %v3634
      %v3636 = vsel %vm459, %v3592, 0.0
      %v3637 = vadd.f32 %v3635, %v3636
      %v3638 = vsel %vm459, %v3597, 0.0
      %v3639 = vadd.f32 %v3637, %v3638
      %v3640 = vsel %vm459, %v3600, 0.0
      %v3641 = vadd.f32 %v3639, %v3640
      %v3642 = vsel %vm459, %v3605, 0.0
      %v3643 = vadd.f32 %v3641, %v3642
      %v3644 = vsel %vm459, %v3608, 0.0
      %v3645 = vadd.f32 %v3643, %v3644
      %v3646 = vsel %vm459, %v3613, 0.0
      %v3647 = vadd.f32 %v3645, %v3646
      %v3648 = vsel %vm459, %v3616, 0.0
      %v3649 = vadd.f32 %v3647, %v3648
      %v3650 = vrot.slane %v3649, 4
      %v3651 = vadd.f32 %v3649, %v3650
      %v3652 = vrot.slane %v3651, 2
      %v3653 = vadd.f32 %v3651, %v3652
      %v3654 = vrot.slane %v3653, 1
      %v3655 = vadd.f32 %v3653, %v3654
      %v3656 = vmul.f32 %v3557, %v3557
      %v3657 = vmul.f32 %v3560, %v3560
      %v3658 = vmul.f32 %v3565, %v3565
      %v3659 = vmul.f32 %v3568, %v3568
      %v3660 = vmul.f32 %v3573, %v3573
      %v3661 = vmul.f32 %v3576, %v3576
      %v3662 = vmul.f32 %v3581, %v3581
      %v3663 = vmul.f32 %v3584, %v3584
      %v3664 = vmul.f32 %v3589, %v3589
      %v3665 = vmul.f32 %v3592, %v3592
      %v3666 = vmul.f32 %v3597, %v3597
      %v3667 = vmul.f32 %v3600, %v3600
      %v3668 = vmul.f32 %v3605, %v3605
      %v3669 = vmul.f32 %v3608, %v3608
      %v3670 = vmul.f32 %v3613, %v3613
      %v3671 = vmul.f32 %v3616, %v3616
      %v3672 = vsel %vm459, %v3656, 0.0
      %v3673 = vsel %vm459, %v3657, 0.0
      %v3674 = vadd.f32 %v3672, %v3673
      %v3675 = vsel %vm459, %v3658, 0.0
      %v3676 = vadd.f32 %v3674, %v3675
      %v3677 = vsel %vm459, %v3659, 0.0
      %v3678 = vadd.f32 %v3676, %v3677
      %v3679 = vsel %vm459, %v3660, 0.0
      %v3680 = vadd.f32 %v3678, %v3679
      %v3681 = vsel %vm459, %v3661, 0.0
      %v3682 = vadd.f32 %v3680, %v3681
      %v3683 = vsel %vm459, %v3662, 0.0
      %v3684 = vadd.f32 %v3682, %v3683
      %v3685 = vsel %vm459, %v3663, 0.0
      %v3686 = vadd.f32 %v3684, %v3685
      %v3687 = vsel %vm459, %v3664, 0.0
      %v3688 = vadd.f32 %v3686, %v3687
      %v3689 = vsel %vm459, %v3665, 0.0
      %v3690 = vadd.f32 %v3688, %v3689
      %v3691 = vsel %vm459, %v3666, 0.0
      %v3692 = vadd.f32 %v3690, %v3691
      %v3693 = vsel %vm459, %v3667, 0.0
      %v3694 = vadd.f32 %v3692, %v3693
      %v3695 = vsel %vm459, %v3668, 0.0
      %v3696 = vadd.f32 %v3694, %v3695
      %v3697 = vsel %vm459, %v3669, 0.0
      %v3698 = vadd.f32 %v3696, %v3697
      %v3699 = vsel %vm459, %v3670, 0.0
      %v3700 = vadd.f32 %v3698, %v3699
      %v3701 = vsel %vm459, %v3671, 0.0
      %v3702 = vadd.f32 %v3700, %v3701
      %v3703 = vrot.slane %v3702, 4
      %v3704 = vadd.f32 %v3702, %v3703
      %v3705 = vrot.slane %v3704, 2
      %v3706 = vadd.f32 %v3704, %v3705
      %v3707 = vrot.slane %v3706, 1
      %v3708 = vadd.f32 %v3706, %v3707
      %v3709 = vsel %vm615, %v496, %v1392
      %v3710 = vsel %vm268, %v3709, %v2108
      %v3711 = vsel %vm553, %v3710, %v2920
      %v3712 = vsel %vm1449, %v3711, %v3655
      %v3713 = vsel %vm615, %v549, %v1445
      %v3714 = vsel %vm268, %v3713, %v2161
      %v3715 = vsel %vm553, %v3714, %v2973
      %v3716 = vsel %vm1449, %v3715, %v3708
      %v3717 = vld [vmem:[%s3] sm:$0x1f]
      %v3718 = vld [vmem:[%s3 + $0x8] sm:$0x1f]
      %v3719 = vadd.f32 %v3717, %v3712
      %v3720 = vadd.f32 %v3718, %v3716
      %vm3721 = vcmask 520192
      %3722 = vst.msk [vmem:[%s3] sm:$0x1f] %vm3721, %v3719
      %3723 = vst.msk [vmem:[%s3 + $0x8] sm:$0x1f] %vm3721, %v3720
      // Predicated region
      $region37: #{bpb_forward.2} parent=31 // pred_check
        %p3724 = pneg %p95
      $region38: #{bpb_forward.2} parent=31 // pred_check_branch
        %3726 = sbr.rel (%p3724) target = $region40
      $region39: #{bpb_forward.2} parent=31 // pred_region
        _
      $region40: #{bpb_forward.2} parent=31 // pred_fallthru
        _
      // Predicated region
      $region41: #{bpb_forward.2} parent=31 // pred_check
        %p3727 = pneg %p95
      $region42: #{bpb_forward.2} parent=31 // pred_check_branch
        %3729 = sbr.rel (%p3727) target = $region44
      $region43: #{bpb_forward.2} parent=31 // pred_region
        _
      $region44: #{bpb_forward.2} parent=31 // pred_fallthru
        _
    $region32: #{bpb_forward.2} parent=5 // pred_fallthru
      _
    %p3730 = scmp.le.s32.totalorder 2, %s9
    // Predicated region
    $region45: #{bpb_forward.2} parent=5 // pred_check
      %p3731 = pneg %p3730
    $region46: #{bpb_forward.2} parent=5 // pred_check_branch
      %3733 = sbr.rel (%p3731) target = $region48
    $region47: #{bpb_forward.2} parent=5 // pred_region
      %s3734 = ssub.s32 %s9, 2
    $region48: #{bpb_forward.2} parent=5 // pred_fallthru
      _
  $region6: #{bpb_forward.2} parent=0 // loop_footer
    %s13 = sadd.s32 1, %s9
  $region7: #{bpb_forward.2} parent=0 // loop_footer_branch
    %8 = sbr.rel target = $region3
  $region8: #{bpb_forward.2} parent=0 // loop_exit
    _

// kernel: bpb_forward.3
$region0: #{bpb_forward.3}
  #allocation0 [shape = 'u32[]', space=smem, size = 0x4, offset = 0x4, fixed_abs, tag = 'smem constant byte address 0x4 - core index']
  #allocation1 [shape = 'u32[144,128]{1,0:T(1,128)}', space=vmem, size = 0x12000, scoped, tag = 'internal scratch']
  #allocation2 [shape = 'f32[1,1]{1,0:T(1,128)S(1)}', space=vmem, size = 0x200, scoped, tag = 'scoped memory for bpb_forward.3']
  %s0 = inlined_call_operand.vmem [shape: f32[4,20,28,4], index: 0, kind: input, shape index: {}]
  %s1 = inlined_call_operand.vmem [shape: bf16[4,64], index: 1, kind: input, shape index: {}]
  %s2 = inlined_call_operand.vmem [shape: bf16[4,36,64], index: 2, kind: input, shape index: {}]
  %s3 = inlined_call_operand.vmem [shape: f32[5,64], index: 3, kind: input, shape index: {}]
  %s4 = inlined_call_operand.vmem [shape: f32[5,64], index: 4, kind: input, shape index: {}]
  %s5 = inlined_call_operand.vmem [shape: f32[5,64], index: 5, kind: input, shape index: {}]
  %s6 = inlined_call_operand.<no memory space> [shape: f32[1,1], index: 6, kind: input, shape index: {}]
  %s7 = inlined_call_operand.hbm [shape: f32[4,8,16], index: 7, kind: output, shape index: {}]
  %s8 = sld [smem:[#allocation0]]
  $region61: #{bpb_forward.3} parent=0
    _
  %s10 = ssub.s32 1, %s8
  %s11 = scalar_select 0, %s10, %s8
  %v12 = vstv %s6
  %13 = vst [vmem:[#allocation2] sm:$0x1] %v12
  $region1: #{bpb_forward.3} parent=0
    #allocation3 [shape = 'u8[8192]{0}', space=vmem, size = 0x2000, scoped, tag = 'output window, operand 0']
    #allocation4 [shape = 's32[2]{0}', space=sflag, size = 0x8, scoped, tag = 'scoped memory for bpb_forward.3']
    %14 = vsyncpa [#allocation4], 0
    %s15 = scalar_lea.sflag [#allocation4], 1
    %16 = vsyncpa %s15, 0
    loop: start=0, step=1, limit=6
    $region2: #{bpb_forward.3} parent=1 // loop_pre_header
      _
    $region3: #{bpb_forward.3} parent=1 // loop_header
      %s18 = sphi 0, %s22
      %p19 = scmp.ge.s32.totalorder %s18, 6
      %s28 = sphi 0, %s30
      %s31 = sphi 0, %s28
      %s32 = sphi 0, %s31
      %s48 = sphi 0, %s32
      %s52 = sphi 0, %s52
      %s54 = sphi 0, %s52
      %s55 = sphi 0, %s54
      %s69 = sphi 0, %s55
      %s73 = sphi 0, %s73
      %s75 = sphi 0, %s73
      %s76 = sphi 0, %s75
      %s90 = sphi 0, %s76
      %s94 = sphi 0, %s94
      %s96 = sphi 0, %s94
      %s97 = sphi 0, %s96
      %s111 = sphi 0, %s97
      %s115 = sphi 0, %s115
      %s117 = sphi 0, %s115
      %s118 = sphi 0, %s117
      %s132 = sphi 0, %s118
      %s136 = sphi 0, %s136
      %s138 = sphi 0, %s136
      %s139 = sphi 0, %s138
      %s153 = sphi 0, %s139
      %s157 = sphi 0, %s157
      %s159 = sphi 0, %s157
      %s160 = sphi 0, %s159
      %s174 = sphi 0, %s160
      %s180 = sphi 0, %s182
      %s183 = sphi 0, %s180
      %s184 = sphi 0, %s183
      %s200 = sphi 0, %s184
    $region4: #{bpb_forward.3} parent=1 // loop_header_branch
      %21 = sbr.rel (%p19) target = $region8
    $region5: #{bpb_forward.3} parent=1 // loop_body
      %s23 = ssub.s32 %s18, 1
      %s24 = ssub.s32 %s18, 2
      %s25 = sadd.s32 %s18, 1
      %s26 = ssub.s32 %s18, %s25
      %p27 = scmp.eq.s32.totalorder %s26, 0
      %s29 = sadd.s32 %s28, 1
      %s30 = scalar_select %p27, %s28, %s29
      %p33 = pneg %p27
      %p34 = scmp.eq.s32.totalorder %s18, 3
      %p35 = por %p33, %p34
      %p36 = scmp.ne.s32.totalorder %s28, %s31
      %p37 = scmp.eq.s32.totalorder %s18, 0
      %p38 = por %p36, %p37
      %p39 = scmp.ne.s32.totalorder %s28, %s31
      %p40 = scmp.eq.s32.totalorder %s23, 3
      %p41 = por %p39, %p40
      %p42 = scmp.ne.s32.totalorder %s31, %s32
      %p43 = scmp.eq.s32.totalorder %s23, 0
      %p44 = por %p42, %p43
      %p45 = scmp.ne.s32.totalorder %s31, %s32
      %p46 = scmp.eq.s32.totalorder %s24, 3
      %p47 = por %p45, %p46
      %p49 = scmp.ne.s32.totalorder %s32, %s48
      %p50 = scmp.eq.s32.totalorder %s24, 0
      %p51 = por %p49, %p50
      %s53 = sadd.s32 %s52, 1
      %p56 = scmp.eq.s32.totalorder %s18, 3
      %p57 = scmp.ne.s32.totalorder %s52, %s54
      %p58 = scmp.eq.s32.totalorder %s18, 0
      %p59 = por %p57, %p58
      %p60 = scmp.ne.s32.totalorder %s52, %s54
      %p61 = scmp.eq.s32.totalorder %s23, 3
      %p62 = por %p60, %p61
      %p63 = scmp.ne.s32.totalorder %s54, %s55
      %p64 = scmp.eq.s32.totalorder %s23, 0
      %p65 = por %p63, %p64
      %p66 = scmp.ne.s32.totalorder %s54, %s55
      %p67 = scmp.eq.s32.totalorder %s24, 3
      %p68 = por %p66, %p67
      %p70 = scmp.ne.s32.totalorder %s55, %s69
      %p71 = scmp.eq.s32.totalorder %s24, 0
      %p72 = por %p70, %p71
      %s74 = sadd.s32 %s73, 1
      %p77 = scmp.eq.s32.totalorder %s18, 3
      %p78 = scmp.ne.s32.totalorder %s73, %s75
      %p79 = scmp.eq.s32.totalorder %s18, 0
      %p80 = por %p78, %p79
      %p81 = scmp.ne.s32.totalorder %s73, %s75
      %p82 = scmp.eq.s32.totalorder %s23, 3
      %p83 = por %p81, %p82
      %p84 = scmp.ne.s32.totalorder %s75, %s76
      %p85 = scmp.eq.s32.totalorder %s23, 0
      %p86 = por %p84, %p85
      %p87 = scmp.ne.s32.totalorder %s75, %s76
      %p88 = scmp.eq.s32.totalorder %s24, 3
      %p89 = por %p87, %p88
      %p91 = scmp.ne.s32.totalorder %s76, %s90
      %p92 = scmp.eq.s32.totalorder %s24, 0
      %p93 = por %p91, %p92
      %s95 = sadd.s32 %s94, 1
      %p98 = scmp.eq.s32.totalorder %s18, 3
      %p99 = scmp.ne.s32.totalorder %s94, %s96
      %p100 = scmp.eq.s32.totalorder %s18, 0
      %p101 = por %p99, %p100
      %p102 = scmp.ne.s32.totalorder %s94, %s96
      %p103 = scmp.eq.s32.totalorder %s23, 3
      %p104 = por %p102, %p103
      %p105 = scmp.ne.s32.totalorder %s96, %s97
      %p106 = scmp.eq.s32.totalorder %s23, 0
      %p107 = por %p105, %p106
      %p108 = scmp.ne.s32.totalorder %s96, %s97
      %p109 = scmp.eq.s32.totalorder %s24, 3
      %p110 = por %p108, %p109
      %p112 = scmp.ne.s32.totalorder %s97, %s111
      %p113 = scmp.eq.s32.totalorder %s24, 0
      %p114 = por %p112, %p113
      %s116 = sadd.s32 %s115, 1
      %p119 = scmp.eq.s32.totalorder %s18, 3
      %p120 = scmp.ne.s32.totalorder %s115, %s117
      %p121 = scmp.eq.s32.totalorder %s18, 0
      %p122 = por %p120, %p121
      %p123 = scmp.ne.s32.totalorder %s115, %s117
      %p124 = scmp.eq.s32.totalorder %s23, 3
      %p125 = por %p123, %p124
      %p126 = scmp.ne.s32.totalorder %s117, %s118
      %p127 = scmp.eq.s32.totalorder %s23, 0
      %p128 = por %p126, %p127
      %p129 = scmp.ne.s32.totalorder %s117, %s118
      %p130 = scmp.eq.s32.totalorder %s24, 3
      %p131 = por %p129, %p130
      %p133 = scmp.ne.s32.totalorder %s118, %s132
      %p134 = scmp.eq.s32.totalorder %s24, 0
      %p135 = por %p133, %p134
      %s137 = sadd.s32 %s136, 1
      %p140 = scmp.eq.s32.totalorder %s18, 3
      %p141 = scmp.ne.s32.totalorder %s136, %s138
      %p142 = scmp.eq.s32.totalorder %s18, 0
      %p143 = por %p141, %p142
      %p144 = scmp.ne.s32.totalorder %s136, %s138
      %p145 = scmp.eq.s32.totalorder %s23, 3
      %p146 = por %p144, %p145
      %p147 = scmp.ne.s32.totalorder %s138, %s139
      %p148 = scmp.eq.s32.totalorder %s23, 0
      %p149 = por %p147, %p148
      %p150 = scmp.ne.s32.totalorder %s138, %s139
      %p151 = scmp.eq.s32.totalorder %s24, 3
      %p152 = por %p150, %p151
      %p154 = scmp.ne.s32.totalorder %s139, %s153
      %p155 = scmp.eq.s32.totalorder %s24, 0
      %p156 = por %p154, %p155
      %s158 = sadd.s32 %s157, 1
      %p161 = scmp.eq.s32.totalorder %s18, 3
      %p162 = scmp.ne.s32.totalorder %s157, %s159
      %p163 = scmp.eq.s32.totalorder %s18, 0
      %p164 = por %p162, %p163
      %p165 = scmp.ne.s32.totalorder %s157, %s159
      %p166 = scmp.eq.s32.totalorder %s23, 3
      %p167 = por %p165, %p166
      %p168 = scmp.ne.s32.totalorder %s159, %s160
      %p169 = scmp.eq.s32.totalorder %s23, 0
      %p170 = por %p168, %p169
      %p171 = scmp.ne.s32.totalorder %s159, %s160
      %p172 = scmp.eq.s32.totalorder %s24, 3
      %p173 = por %p171, %p172
      %p175 = scmp.ne.s32.totalorder %s160, %s174
      %p176 = scmp.eq.s32.totalorder %s24, 0
      %p177 = por %p175, %p176
      %s178 = ssub.s32 %s18, %s25
      %p179 = scmp.eq.s32.totalorder %s178, 0
      %s181 = sadd.s32 %s180, 1
      %s182 = scalar_select %p179, %s180, %s181
      %p185 = pneg %p179
      %p186 = scmp.eq.s32.totalorder %s18, 3
      %p187 = por %p185, %p186
      %p188 = scmp.ne.s32.totalorder %s180, %s183
      %p189 = scmp.eq.s32.totalorder %s18, 0
      %p190 = por %p188, %p189
      %p191 = scmp.ne.s32.totalorder %s180, %s183
      %p192 = scmp.eq.s32.totalorder %s23, 3
      %p193 = por %p191, %p192
      %p194 = scmp.ne.s32.totalorder %s183, %s184
      %p195 = scmp.eq.s32.totalorder %s23, 0
      %p196 = por %p194, %p195
      %p197 = scmp.ne.s32.totalorder %s183, %s184
      %p198 = scmp.eq.s32.totalorder %s24, 3
      %p199 = por %p197, %p198
      %p201 = scmp.ne.s32.totalorder %s184, %s200
      %p202 = scmp.eq.s32.totalorder %s24, 0
      %p203 = por %p201, %p202
      %p204 = scmp.le.s32.totalorder 1, %s18
      %p205 = scmp.lt.s32.totalorder %s18, 5
      %p206 = pnand %p204, %p205
      %p207 = pneg %p206
      // Predicated region
      $region9: #{bpb_forward.3} parent=5 // pred_check
        _
      $region10: #{bpb_forward.3} parent=5 // pred_check_branch
        %209 = sbr.rel (%p206) target = $region12
      $region11: #{bpb_forward.3} parent=5 // pred_region
        %s210 = ssub.s32 %s18, 1
        // Predicated region
        $region13: #{bpb_forward.3} parent=11 // pred_check
          %p211 = pneg %p65
        $region14: #{bpb_forward.3} parent=11 // pred_check_branch
          %213 = sbr.rel (%p211) target = $region16
        $region15: #{bpb_forward.3} parent=11 // pred_region
          _
        $region16: #{bpb_forward.3} parent=11 // pred_fallthru
          _
        // Predicated region
        $region17: #{bpb_forward.3} parent=11 // pred_check
          %p214 = pneg %p86
        $region18: #{bpb_forward.3} parent=11 // pred_check_branch
          %216 = sbr.rel (%p214) target = $region20
        $region19: #{bpb_forward.3} parent=11 // pred_region
          _
        $region20: #{bpb_forward.3} parent=11 // pred_fallthru
          _
        // Predicated region
        $region21: #{bpb_forward.3} parent=11 // pred_check
          %p217 = pneg %p107
        $region22: #{bpb_forward.3} parent=11 // pred_check_branch
          %219 = sbr.rel (%p217) target = $region24
        $region23: #{bpb_forward.3} parent=11 // pred_region
          _
        $region24: #{bpb_forward.3} parent=11 // pred_fallthru
          _
        // Predicated region
        $region25: #{bpb_forward.3} parent=11 // pred_check
          %p220 = pneg %p128
        $region26: #{bpb_forward.3} parent=11 // pred_check_branch
          %222 = sbr.rel (%p220) target = $region28
        $region27: #{bpb_forward.3} parent=11 // pred_region
          _
        $region28: #{bpb_forward.3} parent=11 // pred_fallthru
          _
        // Predicated region
        $region29: #{bpb_forward.3} parent=11 // pred_check
          %p223 = pneg %p149
        $region30: #{bpb_forward.3} parent=11 // pred_check_branch
          %225 = sbr.rel (%p223) target = $region32
        $region31: #{bpb_forward.3} parent=11 // pred_region
          _
        $region32: #{bpb_forward.3} parent=11 // pred_fallthru
          _
        // Predicated region
        $region33: #{bpb_forward.3} parent=11 // pred_check
          %p226 = pneg %p170
        $region34: #{bpb_forward.3} parent=11 // pred_check_branch
          %228 = sbr.rel (%p226) target = $region36
        $region35: #{bpb_forward.3} parent=11 // pred_region
          _
        $region36: #{bpb_forward.3} parent=11 // pred_fallthru
          _
      $region12: #{bpb_forward.3} parent=5 // pred_fallthru
        _
      %p229 = scmp.lt.s32.totalorder %s18, 4
      // Predicated region
      $region37: #{bpb_forward.3} parent=5 // pred_check
        %p230 = pneg %p229
      $region38: #{bpb_forward.3} parent=5 // pred_check_branch
        %232 = sbr.rel (%p230) target = $region40
      $region39: #{bpb_forward.3} parent=5 // pred_region
        // Predicated region
        $region41: #{bpb_forward.3} parent=39 // pred_check
          %p233 = pneg %p38
        $region42: #{bpb_forward.3} parent=39 // pred_check_branch
          %235 = sbr.rel (%p233) target = $region44
        $region43: #{bpb_forward.3} parent=39 // pred_region
          %p236 = scmp.lt.s32.totalorder %s18, 3
          %s237 = scalar_select %p236, %s18, 3
          %s238 = smul.addr %s237, 80
          %s239 = smul.addr %s238, 8
          %s240 = scalar_lea.vmem %s0, %s239
        $region44: #{bpb_forward.3} parent=39 // pred_fallthru
          _
      $region40: #{bpb_forward.3} parent=5 // pred_fallthru
        _
      %p241 = scmp.le.s32.totalorder 1, %s18
      %p242 = scmp.lt.s32.totalorder %s18, 5
      %p243 = pnand %p241, %p242
      %p244 = pneg %p243
      // Predicated region
      $region45: #{bpb_forward.3} parent=5 // pred_check
        _
      $region46: #{bpb_forward.3} parent=5 // pred_check_branch
        %246 = sbr.rel (%p243) target = $region48
      $region47: #{bpb_forward.3} parent=5 // pred_region
        %s247 = ssub.s32 %s18, 1
        %p248 = scmp.lt.s32.totalorder %s23, 3
        %s249 = scalar_select %p248, %s23, 3
        %s250 = smul.addr %s249, 80
        %s251 = smul.addr %s250, 8
        %s252 = scalar_lea.vmem %s0, %s251
        %p253 = pneg %p44
        %p254 = pneg %p41
        %p255 = pneg %p65
        %p256 = pneg %p62
        %p257 = pneg %p86
        %p258 = pneg %p83
        %p259 = pneg %p107
        %p260 = pneg %p104
        %p261 = pneg %p128
        %p262 = pneg %p125
        %p263 = pneg %p149
        %p264 = pneg %p146
        %p265 = pneg %p170
        %p266 = pneg %p167
        %p267 = pneg %p196
        %p268 = pneg %p193
        %s269 = sand.u32 %s183, 1
        %s270 = scalar_lea.sflag [#allocation4], %s269
        %s271 = sand.u32 %s183, 1
        %s272 = smul.addr %s271, 8
        %s273 = scalar_lea.vmem [#allocation3], %s272
        %p274 = scmp.lt.s32.totalorder %s23, 3
        %s275 = scalar_select %p274, %s23, 3
        %s276 = smul.addr %s275, 80
        %s277 = smul.addr %s276, 8
        %s278 = scalar_lea.vmem %s0, %s277
        %v280 = vld [vmem:[%s278] sm:$0xff]
        %v281 = vld [vmem:[%s278 + $0x8] sm:$0xff]
        %v282 = vld [vmem:[%s278 + $0x10] sm:$0xff]
        %v283 = vld [vmem:[%s278 + $0x18] sm:$0xf]
        %v284 = vld [vmem:[%s278 + $0x20] sm:$0xff]
        %v285 = vld [vmem:[%s278 + $0x28] sm:$0xff]
        %v286 = vld [vmem:[%s278 + $0x30] sm:$0xff]
        %v287 = vld [vmem:[%s278 + $0x38] sm:$0xf]
        %v288 = vld [vmem:[%s278 + $0x40] sm:$0xff]
        %v289 = vld [vmem:[%s278 + $0x48] sm:$0xff]
        %v290 = vld [vmem:[%s278 + $0x50] sm:$0xff]
        %v291 = vld [vmem:[%s278 + $0x58] sm:$0xf]
        %v292 = vld [vmem:[%s278 + $0x60] sm:$0xff]
        %v293 = vld [vmem:[%s278 + $0x68] sm:$0xff]
        %v294 = vld [vmem:[%s278 + $0x70] sm:$0xff]
        %v295 = vld [vmem:[%s278 + $0x78] sm:$0xf]
        %v296 = vld [vmem:[%s278 + $0x80] sm:$0xff]
        %v297 = vld [vmem:[%s278 + $0x88] sm:$0xff]
        %v298 = vld [vmem:[%s278 + $0x90] sm:$0xff]
        %v299 = vld [vmem:[%s278 + $0x98] sm:$0xf]
        %v300 = vld [vmem:[%s278 + $0xa0] sm:$0xff]
        %v301 = vld [vmem:[%s278 + $0xa8] sm:$0xff]
        %v302 = vld [vmem:[%s278 + $0xb0] sm:$0xff]
        %v303 = vld [vmem:[%s278 + $0xb8] sm:$0xf]
        %v304 = vld [vmem:[%s278 + $0xc0] sm:$0xff]
        %v305 = vld [vmem:[%s278 + $0xc8] sm:$0xff]
        %v306 = vld [vmem:[%s278 + $0xd0] sm:$0xff]
        %v307 = vld [vmem:[%s278 + $0xd8] sm:$0xf]
        %v308 = vld [vmem:[%s278 + $0xe0] sm:$0xff]
        %v309 = vld [vmem:[%s278 + $0xe8] sm:$0xff]
        %v310 = vld [vmem:[%s278 + $0xf0] sm:$0xff]
        %v311 = vld [vmem:[%s278 + $0xf8] sm:$0xf]
        %v312 = vld [vmem:[%s278 + $0x100] sm:$0xff]
        %v313 = vld [vmem:[%s278 + $0x108] sm:$0xff]
        %v314 = vld [vmem:[%s278 + $0x110] sm:$0xff]
        %v315 = vld [vmem:[%s278 + $0x118] sm:$0xf]
        %v316 = vld [vmem:[%s278 + $0x120] sm:$0xff]
        %v317 = vld [vmem:[%s278 + $0x128] sm:$0xff]
        %v318 = vld [vmem:[%s278 + $0x130] sm:$0xff]
        %v319 = vld [vmem:[%s278 + $0x138] sm:$0xf]
        %v320 = vld [vmem:[%s278 + $0x140] sm:$0xff]
        %v321 = vld [vmem:[%s278 + $0x148] sm:$0xff]
        %v322 = vld [vmem:[%s278 + $0x150] sm:$0xff]
        %v323 = vld [vmem:[%s278 + $0x158] sm:$0xf]
        %v324 = vld [vmem:[%s278 + $0x160] sm:$0xff]
        %v325 = vld [vmem:[%s278 + $0x168] sm:$0xff]
        %v326 = vld [vmem:[%s278 + $0x170] sm:$0xff]
        %v327 = vld [vmem:[%s278 + $0x178] sm:$0xf]
        %v328 = vld [vmem:[%s278 + $0x180] sm:$0xff]
        %v329 = vld [vmem:[%s278 + $0x188] sm:$0xff]
        %v330 = vld [vmem:[%s278 + $0x190] sm:$0xff]
        %v331 = vld [vmem:[%s278 + $0x198] sm:$0xf]
        %v332 = vld [vmem:[%s278 + $0x1a0] sm:$0xff]
        %v333 = vld [vmem:[%s278 + $0x1a8] sm:$0xff]
        %v334 = vld [vmem:[%s278 + $0x1b0] sm:$0xff]
        %v335 = vld [vmem:[%s278 + $0x1b8] sm:$0xf]
        %v336 = vld [vmem:[%s278 + $0x1c0] sm:$0xff]
        %v337 = vld [vmem:[%s278 + $0x1c8] sm:$0xff]
        %v338 = vld [vmem:[%s278 + $0x1d0] sm:$0xff]
        %v339 = vld [vmem:[%s278 + $0x1d8] sm:$0xf]
        %v340 = vld [vmem:[%s278 + $0x1e0] sm:$0xff]
        %v341 = vld [vmem:[%s278 + $0x1e8] sm:$0xff]
        %v342 = vld [vmem:[%s278 + $0x1f0] sm:$0xff]
        %v343 = vld [vmem:[%s278 + $0x1f8] sm:$0xf]
        %v344 = vld [vmem:[%s278 + $0x200] sm:$0xff]
        %v345 = vld [vmem:[%s278 + $0x208] sm:$0xff]
        %v346 = vld [vmem:[%s278 + $0x210] sm:$0xff]
        %v347 = vld [vmem:[%s278 + $0x218] sm:$0xf]
        %v348 = vld [vmem:[%s278 + $0x220] sm:$0xff]
        %v349 = vld [vmem:[%s278 + $0x228] sm:$0xff]
        %v350 = vld [vmem:[%s278 + $0x230] sm:$0xff]
        %v351 = vld [vmem:[%s278 + $0x238] sm:$0xf]
        %v352 = vld [vmem:[%s278 + $0x240] sm:$0xff]
        %v353 = vld [vmem:[%s278 + $0x248] sm:$0xff]
        %v354 = vld [vmem:[%s278 + $0x250] sm:$0xff]
        %v355 = vld [vmem:[%s278 + $0x258] sm:$0xf]
        %v356 = vld [vmem:[%s278 + $0x260] sm:$0xff]
        %v357 = vld [vmem:[%s278 + $0x268] sm:$0xff]
        %v358 = vld [vmem:[%s278 + $0x270] sm:$0xff]
        %v359 = vld [vmem:[%s278 + $0x278] sm:$0xf]
        %vm384 = vcmask 1041408
        %v385 = vrot.slane %v304, 6
        %v386 = vrot.slane %v305, 6
        %v387 = vsel %vm384, %v385, %v386
        %v388 = vrot.slane %v306, 6
        %v389 = vsel %vm384, %v386, %v388
        %v390 = vrot.slane %v308, 6
        %v391 = vrot.slane %v309, 6
        %v392 = vsel %vm384, %v390, %v391
        %v393 = vrot.slane %v310, 6
        %v394 = vsel %vm384, %v391, %v393
        %v395 = vrot.slane %v312, 6
        %v396 = vrot.slane %v313, 6
        %v397 = vsel %vm384, %v395, %v396
        %v398 = vrot.slane %v314, 6
        %v399 = vsel %vm384, %v396, %v398
        %v400 = vrot.slane %v316, 6
        %v401 = vrot.slane %v317, 6
        %v402 = vsel %vm384, %v400, %v401
        %v403 = vrot.slane %v318, 6
        %v404 = vsel %vm384, %v401, %v403
        %v405 = vrot.slane %v320, 6
        %v406 = vrot.slane %v321, 6
        %v407 = vsel %vm384, %v405, %v406
        %v408 = vrot.slane %v322, 6
        %v409 = vsel %vm384, %v406, %v408
        %v410 = vrot.slane %v324, 6
        %v411 = vrot.slane %v325, 6
        %v412 = vsel %vm384, %v410, %v411
        %v413 = vrot.slane %v326, 6
        %v414 = vsel %vm384, %v411, %v413
        %v415 = vrot.slane %v328, 6
        %v416 = vrot.slane %v329, 6
        %v417 = vsel %vm384, %v415, %v416
        %v418 = vrot.slane %v330, 6
        %v419 = vsel %vm384, %v416, %v418
        %v420 = vrot.slane %v332, 6
        %v421 = vrot.slane %v333, 6
        %v422 = vsel %vm384, %v420, %v421
        %v423 = vrot.slane %v334, 6
        %v424 = vsel %vm384, %v421, %v423
        %v441 = vpack.c.bf16 %v389, %v387
        %v442 = vpack.c.bf16 %v394, %v392
        %v443 = vpack.c.bf16 %v399, %v397
        %v444 = vpack.c.bf16 %v404, %v402
        %v445 = vpack.c.bf16 %v409, %v407
        %v446 = vpack.c.bf16 %v414, %v412
        %v447 = vpack.c.bf16 %v419, %v417
        %v448 = vpack.c.bf16 %v424, %v422
        %v449 = vld [vmem:[%s1] sm:$0x3]
        %vm450 = vcmask 31744
        %v452 = vsel %vm450, %v441, 0
        %v455 = vsel %vm450, %v442, 0
        %v458 = vsel %vm450, %v443, 0
        %v461 = vsel %vm450, %v444, 0
        %v464 = vsel %vm450, %v445, 0
        %v467 = vsel %vm450, %v446, 0
        %v470 = vsel %vm450, %v447, 0
        %v473 = vsel %vm450, %v448, 0
        %v476 = vsel %vm384, %v449, 0
        %478 = vmatprep.subr.bf16.mxu0 0
        %479 = vmatpush1.bf16.msra.mxu0 %v476
        %480 = vmatprep.subr.bf16.mxu0 0
        %481 = vmatpush1.bf16.msra.mxu0 0
        %482 = vmatprep.subr.bf16.mxu0 0
        %483 = vmatpush1.bf16.msra.mxu0 0
        %484 = vmatprep.subr.bf16.mxu0 0
        %485 = vmatpush1.bf16.msra.mxu0 0
        %486 = vmatprep.subr.bf16.mxu0 0
        %487 = vmatpush1.bf16.msra.mxu0 0
        %488 = vmatprep.subr.bf16.mxu0 0
        %489 = vmatpush1.bf16.msra.mxu0 0
        %490 = vmatprep.subr.bf16.mxu0 0
        %491 = vmatpush1.bf16.msra.mxu0 0
        %492 = vmatprep.subr.bf16.mxu0 0
        %493 = vmatpush1.bf16.msra.mxu0 0
        %494 = vmatprep.subr.bf16.mxu0 0
        %495 = vmatpush1.bf16.msra.mxu0 0
        %496 = vmatprep.subr.bf16.mxu0 0
        %497 = vmatpush1.bf16.msra.mxu0 0
        %498 = vmatprep.subr.bf16.mxu0 0
        %499 = vmatpush1.bf16.msra.mxu0 0
        %500 = vmatprep.subr.bf16.mxu0 0
        %501 = vmatpush1.bf16.msra.mxu0 0
        %502 = vmatprep.subr.bf16.mxu0 0
        %503 = vmatpush1.bf16.msra.mxu0 0
        %504 = vmatprep.subr.bf16.mxu0 0
        %505 = vmatpush1.bf16.msra.mxu0 0
        %506 = vmatprep.subr.bf16.mxu0 0
        %507 = vmatpush1.bf16.msra.mxu0 0
        %508 = vmatprep.subr.bf16.mxu0 0
        %509 = vmatpush1.bf16.msra.mxu0 0
        %510 = vmatprep.mubr.bf16.mxu0 0
        %511 = vmatmul.mubr.bf16.gmra.mrb[0].mxu0 %v452
        %v512 = vpop.f32.mrb[0].mxu0
        %v513 = vadd.f32 0.0, %v512
        %v514 = vpop.f32.mrb[0].mxu0
        %v515 = vpop.f32.mrb[0].mxu0
        %v516 = vadd.f32 0.0, %v515
        %v517 = vpop.f32.mrb[0].mxu0
        %518 = vmatprep.mubr.bf16.mxu0 0
        %519 = vmatmul.mubr.bf16.gmra.mrb[0].mxu0 %v455
        %v520 = vpop.f32.mrb[0].mxu0
        %v521 = vadd.f32 0.0, %v520
        %v522 = vpop.f32.mrb[0].mxu0
        %v523 = vpop.f32.mrb[0].mxu0
        %v524 = vadd.f32 0.0, %v523
        %v525 = vpop.f32.mrb[0].mxu0
        %526 = vmatprep.mubr.bf16.mxu0 0
        %527 = vmatmul.mubr.bf16.gmra.mrb[0].mxu0 %v458
        %v528 = vpop.f32.mrb[0].mxu0
        %v529 = vadd.f32 0.0, %v528
        %v530 = vpop.f32.mrb[0].mxu0
        %v531 = vpop.f32.mrb[0].mxu0
        %v532 = vadd.f32 0.0, %v531
        %v533 = vpop.f32.mrb[0].mxu0
        %534 = vmatprep.mubr.bf16.mxu0 0
        %535 = vmatmul.mubr.bf16.gmra.mrb[0].mxu0 %v461
        %v536 = vpop.f32.mrb[0].mxu0
        %v537 = vadd.f32 0.0, %v536
        %v538 = vpop.f32.mrb[0].mxu0
        %v539 = vpop.f32.mrb[0].mxu0
        %v540 = vadd.f32 0.0, %v539
        %v541 = vpop.f32.mrb[0].mxu0
        %542 = vmatprep.mubr.bf16.mxu0 0
        %543 = vmatmul.mubr.bf16.gmra.mrb[0].mxu0 %v464
        %v544 = vpop.f32.mrb[0].mxu0
        %v545 = vadd.f32 0.0, %v544
        %v546 = vpop.f32.mrb[0].mxu0
        %v547 = vpop.f32.mrb[0].mxu0
        %v548 = vadd.f32 0.0, %v547
        %v549 = vpop.f32.mrb[0].mxu0
        %550 = vmatprep.mubr.bf16.mxu0 0
        %551 = vmatmul.mubr.bf16.gmra.mrb[0].mxu0 %v467
        %v552 = vpop.f32.mrb[0].mxu0
        %v553 = vadd.f32 0.0, %v552
        %v554 = vpop.f32.mrb[0].mxu0
        %v555 = vpop.f32.mrb[0].mxu0
        %v556 = vadd.f32 0.0, %v555
        %v557 = vpop.f32.mrb[0].mxu0
        %558 = vmatprep.mubr.bf16.mxu0 0
        %559 = vmatmul.mubr.bf16.gmra.mrb[0].mxu0 %v470
        %v560 = vpop.f32.mrb[0].mxu0
        %v561 = vadd.f32 0.0, %v560
        %v562 = vpop.f32.mrb[0].mxu0
        %v563 = vpop.f32.mrb[0].mxu0
        %v564 = vadd.f32 0.0, %v563
        %v565 = vpop.f32.mrb[0].mxu0
        %566 = vmatprep.mubr.bf16.mxu0 0
        %567 = vmatmul.mubr.bf16.gmra.mrb[0].mxu0 %v473
        %v568 = vpop.f32.mrb[0].mxu0
        %v569 = vadd.f32 0.0, %v568
        %v570 = vpop.f32.mrb[0].mxu0
        %v571 = vpop.f32.mrb[0].mxu0
        %v572 = vadd.f32 0.0, %v571
        %v573 = vpop.f32.mrb[0].mxu0
        %574 = vdwg.mxu0
        %v575 = vld [vmem:[%s3] sm:$0x1]
        %v576 = vlaneseq
        %v577 = vshrl.u32 %v576, 7
        %v578 = vsub.s32 0, %v577
        %v579 = vrot.slane %v575, %v578
        %v580 = vmul.f32 %v513, %v579
        %v581 = vmul.f32 %v516, %v579
        %v582 = vmul.f32 %v521, %v579
        %v583 = vmul.f32 %v524, %v579
        %v584 = vmul.f32 %v529, %v579
        %v585 = vmul.f32 %v532, %v579
        %v586 = vmul.f32 %v537, %v579
        %v587 = vmul.f32 %v540, %v579
        %v588 = vmul.f32 %v545, %v579
        %v589 = vmul.f32 %v548, %v579
        %v590 = vmul.f32 %v553, %v579
        %v591 = vmul.f32 %v556, %v579
        %v592 = vmul.f32 %v561, %v579
        %v593 = vmul.f32 %v564, %v579
        %v594 = vmul.f32 %v569, %v579
        %v595 = vmul.f32 %v572, %v579
        %v596 = vld [vmem:[%s4] sm:$0x1]
        %v597 = vlaneseq
        %v598 = vshrl.u32 %v597, 7
        %v599 = vsub.s32 0, %v598
        %v600 = vrot.slane %v596, %v599
        %v601 = vadd.f32 %v580, %v600
        %v602 = vadd.f32 %v581, %v600
        %v603 = vadd.f32 %v582, %v600
        %v604 = vadd.f32 %v583, %v600
        %v605 = vadd.f32 %v584, %v600
        %v606 = vadd.f32 %v585, %v600
        %v607 = vadd.f32 %v586, %v600
        %v608 = vadd.f32 %v587, %v600
        %v609 = vadd.f32 %v588, %v600
        %v610 = vadd.f32 %v589, %v600
        %v611 = vadd.f32 %v590, %v600
        %v612 = vadd.f32 %v591, %v600
        %v613 = vadd.f32 %v592, %v600
        %v614 = vadd.f32 %v593, %v600
        %v615 = vadd.f32 %v594, %v600
        %v616 = vadd.f32 %v595, %v600
        %v617 = vmax.f32 %v601, 0.0
        %v618 = vmax.f32 %v602, 0.0
        %v619 = vmax.f32 %v603, 0.0
        %v620 = vmax.f32 %v604, 0.0
        %v621 = vmax.f32 %v605, 0.0
        %v622 = vmax.f32 %v606, 0.0
        %v623 = vmax.f32 %v607, 0.0
        %v624 = vmax.f32 %v608, 0.0
        %v625 = vmax.f32 %v609, 0.0
        %v626 = vmax.f32 %v610, 0.0
        %v627 = vmax.f32 %v611, 0.0
        %v628 = vmax.f32 %v612, 0.0
        %v629 = vmax.f32 %v613, 0.0
        %v630 = vmax.f32 %v614, 0.0
        %v631 = vmax.f32 %v615, 0.0
        %v632 = vmax.f32 %v616, 0.0
        %v633 = vld [vmem:[%s5] sm:$0x1]
        %v634 = vlaneseq
        %v635 = vshrl.u32 %v634, 7
        %v636 = vsub.s32 0, %v635
        %v637 = vrot.slane %v633, %v636
        %v638 = vmul.f32 %v617, %v637
        %v639 = vmul.f32 %v618, %v637
        %v640 = vmul.f32 %v619, %v637
        %v641 = vmul.f32 %v620, %v637
        %v642 = vmul.f32 %v621, %v637
        %v643 = vmul.f32 %v622, %v637
        %v644 = vmul.f32 %v623, %v637
        %v645 = vmul.f32 %v624, %v637
        %v646 = vmul.f32 %v625, %v637
        %v647 = vmul.f32 %v626, %v637
        %v648 = vmul.f32 %v627, %v637
        %v649 = vmul.f32 %v628, %v637
        %v650 = vmul.f32 %v629, %v637
        %v651 = vmul.f32 %v630, %v637
        %v652 = vmul.f32 %v631, %v637
        %v653 = vmul.f32 %v632, %v637
        %v654 = vadd.f32 %v638, 0.0
        %v655 = vadd.f32 %v639, 0.0
        %v656 = vadd.f32 %v640, 0.0
        %v657 = vadd.f32 %v641, 0.0
        %v658 = vadd.f32 %v642, 0.0
        %v659 = vadd.f32 %v643, 0.0
        %v660 = vadd.f32 %v644, 0.0
        %v661 = vadd.f32 %v645, 0.0
        %v662 = vadd.f32 %v646, 0.0
        %v663 = vadd.f32 %v647, 0.0
        %v664 = vadd.f32 %v648, 0.0
        %v665 = vadd.f32 %v649, 0.0
        %v666 = vadd.f32 %v650, 0.0
        %v667 = vadd.f32 %v651, 0.0
        %v668 = vadd.f32 %v652, 0.0
        %v669 = vadd.f32 %v653, 0.0
        %vm673 = vcmask 1042432
        %v674 = vrot.slane %v300, 5
        %v675 = vrot.slane %v301, 5
        %v676 = vsel %vm673, %v674, %v675
        %v677 = vrot.slane %v302, 5
        %v678 = vsel %vm673, %v675, %v677
        %v679 = vrot.slane %v304, 5
        %v680 = vrot.slane %v305, 5
        %v681 = vsel %vm673, %v679, %v680
        %v682 = vrot.slane %v306, 5
        %v683 = vsel %vm673, %v680, %v682
        %v684 = vrot.slane %v308, 5
        %v685 = vrot.slane %v309, 5
        %v686 = vsel %vm673, %v684, %v685
        %v687 = vrot.slane %v310, 5
        %v688 = vsel %vm673, %v685, %v687
        %v689 = vrot.slane %v312, 5
        %v690 = vrot.slane %v313, 5
        %v691 = vsel %vm673, %v689, %v690
        %v692 = vrot.slane %v314, 5
        %v693 = vsel %vm673, %v690, %v692
        %v694 = vrot.slane %v316, 5
        %v695 = vrot.slane %v317, 5
        %v696 = vsel %vm673, %v694, %v695
        %v697 = vrot.slane %v318, 5
        %v698 = vsel %vm673, %v695, %v697
        %v699 = vrot.slane %v320, 5
        %v700 = vrot.slane %v321, 5
        %v701 = vsel %vm673, %v699, %v700
        %v702 = vrot.slane %v322, 5
        %v703 = vsel %vm673, %v700, %v702
        %v704 = vrot.slane %v324, 5
        %v705 = vrot.slane %v325, 5
        %v706 = vsel %vm673, %v704, %v705
        %v707 = vrot.slane %v326, 5
        %v708 = vsel %vm673, %v705, %v707
        %v709 = vrot.slane %v328, 5
        %v710 = vrot.slane %v329, 5
        %v711 = vsel %vm673, %v709, %v710
        %v712 = vrot.slane %v330, 5
        %v713 = vsel %vm673, %v710, %v712
        %v730 = vrot.slane %v300, 6
        %v731 = vrot.slane %v301, 6
        %v732 = vsel %vm384, %v730, %v731
        %v733 = vrot.slane %v302, 6
        %v734 = vsel %vm384, %v731, %v733
        %vm735 = vcmask 1040384
        %v736 = vrot.slane %v300, 7
        %v737 = vrot.slane %v301, 7
        %v738 = vsel %vm735, %v736, %v737
        %v739 = vrot.slane %v302, 7
        %v740 = vsel %vm735, %v737, %v739
        %v741 = vrot.slane %v304, 7
        %v742 = vrot.slane %v305, 7
        %v743 = vsel %vm735, %v741, %v742
        %v744 = vrot.slane %v306, 7
        %v745 = vsel %vm735, %v742, %v744
        %v746 = vrot.slane %v308, 7
        %v747 = vrot.slane %v309, 7
        %v748 = vsel %vm735, %v746, %v747
        %v749 = vrot.slane %v310, 7
        %v750 = vsel %vm735, %v747, %v749
        %v751 = vrot.slane %v312, 7
        %v752 = vrot.slane %v313, 7
        %v753 = vsel %vm735, %v751, %v752
        %v754 = vrot.slane %v314, 7
        %v755 = vsel %vm735, %v752, %v754
        %v756 = vrot.slane %v316, 7
        %v757 = vrot.slane %v317, 7
        %v758 = vsel %vm735, %v756, %v757
        %v759 = vrot.slane %v318, 7
        %v760 = vsel %vm735, %v757, %v759
        %v761 = vrot.slane %v320, 7
        %v762 = vrot.slane %v321, 7
        %v763 = vsel %vm735, %v761, %v762
        %v764 = vrot.slane %v322, 7
        %v765 = vsel %vm735, %v762, %v764
        %v766 = vrot.slane %v324, 7
        %v767 = vrot.slane %v325, 7
        %v768 = vsel %vm735, %v766, %v767
        %v769 = vrot.slane %v326, 7
        %v770 = vsel %vm735, %v767, %v769
        %v771 = vrot.slane %v328, 7
        %v772 = vrot.slane %v329, 7
        %v773 = vsel %vm735, %v771, %v772
        %v774 = vrot.slane %v330, 7
        %v775 = vsel %vm735, %v772, %v774
        %v776 = vrot.slane %v332, 5
        %v777 = vrot.slane %v333, 5
        %v778 = vsel %vm673, %v776, %v777
        %v779 = vrot.slane %v334, 5
        %v780 = vsel %vm673, %v777, %v779
        %v781 = vrot.slane %v332, 7
        %v782 = vrot.slane %v333, 7
        %v783 = vsel %vm735, %v781, %v782
        %v784 = vrot.slane %v334, 7
        %v785 = vsel %vm735, %v782, %v784
        %v789 = vrot.slane %v336, 5
        %v790 = vrot.slane %v337, 5
        %v791 = vsel %vm673, %v789, %v790
        %v792 = vrot.slane %v338, 5
        %v793 = vsel %vm673, %v790, %v792
        %v794 = vrot.slane %v336, 6
        %v795 = vrot.slane %v337, 6
        %v796 = vsel %vm384, %v794, %v795
        %v797 = vrot.slane %v338, 6
        %v798 = vsel %vm384, %v795, %v797
        %v799 = vrot.slane %v336, 7
        %v800 = vrot.slane %v337, 7
        %v801 = vsel %vm735, %v799, %v800
        %v802 = vrot.slane %v338, 7
        %v803 = vsel %vm735, %v800, %v802
        %804 = vrot.lane.b32.xlu0 %v732, 4
        %v805 = vpop.permute.xlu0 %804
        %806 = vrot.lane.b32.xlu0 %v734, 4
        %v807 = vpop.permute.xlu0 %806
        %808 = vrot.lane.b32.xlu0 %v387, 4
        %v809 = vpop.permute.xlu0 %808
        %810 = vrot.lane.b32.xlu0 %v389, 4
        %v811 = vpop.permute.xlu0 %810
        %812 = vrot.lane.b32.xlu0 %v392, 4
        %v813 = vpop.permute.xlu0 %812
        %814 = vrot.lane.b32.xlu0 %v394, 4
        %v815 = vpop.permute.xlu0 %814
        %816 = vrot.lane.b32.xlu0 %v397, 4
        %v817 = vpop.permute.xlu0 %816
        %818 = vrot.lane.b32.xlu0 %v399, 4
        %v819 = vpop.permute.xlu0 %818
        %820 = vrot.lane.b32.xlu0 %v402, 4
        %v821 = vpop.permute.xlu0 %820
        %822 = vrot.lane.b32.xlu0 %v404, 4
        %v823 = vpop.permute.xlu0 %822
        %824 = vrot.lane.b32.xlu0 %v407, 4
        %v825 = vpop.permute.xlu0 %824
        %826 = vrot.lane.b32.xlu0 %v409, 4
        %v827 = vpop.permute.xlu0 %826
        %828 = vrot.lane.b32.xlu0 %v412, 4
        %v829 = vpop.permute.xlu0 %828
        %830 = vrot.lane.b32.xlu0 %v414, 4
        %v831 = vpop.permute.xlu0 %830
        %832 = vrot.lane.b32.xlu0 %v417, 4
        %v833 = vpop.permute.xlu0 %832
        %834 = vrot.lane.b32.xlu0 %v419, 4
        %v835 = vpop.permute.xlu0 %834
        %852 = vrot.lane.b32.xlu0 %v738, 8
        %v853 = vpop.permute.xlu0 %852
        %854 = vrot.lane.b32.xlu0 %v740, 8
        %v855 = vpop.permute.xlu0 %854
        %856 = vrot.lane.b32.xlu0 %v743, 8
        %v857 = vpop.permute.xlu0 %856
        %858 = vrot.lane.b32.xlu0 %v745, 8
        %v859 = vpop.permute.xlu0 %858
        %860 = vrot.lane.b32.xlu0 %v748, 8
        %v861 = vpop.permute.xlu0 %860
        %862 = vrot.lane.b32.xlu0 %v750, 8
        %v863 = vpop.permute.xlu0 %862
        %864 = vrot.lane.b32.xlu0 %v753, 8
        %v865 = vpop.permute.xlu0 %864
        %866 = vrot.lane.b32.xlu0 %v755, 8
        %v867 = vpop.permute.xlu0 %866
        %868 = vrot.lane.b32.xlu0 %v758, 8
        %v869 = vpop.permute.xlu0 %868
        %870 = vrot.lane.b32.xlu0 %v760, 8
        %v871 = vpop.permute.xlu0 %870
        %872 = vrot.lane.b32.xlu0 %v763, 8
        %v873 = vpop.permute.xlu0 %872
        %874 = vrot.lane.b32.xlu0 %v765, 8
        %v875 = vpop.permute.xlu0 %874
        %876 = vrot.lane.b32.xlu0 %v768, 8
        %v877 = vpop.permute.xlu0 %876
        %878 = vrot.lane.b32.xlu0 %v770, 8
        %v879 = vpop.permute.xlu0 %878
        %880 = vrot.lane.b32.xlu0 %v773, 8
        %v881 = vpop.permute.xlu0 %880
        %882 = vrot.lane.b32.xlu0 %v775, 8
        %v883 = vpop.permute.xlu0 %882
        %900 = vrot.lane.b32.xlu0 %v681, 12
        %v901 = vpop.permute.xlu0 %900
        %902 = vrot.lane.b32.xlu0 %v683, 12
        %v903 = vpop.permute.xlu0 %902
        %904 = vrot.lane.b32.xlu0 %v686, 12
        %v905 = vpop.permute.xlu0 %904
        %906 = vrot.lane.b32.xlu0 %v688, 12
        %v907 = vpop.permute.xlu0 %906
        %908 = vrot.lane.b32.xlu0 %v691, 12
        %v909 = vpop.permute.xlu0 %908
        %910 = vrot.lane.b32.xlu0 %v693, 12
        %v911 = vpop.permute.xlu0 %910
        %912 = vrot.lane.b32.xlu0 %v696, 12
        %v913 = vpop.permute.xlu0 %912
        %914 = vrot.lane.b32.xlu0 %v698, 12
        %v915 = vpop.permute.xlu0 %914
        %916 = vrot.lane.b32.xlu0 %v701, 12
        %v917 = vpop.permute.xlu0 %916
        %918 = vrot.lane.b32.xlu0 %v703, 12
        %v919 = vpop.permute.xlu0 %918
        %920 = vrot.lane.b32.xlu0 %v706, 12
        %v921 = vpop.permute.xlu0 %920
        %922 = vrot.lane.b32.xlu0 %v708, 12
        %v923 = vpop.permute.xlu0 %922
        %924 = vrot.lane.b32.xlu0 %v711, 12
        %v925 = vpop.permute.xlu0 %924
        %926 = vrot.lane.b32.xlu0 %v713, 12
        %v927 = vpop.permute.xlu0 %926
        %928 = vrot.lane.b32.xlu0 %v778, 12
        %v929 = vpop.permute.xlu0 %928
        %930 = vrot.lane.b32.xlu0 %v780, 12
        %v931 = vpop.permute.xlu0 %930
        %948 = vrot.lane.b32.xlu0 %v387, 16
        %v949 = vpop.permute.xlu0 %948
        %950 = vrot.lane.b32.xlu0 %v389, 16
        %v951 = vpop.permute.xlu0 %950
        %952 = vrot.lane.b32.xlu0 %v392, 16
        %v953 = vpop.permute.xlu0 %952
        %954 = vrot.lane.b32.xlu0 %v394, 16
        %v955 = vpop.permute.xlu0 %954
        %956 = vrot.lane.b32.xlu0 %v397, 16
        %v957 = vpop.permute.xlu0 %956
        %958 = vrot.lane.b32.xlu0 %v399, 16
        %v959 = vpop.permute.xlu0 %958
        %960 = vrot.lane.b32.xlu0 %v402, 16
        %v961 = vpop.permute.xlu0 %960
        %962 = vrot.lane.b32.xlu0 %v404, 16
        %v963 = vpop.permute.xlu0 %962
        %964 = vrot.lane.b32.xlu0 %v407, 16
        %v965 = vpop.permute.xlu0 %964
        %966 = vrot.lane.b32.xlu0 %v409, 16
        %v967 = vpop.permute.xlu0 %966
        %968 = vrot.lane.b32.xlu0 %v412, 16
        %v969 = vpop.permute.xlu0 %968
        %970 = vrot.lane.b32.xlu0 %v414, 16
        %v971 = vpop.permute.xlu0 %970
        %972 = vrot.lane.b32.xlu0 %v417, 16
        %v973 = vpop.permute.xlu0 %972
        %974 = vrot.lane.b32.xlu0 %v419, 16
        %v975 = vpop.permute.xlu0 %974
        %976 = vrot.lane.b32.xlu0 %v422, 16
        %v977 = vpop.permute.xlu0 %976
        %978 = vrot.lane.b32.xlu0 %v424, 16
        %v979 = vpop.permute.xlu0 %978
        %996 = vrot.lane.b32.xlu0 %v743, 20
        %v997 = vpop.permute.xlu0 %996
        %998 = vrot.lane.b32.xlu0 %v745, 20
        %v999 = vpop.permute.xlu0 %998
        %1000 = vrot.lane.b32.xlu0 %v748, 20
        %v1001 = vpop.permute.xlu0 %1000
        %1002 = vrot.lane.b32.xlu0 %v750, 20
        %v1003 = vpop.permute.xlu0 %1002
        %1004 = vrot.lane.b32.xlu0 %v753, 20
        %v1005 = vpop.permute.xlu0 %1004
        %1006 = vrot.lane.b32.xlu0 %v755, 20
        %v1007 = vpop.permute.xlu0 %1006
        %1008 = vrot.lane.b32.xlu0 %v758, 20
        %v1009 = vpop.permute.xlu0 %1008
        %1010 = vrot.lane.b32.xlu0 %v760, 20
        %v1011 = vpop.permute.xlu0 %1010
        %1012 = vrot.lane.b32.xlu0 %v763, 20
        %v1013 = vpop.permute.xlu0 %1012
        %1014 = vrot.lane.b32.xlu0 %v765, 20
        %v1015 = vpop.permute.xlu0 %1014
        %1016 = vrot.lane.b32.xlu0 %v768, 20
        %v1017 = vpop.permute.xlu0 %1016
        %1018 = vrot.lane.b32.xlu0 %v770, 20
        %v1019 = vpop.permute.xlu0 %1018
        %1020 = vrot.lane.b32.xlu0 %v773, 20
        %v1021 = vpop.permute.xlu0 %1020
        %1022 = vrot.lane.b32.xlu0 %v775, 20
        %v1023 = vpop.permute.xlu0 %1022
        %1024 = vrot.lane.b32.xlu0 %v783, 20
        %v1025 = vpop.permute.xlu0 %1024
        %1026 = vrot.lane.b32.xlu0 %v785, 20
        %v1027 = vpop.permute.xlu0 %1026
        %1044 = vrot.lane.b32.xlu0 %v686, 24
        %v1045 = vpop.permute.xlu0 %1044
        %1046 = vrot.lane.b32.xlu0 %v688, 24
        %v1047 = vpop.permute.xlu0 %1046
        %1048 = vrot.lane.b32.xlu0 %v691, 24
        %v1049 = vpop.permute.xlu0 %1048
        %1050 = vrot.lane.b32.xlu0 %v693, 24
        %v1051 = vpop.permute.xlu0 %1050
        %1052 = vrot.lane.b32.xlu0 %v696, 24
        %v1053 = vpop.permute.xlu0 %1052
        %1054 = vrot.lane.b32.xlu0 %v698, 24
        %v1055 = vpop.permute.xlu0 %1054
        %1056 = vrot.lane.b32.xlu0 %v701, 24
        %v1057 = vpop.permute.xlu0 %1056
        %1058 = vrot.lane.b32.xlu0 %v703, 24
        %v1059 = vpop.permute.xlu0 %1058
        %1060 = vrot.lane.b32.xlu0 %v706, 24
        %v1061 = vpop.permute.xlu0 %1060
        %1062 = vrot.lane.b32.xlu0 %v708, 24
        %v1063 = vpop.permute.xlu0 %1062
        %1064 = vrot.lane.b32.xlu0 %v711, 24
        %v1065 = vpop.permute.xlu0 %1064
        %1066 = vrot.lane.b32.xlu0 %v713, 24
        %v1067 = vpop.permute.xlu0 %1066
        %1068 = vrot.lane.b32.xlu0 %v778, 24
        %v1069 = vpop.permute.xlu0 %1068
        %1070 = vrot.lane.b32.xlu0 %v780, 24
        %v1071 = vpop.permute.xlu0 %1070
        %1072 = vrot.lane.b32.xlu0 %v791, 24
        %v1073 = vpop.permute.xlu0 %1072
        %1074 = vrot.lane.b32.xlu0 %v793, 24
        %v1075 = vpop.permute.xlu0 %1074
        %1092 = vrot.lane.b32.xlu0 %v392, 28
        %v1093 = vpop.permute.xlu0 %1092
        %1094 = vrot.lane.b32.xlu0 %v394, 28
        %v1095 = vpop.permute.xlu0 %1094
        %1096 = vrot.lane.b32.xlu0 %v397, 28
        %v1097 = vpop.permute.xlu0 %1096
        %1098 = vrot.lane.b32.xlu0 %v399, 28
        %v1099 = vpop.permute.xlu0 %1098
        %1100 = vrot.lane.b32.xlu0 %v402, 28
        %v1101 = vpop.permute.xlu0 %1100
        %1102 = vrot.lane.b32.xlu0 %v404, 28
        %v1103 = vpop.permute.xlu0 %1102
        %1104 = vrot.lane.b32.xlu0 %v407, 28
        %v1105 = vpop.permute.xlu0 %1104
        %1106 = vrot.lane.b32.xlu0 %v409, 28
        %v1107 = vpop.permute.xlu0 %1106
        %1108 = vrot.lane.b32.xlu0 %v412, 28
        %v1109 = vpop.permute.xlu0 %1108
        %1110 = vrot.lane.b32.xlu0 %v414, 28
        %v1111 = vpop.permute.xlu0 %1110
        %1112 = vrot.lane.b32.xlu0 %v417, 28
        %v1113 = vpop.permute.xlu0 %1112
        %1114 = vrot.lane.b32.xlu0 %v419, 28
        %v1115 = vpop.permute.xlu0 %1114
        %1116 = vrot.lane.b32.xlu0 %v422, 28
        %v1117 = vpop.permute.xlu0 %1116
        %1118 = vrot.lane.b32.xlu0 %v424, 28
        %v1119 = vpop.permute.xlu0 %1118
        %1120 = vrot.lane.b32.xlu0 %v796, 28
        %v1121 = vpop.permute.xlu0 %1120
        %1122 = vrot.lane.b32.xlu0 %v798, 28
        %v1123 = vpop.permute.xlu0 %1122
        %1140 = vrot.lane.b32.xlu0 %v748, 32
        %v1141 = vpop.permute.xlu0 %1140
        %1142 = vrot.lane.b32.xlu0 %v750, 32
        %v1143 = vpop.permute.xlu0 %1142
        %1144 = vrot.lane.b32.xlu0 %v753, 32
        %v1145 = vpop.permute.xlu0 %1144
        %1146 = vrot.lane.b32.xlu0 %v755, 32
        %v1147 = vpop.permute.xlu0 %1146
        %1148 = vrot.lane.b32.xlu0 %v758, 32
        %v1149 = vpop.permute.xlu0 %1148
        %1150 = vrot.lane.b32.xlu0 %v760, 32
        %v1151 = vpop.permute.xlu0 %1150
        %1152 = vrot.lane.b32.xlu0 %v763, 32
        %v1153 = vpop.permute.xlu0 %1152
        %1154 = vrot.lane.b32.xlu0 %v765, 32
        %v1155 = vpop.permute.xlu0 %1154
        %1156 = vrot.lane.b32.xlu0 %v768, 32
        %v1157 = vpop.permute.xlu0 %1156
        %1158 = vrot.lane.b32.xlu0 %v770, 32
        %v1159 = vpop.permute.xlu0 %1158
        %1160 = vrot.lane.b32.xlu0 %v773, 32
        %v1161 = vpop.permute.xlu0 %1160
        %1162 = vrot.lane.b32.xlu0 %v775, 32
        %v1163 = vpop.permute.xlu0 %1162
        %1164 = vrot.lane.b32.xlu0 %v783, 32
        %v1165 = vpop.permute.xlu0 %1164
        %1166 = vrot.lane.b32.xlu0 %v785, 32
        %v1167 = vpop.permute.xlu0 %1166
        %1168 = vrot.lane.b32.xlu0 %v801, 32
        %v1169 = vpop.permute.xlu0 %1168
        %1170 = vrot.lane.b32.xlu0 %v803, 32
        %v1171 = vpop.permute.xlu0 %1170
        %v1188 = vsel %vm450, %v676, %v805
        %v1189 = vsel %vm450, %v678, %v807
        %v1190 = vsel %vm450, %v681, %v809
        %v1191 = vsel %vm450, %v683, %v811
        %v1192 = vsel %vm450, %v686, %v813
        %v1193 = vsel %vm450, %v688, %v815
        %v1194 = vsel %vm450, %v691, %v817
        %v1195 = vsel %vm450, %v693, %v819
        %v1196 = vsel %vm450, %v696, %v821
        %v1197 = vsel %vm450, %v698, %v823
        %v1198 = vsel %vm450, %v701, %v825
        %v1199 = vsel %vm450, %v703, %v827
        %v1200 = vsel %vm450, %v706, %v829
        %v1201 = vsel %vm450, %v708, %v831
        %v1202 = vsel %vm450, %v711, %v833
        %v1203 = vsel %vm450, %v713, %v835
        %vm1204 = vcmask 64512
        %v1205 = vsel %vm1204, %v1188, %v853
        %v1206 = vsel %vm1204, %v1189, %v855
        %v1207 = vsel %vm1204, %v1190, %v857
        %v1208 = vsel %vm1204, %v1191, %v859
        %v1209 = vsel %vm1204, %v1192, %v861
        %v1210 = vsel %vm1204, %v1193, %v863
        %v1211 = vsel %vm1204, %v1194, %v865
        %v1212 = vsel %vm1204, %v1195, %v867
        %v1213 = vsel %vm1204, %v1196, %v869
        %v1214 = vsel %vm1204, %v1197, %v871
        %v1215 = vsel %vm1204, %v1198, %v873
        %v1216 = vsel %vm1204, %v1199, %v875
        %v1217 = vsel %vm1204, %v1200, %v877
        %v1218 = vsel %vm1204, %v1201, %v879
        %v1219 = vsel %vm1204, %v1202, %v881
        %v1220 = vsel %vm1204, %v1203, %v883
        %vm1221 = vcmask 97280
        %v1222 = vsel %vm1221, %v1205, %v901
        %v1223 = vsel %vm1221, %v1206, %v903
        %v1224 = vsel %vm1221, %v1207, %v905
        %v1225 = vsel %vm1221, %v1208, %v907
        %v1226 = vsel %vm1221, %v1209, %v909
        %v1227 = vsel %vm1221, %v1210, %v911
        %v1228 = vsel %vm1221, %v1211, %v913
        %v1229 = vsel %vm1221, %v1212, %v915
        %v1230 = vsel %vm1221, %v1213, %v917
        %v1231 = vsel %vm1221, %v1214, %v919
        %v1232 = vsel %vm1221, %v1215, %v921
        %v1233 = vsel %vm1221, %v1216, %v923
        %v1234 = vsel %vm1221, %v1217, %v925
        %v1235 = vsel %vm1221, %v1218, %v927
        %v1236 = vsel %vm1221, %v1219, %v929
        %v1237 = vsel %vm1221, %v1220, %v931
        %vm1238 = vcmask 130048
        %v1239 = vsel %vm1238, %v1222, %v949
        %v1240 = vsel %vm1238, %v1223, %v951
        %v1241 = vsel %vm1238, %v1224, %v953
        %v1242 = vsel %vm1238, %v1225, %v955
        %v1243 = vsel %vm1238, %v1226, %v957
        %v1244 = vsel %vm1238, %v1227, %v959
        %v1245 = vsel %vm1238, %v1228, %v961
        %v1246 = vsel %vm1238, %v1229, %v963
        %v1247 = vsel %vm1238, %v1230, %v965
        %v1248 = vsel %vm1238, %v1231, %v967
        %v1249 = vsel %vm1238, %v1232, %v969
        %v1250 = vsel %vm1238, %v1233, %v971
        %v1251 = vsel %vm1238, %v1234, %v973
        %v1252 = vsel %vm1238, %v1235, %v975
        %v1253 = vsel %vm1238, %v1236, %v977
        %v1254 = vsel %vm1238, %v1237, %v979
        %vm1255 = vcmask 162816
        %v1256 = vsel %vm1255, %v1239, %v997
        %v1257 = vsel %vm1255, %v1240, %v999
        %v1258 = vsel %vm1255, %v1241, %v1001
        %v1259 = vsel %vm1255, %v1242, %v1003
        %v1260 = vsel %vm1255, %v1243, %v1005
        %v1261 = vsel %vm1255, %v1244, %v1007
        %v1262 = vsel %vm1255, %v1245, %v1009
        %v1263 = vsel %vm1255, %v1246, %v1011
        %v1264 = vsel %vm1255, %v1247, %v1013
        %v1265 = vsel %vm1255, %v1248, %v1015
        %v1266 = vsel %vm1255, %v1249, %v1017
        %v1267 = vsel %vm1255, %v1250, %v1019
        %v1268 = vsel %vm1255, %v1251, %v1021
        %v1269 = vsel %vm1255, %v1252, %v1023
        %v1270 = vsel %vm1255, %v1253, %v1025
        %v1271 = vsel %vm1255, %v1254, %v1027
        %vm1272 = vcmask 195584
        %v1273 = vsel %vm1272, %v1256, %v1045
        %v1274 = vsel %vm1272, %v1257, %v1047
        %v1275 = vsel %vm1272, %v1258, %v1049
        %v1276 = vsel %vm1272, %v1259, %v1051
        %v1277 = vsel %vm1272, %v1260, %v1053
        %v1278 = vsel %vm1272, %v1261, %v1055
        %v1279 = vsel %vm1272, %v1262, %v1057
        %v1280 = vsel %vm1272, %v1263, %v1059
        %v1281 = vsel %vm1272, %v1264, %v1061
        %v1282 = vsel %vm1272, %v1265, %v1063
        %v1283 = vsel %vm1272, %v1266, %v1065
        %v1284 = vsel %vm1272, %v1267, %v1067
        %v1285 = vsel %vm1272, %v1268, %v1069
        %v1286 = vsel %vm1272, %v1269, %v1071
        %v1287 = vsel %vm1272, %v1270, %v1073
        %v1288 = vsel %vm1272, %v1271, %v1075
        %vm1289 = vcmask 228352
        %v1290 = vsel %vm1289, %v1273, %v1093
        %v1291 = vsel %vm1289, %v1274, %v1095
        %v1292 = vsel %vm1289, %v1275, %v1097
        %v1293 = vsel %vm1289, %v1276, %v1099
        %v1294 = vsel %vm1289, %v1277, %v1101
        %v1295 = vsel %vm1289, %v1278, %v1103
        %v1296 = vsel %vm1289, %v1279, %v1105
        %v1297 = vsel %vm1289, %v1280, %v1107
        %v1298 = vsel %vm1289, %v1281, %v1109
        %v1299 = vsel %vm1289, %v1282, %v1111
        %v1300 = vsel %vm1289, %v1283, %v1113
        %v1301 = vsel %vm1289, %v1284, %v1115
        %v1302 = vsel %vm1289, %v1285, %v1117
        %v1303 = vsel %vm1289, %v1286, %v1119
        %v1304 = vsel %vm1289, %v1287, %v1121
        %v1305 = vsel %vm1289, %v1288, %v1123
        %vm1306 = vcmask 261120
        %v1307 = vsel %vm1306, %v1290, %v1141
        %v1308 = vsel %vm1306, %v1291, %v1143
        %v1309 = vsel %vm1306, %v1292, %v1145
        %v1310 = vsel %vm1306, %v1293, %v1147
        %v1311 = vsel %vm1306, %v1294, %v1149
        %v1312 = vsel %vm1306, %v1295, %v1151
        %v1313 = vsel %vm1306, %v1296, %v1153
        %v1314 = vsel %vm1306, %v1297, %v1155
        %v1315 = vsel %vm1306, %v1298, %v1157
        %v1316 = vsel %vm1306, %v1299, %v1159
        %v1317 = vsel %vm1306, %v1300, %v1161
        %v1318 = vsel %vm1306, %v1301, %v1163
        %v1319 = vsel %vm1306, %v1302, %v1165
        %v1320 = vsel %vm1306, %v1303, %v1167
        %v1321 = vsel %vm1306, %v1304, %v1169
        %v1322 = vsel %vm1306, %v1305, %v1171
        %v1323 = vpack.c.bf16 %v1308, %v1307
        %v1324 = vpack.c.bf16 %v1310, %v1309
        %v1325 = vpack.c.bf16 %v1312, %v1311
        %v1326 = vpack.c.bf16 %v1314, %v1313
        %v1327 = vpack.c.bf16 %v1316, %v1315
        %v1328 = vpack.c.bf16 %v1318, %v1317
        %v1329 = vpack.c.bf16 %v1320, %v1319
        %v1330 = vpack.c.bf16 %v1322, %v1321
        %v1331 = vld [vmem:[%s2] sm:$0xf]
        %v1332 = vld [vmem:[%s2 + $0x4] sm:$0xf]
        %v1333 = vld [vmem:[%s2 + $0x8] sm:$0xf]
        %v1334 = vld [vmem:[%s2 + $0xc] sm:$0xf]
        %v1335 = vld [vmem:[%s2 + $0x10] sm:$0x3]
        %v1341 = vunpack.c.l.b16 %v1331
        %v1342 = vunpack.c.l.b16 %v1332
        %v1343 = vunpack.c.l.b16 %v1333
        %v1344 = vunpack.c.l.b16 %v1334
        %v1345 = vunpack.c.l.b16 %v1335
        %v1346 = vpack.c.b16 %v1342, %v1341
        %v1347 = vpack.c.b16 %v1344, %v1343
        %v1348 = vpack.c.b16 %v1345, %v1345
        %vm1351 = vcmask 293888
        %v1353 = vsel %vm1351, %v1323, 0
        %v1356 = vsel %vm1351, %v1324, 0
        %v1359 = vsel %vm1351, %v1325, 0
        %v1362 = vsel %vm1351, %v1326, 0
        %v1365 = vsel %vm1351, %v1327, 0
        %v1368 = vsel %vm1351, %v1328, 0
        %v1371 = vsel %vm1351, %v1329, 0
        %v1374 = vsel %vm1351, %v1330, 0
        %v1377 = vsel %vm384, %v1348, 0
        %1379 = vmatprep.subr.bf16.mxu0 0
        %1380 = vmatpush1.bf16.msra.mxu0 %v1346
        %1381 = vmatprep.subr.bf16.mxu0 0
        %1382 = vmatpush1.bf16.msra.mxu0 %v1347
        %1383 = vmatprep.subr.bf16.mxu0 0
        %1384 = vmatpush1.bf16.msra.mxu0 %v1377
        %1385 = vmatprep.subr.bf16.mxu0 0
        %1386 = vmatpush1.bf16.msra.mxu0 0
        %1387 = vmatprep.subr.bf16.mxu0 0
        %1388 = vmatpush1.bf16.msra.mxu0 0
        %1389 = vmatprep.subr.bf16.mxu0 0
        %1390 = vmatpush1.bf16.msra.mxu0 0
        %1391 = vmatprep.subr.bf16.mxu0 0
        %1392 = vmatpush1.bf16.msra.mxu0 0
        %1393 = vmatprep.subr.bf16.mxu0 0
        %1394 = vmatpush1.bf16.msra.mxu0 0
        %1395 = vmatprep.subr.bf16.mxu0 0
        %1396 = vmatpush1.bf16.msra.mxu0 0
        %1397 = vmatprep.subr.bf16.mxu0 0
        %1398 = vmatpush1.bf16.msra.mxu0 0
        %1399 = vmatprep.subr.bf16.mxu0 0
        %1400 = vmatpush1.bf16.msra.mxu0 0
        %1401 = vmatprep.subr.bf16.mxu0 0
        %1402 = vmatpush1.bf16.msra.mxu0 0
        %1403 = vmatprep.subr.bf16.mxu0 0
        %1404 = vmatpush1.bf16.msra.mxu0 0
        %1405 = vmatprep.subr.bf16.mxu0 0
        %1406 = vmatpush1.bf16.msra.mxu0 0
        %1407 = vmatprep.subr.bf16.mxu0 0
        %1408 = vmatpush1.bf16.msra.mxu0 0
        %1409 = vmatprep.subr.bf16.mxu0 0
        %1410 = vmatpush1.bf16.msra.mxu0 0
        %1411 = vmatprep.mubr.bf16.mxu0 0
        %1412 = vmatmul.mubr.bf16.gmra.mrb[0].mxu0 %v1353
        %v1413 = vpop.f32.mrb[0].mxu0
        %v1414 = vadd.f32 0.0, %v1413
        %v1415 = vpop.f32.mrb[0].mxu0
        %v1416 = vpop.f32.mrb[0].mxu0
        %v1417 = vadd.f32 0.0, %v1416
        %v1418 = vpop.f32.mrb[0].mxu0
        %1419 = vmatprep.mubr.bf16.mxu0 0
        %1420 = vmatmul.mubr.bf16.gmra.mrb[0].mxu0 %v1356
        %v1421 = vpop.f32.mrb[0].mxu0
        %v1422 = vadd.f32 0.0, %v1421
        %v1423 = vpop.f32.mrb[0].mxu0
        %v1424 = vpop.f32.mrb[0].mxu0
        %v1425 = vadd.f32 0.0, %v1424
        %v1426 = vpop.f32.mrb[0].mxu0
        %1427 = vmatprep.mubr.bf16.mxu0 0
        %1428 = vmatmul.mubr.bf16.gmra.mrb[0].mxu0 %v1359
        %v1429 = vpop.f32.mrb[0].mxu0
        %v1430 = vadd.f32 0.0, %v1429
        %v1431 = vpop.f32.mrb[0].mxu0
        %v1432 = vpop.f32.mrb[0].mxu0
        %v1433 = vadd.f32 0.0, %v1432
        %v1434 = vpop.f32.mrb[0].mxu0
        %1435 = vmatprep.mubr.bf16.mxu0 0
        %1436 = vmatmul.mubr.bf16.gmra.mrb[0].mxu0 %v1362
        %v1437 = vpop.f32.mrb[0].mxu0
        %v1438 = vadd.f32 0.0, %v1437
        %v1439 = vpop.f32.mrb[0].mxu0
        %v1440 = vpop.f32.mrb[0].mxu0
        %v1441 = vadd.f32 0.0, %v1440
        %v1442 = vpop.f32.mrb[0].mxu0
        %1443 = vmatprep.mubr.bf16.mxu0 0
        %1444 = vmatmul.mubr.bf16.gmra.mrb[0].mxu0 %v1365
        %v1445 = vpop.f32.mrb[0].mxu0
        %v1446 = vadd.f32 0.0, %v1445
        %v1447 = vpop.f32.mrb[0].mxu0
        %v1448 = vpop.f32.mrb[0].mxu0
        %v1449 = vadd.f32 0.0, %v1448
        %v1450 = vpop.f32.mrb[0].mxu0
        %1451 = vmatprep.mubr.bf16.mxu0 0
        %1452 = vmatmul.mubr.bf16.gmra.mrb[0].mxu0 %v1368
        %v1453 = vpop.f32.mrb[0].mxu0
        %v1454 = vadd.f32 0.0, %v1453
        %v1455 = vpop.f32.mrb[0].mxu0
        %v1456 = vpop.f32.mrb[0].mxu0
        %v1457 = vadd.f32 0.0, %v1456
        %v1458 = vpop.f32.mrb[0].mxu0
        %1459 = vmatprep.mubr.bf16.mxu0 0
        %1460 = vmatmul.mubr.bf16.gmra.mrb[0].mxu0 %v1371
        %v1461 = vpop.f32.mrb[0].mxu0
        %v1462 = vadd.f32 0.0, %v1461
        %v1463 = vpop.f32.mrb[0].mxu0
        %v1464 = vpop.f32.mrb[0].mxu0
        %v1465 = vadd.f32 0.0, %v1464
        %v1466 = vpop.f32.mrb[0].mxu0
        %1467 = vmatprep.mubr.bf16.mxu0 0
        %1468 = vmatmul.mubr.bf16.gmra.mrb[0].mxu0 %v1374
        %v1469 = vpop.f32.mrb[0].mxu0
        %v1470 = vadd.f32 0.0, %v1469
        %v1471 = vpop.f32.mrb[0].mxu0
        %v1472 = vpop.f32.mrb[0].mxu0
        %v1473 = vadd.f32 0.0, %v1472
        %v1474 = vpop.f32.mrb[0].mxu0
        %1475 = vdwg.mxu0
        %v1476 = vld [vmem:[%s3 + $0x1] sm:$0x1]
        %v1477 = vlaneseq
        %v1478 = vshrl.u32 %v1477, 7
        %v1479 = vsub.s32 0, %v1478
        %v1480 = vrot.slane %v1476, %v1479
        %v1481 = vmul.f32 %v1414, %v1480
        %v1482 = vmul.f32 %v1417, %v1480
        %v1483 = vmul.f32 %v1422, %v1480
        %v1484 = vmul.f32 %v1425, %v1480
        %v1485 = vmul.f32 %v1430, %v1480
        %v1486 = vmul.f32 %v1433, %v1480
        %v1487 = vmul.f32 %v1438, %v1480
        %v1488 = vmul.f32 %v1441, %v1480
        %v1489 = vmul.f32 %v1446, %v1480
        %v1490 = vmul.f32 %v1449, %v1480
        %v1491 = vmul.f32 %v1454, %v1480
        %v1492 = vmul.f32 %v1457, %v1480
        %v1493 = vmul.f32 %v1462, %v1480
        %v1494 = vmul.f32 %v1465, %v1480
        %v1495 = vmul.f32 %v1470, %v1480
        %v1496 = vmul.f32 %v1473, %v1480
        %v1497 = vld [vmem:[%s4 + $0x1] sm:$0x1]
        %v1498 = vlaneseq
        %v1499 = vshrl.u32 %v1498, 7
        %v1500 = vsub.s32 0, %v1499
        %v1501 = vrot.slane %v1497, %v1500
        %v1502 = vadd.f32 %v1481, %v1501
        %v1503 = vadd.f32 %v1482, %v1501
        %v1504 = vadd.f32 %v1483, %v1501
        %v1505 = vadd.f32 %v1484, %v1501
        %v1506 = vadd.f32 %v1485, %v1501
        %v1507 = vadd.f32 %v1486, %v1501
        %v1508 = vadd.f32 %v1487, %v1501
        %v1509 = vadd.f32 %v1488, %v1501
        %v1510 = vadd.f32 %v1489, %v1501
        %v1511 = vadd.f32 %v1490, %v1501
        %v1512 = vadd.f32 %v1491, %v1501
        %v1513 = vadd.f32 %v1492, %v1501
        %v1514 = vadd.f32 %v1493, %v1501
        %v1515 = vadd.f32 %v1494, %v1501
        %v1516 = vadd.f32 %v1495, %v1501
        %v1517 = vadd.f32 %v1496, %v1501
        %v1518 = vmax.f32 %v1502, 0.0
        %v1519 = vmax.f32 %v1503, 0.0
        %v1520 = vmax.f32 %v1504, 0.0
        %v1521 = vmax.f32 %v1505, 0.0
        %v1522 = vmax.f32 %v1506, 0.0
        %v1523 = vmax.f32 %v1507, 0.0
        %v1524 = vmax.f32 %v1508, 0.0
        %v1525 = vmax.f32 %v1509, 0.0
        %v1526 = vmax.f32 %v1510, 0.0
        %v1527 = vmax.f32 %v1511, 0.0
        %v1528 = vmax.f32 %v1512, 0.0
        %v1529 = vmax.f32 %v1513, 0.0
        %v1530 = vmax.f32 %v1514, 0.0
        %v1531 = vmax.f32 %v1515, 0.0
        %v1532 = vmax.f32 %v1516, 0.0
        %v1533 = vmax.f32 %v1517, 0.0
        %v1534 = vld [vmem:[%s5 + $0x1] sm:$0x1]
        %v1535 = vlaneseq
        %v1536 = vshrl.u32 %v1535, 7
        %v1537 = vsub.s32 0, %v1536
        %v1538 = vrot.slane %v1534, %v1537
        %v1539 = vmul.f32 %v1518, %v1538
        %v1540 = vmul.f32 %v1519, %v1538
        %v1541 = vmul.f32 %v1520, %v1538
        %v1542 = vmul.f32 %v1521, %v1538
        %v1543 = vmul.f32 %v1522, %v1538
        %v1544 = vmul.f32 %v1523, %v1538
        %v1545 = vmul.f32 %v1524, %v1538
        %v1546 = vmul.f32 %v1525, %v1538
        %v1547 = vmul.f32 %v1526, %v1538
        %v1548 = vmul.f32 %v1527, %v1538
        %v1549 = vmul.f32 %v1528, %v1538
        %v1550 = vmul.f32 %v1529, %v1538
        %v1551 = vmul.f32 %v1530, %v1538
        %v1552 = vmul.f32 %v1531, %v1538
        %v1553 = vmul.f32 %v1532, %v1538
        %v1554 = vmul.f32 %v1533, %v1538
        %v1555 = vadd.f32 %v654, %v1539
        %v1556 = vadd.f32 %v655, %v1540
        %v1557 = vadd.f32 %v656, %v1541
        %v1558 = vadd.f32 %v657, %v1542
        %v1559 = vadd.f32 %v658, %v1543
        %v1560 = vadd.f32 %v659, %v1544
        %v1561 = vadd.f32 %v660, %v1545
        %v1562 = vadd.f32 %v661, %v1546
        %v1563 = vadd.f32 %v662, %v1547
        %v1564 = vadd.f32 %v663, %v1548
        %v1565 = vadd.f32 %v664, %v1549
        %v1566 = vadd.f32 %v665, %v1550
        %v1567 = vadd.f32 %v666, %v1551
        %v1568 = vadd.f32 %v667, %v1552
        %v1569 = vadd.f32 %v668, %v1553
        %v1570 = vadd.f32 %v669, %v1554
        %vm1574 = vcmask 1043456
        %v1575 = vrot.slane %v296, 4
        %v1576 = vrot.slane %v297, 4
        %v1577 = vsel %vm1574, %v1575, %v1576
        %v1578 = vrot.slane %v298, 4
        %v1579 = vsel %vm1574, %v1576, %v1578
        %v1580 = vrot.slane %v300, 4
        %v1581 = vrot.slane %v301, 4
        %v1582 = vsel %vm1574, %v1580, %v1581
        %v1583 = vrot.slane %v302, 4
        %v1584 = vsel %vm1574, %v1581, %v1583
        %v1585 = vrot.slane %v304, 4
        %v1586 = vrot.slane %v305, 4
        %v1587 = vsel %vm1574, %v1585, %v1586
        %v1588 = vrot.slane %v306, 4
        %v1589 = vsel %vm1574, %v1586, %v1588
        %v1590 = vrot.slane %v308, 4
        %v1591 = vrot.slane %v309, 4
        %v1592 = vsel %vm1574, %v1590, %v1591
        %v1593 = vrot.slane %v310, 4
        %v1594 = vsel %vm1574, %v1591, %v1593
        %v1595 = vrot.slane %v312, 4
        %v1596 = vrot.slane %v313, 4
        %v1597 = vsel %vm1574, %v1595, %v1596
        %v1598 = vrot.slane %v314, 4
        %v1599 = vsel %vm1574, %v1596, %v1598
        %v1600 = vrot.slane %v316, 4
        %v1601 = vrot.slane %v317, 4
        %v1602 = vsel %vm1574, %v1600, %v1601
        %v1603 = vrot.slane %v318, 4
        %v1604 = vsel %vm1574, %v1601, %v1603
        %v1605 = vrot.slane %v320, 4
        %v1606 = vrot.slane %v321, 4
        %v1607 = vsel %vm1574, %v1605, %v1606
        %v1608 = vrot.slane %v322, 4
        %v1609 = vsel %vm1574, %v1606, %v1608
        %v1610 = vrot.slane %v324, 4
        %v1611 = vrot.slane %v325, 4
        %v1612 = vsel %vm1574, %v1610, %v1611
        %v1613 = vrot.slane %v326, 4
        %v1614 = vsel %vm1574, %v1611, %v1613
        %v1631 = vrot.slane %v296, 6
        %v1632 = vrot.slane %v297, 6
        %v1633 = vsel %vm384, %v1631, %v1632
        %v1634 = vrot.slane %v298, 6
        %v1635 = vsel %vm384, %v1632, %v1634
        %v1636 = vrot.slane %v328, 4
        %v1637 = vrot.slane %v329, 4
        %v1638 = vsel %vm1574, %v1636, %v1637
        %v1639 = vrot.slane %v330, 4
        %v1640 = vsel %vm1574, %v1637, %v1639
        %v1641 = vrot.slane %v332, 4
        %v1642 = vrot.slane %v333, 4
        %v1643 = vsel %vm1574, %v1641, %v1642
        %v1644 = vrot.slane %v334, 4
        %v1645 = vsel %vm1574, %v1642, %v1644
        %v1649 = vrot.slane %v336, 4
        %v1650 = vrot.slane %v337, 4
        %v1651 = vsel %vm1574, %v1649, %v1650
        %v1652 = vrot.slane %v338, 4
        %v1653 = vsel %vm1574, %v1650, %v1652
        %v1654 = vrot.slane %v340, 4
        %v1655 = vrot.slane %v341, 4
        %v1656 = vsel %vm1574, %v1654, %v1655
        %v1657 = vrot.slane %v342, 4
        %v1658 = vsel %vm1574, %v1655, %v1657
        %v1659 = vrot.slane %v340, 6
        %v1660 = vrot.slane %v341, 6
        %v1661 = vsel %vm384, %v1659, %v1660
        %v1662 = vrot.slane %v342, 6
        %v1663 = vsel %vm384, %v1660, %v1662
        %1664 = vrot.lane.b32.xlu0 %v1633, 4
        %v1665 = vpop.permute.xlu0 %1664
        %1666 = vrot.lane.b32.xlu0 %v1635, 4
        %v1667 = vpop.permute.xlu0 %1666
        %1670 = vrot.lane.b32.xlu0 %v297, 8
        %v1671 = vpop.permute.xlu0 %1670
        %1672 = vrot.lane.b32.xlu0 %v298, 8
        %v1673 = vpop.permute.xlu0 %1672
        %1674 = vrot.lane.b32.xlu0 %v301, 8
        %v1675 = vpop.permute.xlu0 %1674
        %1676 = vrot.lane.b32.xlu0 %v302, 8
        %v1677 = vpop.permute.xlu0 %1676
        %1678 = vrot.lane.b32.xlu0 %v305, 8
        %v1679 = vpop.permute.xlu0 %1678
        %1680 = vrot.lane.b32.xlu0 %v306, 8
        %v1681 = vpop.permute.xlu0 %1680
        %1682 = vrot.lane.b32.xlu0 %v309, 8
        %v1683 = vpop.permute.xlu0 %1682
        %1684 = vrot.lane.b32.xlu0 %v310, 8
        %v1685 = vpop.permute.xlu0 %1684
        %1686 = vrot.lane.b32.xlu0 %v313, 8
        %v1687 = vpop.permute.xlu0 %1686
        %1688 = vrot.lane.b32.xlu0 %v314, 8
        %v1689 = vpop.permute.xlu0 %1688
        %1690 = vrot.lane.b32.xlu0 %v317, 8
        %v1691 = vpop.permute.xlu0 %1690
        %1692 = vrot.lane.b32.xlu0 %v318, 8
        %v1693 = vpop.permute.xlu0 %1692
        %1694 = vrot.lane.b32.xlu0 %v321, 8
        %v1695 = vpop.permute.xlu0 %1694
        %1696 = vrot.lane.b32.xlu0 %v322, 8
        %v1697 = vpop.permute.xlu0 %1696
        %1698 = vrot.lane.b32.xlu0 %v325, 8
        %v1699 = vpop.permute.xlu0 %1698
        %1700 = vrot.lane.b32.xlu0 %v326, 8
        %v1701 = vpop.permute.xlu0 %1700
        %1718 = vrot.lane.b32.xlu0 %v1587, 12
        %v1719 = vpop.permute.xlu0 %1718
        %1720 = vrot.lane.b32.xlu0 %v1589, 12
        %v1721 = vpop.permute.xlu0 %1720
        %1722 = vrot.lane.b32.xlu0 %v1592, 12
        %v1723 = vpop.permute.xlu0 %1722
        %1724 = vrot.lane.b32.xlu0 %v1594, 12
        %v1725 = vpop.permute.xlu0 %1724
        %1726 = vrot.lane.b32.xlu0 %v1597, 12
        %v1727 = vpop.permute.xlu0 %1726
        %1728 = vrot.lane.b32.xlu0 %v1599, 12
        %v1729 = vpop.permute.xlu0 %1728
        %1730 = vrot.lane.b32.xlu0 %v1602, 12
        %v1731 = vpop.permute.xlu0 %1730
        %1732 = vrot.lane.b32.xlu0 %v1604, 12
        %v1733 = vpop.permute.xlu0 %1732
        %1734 = vrot.lane.b32.xlu0 %v1607, 12
        %v1735 = vpop.permute.xlu0 %1734
        %1736 = vrot.lane.b32.xlu0 %v1609, 12
        %v1737 = vpop.permute.xlu0 %1736
        %1738 = vrot.lane.b32.xlu0 %v1612, 12
        %v1739 = vpop.permute.xlu0 %1738
        %1740 = vrot.lane.b32.xlu0 %v1614, 12
        %v1741 = vpop.permute.xlu0 %1740
        %1742 = vrot.lane.b32.xlu0 %v1638, 12
        %v1743 = vpop.permute.xlu0 %1742
        %1744 = vrot.lane.b32.xlu0 %v1640, 12
        %v1745 = vpop.permute.xlu0 %1744
        %1746 = vrot.lane.b32.xlu0 %v1643, 12
        %v1747 = vpop.permute.xlu0 %1746
        %1748 = vrot.lane.b32.xlu0 %v1645, 12
        %v1749 = vpop.permute.xlu0 %1748
        %1766 = vrot.lane.b32.xlu0 %v305, 20
        %v1767 = vpop.permute.xlu0 %1766
        %1768 = vrot.lane.b32.xlu0 %v306, 20
        %v1769 = vpop.permute.xlu0 %1768
        %1770 = vrot.lane.b32.xlu0 %v309, 20
        %v1771 = vpop.permute.xlu0 %1770
        %1772 = vrot.lane.b32.xlu0 %v310, 20
        %v1773 = vpop.permute.xlu0 %1772
        %1774 = vrot.lane.b32.xlu0 %v313, 20
        %v1775 = vpop.permute.xlu0 %1774
        %1776 = vrot.lane.b32.xlu0 %v314, 20
        %v1777 = vpop.permute.xlu0 %1776
        %1778 = vrot.lane.b32.xlu0 %v317, 20
        %v1779 = vpop.permute.xlu0 %1778
        %1780 = vrot.lane.b32.xlu0 %v318, 20
        %v1781 = vpop.permute.xlu0 %1780
        %1782 = vrot.lane.b32.xlu0 %v321, 20
        %v1783 = vpop.permute.xlu0 %1782
        %1784 = vrot.lane.b32.xlu0 %v322, 20
        %v1785 = vpop.permute.xlu0 %1784
        %1786 = vrot.lane.b32.xlu0 %v325, 20
        %v1787 = vpop.permute.xlu0 %1786
        %1788 = vrot.lane.b32.xlu0 %v326, 20
        %v1789 = vpop.permute.xlu0 %1788
        %1790 = vrot.lane.b32.xlu0 %v329, 20
        %v1791 = vpop.permute.xlu0 %1790
        %1792 = vrot.lane.b32.xlu0 %v330, 20
        %v1793 = vpop.permute.xlu0 %1792
        %1794 = vrot.lane.b32.xlu0 %v333, 20
        %v1795 = vpop.permute.xlu0 %1794
        %1796 = vrot.lane.b32.xlu0 %v334, 20
        %v1797 = vpop.permute.xlu0 %1796
        %1814 = vrot.lane.b32.xlu0 %v1597, 24
        %v1815 = vpop.permute.xlu0 %1814
        %1816 = vrot.lane.b32.xlu0 %v1599, 24
        %v1817 = vpop.permute.xlu0 %1816
        %1818 = vrot.lane.b32.xlu0 %v1602, 24
        %v1819 = vpop.permute.xlu0 %1818
        %1820 = vrot.lane.b32.xlu0 %v1604, 24
        %v1821 = vpop.permute.xlu0 %1820
        %1822 = vrot.lane.b32.xlu0 %v1607, 24
        %v1823 = vpop.permute.xlu0 %1822
        %1824 = vrot.lane.b32.xlu0 %v1609, 24
        %v1825 = vpop.permute.xlu0 %1824
        %1826 = vrot.lane.b32.xlu0 %v1612, 24
        %v1827 = vpop.permute.xlu0 %1826
        %1828 = vrot.lane.b32.xlu0 %v1614, 24
        %v1829 = vpop.permute.xlu0 %1828
        %1830 = vrot.lane.b32.xlu0 %v1638, 24
        %v1831 = vpop.permute.xlu0 %1830
        %1832 = vrot.lane.b32.xlu0 %v1640, 24
        %v1833 = vpop.permute.xlu0 %1832
        %1834 = vrot.lane.b32.xlu0 %v1643, 24
        %v1835 = vpop.permute.xlu0 %1834
        %1836 = vrot.lane.b32.xlu0 %v1645, 24
        %v1837 = vpop.permute.xlu0 %1836
        %1838 = vrot.lane.b32.xlu0 %v1651, 24
        %v1839 = vpop.permute.xlu0 %1838
        %1840 = vrot.lane.b32.xlu0 %v1653, 24
        %v1841 = vpop.permute.xlu0 %1840
        %1842 = vrot.lane.b32.xlu0 %v1656, 24
        %v1843 = vpop.permute.xlu0 %1842
        %1844 = vrot.lane.b32.xlu0 %v1658, 24
        %v1845 = vpop.permute.xlu0 %1844
        %1862 = vrot.lane.b32.xlu0 %v1661, 28
        %v1863 = vpop.permute.xlu0 %1862
        %1864 = vrot.lane.b32.xlu0 %v1663, 28
        %v1865 = vpop.permute.xlu0 %1864
        %1868 = vrot.lane.b32.xlu0 %v313, 32
        %v1869 = vpop.permute.xlu0 %1868
        %1870 = vrot.lane.b32.xlu0 %v314, 32
        %v1871 = vpop.permute.xlu0 %1870
        %1872 = vrot.lane.b32.xlu0 %v317, 32
        %v1873 = vpop.permute.xlu0 %1872
        %1874 = vrot.lane.b32.xlu0 %v318, 32
        %v1875 = vpop.permute.xlu0 %1874
        %1876 = vrot.lane.b32.xlu0 %v321, 32
        %v1877 = vpop.permute.xlu0 %1876
        %1878 = vrot.lane.b32.xlu0 %v322, 32
        %v1879 = vpop.permute.xlu0 %1878
        %1880 = vrot.lane.b32.xlu0 %v325, 32
        %v1881 = vpop.permute.xlu0 %1880
        %1882 = vrot.lane.b32.xlu0 %v326, 32
        %v1883 = vpop.permute.xlu0 %1882
        %1884 = vrot.lane.b32.xlu0 %v329, 32
        %v1885 = vpop.permute.xlu0 %1884
        %1886 = vrot.lane.b32.xlu0 %v330, 32
        %v1887 = vpop.permute.xlu0 %1886
        %1888 = vrot.lane.b32.xlu0 %v333, 32
        %v1889 = vpop.permute.xlu0 %1888
        %1890 = vrot.lane.b32.xlu0 %v334, 32
        %v1891 = vpop.permute.xlu0 %1890
        %1892 = vrot.lane.b32.xlu0 %v337, 32
        %v1893 = vpop.permute.xlu0 %1892
        %1894 = vrot.lane.b32.xlu0 %v338, 32
        %v1895 = vpop.permute.xlu0 %1894
        %1896 = vrot.lane.b32.xlu0 %v341, 32
        %v1897 = vpop.permute.xlu0 %1896
        %1898 = vrot.lane.b32.xlu0 %v342, 32
        %v1899 = vpop.permute.xlu0 %1898
        %v1916 = vsel %vm450, %v1577, %v1665
        %v1917 = vsel %vm450, %v1579, %v1667
        %v1918 = vsel %vm450, %v1582, %v805
        %v1919 = vsel %vm450, %v1584, %v807
        %v1920 = vsel %vm450, %v1587, %v809
        %v1921 = vsel %vm450, %v1589, %v811
        %v1922 = vsel %vm450, %v1592, %v813
        %v1923 = vsel %vm450, %v1594, %v815
        %v1924 = vsel %vm450, %v1597, %v817
        %v1925 = vsel %vm450, %v1599, %v819
        %v1926 = vsel %vm450, %v1602, %v821
        %v1927 = vsel %vm450, %v1604, %v823
        %v1928 = vsel %vm450, %v1607, %v825
        %v1929 = vsel %vm450, %v1609, %v827
        %v1930 = vsel %vm450, %v1612, %v829
        %v1931 = vsel %vm450, %v1614, %v831
        %v1932 = vsel %vm1204, %v1916, %v1671
        %v1933 = vsel %vm1204, %v1917, %v1673
        %v1934 = vsel %vm1204, %v1918, %v1675
        %v1935 = vsel %vm1204, %v1919, %v1677
        %v1936 = vsel %vm1204, %v1920, %v1679
        %v1937 = vsel %vm1204, %v1921, %v1681
        %v1938 = vsel %vm1204, %v1922, %v1683
        %v1939 = vsel %vm1204, %v1923, %v1685
        %v1940 = vsel %vm1204, %v1924, %v1687
        %v1941 = vsel %vm1204, %v1925, %v1689
        %v1942 = vsel %vm1204, %v1926, %v1691
        %v1943 = vsel %vm1204, %v1927, %v1693
        %v1944 = vsel %vm1204, %v1928, %v1695
        %v1945 = vsel %vm1204, %v1929, %v1697
        %v1946 = vsel %vm1204, %v1930, %v1699
        %v1947 = vsel %vm1204, %v1931, %v1701
        %v1948 = vsel %vm1221, %v1932, %v1719
        %v1949 = vsel %vm1221, %v1933, %v1721
        %v1950 = vsel %vm1221, %v1934, %v1723
        %v1951 = vsel %vm1221, %v1935, %v1725
        %v1952 = vsel %vm1221, %v1936, %v1727
        %v1953 = vsel %vm1221, %v1937, %v1729
        %v1954 = vsel %vm1221, %v1938, %v1731
        %v1955 = vsel %vm1221, %v1939, %v1733
        %v1956 = vsel %vm1221, %v1940, %v1735
        %v1957 = vsel %vm1221, %v1941, %v1737
        %v1958 = vsel %vm1221, %v1942, %v1739
        %v1959 = vsel %vm1221, %v1943, %v1741
        %v1960 = vsel %vm1221, %v1944, %v1743
        %v1961 = vsel %vm1221, %v1945, %v1745
        %v1962 = vsel %vm1221, %v1946, %v1747
        %v1963 = vsel %vm1221, %v1947, %v1749
        %v1964 = vsel %vm1238, %v1948, %v949
        %v1965 = vsel %vm1238, %v1949, %v951
        %v1966 = vsel %vm1238, %v1950, %v953
        %v1967 = vsel %vm1238, %v1951, %v955
        %v1968 = vsel %vm1238, %v1952, %v957
        %v1969 = vsel %vm1238, %v1953, %v959
        %v1970 = vsel %vm1238, %v1954, %v961
        %v1971 = vsel %vm1238, %v1955, %v963
        %v1972 = vsel %vm1238, %v1956, %v965
        %v1973 = vsel %vm1238, %v1957, %v967
        %v1974 = vsel %vm1238, %v1958, %v969
        %v1975 = vsel %vm1238, %v1959, %v971
        %v1976 = vsel %vm1238, %v1960, %v973
        %v1977 = vsel %vm1238, %v1961, %v975
        %v1978 = vsel %vm1238, %v1962, %v977
        %v1979 = vsel %vm1238, %v1963, %v979
        %v1980 = vsel %vm1255, %v1964, %v1767
        %v1981 = vsel %vm1255, %v1965, %v1769
        %v1982 = vsel %vm1255, %v1966, %v1771
        %v1983 = vsel %vm1255, %v1967, %v1773
        %v1984 = vsel %vm1255, %v1968, %v1775
        %v1985 = vsel %vm1255, %v1969, %v1777
        %v1986 = vsel %vm1255, %v1970, %v1779
        %v1987 = vsel %vm1255, %v1971, %v1781
        %v1988 = vsel %vm1255, %v1972, %v1783
        %v1989 = vsel %vm1255, %v1973, %v1785
        %v1990 = vsel %vm1255, %v1974, %v1787
        %v1991 = vsel %vm1255, %v1975, %v1789
        %v1992 = vsel %vm1255, %v1976, %v1791
        %v1993 = vsel %vm1255, %v1977, %v1793
        %v1994 = vsel %vm1255, %v1978, %v1795
        %v1995 = vsel %vm1255, %v1979, %v1797
        %v1996 = vsel %vm1272, %v1980, %v1815
        %v1997 = vsel %vm1272, %v1981, %v1817
        %v1998 = vsel %vm1272, %v1982, %v1819
        %v1999 = vsel %vm1272, %v1983, %v1821
        %v2000 = vsel %vm1272, %v1984, %v1823
        %v2001 = vsel %vm1272, %v1985, %v1825
        %v2002 = vsel %vm1272, %v1986, %v1827
        %v2003 = vsel %vm1272, %v1987, %v1829
        %v2004 = vsel %vm1272, %v1988, %v1831
        %v2005 = vsel %vm1272, %v1989, %v1833
        %v2006 = vsel %vm1272, %v1990, %v1835
        %v2007 = vsel %vm1272, %v1991, %v1837
        %v2008 = vsel %vm1272, %v1992, %v1839
        %v2009 = vsel %vm1272, %v1993, %v1841
        %v2010 = vsel %vm1272, %v1994, %v1843
        %v2011 = vsel %vm1272, %v1995, %v1845
        %v2012 = vsel %vm1289, %v1996, %v1097
        %v2013 = vsel %vm1289, %v1997, %v1099
        %v2014 = vsel %vm1289, %v1998, %v1101
        %v2015 = vsel %vm1289, %v1999, %v1103
        %v2016 = vsel %vm1289, %v2000, %v1105
        %v2017 = vsel %vm1289, %v2001, %v1107
        %v2018 = vsel %vm1289, %v2002, %v1109
        %v2019 = vsel %vm1289, %v2003, %v1111
        %v2020 = vsel %vm1289, %v2004, %v1113
        %v2021 = vsel %vm1289, %v2005, %v1115
        %v2022 = vsel %vm1289, %v2006, %v1117
        %v2023 = vsel %vm1289, %v2007, %v1119
        %v2024 = vsel %vm1289, %v2008, %v1121
        %v2025 = vsel %vm1289, %v2009, %v1123
        %v2026 = vsel %vm1289, %v2010, %v1863
        %v2027 = vsel %vm1289, %v2011, %v1865
        %v2028 = vsel %vm1306, %v2012, %v1869
        %v2029 = vsel %vm1306, %v2013, %v1871
        %v2030 = vsel %vm1306, %v2014, %v1873
        %v2031 = vsel %vm1306, %v2015, %v1875
        %v2032 = vsel %vm1306, %v2016, %v1877
        %v2033 = vsel %vm1306, %v2017, %v1879
        %v2034 = vsel %vm1306, %v2018, %v1881
        %v2035 = vsel %vm1306, %v2019, %v1883
        %v2036 = vsel %vm1306, %v2020, %v1885
        %v2037 = vsel %vm1306, %v2021, %v1887
        %v2038 = vsel %vm1306, %v2022, %v1889
        %v2039 = vsel %vm1306, %v2023, %v1891
        %v2040 = vsel %vm1306, %v2024, %v1893
        %v2041 = vsel %vm1306, %v2025, %v1895
        %v2042 = vsel %vm1306, %v2026, %v1897
        %v2043 = vsel %vm1306, %v2027, %v1899
        %v2044 = vpack.c.bf16 %v2029, %v2028
        %v2045 = vpack.c.bf16 %v2031, %v2030
        %v2046 = vpack.c.bf16 %v2033, %v2032
        %v2047 = vpack.c.bf16 %v2035, %v2034
        %v2048 = vpack.c.bf16 %v2037, %v2036
        %v2049 = vpack.c.bf16 %v2039, %v2038
        %v2050 = vpack.c.bf16 %v2041, %v2040
        %v2051 = vpack.c.bf16 %v2043, %v2042
        %s2052 = scalar_lea.vmem %s2, 20
        %v2053 = vld [vmem:[%s2052] sm:$0xf]
        %v2054 = vld [vmem:[%s2052 + $0x4] sm:$0xf]
        %v2055 = vld [vmem:[%s2052 + $0x8] sm:$0xf]
        %v2056 = vld [vmem:[%s2052 + $0xc] sm:$0xf]
        %v2057 = vld [vmem:[%s2052 + $0x10] sm:$0x3]
        %v2063 = vunpack.c.l.b16 %v2053
        %v2064 = vunpack.c.l.b16 %v2054
        %v2065 = vunpack.c.l.b16 %v2055
        %v2066 = vunpack.c.l.b16 %v2056
        %v2067 = vunpack.c.l.b16 %v2057
        %v2068 = vpack.c.b16 %v2064, %v2063
        %v2069 = vpack.c.b16 %v2066, %v2065
        %v2070 = vpack.c.b16 %v2067, %v2067
        %v2074 = vsel %vm1351, %v2044, 0
        %v2077 = vsel %vm1351, %v2045, 0
        %v2080 = vsel %vm1351, %v2046, 0
        %v2083 = vsel %vm1351, %v2047, 0
        %v2086 = vsel %vm1351, %v2048, 0
        %v2089 = vsel %vm1351, %v2049, 0
        %v2092 = vsel %vm1351, %v2050, 0
        %v2095 = vsel %vm1351, %v2051, 0
        %v2098 = vsel %vm384, %v2070, 0
        %2100 = vmatprep.subr.bf16.mxu0 0
        %2101 = vmatpush1.bf16.msra.mxu0 %v2068
        %2102 = vmatprep.subr.bf16.mxu0 0
        %2103 = vmatpush1.bf16.msra.mxu0 %v2069
        %2104 = vmatprep.subr.bf16.mxu0 0
        %2105 = vmatpush1.bf16.msra.mxu0 %v2098
        %2106 = vmatprep.subr.bf16.mxu0 0
        %2107 = vmatpush1.bf16.msra.mxu0 0
        %2108 = vmatprep.subr.bf16.mxu0 0
        %2109 = vmatpush1.bf16.msra.mxu0 0
        %2110 = vmatprep.subr.bf16.mxu0 0
        %2111 = vmatpush1.bf16.msra.mxu0 0
        %2112 = vmatprep.subr.bf16.mxu0 0
        %2113 = vmatpush1.bf16.msra.mxu0 0
        %2114 = vmatprep.subr.bf16.mxu0 0
        %2115 = vmatpush1.bf16.msra.mxu0 0
        %2116 = vmatprep.subr.bf16.mxu0 0
        %2117 = vmatpush1.bf16.msra.mxu0 0
        %2118 = vmatprep.subr.bf16.mxu0 0
        %2119 = vmatpush1.bf16.msra.mxu0 0
        %2120 = vmatprep.subr.bf16.mxu0 0
        %2121 = vmatpush1.bf16.msra.mxu0 0
        %2122 = vmatprep.subr.bf16.mxu0 0
        %2123 = vmatpush1.bf16.msra.mxu0 0
        %2124 = vmatprep.subr.bf16.mxu0 0
        %2125 = vmatpush1.bf16.msra.mxu0 0
        %2126 = vmatprep.subr.bf16.mxu0 0
        %2127 = vmatpush1.bf16.msra.mxu0 0
        %2128 = vmatprep.subr.bf16.mxu0 0
        %2129 = vmatpush1.bf16.msra.mxu0 0
        %2130 = vmatprep.subr.bf16.mxu0 0
        %2131 = vmatpush1.bf16.msra.mxu0 0
        %2132 = vmatprep.mubr.bf16.mxu0 0
        %2133 = vmatmul.mubr.bf16.gmra.mrb[0].mxu0 %v2074
        %v2134 = vpop.f32.mrb[0].mxu0
        %v2135 = vadd.f32 0.0, %v2134
        %v2136 = vpop.f32.mrb[0].mxu0
        %v2137 = vpop.f32.mrb[0].mxu0
        %v2138 = vadd.f32 0.0, %v2137
        %v2139 = vpop.f32.mrb[0].mxu0
        %2140 = vmatprep.mubr.bf16.mxu0 0
        %2141 = vmatmul.mubr.bf16.gmra.mrb[0].mxu0 %v2077
        %v2142 = vpop.f32.mrb[0].mxu0
        %v2143 = vadd.f32 0.0, %v2142
        %v2144 = vpop.f32.mrb[0].mxu0
        %v2145 = vpop.f32.mrb[0].mxu0
        %v2146 = vadd.f32 0.0, %v2145
        %v2147 = vpop.f32.mrb[0].mxu0
        %2148 = vmatprep.mubr.bf16.mxu0 0
        %2149 = vmatmul.mubr.bf16.gmra.mrb[0].mxu0 %v2080
        %v2150 = vpop.f32.mrb[0].mxu0
        %v2151 = vadd.f32 0.0, %v2150
        %v2152 = vpop.f32.mrb[0].mxu0
        %v2153 = vpop.f32.mrb[0].mxu0
        %v2154 = vadd.f32 0.0, %v2153
        %v2155 = vpop.f32.mrb[0].mxu0
        %2156 = vmatprep.mubr.bf16.mxu0 0
        %2157 = vmatmul.mubr.bf16.gmra.mrb[0].mxu0 %v2083
        %v2158 = vpop.f32.mrb[0].mxu0
        %v2159 = vadd.f32 0.0, %v2158
        %v2160 = vpop.f32.mrb[0].mxu0
        %v2161 = vpop.f32.mrb[0].mxu0
        %v2162 = vadd.f32 0.0, %v2161
        %v2163 = vpop.f32.mrb[0].mxu0
        %2164 = vmatprep.mubr.bf16.mxu0 0
        %2165 = vmatmul.mubr.bf16.gmra.mrb[0].mxu0 %v2086
        %v2166 = vpop.f32.mrb[0].mxu0
        %v2167 = vadd.f32 0.0, %v2166
        %v2168 = vpop.f32.mrb[0].mxu0
        %v2169 = vpop.f32.mrb[0].mxu0
        %v2170 = vadd.f32 0.0, %v2169
        %v2171 = vpop.f32.mrb[0].mxu0
        %2172 = vmatprep.mubr.bf16.mxu0 0
        %2173 = vmatmul.mubr.bf16.gmra.mrb[0].mxu0 %v2089
        %v2174 = vpop.f32.mrb[0].mxu0
        %v2175 = vadd.f32 0.0, %v2174
        %v2176 = vpop.f32.mrb[0].mxu0
        %v2177 = vpop.f32.mrb[0].mxu0
        %v2178 = vadd.f32 0.0, %v2177
        %v2179 = vpop.f32.mrb[0].mxu0
        %2180 = vmatprep.mubr.bf16.mxu0 0
        %2181 = vmatmul.mubr.bf16.gmra.mrb[0].mxu0 %v2092
        %v2182 = vpop.f32.mrb[0].mxu0
        %v2183 = vadd.f32 0.0, %v2182
        %v2184 = vpop.f32.mrb[0].mxu0
        %v2185 = vpop.f32.mrb[0].mxu0
        %v2186 = vadd.f32 0.0, %v2185
        %v2187 = vpop.f32.mrb[0].mxu0
        %2188 = vmatprep.mubr.bf16.mxu0 0
        %2189 = vmatmul.mubr.bf16.gmra.mrb[0].mxu0 %v2095
        %v2190 = vpop.f32.mrb[0].mxu0
        %v2191 = vadd.f32 0.0, %v2190
        %v2192 = vpop.f32.mrb[0].mxu0
        %v2193 = vpop.f32.mrb[0].mxu0
        %v2194 = vadd.f32 0.0, %v2193
        %v2195 = vpop.f32.mrb[0].mxu0
        %2196 = vdwg.mxu0
        %v2197 = vld [vmem:[%s3 + $0x2] sm:$0x1]
        %v2198 = vlaneseq
        %v2199 = vshrl.u32 %v2198, 7
        %v2200 = vsub.s32 0, %v2199
        %v2201 = vrot.slane %v2197, %v2200
        %v2202 = vmul.f32 %v2135, %v2201
        %v2203 = vmul.f32 %v2138, %v2201
        %v2204 = vmul.f32 %v2143, %v2201
        %v2205 = vmul.f32 %v2146, %v2201
        %v2206 = vmul.f32 %v2151, %v2201
        %v2207 = vmul.f32 %v2154, %v2201
        %v2208 = vmul.f32 %v2159, %v2201
        %v2209 = vmul.f32 %v2162, %v2201
        %v2210 = vmul.f32 %v2167, %v2201
        %v2211 = vmul.f32 %v2170, %v2201
        %v2212 = vmul.f32 %v2175, %v2201
        %v2213 = vmul.f32 %v2178, %v2201
        %v2214 = vmul.f32 %v2183, %v2201
        %v2215 = vmul.f32 %v2186, %v2201
        %v2216 = vmul.f32 %v2191, %v2201
        %v2217 = vmul.f32 %v2194, %v2201
        %v2218 = vld [vmem:[%s4 + $0x2] sm:$0x1]
        %v2219 = vlaneseq
        %v2220 = vshrl.u32 %v2219, 7
        %v2221 = vsub.s32 0, %v2220
        %v2222 = vrot.slane %v2218, %v2221
        %v2223 = vadd.f32 %v2202, %v2222
        %v2224 = vadd.f32 %v2203, %v2222
        %v2225 = vadd.f32 %v2204, %v2222
        %v2226 = vadd.f32 %v2205, %v2222
        %v2227 = vadd.f32 %v2206, %v2222
        %v2228 = vadd.f32 %v2207, %v2222
        %v2229 = vadd.f32 %v2208, %v2222
        %v2230 = vadd.f32 %v2209, %v2222
        %v2231 = vadd.f32 %v2210, %v2222
        %v2232 = vadd.f32 %v2211, %v2222
        %v2233 = vadd.f32 %v2212, %v2222
        %v2234 = vadd.f32 %v2213, %v2222
        %v2235 = vadd.f32 %v2214, %v2222
        %v2236 = vadd.f32 %v2215, %v2222
        %v2237 = vadd.f32 %v2216, %v2222
        %v2238 = vadd.f32 %v2217, %v2222
        %v2239 = vmax.f32 %v2223, 0.0
        %v2240 = vmax.f32 %v2224, 0.0
        %v2241 = vmax.f32 %v2225, 0.0
        %v2242 = vmax.f32 %v2226, 0.0
        %v2243 = vmax.f32 %v2227, 0.0
        %v2244 = vmax.f32 %v2228, 0.0
        %v2245 = vmax.f32 %v2229, 0.0
        %v2246 = vmax.f32 %v2230, 0.0
        %v2247 = vmax.f32 %v2231, 0.0
        %v2248 = vmax.f32 %v2232, 0.0
        %v2249 = vmax.f32 %v2233, 0.0
        %v2250 = vmax.f32 %v2234, 0.0
        %v2251 = vmax.f32 %v2235, 0.0
        %v2252 = vmax.f32 %v2236, 0.0
        %v2253 = vmax.f32 %v2237, 0.0
        %v2254 = vmax.f32 %v2238, 0.0
        %v2255 = vld [vmem:[%s5 + $0x2] sm:$0x1]
        %v2256 = vlaneseq
        %v2257 = vshrl.u32 %v2256, 7
        %v2258 = vsub.s32 0, %v2257
        %v2259 = vrot.slane %v2255, %v2258
        %v2260 = vmul.f32 %v2239, %v2259
        %v2261 = vmul.f32 %v2240, %v2259
        %v2262 = vmul.f32 %v2241, %v2259
        %v2263 = vmul.f32 %v2242, %v2259
        %v2264 = vmul.f32 %v2243, %v2259
        %v2265 = vmul.f32 %v2244, %v2259
        %v2266 = vmul.f32 %v2245, %v2259
        %v2267 = vmul.f32 %v2246, %v2259
        %v2268 = vmul.f32 %v2247, %v2259
        %v2269 = vmul.f32 %v2248, %v2259
        %v2270 = vmul.f32 %v2249, %v2259
        %v2271 = vmul.f32 %v2250, %v2259
        %v2272 = vmul.f32 %v2251, %v2259
        %v2273 = vmul.f32 %v2252, %v2259
        %v2274 = vmul.f32 %v2253, %v2259
        %v2275 = vmul.f32 %v2254, %v2259
        %v2276 = vadd.f32 %v1555, %v2260
        %v2277 = vadd.f32 %v1556, %v2261
        %v2278 = vadd.f32 %v1557, %v2262
        %v2279 = vadd.f32 %v1558, %v2263
        %v2280 = vadd.f32 %v1559, %v2264
        %v2281 = vadd.f32 %v1560, %v2265
        %v2282 = vadd.f32 %v1561, %v2266
        %v2283 = vadd.f32 %v1562, %v2267
        %v2284 = vadd.f32 %v1563, %v2268
        %v2285 = vadd.f32 %v1564, %v2269
        %v2286 = vadd.f32 %v1565, %v2270
        %v2287 = vadd.f32 %v1566, %v2271
        %v2288 = vadd.f32 %v1567, %v2272
        %v2289 = vadd.f32 %v1568, %v2273
        %v2290 = vadd.f32 %v1569, %v2274
        %v2291 = vadd.f32 %v1570, %v2275
        %vm2298 = vcmask 1045504
        %v2299 = vrot.slane %v288, 2
        %v2300 = vrot.slane %v289, 2
        %v2301 = vsel %vm2298, %v2299, %v2300
        %v2302 = vrot.slane %v290, 2
        %v2303 = vsel %vm2298, %v2300, %v2302
        %v2304 = vrot.slane %v292, 2
        %v2305 = vrot.slane %v293, 2
        %v2306 = vsel %vm2298, %v2304, %v2305
        %v2307 = vrot.slane %v294, 2
        %v2308 = vsel %vm2298, %v2305, %v2307
        %v2309 = vrot.slane %v296, 2
        %v2310 = vrot.slane %v297, 2
        %v2311 = vsel %vm2298, %v2309, %v2310
        %v2312 = vrot.slane %v298, 2
        %v2313 = vsel %vm2298, %v2310, %v2312
        %v2314 = vrot.slane %v300, 2
        %v2315 = vrot.slane %v301, 2
        %v2316 = vsel %vm2298, %v2314, %v2315
        %v2317 = vrot.slane %v302, 2
        %v2318 = vsel %vm2298, %v2315, %v2317
        %v2319 = vrot.slane %v304, 2
        %v2320 = vrot.slane %v305, 2
        %v2321 = vsel %vm2298, %v2319, %v2320
        %v2322 = vrot.slane %v306, 2
        %v2323 = vsel %vm2298, %v2320, %v2322
        %v2324 = vrot.slane %v308, 2
        %v2325 = vrot.slane %v309, 2
        %v2326 = vsel %vm2298, %v2324, %v2325
        %v2327 = vrot.slane %v310, 2
        %v2328 = vsel %vm2298, %v2325, %v2327
        %v2329 = vrot.slane %v312, 2
        %v2330 = vrot.slane %v313, 2
        %v2331 = vsel %vm2298, %v2329, %v2330
        %v2332 = vrot.slane %v314, 2
        %v2333 = vsel %vm2298, %v2330, %v2332
        %v2334 = vrot.slane %v316, 2
        %v2335 = vrot.slane %v317, 2
        %v2336 = vsel %vm2298, %v2334, %v2335
        %v2337 = vrot.slane %v318, 2
        %v2338 = vsel %vm2298, %v2335, %v2337
        %v2355 = vrot.slane %v288, 6
        %v2356 = vrot.slane %v289, 6
        %v2357 = vsel %vm384, %v2355, %v2356
        %v2358 = vrot.slane %v290, 6
        %v2359 = vsel %vm384, %v2356, %v2358
        %v2360 = vrot.slane %v292, 6
        %v2361 = vrot.slane %v293, 6
        %v2362 = vsel %vm384, %v2360, %v2361
        %v2363 = vrot.slane %v294, 6
        %v2364 = vsel %vm384, %v2361, %v2363
        %v2373 = vrot.slane %v291, 2
        %v2374 = vsel %vm2298, %v2302, %v2373
        %v2375 = vrot.slane %v295, 2
        %v2376 = vsel %vm2298, %v2307, %v2375
        %v2377 = vrot.slane %v299, 2
        %v2378 = vsel %vm2298, %v2312, %v2377
        %v2379 = vrot.slane %v303, 2
        %v2380 = vsel %vm2298, %v2317, %v2379
        %v2381 = vrot.slane %v307, 2
        %v2382 = vsel %vm2298, %v2322, %v2381
        %v2383 = vrot.slane %v311, 2
        %v2384 = vsel %vm2298, %v2327, %v2383
        %v2385 = vrot.slane %v315, 2
        %v2386 = vsel %vm2298, %v2332, %v2385
        %v2387 = vrot.slane %v319, 2
        %v2388 = vsel %vm2298, %v2337, %v2387
        %v2389 = vrot.slane %v320, 2
        %v2390 = vrot.slane %v321, 2
        %v2391 = vsel %vm2298, %v2389, %v2390
        %v2392 = vrot.slane %v322, 2
        %v2393 = vsel %vm2298, %v2390, %v2392
        %v2394 = vrot.slane %v324, 2
        %v2395 = vrot.slane %v325, 2
        %v2396 = vsel %vm2298, %v2394, %v2395
        %v2397 = vrot.slane %v326, 2
        %v2398 = vsel %vm2298, %v2395, %v2397
        %v2399 = vrot.slane %v328, 2
        %v2400 = vrot.slane %v329, 2
        %v2401 = vsel %vm2298, %v2399, %v2400
        %v2402 = vrot.slane %v330, 2
        %v2403 = vsel %vm2298, %v2400, %v2402
        %v2404 = vrot.slane %v332, 2
        %v2405 = vrot.slane %v333, 2
        %v2406 = vsel %vm2298, %v2404, %v2405
        %v2407 = vrot.slane %v334, 2
        %v2408 = vsel %vm2298, %v2405, %v2407
        %v2413 = vrot.slane %v323, 2
        %v2414 = vsel %vm2298, %v2392, %v2413
        %v2415 = vrot.slane %v327, 2
        %v2416 = vsel %vm2298, %v2397, %v2415
        %v2417 = vrot.slane %v331, 2
        %v2418 = vsel %vm2298, %v2402, %v2417
        %v2419 = vrot.slane %v335, 2
        %v2420 = vsel %vm2298, %v2407, %v2419
        %v2427 = vrot.slane %v336, 2
        %v2428 = vrot.slane %v337, 2
        %v2429 = vsel %vm2298, %v2427, %v2428
        %v2430 = vrot.slane %v338, 2
        %v2431 = vsel %vm2298, %v2428, %v2430
        %v2432 = vrot.slane %v340, 2
        %v2433 = vrot.slane %v341, 2
        %v2434 = vsel %vm2298, %v2432, %v2433
        %v2435 = vrot.slane %v342, 2
        %v2436 = vsel %vm2298, %v2433, %v2435
        %v2437 = vrot.slane %v344, 2
        %v2438 = vrot.slane %v345, 2
        %v2439 = vsel %vm2298, %v2437, %v2438
        %v2440 = vrot.slane %v346, 2
        %v2441 = vsel %vm2298, %v2438, %v2440
        %v2442 = vrot.slane %v348, 2
        %v2443 = vrot.slane %v349, 2
        %v2444 = vsel %vm2298, %v2442, %v2443
        %v2445 = vrot.slane %v350, 2
        %v2446 = vsel %vm2298, %v2443, %v2445
        %v2447 = vrot.slane %v344, 6
        %v2448 = vrot.slane %v345, 6
        %v2449 = vsel %vm384, %v2447, %v2448
        %v2450 = vrot.slane %v346, 6
        %v2451 = vsel %vm384, %v2448, %v2450
        %v2452 = vrot.slane %v348, 6
        %v2453 = vrot.slane %v349, 6
        %v2454 = vsel %vm384, %v2452, %v2453
        %v2455 = vrot.slane %v350, 6
        %v2456 = vsel %vm384, %v2453, %v2455
        %v2461 = vrot.slane %v339, 2
        %v2462 = vsel %vm2298, %v2430, %v2461
        %v2463 = vrot.slane %v343, 2
        %v2464 = vsel %vm2298, %v2435, %v2463
        %v2465 = vrot.slane %v347, 2
        %v2466 = vsel %vm2298, %v2440, %v2465
        %v2467 = vrot.slane %v351, 2
        %v2468 = vsel %vm2298, %v2445, %v2467
        %2469 = vrot.lane.b32.xlu0 %v2357, 4
        %v2470 = vpop.permute.xlu0 %2469
        %2471 = vrot.lane.b32.xlu0 %v2359, 4
        %v2472 = vpop.permute.xlu0 %2471
        %2473 = vrot.lane.b32.xlu0 %v2362, 4
        %v2474 = vpop.permute.xlu0 %2473
        %2475 = vrot.lane.b32.xlu0 %v2364, 4
        %v2476 = vpop.permute.xlu0 %2475
        %2481 = vrot.lane.b32.xlu0 %v2303, 8
        %v2482 = vpop.permute.xlu0 %2481
        %2483 = vrot.lane.b32.xlu0 %v2374, 8
        %v2484 = vpop.permute.xlu0 %2483
        %2485 = vrot.lane.b32.xlu0 %v2308, 8
        %v2486 = vpop.permute.xlu0 %2485
        %2487 = vrot.lane.b32.xlu0 %v2376, 8
        %v2488 = vpop.permute.xlu0 %2487
        %2489 = vrot.lane.b32.xlu0 %v2313, 8
        %v2490 = vpop.permute.xlu0 %2489
        %2491 = vrot.lane.b32.xlu0 %v2378, 8
        %v2492 = vpop.permute.xlu0 %2491
        %2493 = vrot.lane.b32.xlu0 %v2318, 8
        %v2494 = vpop.permute.xlu0 %2493
        %2495 = vrot.lane.b32.xlu0 %v2380, 8
        %v2496 = vpop.permute.xlu0 %2495
        %2497 = vrot.lane.b32.xlu0 %v2323, 8
        %v2498 = vpop.permute.xlu0 %2497
        %2499 = vrot.lane.b32.xlu0 %v2382, 8
        %v2500 = vpop.permute.xlu0 %2499
        %2501 = vrot.lane.b32.xlu0 %v2328, 8
        %v2502 = vpop.permute.xlu0 %2501
        %2503 = vrot.lane.b32.xlu0 %v2384, 8
        %v2504 = vpop.permute.xlu0 %2503
        %2505 = vrot.lane.b32.xlu0 %v2333, 8
        %v2506 = vpop.permute.xlu0 %2505
        %2507 = vrot.lane.b32.xlu0 %v2386, 8
        %v2508 = vpop.permute.xlu0 %2507
        %2509 = vrot.lane.b32.xlu0 %v2338, 8
        %v2510 = vpop.permute.xlu0 %2509
        %2511 = vrot.lane.b32.xlu0 %v2388, 8
        %v2512 = vpop.permute.xlu0 %2511
        %2529 = vrot.lane.b32.xlu0 %v2321, 12
        %v2530 = vpop.permute.xlu0 %2529
        %2531 = vrot.lane.b32.xlu0 %v2323, 12
        %v2532 = vpop.permute.xlu0 %2531
        %2533 = vrot.lane.b32.xlu0 %v2326, 12
        %v2534 = vpop.permute.xlu0 %2533
        %2535 = vrot.lane.b32.xlu0 %v2328, 12
        %v2536 = vpop.permute.xlu0 %2535
        %2537 = vrot.lane.b32.xlu0 %v2331, 12
        %v2538 = vpop.permute.xlu0 %2537
        %2539 = vrot.lane.b32.xlu0 %v2333, 12
        %v2540 = vpop.permute.xlu0 %2539
        %2541 = vrot.lane.b32.xlu0 %v2336, 12
        %v2542 = vpop.permute.xlu0 %2541
        %2543 = vrot.lane.b32.xlu0 %v2338, 12
        %v2544 = vpop.permute.xlu0 %2543
        %2545 = vrot.lane.b32.xlu0 %v2391, 12
        %v2546 = vpop.permute.xlu0 %2545
        %2547 = vrot.lane.b32.xlu0 %v2393, 12
        %v2548 = vpop.permute.xlu0 %2547
        %2549 = vrot.lane.b32.xlu0 %v2396, 12
        %v2550 = vpop.permute.xlu0 %2549
        %2551 = vrot.lane.b32.xlu0 %v2398, 12
        %v2552 = vpop.permute.xlu0 %2551
        %2553 = vrot.lane.b32.xlu0 %v2401, 12
        %v2554 = vpop.permute.xlu0 %2553
        %2555 = vrot.lane.b32.xlu0 %v2403, 12
        %v2556 = vpop.permute.xlu0 %2555
        %2557 = vrot.lane.b32.xlu0 %v2406, 12
        %v2558 = vpop.permute.xlu0 %2557
        %2559 = vrot.lane.b32.xlu0 %v2408, 12
        %v2560 = vpop.permute.xlu0 %2559
        %2577 = vrot.lane.b32.xlu0 %v2323, 20
        %v2578 = vpop.permute.xlu0 %2577
        %2579 = vrot.lane.b32.xlu0 %v2382, 20
        %v2580 = vpop.permute.xlu0 %2579
        %2581 = vrot.lane.b32.xlu0 %v2328, 20
        %v2582 = vpop.permute.xlu0 %2581
        %2583 = vrot.lane.b32.xlu0 %v2384, 20
        %v2584 = vpop.permute.xlu0 %2583
        %2585 = vrot.lane.b32.xlu0 %v2333, 20
        %v2586 = vpop.permute.xlu0 %2585
        %2587 = vrot.lane.b32.xlu0 %v2386, 20
        %v2588 = vpop.permute.xlu0 %2587
        %2589 = vrot.lane.b32.xlu0 %v2338, 20
        %v2590 = vpop.permute.xlu0 %2589
        %2591 = vrot.lane.b32.xlu0 %v2388, 20
        %v2592 = vpop.permute.xlu0 %2591
        %2593 = vrot.lane.b32.xlu0 %v2393, 20
        %v2594 = vpop.permute.xlu0 %2593
        %2595 = vrot.lane.b32.xlu0 %v2414, 20
        %v2596 = vpop.permute.xlu0 %2595
        %2597 = vrot.lane.b32.xlu0 %v2398, 20
        %v2598 = vpop.permute.xlu0 %2597
        %2599 = vrot.lane.b32.xlu0 %v2416, 20
        %v2600 = vpop.permute.xlu0 %2599
        %2601 = vrot.lane.b32.xlu0 %v2403, 20
        %v2602 = vpop.permute.xlu0 %2601
        %2603 = vrot.lane.b32.xlu0 %v2418, 20
        %v2604 = vpop.permute.xlu0 %2603
        %2605 = vrot.lane.b32.xlu0 %v2408, 20
        %v2606 = vpop.permute.xlu0 %2605
        %2607 = vrot.lane.b32.xlu0 %v2420, 20
        %v2608 = vpop.permute.xlu0 %2607
        %2625 = vrot.lane.b32.xlu0 %v2391, 24
        %v2626 = vpop.permute.xlu0 %2625
        %2627 = vrot.lane.b32.xlu0 %v2393, 24
        %v2628 = vpop.permute.xlu0 %2627
        %2629 = vrot.lane.b32.xlu0 %v2396, 24
        %v2630 = vpop.permute.xlu0 %2629
        %2631 = vrot.lane.b32.xlu0 %v2398, 24
        %v2632 = vpop.permute.xlu0 %2631
        %2633 = vrot.lane.b32.xlu0 %v2401, 24
        %v2634 = vpop.permute.xlu0 %2633
        %2635 = vrot.lane.b32.xlu0 %v2403, 24
        %v2636 = vpop.permute.xlu0 %2635
        %2637 = vrot.lane.b32.xlu0 %v2406, 24
        %v2638 = vpop.permute.xlu0 %2637
        %2639 = vrot.lane.b32.xlu0 %v2408, 24
        %v2640 = vpop.permute.xlu0 %2639
        %2641 = vrot.lane.b32.xlu0 %v2429, 24
        %v2642 = vpop.permute.xlu0 %2641
        %2643 = vrot.lane.b32.xlu0 %v2431, 24
        %v2644 = vpop.permute.xlu0 %2643
        %2645 = vrot.lane.b32.xlu0 %v2434, 24
        %v2646 = vpop.permute.xlu0 %2645
        %2647 = vrot.lane.b32.xlu0 %v2436, 24
        %v2648 = vpop.permute.xlu0 %2647
        %2649 = vrot.lane.b32.xlu0 %v2439, 24
        %v2650 = vpop.permute.xlu0 %2649
        %2651 = vrot.lane.b32.xlu0 %v2441, 24
        %v2652 = vpop.permute.xlu0 %2651
        %2653 = vrot.lane.b32.xlu0 %v2444, 24
        %v2654 = vpop.permute.xlu0 %2653
        %2655 = vrot.lane.b32.xlu0 %v2446, 24
        %v2656 = vpop.permute.xlu0 %2655
        %2673 = vrot.lane.b32.xlu0 %v2449, 28
        %v2674 = vpop.permute.xlu0 %2673
        %2675 = vrot.lane.b32.xlu0 %v2451, 28
        %v2676 = vpop.permute.xlu0 %2675
        %2677 = vrot.lane.b32.xlu0 %v2454, 28
        %v2678 = vpop.permute.xlu0 %2677
        %2679 = vrot.lane.b32.xlu0 %v2456, 28
        %v2680 = vpop.permute.xlu0 %2679
        %2685 = vrot.lane.b32.xlu0 %v2393, 32
        %v2686 = vpop.permute.xlu0 %2685
        %2687 = vrot.lane.b32.xlu0 %v2414, 32
        %v2688 = vpop.permute.xlu0 %2687
        %2689 = vrot.lane.b32.xlu0 %v2398, 32
        %v2690 = vpop.permute.xlu0 %2689
        %2691 = vrot.lane.b32.xlu0 %v2416, 32
        %v2692 = vpop.permute.xlu0 %2691
        %2693 = vrot.lane.b32.xlu0 %v2403, 32
        %v2694 = vpop.permute.xlu0 %2693
        %2695 = vrot.lane.b32.xlu0 %v2418, 32
        %v2696 = vpop.permute.xlu0 %2695
        %2697 = vrot.lane.b32.xlu0 %v2408, 32
        %v2698 = vpop.permute.xlu0 %2697
        %2699 = vrot.lane.b32.xlu0 %v2420, 32
        %v2700 = vpop.permute.xlu0 %2699
        %2701 = vrot.lane.b32.xlu0 %v2431, 32
        %v2702 = vpop.permute.xlu0 %2701
        %2703 = vrot.lane.b32.xlu0 %v2462, 32
        %v2704 = vpop.permute.xlu0 %2703
        %2705 = vrot.lane.b32.xlu0 %v2436, 32
        %v2706 = vpop.permute.xlu0 %2705
        %2707 = vrot.lane.b32.xlu0 %v2464, 32
        %v2708 = vpop.permute.xlu0 %2707
        %2709 = vrot.lane.b32.xlu0 %v2441, 32
        %v2710 = vpop.permute.xlu0 %2709
        %2711 = vrot.lane.b32.xlu0 %v2466, 32
        %v2712 = vpop.permute.xlu0 %2711
        %2713 = vrot.lane.b32.xlu0 %v2446, 32
        %v2714 = vpop.permute.xlu0 %2713
        %2715 = vrot.lane.b32.xlu0 %v2468, 32
        %v2716 = vpop.permute.xlu0 %2715
        %v2733 = vsel %vm450, %v2301, %v2470
        %v2734 = vsel %vm450, %v2303, %v2472
        %v2735 = vsel %vm450, %v2306, %v2474
        %v2736 = vsel %vm450, %v2308, %v2476
        %v2737 = vsel %vm450, %v2311, %v1665
        %v2738 = vsel %vm450, %v2313, %v1667
        %v2739 = vsel %vm450, %v2316, %v805
        %v2740 = vsel %vm450, %v2318, %v807
        %v2741 = vsel %vm450, %v2321, %v809
        %v2742 = vsel %vm450, %v2323, %v811
        %v2743 = vsel %vm450, %v2326, %v813
        %v2744 = vsel %vm450, %v2328, %v815
        %v2745 = vsel %vm450, %v2331, %v817
        %v2746 = vsel %vm450, %v2333, %v819
        %v2747 = vsel %vm450, %v2336, %v821
        %v2748 = vsel %vm450, %v2338, %v823
        %v2749 = vsel %vm1204, %v2733, %v2482
        %v2750 = vsel %vm1204, %v2734, %v2484
        %v2751 = vsel %vm1204, %v2735, %v2486
        %v2752 = vsel %vm1204, %v2736, %v2488
        %v2753 = vsel %vm1204, %v2737, %v2490
        %v2754 = vsel %vm1204, %v2738, %v2492
        %v2755 = vsel %vm1204, %v2739, %v2494
        %v2756 = vsel %vm1204, %v2740, %v2496
        %v2757 = vsel %vm1204, %v2741, %v2498
        %v2758 = vsel %vm1204, %v2742, %v2500
        %v2759 = vsel %vm1204, %v2743, %v2502
        %v2760 = vsel %vm1204, %v2744, %v2504
        %v2761 = vsel %vm1204, %v2745, %v2506
        %v2762 = vsel %vm1204, %v2746, %v2508
        %v2763 = vsel %vm1204, %v2747, %v2510
        %v2764 = vsel %vm1204, %v2748, %v2512
        %v2765 = vsel %vm1221, %v2749, %v2530
        %v2766 = vsel %vm1221, %v2750, %v2532
        %v2767 = vsel %vm1221, %v2751, %v2534
        %v2768 = vsel %vm1221, %v2752, %v2536
        %v2769 = vsel %vm1221, %v2753, %v2538
        %v2770 = vsel %vm1221, %v2754, %v2540
        %v2771 = vsel %vm1221, %v2755, %v2542
        %v2772 = vsel %vm1221, %v2756, %v2544
        %v2773 = vsel %vm1221, %v2757, %v2546
        %v2774 = vsel %vm1221, %v2758, %v2548
        %v2775 = vsel %vm1221, %v2759, %v2550
        %v2776 = vsel %vm1221, %v2760, %v2552
        %v2777 = vsel %vm1221, %v2761, %v2554
        %v2778 = vsel %vm1221, %v2762, %v2556
        %v2779 = vsel %vm1221, %v2763, %v2558
        %v2780 = vsel %vm1221, %v2764, %v2560
        %v2781 = vsel %vm1238, %v2765, %v949
        %v2782 = vsel %vm1238, %v2766, %v951
        %v2783 = vsel %vm1238, %v2767, %v953
        %v2784 = vsel %vm1238, %v2768, %v955
        %v2785 = vsel %vm1238, %v2769, %v957
        %v2786 = vsel %vm1238, %v2770, %v959
        %v2787 = vsel %vm1238, %v2771, %v961
        %v2788 = vsel %vm1238, %v2772, %v963
        %v2789 = vsel %vm1238, %v2773, %v965
        %v2790 = vsel %vm1238, %v2774, %v967
        %v2791 = vsel %vm1238, %v2775, %v969
        %v2792 = vsel %vm1238, %v2776, %v971
        %v2793 = vsel %vm1238, %v2777, %v973
        %v2794 = vsel %vm1238, %v2778, %v975
        %v2795 = vsel %vm1238, %v2779, %v977
        %v2796 = vsel %vm1238, %v2780, %v979
        %v2797 = vsel %vm1255, %v2781, %v2578
        %v2798 = vsel %vm1255, %v2782, %v2580
        %v2799 = vsel %vm1255, %v2783, %v2582
        %v2800 = vsel %vm1255, %v2784, %v2584
        %v2801 = vsel %vm1255, %v2785, %v2586
        %v2802 = vsel %vm1255, %v2786, %v2588
        %v2803 = vsel %vm1255, %v2787, %v2590
        %v2804 = vsel %vm1255, %v2788, %v2592
        %v2805 = vsel %vm1255, %v2789, %v2594
        %v2806 = vsel %vm1255, %v2790, %v2596
        %v2807 = vsel %vm1255, %v2791, %v2598
        %v2808 = vsel %vm1255, %v2792, %v2600
        %v2809 = vsel %vm1255, %v2793, %v2602
        %v2810 = vsel %vm1255, %v2794, %v2604
        %v2811 = vsel %vm1255, %v2795, %v2606
        %v2812 = vsel %vm1255, %v2796, %v2608
        %v2813 = vsel %vm1272, %v2797, %v2626
        %v2814 = vsel %vm1272, %v2798, %v2628
        %v2815 = vsel %vm1272, %v2799, %v2630
        %v2816 = vsel %vm1272, %v2800, %v2632
        %v2817 = vsel %vm1272, %v2801, %v2634
        %v2818 = vsel %vm1272, %v2802, %v2636
        %v2819 = vsel %vm1272, %v2803, %v2638
        %v2820 = vsel %vm1272, %v2804, %v2640
        %v2821 = vsel %vm1272, %v2805, %v2642
        %v2822 = vsel %vm1272, %v2806, %v2644
        %v2823 = vsel %vm1272, %v2807, %v2646
        %v2824 = vsel %vm1272, %v2808, %v2648
        %v2825 = vsel %vm1272, %v2809, %v2650
        %v2826 = vsel %vm1272, %v2810, %v2652
        %v2827 = vsel %vm1272, %v2811, %v2654
        %v2828 = vsel %vm1272, %v2812, %v2656
        %v2829 = vsel %vm1289, %v2813, %v1105
        %v2830 = vsel %vm1289, %v2814, %v1107
        %v2831 = vsel %vm1289, %v2815, %v1109
        %v2832 = vsel %vm1289, %v2816, %v1111
        %v2833 = vsel %vm1289, %v2817, %v1113
        %v2834 = vsel %vm1289, %v2818, %v1115
        %v2835 = vsel %vm1289, %v2819, %v1117
        %v2836 = vsel %vm1289, %v2820, %v1119
        %v2837 = vsel %vm1289, %v2821, %v1121
        %v2838 = vsel %vm1289, %v2822, %v1123
        %v2839 = vsel %vm1289, %v2823, %v1863
        %v2840 = vsel %vm1289, %v2824, %v1865
        %v2841 = vsel %vm1289, %v2825, %v2674
        %v2842 = vsel %vm1289, %v2826, %v2676
        %v2843 = vsel %vm1289, %v2827, %v2678
        %v2844 = vsel %vm1289, %v2828, %v2680
        %v2845 = vsel %vm1306, %v2829, %v2686
        %v2846 = vsel %vm1306, %v2830, %v2688
        %v2847 = vsel %vm1306, %v2831, %v2690
        %v2848 = vsel %vm1306, %v2832, %v2692
        %v2849 = vsel %vm1306, %v2833, %v2694
        %v2850 = vsel %vm1306, %v2834, %v2696
        %v2851 = vsel %vm1306, %v2835, %v2698
        %v2852 = vsel %vm1306, %v2836, %v2700
        %v2853 = vsel %vm1306, %v2837, %v2702
        %v2854 = vsel %vm1306, %v2838, %v2704
        %v2855 = vsel %vm1306, %v2839, %v2706
        %v2856 = vsel %vm1306, %v2840, %v2708
        %v2857 = vsel %vm1306, %v2841, %v2710
        %v2858 = vsel %vm1306, %v2842, %v2712
        %v2859 = vsel %vm1306, %v2843, %v2714
        %v2860 = vsel %vm1306, %v2844, %v2716
        %v2861 = vpack.c.bf16 %v2846, %v2845
        %v2862 = vpack.c.bf16 %v2848, %v2847
        %v2863 = vpack.c.bf16 %v2850, %v2849
        %v2864 = vpack.c.bf16 %v2852, %v2851
        %v2865 = vpack.c.bf16 %v2854, %v2853
        %v2866 = vpack.c.bf16 %v2856, %v2855
        %v2867 = vpack.c.bf16 %v2858, %v2857
        %v2868 = vpack.c.bf16 %v2860, %v2859
        %s2869 = scalar_lea.vmem %s2, 40
        %v2870 = vld [vmem:[%s2869] sm:$0xf]
        %v2871 = vld [vmem:[%s2869 + $0x4] sm:$0xf]
        %v2872 = vld [vmem:[%s2869 + $0x8] sm:$0xf]
        %v2873 = vld [vmem:[%s2869 + $0xc] sm:$0xf]
        %v2874 = vld [vmem:[%s2869 + $0x10] sm:$0x3]
        %v2880 = vunpack.c.l.b16 %v2870
        %v2881 = vunpack.c.l.b16 %v2871
        %v2882 = vunpack.c.l.b16 %v2872
        %v2883 = vunpack.c.l.b16 %v2873
        %v2884 = vunpack.c.l.b16 %v2874
        %v2885 = vpack.c.b16 %v2881, %v2880
        %v2886 = vpack.c.b16 %v2883, %v2882
        %v2887 = vpack.c.b16 %v2884, %v2884
        %v2891 = vsel %vm1351, %v2861, 0
        %v2894 = vsel %vm1351, %v2862, 0
        %v2897 = vsel %vm1351, %v2863, 0
        %v2900 = vsel %vm1351, %v2864, 0
        %v2903 = vsel %vm1351, %v2865, 0
        %v2906 = vsel %vm1351, %v2866, 0
        %v2909 = vsel %vm1351, %v2867, 0
        %v2912 = vsel %vm1351, %v2868, 0
        %v2915 = vsel %vm384, %v2887, 0
        %2917 = vmatprep.subr.bf16.mxu0 0
        %2918 = vmatpush1.bf16.msra.mxu0 %v2885
        %2919 = vmatprep.subr.bf16.mxu0 0
        %2920 = vmatpush1.bf16.msra.mxu0 %v2886
        %2921 = vmatprep.subr.bf16.mxu0 0
        %2922 = vmatpush1.bf16.msra.mxu0 %v2915
        %2923 = vmatprep.subr.bf16.mxu0 0
        %2924 = vmatpush1.bf16.msra.mxu0 0
        %2925 = vmatprep.subr.bf16.mxu0 0
        %2926 = vmatpush1.bf16.msra.mxu0 0
        %2927 = vmatprep.subr.bf16.mxu0 0
        %2928 = vmatpush1.bf16.msra.mxu0 0
        %2929 = vmatprep.subr.bf16.mxu0 0
        %2930 = vmatpush1.bf16.msra.mxu0 0
        %2931 = vmatprep.subr.bf16.mxu0 0
        %2932 = vmatpush1.bf16.msra.mxu0 0
        %2933 = vmatprep.subr.bf16.mxu0 0
        %2934 = vmatpush1.bf16.msra.mxu0 0
        %2935 = vmatprep.subr.bf16.mxu0 0
        %2936 = vmatpush1.bf16.msra.mxu0 0
        %2937 = vmatprep.subr.bf16.mxu0 0
        %2938 = vmatpush1.bf16.msra.mxu0 0
        %2939 = vmatprep.subr.bf16.mxu0 0
        %2940 = vmatpush1.bf16.msra.mxu0 0
        %2941 = vmatprep.subr.bf16.mxu0 0
        %2942 = vmatpush1.bf16.msra.mxu0 0
        %2943 = vmatprep.subr.bf16.mxu0 0
        %2944 = vmatpush1.bf16.msra.mxu0 0
        %2945 = vmatprep.subr.bf16.mxu0 0
        %2946 = vmatpush1.bf16.msra.mxu0 0
        %2947 = vmatprep.subr.bf16.mxu0 0
        %2948 = vmatpush1.bf16.msra.mxu0 0
        %2949 = vmatprep.mubr.bf16.mxu0 0
        %2950 = vmatmul.mubr.bf16.gmra.mrb[0].mxu0 %v2891
        %v2951 = vpop.f32.mrb[0].mxu0
        %v2952 = vadd.f32 0.0, %v2951
        %v2953 = vpop.f32.mrb[0].mxu0
        %v2954 = vpop.f32.mrb[0].mxu0
        %v2955 = vadd.f32 0.0, %v2954
        %v2956 = vpop.f32.mrb[0].mxu0
        %2957 = vmatprep.mubr.bf16.mxu0 0
        %2958 = vmatmul.mubr.bf16.gmra.mrb[0].mxu0 %v2894
        %v2959 = vpop.f32.mrb[0].mxu0
        %v2960 = vadd.f32 0.0, %v2959
        %v2961 = vpop.f32.mrb[0].mxu0
        %v2962 = vpop.f32.mrb[0].mxu0
        %v2963 = vadd.f32 0.0, %v2962
        %v2964 = vpop.f32.mrb[0].mxu0
        %2965 = vmatprep.mubr.bf16.mxu0 0
        %2966 = vmatmul.mubr.bf16.gmra.mrb[0].mxu0 %v2897
        %v2967 = vpop.f32.mrb[0].mxu0
        %v2968 = vadd.f32 0.0, %v2967
        %v2969 = vpop.f32.mrb[0].mxu0
        %v2970 = vpop.f32.mrb[0].mxu0
        %v2971 = vadd.f32 0.0, %v2970
        %v2972 = vpop.f32.mrb[0].mxu0
        %2973 = vmatprep.mubr.bf16.mxu0 0
        %2974 = vmatmul.mubr.bf16.gmra.mrb[0].mxu0 %v2900
        %v2975 = vpop.f32.mrb[0].mxu0
        %v2976 = vadd.f32 0.0, %v2975
        %v2977 = vpop.f32.mrb[0].mxu0
        %v2978 = vpop.f32.mrb[0].mxu0
        %v2979 = vadd.f32 0.0, %v2978
        %v2980 = vpop.f32.mrb[0].mxu0
        %2981 = vmatprep.mubr.bf16.mxu0 0
        %2982 = vmatmul.mubr.bf16.gmra.mrb[0].mxu0 %v2903
        %v2983 = vpop.f32.mrb[0].mxu0
        %v2984 = vadd.f32 0.0, %v2983
        %v2985 = vpop.f32.mrb[0].mxu0
        %v2986 = vpop.f32.mrb[0].mxu0
        %v2987 = vadd.f32 0.0, %v2986
        %v2988 = vpop.f32.mrb[0].mxu0
        %2989 = vmatprep.mubr.bf16.mxu0 0
        %2990 = vmatmul.mubr.bf16.gmra.mrb[0].mxu0 %v2906
        %v2991 = vpop.f32.mrb[0].mxu0
        %v2992 = vadd.f32 0.0, %v2991
        %v2993 = vpop.f32.mrb[0].mxu0
        %v2994 = vpop.f32.mrb[0].mxu0
        %v2995 = vadd.f32 0.0, %v2994
        %v2996 = vpop.f32.mrb[0].mxu0
        %2997 = vmatprep.mubr.bf16.mxu0 0
        %2998 = vmatmul.mubr.bf16.gmra.mrb[0].mxu0 %v2909
        %v2999 = vpop.f32.mrb[0].mxu0
        %v3000 = vadd.f32 0.0, %v2999
        %v3001 = vpop.f32.mrb[0].mxu0
        %v3002 = vpop.f32.mrb[0].mxu0
        %v3003 = vadd.f32 0.0, %v3002
        %v3004 = vpop.f32.mrb[0].mxu0
        %3005 = vmatprep.mubr.bf16.mxu0 0
        %3006 = vmatmul.mubr.bf16.gmra.mrb[0].mxu0 %v2912
        %v3007 = vpop.f32.mrb[0].mxu0
        %v3008 = vadd.f32 0.0, %v3007
        %v3009 = vpop.f32.mrb[0].mxu0
        %v3010 = vpop.f32.mrb[0].mxu0
        %v3011 = vadd.f32 0.0, %v3010
        %v3012 = vpop.f32.mrb[0].mxu0
        %3013 = vdwg.mxu0
        %v3014 = vld [vmem:[%s3 + $0x3] sm:$0x1]
        %v3015 = vlaneseq
        %v3016 = vshrl.u32 %v3015, 7
        %v3017 = vsub.s32 0, %v3016
        %v3018 = vrot.slane %v3014, %v3017
        %v3019 = vmul.f32 %v2952, %v3018
        %v3020 = vmul.f32 %v2955, %v3018
        %v3021 = vmul.f32 %v2960, %v3018
        %v3022 = vmul.f32 %v2963, %v3018
        %v3023 = vmul.f32 %v2968, %v3018
        %v3024 = vmul.f32 %v2971, %v3018
        %v3025 = vmul.f32 %v2976, %v3018
        %v3026 = vmul.f32 %v2979, %v3018
        %v3027 = vmul.f32 %v2984, %v3018
        %v3028 = vmul.f32 %v2987, %v3018
        %v3029 = vmul.f32 %v2992, %v3018
        %v3030 = vmul.f32 %v2995, %v3018
        %v3031 = vmul.f32 %v3000, %v3018
        %v3032 = vmul.f32 %v3003, %v3018
        %v3033 = vmul.f32 %v3008, %v3018
        %v3034 = vmul.f32 %v3011, %v3018
        %v3035 = vld [vmem:[%s4 + $0x3] sm:$0x1]
        %v3036 = vlaneseq
        %v3037 = vshrl.u32 %v3036, 7
        %v3038 = vsub.s32 0, %v3037
        %v3039 = vrot.slane %v3035, %v3038
        %v3040 = vadd.f32 %v3019, %v3039
        %v3041 = vadd.f32 %v3020, %v3039
        %v3042 = vadd.f32 %v3021, %v3039
        %v3043 = vadd.f32 %v3022, %v3039
        %v3044 = vadd.f32 %v3023, %v3039
        %v3045 = vadd.f32 %v3024, %v3039
        %v3046 = vadd.f32 %v3025, %v3039
        %v3047 = vadd.f32 %v3026, %v3039
        %v3048 = vadd.f32 %v3027, %v3039
        %v3049 = vadd.f32 %v3028, %v3039
        %v3050 = vadd.f32 %v3029, %v3039
        %v3051 = vadd.f32 %v3030, %v3039
        %v3052 = vadd.f32 %v3031, %v3039
        %v3053 = vadd.f32 %v3032, %v3039
        %v3054 = vadd.f32 %v3033, %v3039
        %v3055 = vadd.f32 %v3034, %v3039
        %v3056 = vmax.f32 %v3040, 0.0
        %v3057 = vmax.f32 %v3041, 0.0
        %v3058 = vmax.f32 %v3042, 0.0
        %v3059 = vmax.f32 %v3043, 0.0
        %v3060 = vmax.f32 %v3044, 0.0
        %v3061 = vmax.f32 %v3045, 0.0
        %v3062 = vmax.f32 %v3046, 0.0
        %v3063 = vmax.f32 %v3047, 0.0
        %v3064 = vmax.f32 %v3048, 0.0
        %v3065 = vmax.f32 %v3049, 0.0
        %v3066 = vmax.f32 %v3050, 0.0
        %v3067 = vmax.f32 %v3051, 0.0
        %v3068 = vmax.f32 %v3052, 0.0
        %v3069 = vmax.f32 %v3053, 0.0
        %v3070 = vmax.f32 %v3054, 0.0
        %v3071 = vmax.f32 %v3055, 0.0
        %v3072 = vld [vmem:[%s5 + $0x3] sm:$0x1]
        %v3073 = vlaneseq
        %v3074 = vshrl.u32 %v3073, 7
        %v3075 = vsub.s32 0, %v3074
        %v3076 = vrot.slane %v3072, %v3075
        %v3077 = vmul.f32 %v3056, %v3076
        %v3078 = vmul.f32 %v3057, %v3076
        %v3079 = vmul.f32 %v3058, %v3076
        %v3080 = vmul.f32 %v3059, %v3076
        %v3081 = vmul.f32 %v3060, %v3076
        %v3082 = vmul.f32 %v3061, %v3076
        %v3083 = vmul.f32 %v3062, %v3076
        %v3084 = vmul.f32 %v3063, %v3076
        %v3085 = vmul.f32 %v3064, %v3076
        %v3086 = vmul.f32 %v3065, %v3076
        %v3087 = vmul.f32 %v3066, %v3076
        %v3088 = vmul.f32 %v3067, %v3076
        %v3089 = vmul.f32 %v3068, %v3076
        %v3090 = vmul.f32 %v3069, %v3076
        %v3091 = vmul.f32 %v3070, %v3076
        %v3092 = vmul.f32 %v3071, %v3076
        %v3093 = vadd.f32 %v2276, %v3077
        %v3094 = vadd.f32 %v2277, %v3078
        %v3095 = vadd.f32 %v2278, %v3079
        %v3096 = vadd.f32 %v2279, %v3080
        %v3097 = vadd.f32 %v2280, %v3081
        %v3098 = vadd.f32 %v2281, %v3082
        %v3099 = vadd.f32 %v2282, %v3083
        %v3100 = vadd.f32 %v2283, %v3084
        %v3101 = vadd.f32 %v2284, %v3085
        %v3102 = vadd.f32 %v2285, %v3086
        %v3103 = vadd.f32 %v2286, %v3087
        %v3104 = vadd.f32 %v2287, %v3088
        %v3105 = vadd.f32 %v2288, %v3089
        %v3106 = vadd.f32 %v2289, %v3090
        %v3107 = vadd.f32 %v2290, %v3091
        %v3108 = vadd.f32 %v2291, %v3092
        %v3115 = vrot.slane %v280, 6
        %v3116 = vrot.slane %v281, 6
        %v3117 = vsel %vm384, %v3115, %v3116
        %v3118 = vrot.slane %v282, 6
        %v3119 = vsel %vm384, %v3116, %v3118
        %v3120 = vrot.slane %v284, 6
        %v3121 = vrot.slane %v285, 6
        %v3122 = vsel %vm384, %v3120, %v3121
        %v3123 = vrot.slane %v286, 6
        %v3124 = vsel %vm384, %v3121, %v3123
        %v3127 = vrot.slane %v281, 4
        %v3128 = vrot.slane %v282, 4
        %v3129 = vsel %vm1574, %v3127, %v3128
        %v3130 = vrot.slane %v283, 4
        %v3131 = vsel %vm1574, %v3128, %v3130
        %v3132 = vrot.slane %v285, 4
        %v3133 = vrot.slane %v286, 4
        %v3134 = vsel %vm1574, %v3132, %v3133
        %v3135 = vrot.slane %v287, 4
        %v3136 = vsel %vm1574, %v3133, %v3135
        %v3137 = vrot.slane %v289, 4
        %v3138 = vrot.slane %v290, 4
        %v3139 = vsel %vm1574, %v3137, %v3138
        %v3140 = vrot.slane %v291, 4
        %v3141 = vsel %vm1574, %v3138, %v3140
        %v3142 = vrot.slane %v293, 4
        %v3143 = vrot.slane %v294, 4
        %v3144 = vsel %vm1574, %v3142, %v3143
        %v3145 = vrot.slane %v295, 4
        %v3146 = vsel %vm1574, %v3143, %v3145
        %v3147 = vrot.slane %v299, 4
        %v3148 = vsel %vm1574, %v1578, %v3147
        %v3149 = vrot.slane %v303, 4
        %v3150 = vsel %vm1574, %v1583, %v3149
        %v3151 = vrot.slane %v307, 4
        %v3152 = vsel %vm1574, %v1588, %v3151
        %v3153 = vrot.slane %v311, 4
        %v3154 = vsel %vm1574, %v1593, %v3153
        %v3155 = vrot.slane %v315, 4
        %v3156 = vsel %vm1574, %v1598, %v3155
        %v3157 = vrot.slane %v319, 4
        %v3158 = vsel %vm1574, %v1603, %v3157
        %v3159 = vrot.slane %v323, 4
        %v3160 = vsel %vm1574, %v1608, %v3159
        %v3161 = vrot.slane %v327, 4
        %v3162 = vsel %vm1574, %v1613, %v3161
        %v3163 = vrot.slane %v331, 4
        %v3164 = vsel %vm1574, %v1639, %v3163
        %v3165 = vrot.slane %v335, 4
        %v3166 = vsel %vm1574, %v1644, %v3165
        %v3173 = vrot.slane %v352, 6
        %v3174 = vrot.slane %v353, 6
        %v3175 = vsel %vm384, %v3173, %v3174
        %v3176 = vrot.slane %v354, 6
        %v3177 = vsel %vm384, %v3174, %v3176
        %v3178 = vrot.slane %v356, 6
        %v3179 = vrot.slane %v357, 6
        %v3180 = vsel %vm384, %v3178, %v3179
        %v3181 = vrot.slane %v358, 6
        %v3182 = vsel %vm384, %v3179, %v3181
        %v3185 = vrot.slane %v339, 4
        %v3186 = vsel %vm1574, %v1652, %v3185
        %v3187 = vrot.slane %v343, 4
        %v3188 = vsel %vm1574, %v1657, %v3187
        %v3189 = vrot.slane %v345, 4
        %v3190 = vrot.slane %v346, 4
        %v3191 = vsel %vm1574, %v3189, %v3190
        %v3192 = vrot.slane %v347, 4
        %v3193 = vsel %vm1574, %v3190, %v3192
        %v3194 = vrot.slane %v349, 4
        %v3195 = vrot.slane %v350, 4
        %v3196 = vsel %vm1574, %v3194, %v3195
        %v3197 = vrot.slane %v351, 4
        %v3198 = vsel %vm1574, %v3195, %v3197
        %v3199 = vrot.slane %v353, 4
        %v3200 = vrot.slane %v354, 4
        %v3201 = vsel %vm1574, %v3199, %v3200
        %v3202 = vrot.slane %v355, 4
        %v3203 = vsel %vm1574, %v3200, %v3202
        %v3204 = vrot.slane %v357, 4
        %v3205 = vrot.slane %v358, 4
        %v3206 = vsel %vm1574, %v3204, %v3205
        %v3207 = vrot.slane %v359, 4
        %v3208 = vsel %vm1574, %v3205, %v3207
        %3209 = vrot.lane.b32.xlu0 %v3117, 4
        %v3210 = vpop.permute.xlu0 %3209
        %3211 = vrot.lane.b32.xlu0 %v3119, 4
        %v3212 = vpop.permute.xlu0 %3211
        %3213 = vrot.lane.b32.xlu0 %v3122, 4
        %v3214 = vpop.permute.xlu0 %3213
        %3215 = vrot.lane.b32.xlu0 %v3124, 4
        %v3216 = vpop.permute.xlu0 %3215
        %3221 = vrot.lane.b32.xlu0 %v3129, 8
        %v3222 = vpop.permute.xlu0 %3221
        %3223 = vrot.lane.b32.xlu0 %v3131, 8
        %v3224 = vpop.permute.xlu0 %3223
        %3225 = vrot.lane.b32.xlu0 %v3134, 8
        %v3226 = vpop.permute.xlu0 %3225
        %3227 = vrot.lane.b32.xlu0 %v3136, 8
        %v3228 = vpop.permute.xlu0 %3227
        %3229 = vrot.lane.b32.xlu0 %v3139, 8
        %v3230 = vpop.permute.xlu0 %3229
        %3231 = vrot.lane.b32.xlu0 %v3141, 8
        %v3232 = vpop.permute.xlu0 %3231
        %3233 = vrot.lane.b32.xlu0 %v3144, 8
        %v3234 = vpop.permute.xlu0 %3233
        %3235 = vrot.lane.b32.xlu0 %v3146, 8
        %v3236 = vpop.permute.xlu0 %3235
        %3237 = vrot.lane.b32.xlu0 %v1579, 8
        %v3238 = vpop.permute.xlu0 %3237
        %3239 = vrot.lane.b32.xlu0 %v3148, 8
        %v3240 = vpop.permute.xlu0 %3239
        %3241 = vrot.lane.b32.xlu0 %v1584, 8
        %v3242 = vpop.permute.xlu0 %3241
        %3243 = vrot.lane.b32.xlu0 %v3150, 8
        %v3244 = vpop.permute.xlu0 %3243
        %3245 = vrot.lane.b32.xlu0 %v1589, 8
        %v3246 = vpop.permute.xlu0 %3245
        %3247 = vrot.lane.b32.xlu0 %v3152, 8
        %v3248 = vpop.permute.xlu0 %3247
        %3249 = vrot.lane.b32.xlu0 %v1594, 8
        %v3250 = vpop.permute.xlu0 %3249
        %3251 = vrot.lane.b32.xlu0 %v3154, 8
        %v3252 = vpop.permute.xlu0 %3251
        %3269 = vrot.lane.b32.xlu0 %v304, 12
        %v3270 = vpop.permute.xlu0 %3269
        %3271 = vrot.lane.b32.xlu0 %v305, 12
        %v3272 = vpop.permute.xlu0 %3271
        %3273 = vrot.lane.b32.xlu0 %v308, 12
        %v3274 = vpop.permute.xlu0 %3273
        %3275 = vrot.lane.b32.xlu0 %v309, 12
        %v3276 = vpop.permute.xlu0 %3275
        %3277 = vrot.lane.b32.xlu0 %v312, 12
        %v3278 = vpop.permute.xlu0 %3277
        %3279 = vrot.lane.b32.xlu0 %v313, 12
        %v3280 = vpop.permute.xlu0 %3279
        %3281 = vrot.lane.b32.xlu0 %v316, 12
        %v3282 = vpop.permute.xlu0 %3281
        %3283 = vrot.lane.b32.xlu0 %v317, 12
        %v3284 = vpop.permute.xlu0 %3283
        %3285 = vrot.lane.b32.xlu0 %v320, 12
        %v3286 = vpop.permute.xlu0 %3285
        %3287 = vrot.lane.b32.xlu0 %v321, 12
        %v3288 = vpop.permute.xlu0 %3287
        %3289 = vrot.lane.b32.xlu0 %v324, 12
        %v3290 = vpop.permute.xlu0 %3289
        %3291 = vrot.lane.b32.xlu0 %v325, 12
        %v3292 = vpop.permute.xlu0 %3291
        %3293 = vrot.lane.b32.xlu0 %v328, 12
        %v3294 = vpop.permute.xlu0 %3293
        %3295 = vrot.lane.b32.xlu0 %v329, 12
        %v3296 = vpop.permute.xlu0 %3295
        %3297 = vrot.lane.b32.xlu0 %v332, 12
        %v3298 = vpop.permute.xlu0 %3297
        %3299 = vrot.lane.b32.xlu0 %v333, 12
        %v3300 = vpop.permute.xlu0 %3299
        %3317 = vrot.lane.b32.xlu0 %v1589, 20
        %v3318 = vpop.permute.xlu0 %3317
        %3319 = vrot.lane.b32.xlu0 %v3152, 20
        %v3320 = vpop.permute.xlu0 %3319
        %3321 = vrot.lane.b32.xlu0 %v1594, 20
        %v3322 = vpop.permute.xlu0 %3321
        %3323 = vrot.lane.b32.xlu0 %v3154, 20
        %v3324 = vpop.permute.xlu0 %3323
        %3325 = vrot.lane.b32.xlu0 %v1599, 20
        %v3326 = vpop.permute.xlu0 %3325
        %3327 = vrot.lane.b32.xlu0 %v3156, 20
        %v3328 = vpop.permute.xlu0 %3327
        %3329 = vrot.lane.b32.xlu0 %v1604, 20
        %v3330 = vpop.permute.xlu0 %3329
        %3331 = vrot.lane.b32.xlu0 %v3158, 20
        %v3332 = vpop.permute.xlu0 %3331
        %3333 = vrot.lane.b32.xlu0 %v1609, 20
        %v3334 = vpop.permute.xlu0 %3333
        %3335 = vrot.lane.b32.xlu0 %v3160, 20
        %v3336 = vpop.permute.xlu0 %3335
        %3337 = vrot.lane.b32.xlu0 %v1614, 20
        %v3338 = vpop.permute.xlu0 %3337
        %3339 = vrot.lane.b32.xlu0 %v3162, 20
        %v3340 = vpop.permute.xlu0 %3339
        %3341 = vrot.lane.b32.xlu0 %v1640, 20
        %v3342 = vpop.permute.xlu0 %3341
        %3343 = vrot.lane.b32.xlu0 %v3164, 20
        %v3344 = vpop.permute.xlu0 %3343
        %3345 = vrot.lane.b32.xlu0 %v1645, 20
        %v3346 = vpop.permute.xlu0 %3345
        %3347 = vrot.lane.b32.xlu0 %v3166, 20
        %v3348 = vpop.permute.xlu0 %3347
        %3365 = vrot.lane.b32.xlu0 %v328, 24
        %v3366 = vpop.permute.xlu0 %3365
        %3367 = vrot.lane.b32.xlu0 %v329, 24
        %v3368 = vpop.permute.xlu0 %3367
        %3369 = vrot.lane.b32.xlu0 %v332, 24
        %v3370 = vpop.permute.xlu0 %3369
        %3371 = vrot.lane.b32.xlu0 %v333, 24
        %v3372 = vpop.permute.xlu0 %3371
        %3373 = vrot.lane.b32.xlu0 %v336, 24
        %v3374 = vpop.permute.xlu0 %3373
        %3375 = vrot.lane.b32.xlu0 %v337, 24
        %v3376 = vpop.permute.xlu0 %3375
        %3377 = vrot.lane.b32.xlu0 %v340, 24
        %v3378 = vpop.permute.xlu0 %3377
        %3379 = vrot.lane.b32.xlu0 %v341, 24
        %v3380 = vpop.permute.xlu0 %3379
        %3381 = vrot.lane.b32.xlu0 %v344, 24
        %v3382 = vpop.permute.xlu0 %3381
        %3383 = vrot.lane.b32.xlu0 %v345, 24
        %v3384 = vpop.permute.xlu0 %3383
        %3385 = vrot.lane.b32.xlu0 %v348, 24
        %v3386 = vpop.permute.xlu0 %3385
        %3387 = vrot.lane.b32.xlu0 %v349, 24
        %v3388 = vpop.permute.xlu0 %3387
        %3389 = vrot.lane.b32.xlu0 %v352, 24
        %v3390 = vpop.permute.xlu0 %3389
        %3391 = vrot.lane.b32.xlu0 %v353, 24
        %v3392 = vpop.permute.xlu0 %3391
        %3393 = vrot.lane.b32.xlu0 %v356, 24
        %v3394 = vpop.permute.xlu0 %3393
        %3395 = vrot.lane.b32.xlu0 %v357, 24
        %v3396 = vpop.permute.xlu0 %3395
        %3413 = vrot.lane.b32.xlu0 %v3175, 28
        %v3414 = vpop.permute.xlu0 %3413
        %3415 = vrot.lane.b32.xlu0 %v3177, 28
        %v3416 = vpop.permute.xlu0 %3415
        %3417 = vrot.lane.b32.xlu0 %v3180, 28
        %v3418 = vpop.permute.xlu0 %3417
        %3419 = vrot.lane.b32.xlu0 %v3182, 28
        %v3420 = vpop.permute.xlu0 %3419
        %3425 = vrot.lane.b32.xlu0 %v1640, 32
        %v3426 = vpop.permute.xlu0 %3425
        %3427 = vrot.lane.b32.xlu0 %v3164, 32
        %v3428 = vpop.permute.xlu0 %3427
        %3429 = vrot.lane.b32.xlu0 %v1645, 32
        %v3430 = vpop.permute.xlu0 %3429
        %3431 = vrot.lane.b32.xlu0 %v3166, 32
        %v3432 = vpop.permute.xlu0 %3431
        %3433 = vrot.lane.b32.xlu0 %v1653, 32
        %v3434 = vpop.permute.xlu0 %3433
        %3435 = vrot.lane.b32.xlu0 %v3186, 32
        %v3436 = vpop.permute.xlu0 %3435
        %3437 = vrot.lane.b32.xlu0 %v1658, 32
        %v3438 = vpop.permute.xlu0 %3437
        %3439 = vrot.lane.b32.xlu0 %v3188, 32
        %v3440 = vpop.permute.xlu0 %3439
        %3441 = vrot.lane.b32.xlu0 %v3191, 32
        %v3442 = vpop.permute.xlu0 %3441
        %3443 = vrot.lane.b32.xlu0 %v3193, 32
        %v3444 = vpop.permute.xlu0 %3443
        %3445 = vrot.lane.b32.xlu0 %v3196, 32
        %v3446 = vpop.permute.xlu0 %3445
        %3447 = vrot.lane.b32.xlu0 %v3198, 32
        %v3448 = vpop.permute.xlu0 %3447
        %3449 = vrot.lane.b32.xlu0 %v3201, 32
        %v3450 = vpop.permute.xlu0 %3449
        %3451 = vrot.lane.b32.xlu0 %v3203, 32
        %v3452 = vpop.permute.xlu0 %3451
        %3453 = vrot.lane.b32.xlu0 %v3206, 32
        %v3454 = vpop.permute.xlu0 %3453
        %3455 = vrot.lane.b32.xlu0 %v3208, 32
        %v3456 = vpop.permute.xlu0 %3455
        %v3473 = vsel %vm450, %v280, %v3210
        %v3474 = vsel %vm450, %v281, %v3212
        %v3475 = vsel %vm450, %v284, %v3214
        %v3476 = vsel %vm450, %v285, %v3216
        %v3477 = vsel %vm450, %v288, %v2470
        %v3478 = vsel %vm450, %v289, %v2472
        %v3479 = vsel %vm450, %v292, %v2474
        %v3480 = vsel %vm450, %v293, %v2476
        %v3481 = vsel %vm450, %v296, %v1665
        %v3482 = vsel %vm450, %v297, %v1667
        %v3483 = vsel %vm450, %v300, %v805
        %v3484 = vsel %vm450, %v301, %v807
        %v3485 = vsel %vm450, %v304, %v809
        %v3486 = vsel %vm450, %v305, %v811
        %v3487 = vsel %vm450, %v308, %v813
        %v3488 = vsel %vm450, %v309, %v815
        %v3489 = vsel %vm1204, %v3473, %v3222
        %v3490 = vsel %vm1204, %v3474, %v3224
        %v3491 = vsel %vm1204, %v3475, %v3226
        %v3492 = vsel %vm1204, %v3476, %v3228
        %v3493 = vsel %vm1204, %v3477, %v3230
        %v3494 = vsel %vm1204, %v3478, %v3232
        %v3495 = vsel %vm1204, %v3479, %v3234
        %v3496 = vsel %vm1204, %v3480, %v3236
        %v3497 = vsel %vm1204, %v3481, %v3238
        %v3498 = vsel %vm1204, %v3482, %v3240
        %v3499 = vsel %vm1204, %v3483, %v3242
        %v3500 = vsel %vm1204, %v3484, %v3244
        %v3501 = vsel %vm1204, %v3485, %v3246
        %v3502 = vsel %vm1204, %v3486, %v3248
        %v3503 = vsel %vm1204, %v3487, %v3250
        %v3504 = vsel %vm1204, %v3488, %v3252
        %v3505 = vsel %vm1221, %v3489, %v3270
        %v3506 = vsel %vm1221, %v3490, %v3272
        %v3507 = vsel %vm1221, %v3491, %v3274
        %v3508 = vsel %vm1221, %v3492, %v3276
        %v3509 = vsel %vm1221, %v3493, %v3278
        %v3510 = vsel %vm1221, %v3494, %v3280
        %v3511 = vsel %vm1221, %v3495, %v3282
        %v3512 = vsel %vm1221, %v3496, %v3284
        %v3513 = vsel %vm1221, %v3497, %v3286
        %v3514 = vsel %vm1221, %v3498, %v3288
        %v3515 = vsel %vm1221, %v3499, %v3290
        %v3516 = vsel %vm1221, %v3500, %v3292
        %v3517 = vsel %vm1221, %v3501, %v3294
        %v3518 = vsel %vm1221, %v3502, %v3296
        %v3519 = vsel %vm1221, %v3503, %v3298
        %v3520 = vsel %vm1221, %v3504, %v3300
        %v3521 = vsel %vm1238, %v3505, %v949
        %v3522 = vsel %vm1238, %v3506, %v951
        %v3523 = vsel %vm1238, %v3507, %v953
        %v3524 = vsel %vm1238, %v3508, %v955
        %v3525 = vsel %vm1238, %v3509, %v957
        %v3526 = vsel %vm1238, %v3510, %v959
        %v3527 = vsel %vm1238, %v3511, %v961
        %v3528 = vsel %vm1238, %v3512, %v963
        %v3529 = vsel %vm1238, %v3513, %v965
        %v3530 = vsel %vm1238, %v3514, %v967
        %v3531 = vsel %vm1238, %v3515, %v969
        %v3532 = vsel %vm1238, %v3516, %v971
        %v3533 = vsel %vm1238, %v3517, %v973
        %v3534 = vsel %vm1238, %v3518, %v975
        %v3535 = vsel %vm1238, %v3519, %v977
        %v3536 = vsel %vm1238, %v3520, %v979
        %v3537 = vsel %vm1255, %v3521, %v3318
        %v3538 = vsel %vm1255, %v3522, %v3320
        %v3539 = vsel %vm1255, %v3523, %v3322
        %v3540 = vsel %vm1255, %v3524, %v3324
        %v3541 = vsel %vm1255, %v3525, %v3326
        %v3542 = vsel %vm1255, %v3526, %v3328
        %v3543 = vsel %vm1255, %v3527, %v3330
        %v3544 = vsel %vm1255, %v3528, %v3332
        %v3545 = vsel %vm1255, %v3529, %v3334
        %v3546 = vsel %vm1255, %v3530, %v3336
        %v3547 = vsel %vm1255, %v3531, %v3338
        %v3548 = vsel %vm1255, %v3532, %v3340
        %v3549 = vsel %vm1255, %v3533, %v3342
        %v3550 = vsel %vm1255, %v3534, %v3344
        %v3551 = vsel %vm1255, %v3535, %v3346
        %v3552 = vsel %vm1255, %v3536, %v3348
        %v3553 = vsel %vm1272, %v3537, %v3366
        %v3554 = vsel %vm1272, %v3538, %v3368
        %v3555 = vsel %vm1272, %v3539, %v3370
        %v3556 = vsel %vm1272, %v3540, %v3372
        %v3557 = vsel %vm1272, %v3541, %v3374
        %v3558 = vsel %vm1272, %v3542, %v3376
        %v3559 = vsel %vm1272, %v3543, %v3378
        %v3560 = vsel %vm1272, %v3544, %v3380
        %v3561 = vsel %vm1272, %v3545, %v3382
        %v3562 = vsel %vm1272, %v3546, %v3384
        %v3563 = vsel %vm1272, %v3547, %v3386
        %v3564 = vsel %vm1272, %v3548, %v3388
        %v3565 = vsel %vm1272, %v3549, %v3390
        %v3566 = vsel %vm1272, %v3550, %v3392
        %v3567 = vsel %vm1272, %v3551, %v3394
        %v3568 = vsel %vm1272, %v3552, %v3396
        %v3569 = vsel %vm1289, %v3553, %v1113
        %v3570 = vsel %vm1289, %v3554, %v1115
        %v3571 = vsel %vm1289, %v3555, %v1117
        %v3572 = vsel %vm1289, %v3556, %v1119
        %v3573 = vsel %vm1289, %v3557, %v1121
        %v3574 = vsel %vm1289, %v3558, %v1123
        %v3575 = vsel %vm1289, %v3559, %v1863
        %v3576 = vsel %vm1289, %v3560, %v1865
        %v3577 = vsel %vm1289, %v3561, %v2674
        %v3578 = vsel %vm1289, %v3562, %v2676
        %v3579 = vsel %vm1289, %v3563, %v2678
        %v3580 = vsel %vm1289, %v3564, %v2680
        %v3581 = vsel %vm1289, %v3565, %v3414
        %v3582 = vsel %vm1289, %v3566, %v3416
        %v3583 = vsel %vm1289, %v3567, %v3418
        %v3584 = vsel %vm1289, %v3568, %v3420
        %v3585 = vsel %vm1306, %v3569, %v3426
        %v3586 = vsel %vm1306, %v3570, %v3428
        %v3587 = vsel %vm1306, %v3571, %v3430
        %v3588 = vsel %vm1306, %v3572, %v3432
        %v3589 = vsel %vm1306, %v3573, %v3434
        %v3590 = vsel %vm1306, %v3574, %v3436
        %v3591 = vsel %vm1306, %v3575, %v3438
        %v3592 = vsel %vm1306, %v3576, %v3440
        %v3593 = vsel %vm1306, %v3577, %v3442
        %v3594 = vsel %vm1306, %v3578, %v3444
        %v3595 = vsel %vm1306, %v3579, %v3446
        %v3596 = vsel %vm1306, %v3580, %v3448
        %v3597 = vsel %vm1306, %v3581, %v3450
        %v3598 = vsel %vm1306, %v3582, %v3452
        %v3599 = vsel %vm1306, %v3583, %v3454
        %v3600 = vsel %vm1306, %v3584, %v3456
        %v3601 = vpack.c.bf16 %v3586, %v3585
        %v3602 = vpack.c.bf16 %v3588, %v3587
        %v3603 = vpack.c.bf16 %v3590, %v3589
        %v3604 = vpack.c.bf16 %v3592, %v3591
        %v3605 = vpack.c.bf16 %v3594, %v3593
        %v3606 = vpack.c.bf16 %v3596, %v3595
        %v3607 = vpack.c.bf16 %v3598, %v3597
        %v3608 = vpack.c.bf16 %v3600, %v3599
        %s3609 = scalar_lea.vmem %s2, 60
        %v3610 = vld [vmem:[%s3609] sm:$0xf]
        %v3611 = vld [vmem:[%s3609 + $0x4] sm:$0xf]
        %v3612 = vld [vmem:[%s3609 + $0x8] sm:$0xf]
        %v3613 = vld [vmem:[%s3609 + $0xc] sm:$0xf]
        %v3614 = vld [vmem:[%s3609 + $0x10] sm:$0x3]
        %v3620 = vunpack.c.l.b16 %v3610
        %v3621 = vunpack.c.l.b16 %v3611
        %v3622 = vunpack.c.l.b16 %v3612
        %v3623 = vunpack.c.l.b16 %v3613
        %v3624 = vunpack.c.l.b16 %v3614
        %v3625 = vpack.c.b16 %v3621, %v3620
        %v3626 = vpack.c.b16 %v3623, %v3622
        %v3627 = vpack.c.b16 %v3624, %v3624
        %v3631 = vsel %vm1351, %v3601, 0
        %v3634 = vsel %vm1351, %v3602, 0
        %v3637 = vsel %vm1351, %v3603, 0
        %v3640 = vsel %vm1351, %v3604, 0
        %v3643 = vsel %vm1351, %v3605, 0
        %v3646 = vsel %vm1351, %v3606, 0
        %v3649 = vsel %vm1351, %v3607, 0
        %v3652 = vsel %vm1351, %v3608, 0
        %v3655 = vsel %vm384, %v3627, 0
        %3657 = vmatprep.subr.bf16.mxu0 0
        %3658 = vmatpush1.bf16.msra.mxu0 %v3625
        %3659 = vmatprep.subr.bf16.mxu0 0
        %3660 = vmatpush1.bf16.msra.mxu0 %v3626
        %3661 = vmatprep.subr.bf16.mxu0 0
        %3662 = vmatpush1.bf16.msra.mxu0 %v3655
        %3663 = vmatprep.subr.bf16.mxu0 0
        %3664 = vmatpush1.bf16.msra.mxu0 0
        %3665 = vmatprep.subr.bf16.mxu0 0
        %3666 = vmatpush1.bf16.msra.mxu0 0
        %3667 = vmatprep.subr.bf16.mxu0 0
        %3668 = vmatpush1.bf16.msra.mxu0 0
        %3669 = vmatprep.subr.bf16.mxu0 0
        %3670 = vmatpush1.bf16.msra.mxu0 0
        %3671 = vmatprep.subr.bf16.mxu0 0
        %3672 = vmatpush1.bf16.msra.mxu0 0
        %3673 = vmatprep.subr.bf16.mxu0 0
        %3674 = vmatpush1.bf16.msra.mxu0 0
        %3675 = vmatprep.subr.bf16.mxu0 0
        %3676 = vmatpush1.bf16.msra.mxu0 0
        %3677 = vmatprep.subr.bf16.mxu0 0
        %3678 = vmatpush1.bf16.msra.mxu0 0
        %3679 = vmatprep.subr.bf16.mxu0 0
        %3680 = vmatpush1.bf16.msra.mxu0 0
        %3681 = vmatprep.subr.bf16.mxu0 0
        %3682 = vmatpush1.bf16.msra.mxu0 0
        %3683 = vmatprep.subr.bf16.mxu0 0
        %3684 = vmatpush1.bf16.msra.mxu0 0
        %3685 = vmatprep.subr.bf16.mxu0 0
        %3686 = vmatpush1.bf16.msra.mxu0 0
        %3687 = vmatprep.subr.bf16.mxu0 0
        %3688 = vmatpush1.bf16.msra.mxu0 0
        %3689 = vmatprep.mubr.bf16.mxu0 0
        %3690 = vmatmul.mubr.bf16.gmra.mrb[0].mxu0 %v3631
        %v3691 = vpop.f32.mrb[0].mxu0
        %v3692 = vadd.f32 0.0, %v3691
        %v3693 = vpop.f32.mrb[0].mxu0
        %v3694 = vpop.f32.mrb[0].mxu0
        %v3695 = vadd.f32 0.0, %v3694
        %v3696 = vpop.f32.mrb[0].mxu0
        %3697 = vmatprep.mubr.bf16.mxu0 0
        %3698 = vmatmul.mubr.bf16.gmra.mrb[0].mxu0 %v3634
        %v3699 = vpop.f32.mrb[0].mxu0
        %v3700 = vadd.f32 0.0, %v3699
        %v3701 = vpop.f32.mrb[0].mxu0
        %v3702 = vpop.f32.mrb[0].mxu0
        %v3703 = vadd.f32 0.0, %v3702
        %v3704 = vpop.f32.mrb[0].mxu0
        %3705 = vmatprep.mubr.bf16.mxu0 0
        %3706 = vmatmul.mubr.bf16.gmra.mrb[0].mxu0 %v3637
        %v3707 = vpop.f32.mrb[0].mxu0
        %v3708 = vadd.f32 0.0, %v3707
        %v3709 = vpop.f32.mrb[0].mxu0
        %v3710 = vpop.f32.mrb[0].mxu0
        %v3711 = vadd.f32 0.0, %v3710
        %v3712 = vpop.f32.mrb[0].mxu0
        %3713 = vmatprep.mubr.bf16.mxu0 0
        %3714 = vmatmul.mubr.bf16.gmra.mrb[0].mxu0 %v3640
        %v3715 = vpop.f32.mrb[0].mxu0
        %v3716 = vadd.f32 0.0, %v3715
        %v3717 = vpop.f32.mrb[0].mxu0
        %v3718 = vpop.f32.mrb[0].mxu0
        %v3719 = vadd.f32 0.0, %v3718
        %v3720 = vpop.f32.mrb[0].mxu0
        %3721 = vmatprep.mubr.bf16.mxu0 0
        %3722 = vmatmul.mubr.bf16.gmra.mrb[0].mxu0 %v3643
        %v3723 = vpop.f32.mrb[0].mxu0
        %v3724 = vadd.f32 0.0, %v3723
        %v3725 = vpop.f32.mrb[0].mxu0
        %v3726 = vpop.f32.mrb[0].mxu0
        %v3727 = vadd.f32 0.0, %v3726
        %v3728 = vpop.f32.mrb[0].mxu0
        %3729 = vmatprep.mubr.bf16.mxu0 0
        %3730 = vmatmul.mubr.bf16.gmra.mrb[0].mxu0 %v3646
        %v3731 = vpop.f32.mrb[0].mxu0
        %v3732 = vadd.f32 0.0, %v3731
        %v3733 = vpop.f32.mrb[0].mxu0
        %v3734 = vpop.f32.mrb[0].mxu0
        %v3735 = vadd.f32 0.0, %v3734
        %v3736 = vpop.f32.mrb[0].mxu0
        %3737 = vmatprep.mubr.bf16.mxu0 0
        %3738 = vmatmul.mubr.bf16.gmra.mrb[0].mxu0 %v3649
        %v3739 = vpop.f32.mrb[0].mxu0
        %v3740 = vadd.f32 0.0, %v3739
        %v3741 = vpop.f32.mrb[0].mxu0
        %v3742 = vpop.f32.mrb[0].mxu0
        %v3743 = vadd.f32 0.0, %v3742
        %v3744 = vpop.f32.mrb[0].mxu0
        %3745 = vmatprep.mubr.bf16.mxu0 0
        %3746 = vmatmul.mubr.bf16.gmra.mrb[0].mxu0 %v3652
        %v3747 = vpop.f32.mrb[0].mxu0
        %v3748 = vadd.f32 0.0, %v3747
        %v3749 = vpop.f32.mrb[0].mxu0
        %v3750 = vpop.f32.mrb[0].mxu0
        %v3751 = vadd.f32 0.0, %v3750
        %v3752 = vpop.f32.mrb[0].mxu0
        %3753 = vdwg.mxu0
        %v3754 = vld [vmem:[%s3 + $0x4] sm:$0x1]
        %v3755 = vlaneseq
        %v3756 = vshrl.u32 %v3755, 7
        %v3757 = vsub.s32 0, %v3756
        %v3758 = vrot.slane %v3754, %v3757
        %v3759 = vmul.f32 %v3692, %v3758
        %v3760 = vmul.f32 %v3695, %v3758
        %v3761 = vmul.f32 %v3700, %v3758
        %v3762 = vmul.f32 %v3703, %v3758
        %v3763 = vmul.f32 %v3708, %v3758
        %v3764 = vmul.f32 %v3711, %v3758
        %v3765 = vmul.f32 %v3716, %v3758
        %v3766 = vmul.f32 %v3719, %v3758
        %v3767 = vmul.f32 %v3724, %v3758
        %v3768 = vmul.f32 %v3727, %v3758
        %v3769 = vmul.f32 %v3732, %v3758
        %v3770 = vmul.f32 %v3735, %v3758
        %v3771 = vmul.f32 %v3740, %v3758
        %v3772 = vmul.f32 %v3743, %v3758
        %v3773 = vmul.f32 %v3748, %v3758
        %v3774 = vmul.f32 %v3751, %v3758
        %v3775 = vld [vmem:[%s4 + $0x4] sm:$0x1]
        %v3776 = vlaneseq
        %v3777 = vshrl.u32 %v3776, 7
        %v3778 = vsub.s32 0, %v3777
        %v3779 = vrot.slane %v3775, %v3778
        %v3780 = vadd.f32 %v3759, %v3779
        %v3781 = vadd.f32 %v3760, %v3779
        %v3782 = vadd.f32 %v3761, %v3779
        %v3783 = vadd.f32 %v3762, %v3779
        %v3784 = vadd.f32 %v3763, %v3779
        %v3785 = vadd.f32 %v3764, %v3779
        %v3786 = vadd.f32 %v3765, %v3779
        %v3787 = vadd.f32 %v3766, %v3779
        %v3788 = vadd.f32 %v3767, %v3779
        %v3789 = vadd.f32 %v3768, %v3779
        %v3790 = vadd.f32 %v3769, %v3779
        %v3791 = vadd.f32 %v3770, %v3779
        %v3792 = vadd.f32 %v3771, %v3779
        %v3793 = vadd.f32 %v3772, %v3779
        %v3794 = vadd.f32 %v3773, %v3779
        %v3795 = vadd.f32 %v3774, %v3779
        %v3796 = vmax.f32 %v3780, 0.0
        %v3797 = vmax.f32 %v3781, 0.0
        %v3798 = vmax.f32 %v3782, 0.0
        %v3799 = vmax.f32 %v3783, 0.0
        %v3800 = vmax.f32 %v3784, 0.0
        %v3801 = vmax.f32 %v3785, 0.0
        %v3802 = vmax.f32 %v3786, 0.0
        %v3803 = vmax.f32 %v3787, 0.0
        %v3804 = vmax.f32 %v3788, 0.0
        %v3805 = vmax.f32 %v3789, 0.0
        %v3806 = vmax.f32 %v3790, 0.0
        %v3807 = vmax.f32 %v3791, 0.0
        %v3808 = vmax.f32 %v3792, 0.0
        %v3809 = vmax.f32 %v3793, 0.0
        %v3810 = vmax.f32 %v3794, 0.0
        %v3811 = vmax.f32 %v3795, 0.0
        %v3812 = vld [vmem:[%s5 + $0x4] sm:$0x1]
        %v3813 = vlaneseq
        %v3814 = vshrl.u32 %v3813, 7
        %v3815 = vsub.s32 0, %v3814
        %v3816 = vrot.slane %v3812, %v3815
        %v3817 = vmul.f32 %v3796, %v3816
        %v3818 = vmul.f32 %v3797, %v3816
        %v3819 = vmul.f32 %v3798, %v3816
        %v3820 = vmul.f32 %v3799, %v3816
        %v3821 = vmul.f32 %v3800, %v3816
        %v3822 = vmul.f32 %v3801, %v3816
        %v3823 = vmul.f32 %v3802, %v3816
        %v3824 = vmul.f32 %v3803, %v3816
        %v3825 = vmul.f32 %v3804, %v3816
        %v3826 = vmul.f32 %v3805, %v3816
        %v3827 = vmul.f32 %v3806, %v3816
        %v3828 = vmul.f32 %v3807, %v3816
        %v3829 = vmul.f32 %v3808, %v3816
        %v3830 = vmul.f32 %v3809, %v3816
        %v3831 = vmul.f32 %v3810, %v3816
        %v3832 = vmul.f32 %v3811, %v3816
        %v3833 = vadd.f32 %v3093, %v3817
        %v3834 = vadd.f32 %v3094, %v3818
        %v3835 = vadd.f32 %v3095, %v3819
        %v3836 = vadd.f32 %v3096, %v3820
        %v3837 = vadd.f32 %v3097, %v3821
        %v3838 = vadd.f32 %v3098, %v3822
        %v3839 = vadd.f32 %v3099, %v3823
        %v3840 = vadd.f32 %v3100, %v3824
        %v3841 = vadd.f32 %v3101, %v3825
        %v3842 = vadd.f32 %v3102, %v3826
        %v3843 = vadd.f32 %v3103, %v3827
        %v3844 = vadd.f32 %v3104, %v3828
        %v3845 = vadd.f32 %v3105, %v3829
        %v3846 = vadd.f32 %v3106, %v3830
        %v3847 = vadd.f32 %v3107, %v3831
        %v3848 = vadd.f32 %v3108, %v3832
        %vm3849 = vcmask 523264
        %v3850 = vsel %vm3849, %v3833, 0.0
        %3851 = vadd.xlane.f32.xlu0 %v3850
        %v3852 = vpop.xlane.xlu0 %3851
        %v3853 = vsel %vm3849, %v3834, 0.0
        %3854 = vadd.xlane.f32.xlu0 %v3853
        %v3855 = vpop.xlane.xlu0 %3854
        %v3856 = vsel %vm3849, %v3835, 0.0
        %3857 = vadd.xlane.f32.xlu0 %v3856
        %v3858 = vpop.xlane.xlu0 %3857
        %v3859 = vsel %vm3849, %v3836, 0.0
        %3860 = vadd.xlane.f32.xlu0 %v3859
        %v3861 = vpop.xlane.xlu0 %3860
        %v3862 = vsel %vm3849, %v3837, 0.0
        %3863 = vadd.xlane.f32.xlu0 %v3862
        %v3864 = vpop.xlane.xlu0 %3863
        %v3865 = vsel %vm3849, %v3838, 0.0
        %3866 = vadd.xlane.f32.xlu0 %v3865
        %v3867 = vpop.xlane.xlu0 %3866
        %v3868 = vsel %vm3849, %v3839, 0.0
        %3869 = vadd.xlane.f32.xlu0 %v3868
        %v3870 = vpop.xlane.xlu0 %3869
        %v3871 = vsel %vm3849, %v3840, 0.0
        %3872 = vadd.xlane.f32.xlu0 %v3871
        %v3873 = vpop.xlane.xlu0 %3872
        %v3874 = vsel %vm3849, %v3841, 0.0
        %3875 = vadd.xlane.f32.xlu0 %v3874
        %v3876 = vpop.xlane.xlu0 %3875
        %v3877 = vsel %vm3849, %v3842, 0.0
        %3878 = vadd.xlane.f32.xlu0 %v3877
        %v3879 = vpop.xlane.xlu0 %3878
        %v3880 = vsel %vm3849, %v3843, 0.0
        %3881 = vadd.xlane.f32.xlu0 %v3880
        %v3882 = vpop.xlane.xlu0 %3881
        %v3883 = vsel %vm3849, %v3844, 0.0
        %3884 = vadd.xlane.f32.xlu0 %v3883
        %v3885 = vpop.xlane.xlu0 %3884
        %v3886 = vsel %vm3849, %v3845, 0.0
        %3887 = vadd.xlane.f32.xlu0 %v3886
        %v3888 = vpop.xlane.xlu0 %3887
        %v3889 = vsel %vm3849, %v3846, 0.0
        %3890 = vadd.xlane.f32.xlu0 %v3889
        %v3891 = vpop.xlane.xlu0 %3890
        %v3892 = vsel %vm3849, %v3847, 0.0
        %3893 = vadd.xlane.f32.xlu0 %v3892
        %v3894 = vpop.xlane.xlu0 %3893
        %v3895 = vsel %vm3849, %v3848, 0.0
        %3896 = vadd.xlane.f32.xlu0 %v3895
        %v3897 = vpop.xlane.xlu0 %3896
        %v3898 = vld [vmem:[#allocation2] sm:$0x1]
        %v3900 = vlaneseq
        %v3901 = vshrl.u32 %v3900, 7
        %v3902 = vsub.s32 0, %v3901
        %v3903 = vrot.slane %v3898, %v3902
        %3904 = vset.pattern.permute.xlu0 0
        %3905 = vperm.xlu0 %3904, %v3903
        %v3906 = vpop.permute.xlu0 %3905
        %v3908 = vadd.f32 %v3852, %v3906
        %v3909 = vadd.f32 %v3855, %v3906
        %v3910 = vadd.f32 %v3858, %v3906
        %v3911 = vadd.f32 %v3861, %v3906
        %v3912 = vadd.f32 %v3864, %v3906
        %v3913 = vadd.f32 %v3867, %v3906
        %v3914 = vadd.f32 %v3870, %v3906
        %v3915 = vadd.f32 %v3873, %v3906
        %v3916 = vadd.f32 %v3876, %v3906
        %v3917 = vadd.f32 %v3879, %v3906
        %v3918 = vadd.f32 %v3882, %v3906
        %v3919 = vadd.f32 %v3885, %v3906
        %v3920 = vadd.f32 %v3888, %v3906
        %v3921 = vadd.f32 %v3891, %v3906
        %v3922 = vadd.f32 %v3894, %v3906
        %v3923 = vadd.f32 %v3897, %v3906
        %v3924 = vxor.u32 %v3908, 2147483648
        %v3925 = vxor.u32 %v3909, 2147483648
        %v3926 = vxor.u32 %v3910, 2147483648
        %v3927 = vxor.u32 %v3911, 2147483648
        %v3928 = vxor.u32 %v3912, 2147483648
        %v3929 = vxor.u32 %v3913, 2147483648
        %v3930 = vxor.u32 %v3914, 2147483648
        %v3931 = vxor.u32 %v3915, 2147483648
        %v3932 = vxor.u32 %v3916, 2147483648
        %v3933 = vxor.u32 %v3917, 2147483648
        %v3934 = vxor.u32 %v3918, 2147483648
        %v3935 = vxor.u32 %v3919, 2147483648
        %v3936 = vxor.u32 %v3920, 2147483648
        %v3937 = vxor.u32 %v3921, 2147483648
        %v3938 = vxor.u32 %v3922, 2147483648
        %v3939 = vxor.u32 %v3923, 2147483648
        %v3940 = vmul.f32 %v3924, 1.442695
        %v3941 = vpow.pop %v3940
        %v3942 = vmul.f32 %v3925, 1.442695
        %v3943 = vpow.pop %v3942
        %v3944 = vmul.f32 %v3926, 1.442695
        %v3945 = vpow.pop %v3944
        %v3946 = vmul.f32 %v3927, 1.442695
        %v3947 = vpow.pop %v3946
        %v3948 = vmul.f32 %v3928, 1.442695
        %v3949 = vpow.pop %v3948
        %v3950 = vmul.f32 %v3929, 1.442695
        %v3951 = vpow.pop %v3950
        %v3952 = vmul.f32 %v3930, 1.442695
        %v3953 = vpow.pop %v3952
        %v3954 = vmul.f32 %v3931, 1.442695
        %v3955 = vpow.pop %v3954
        %v3956 = vmul.f32 %v3932, 1.442695
        %v3957 = vpow.pop %v3956
        %v3958 = vmul.f32 %v3933, 1.442695
        %v3959 = vpow.pop %v3958
        %v3960 = vmul.f32 %v3934, 1.442695
        %v3961 = vpow.pop %v3960
        %v3962 = vmul.f32 %v3935, 1.442695
        %v3963 = vpow.pop %v3962
        %v3964 = vmul.f32 %v3936, 1.442695
        %v3965 = vpow.pop %v3964
        %v3966 = vmul.f32 %v3937, 1.442695
        %v3967 = vpow.pop %v3966
        %v3968 = vmul.f32 %v3938, 1.442695
        %v3969 = vpow.pop %v3968
        %v3970 = vmul.f32 %v3939, 1.442695
        %v3971 = vpow.pop %v3970
        %v3972 = vadd.f32 %v3941, 1.0
        %v3973 = vadd.f32 %v3943, 1.0
        %v3974 = vadd.f32 %v3945, 1.0
        %v3975 = vadd.f32 %v3947, 1.0
        %v3976 = vadd.f32 %v3949, 1.0
        %v3977 = vadd.f32 %v3951, 1.0
        %v3978 = vadd.f32 %v3953, 1.0
        %v3979 = vadd.f32 %v3955, 1.0
        %v3980 = vadd.f32 %v3957, 1.0
        %v3981 = vadd.f32 %v3959, 1.0
        %v3982 = vadd.f32 %v3961, 1.0
        %v3983 = vadd.f32 %v3963, 1.0
        %v3984 = vadd.f32 %v3965, 1.0
        %v3985 = vadd.f32 %v3967, 1.0
        %v3986 = vadd.f32 %v3969, 1.0
        %v3987 = vadd.f32 %v3971, 1.0
        %v3988 = vrcp.pop %v3972
        %v3989 = vmul.f32 1.0, %v3988
        %v3990 = vrcp.pop %v3973
        %v3991 = vmul.f32 1.0, %v3990
        %v3992 = vrcp.pop %v3974
        %v3993 = vmul.f32 1.0, %v3992
        %v3994 = vrcp.pop %v3975
        %v3995 = vmul.f32 1.0, %v3994
        %v3996 = vrcp.pop %v3976
        %v3997 = vmul.f32 1.0, %v3996
        %v3998 = vrcp.pop %v3977
        %v3999 = vmul.f32 1.0, %v3998
        %v4000 = vrcp.pop %v3978
        %v4001 = vmul.f32 1.0, %v4000
        %v4002 = vrcp.pop %v3979
        %v4003 = vmul.f32 1.0, %v4002
        %v4004 = vrcp.pop %v3980
        %v4005 = vmul.f32 1.0, %v4004
        %v4006 = vrcp.pop %v3981
        %v4007 = vmul.f32 1.0, %v4006
        %v4008 = vrcp.pop %v3982
        %v4009 = vmul.f32 1.0, %v4008
        %v4010 = vrcp.pop %v3983
        %v4011 = vmul.f32 1.0, %v4010
        %v4012 = vrcp.pop %v3984
        %v4013 = vmul.f32 1.0, %v4012
        %v4014 = vrcp.pop %v3985
        %v4015 = vmul.f32 1.0, %v4014
        %v4016 = vrcp.pop %v3986
        %v4017 = vmul.f32 1.0, %v4016
        %v4018 = vrcp.pop %v3987
        %v4019 = vmul.f32 1.0, %v4018
        %v4036 = vlaneseq
        %v4037 = vand.u32 %v4036, 127
        %v4038 = vlaneseq
        %v4039 = vshrl.u32 %v4038, 7
        %v4040 = vsub.s32 %v4037, %v4039
        %v4041 = vrot.slane %v3989, %v4040
        %v4042 = vadd.s32 %v4037, 4294967288
        %v4043 = vlaneseq
        %v4044 = vshrl.u32 %v4043, 7
        %v4045 = vsub.s32 %v4042, %v4044
        %v4046 = vrot.slane %v3991, %v4045
        %vm4047 = vcmask 130112
        %v4048 = vsel %vm4047, %v4046, %v4041
        %v4049 = vlaneseq
        %v4050 = vshrl.u32 %v4049, 7
        %v4051 = vsub.s32 %v4037, %v4050
        %v4052 = vrot.slane %v3993, %v4051
        %v4053 = vlaneseq
        %v4054 = vshrl.u32 %v4053, 7
        %v4055 = vsub.s32 %v4042, %v4054
        %v4056 = vrot.slane %v3995, %v4055
        %v4057 = vsel %vm4047, %v4056, %v4052
        %v4058 = vlaneseq
        %v4059 = vshrl.u32 %v4058, 7
        %v4060 = vsub.s32 %v4037, %v4059
        %v4061 = vrot.slane %v3997, %v4060
        %v4062 = vlaneseq
        %v4063 = vshrl.u32 %v4062, 7
        %v4064 = vsub.s32 %v4042, %v4063
        %v4065 = vrot.slane %v3999, %v4064
        %v4066 = vsel %vm4047, %v4065, %v4061
        %v4067 = vlaneseq
        %v4068 = vshrl.u32 %v4067, 7
        %v4069 = vsub.s32 %v4037, %v4068
        %v4070 = vrot.slane %v4001, %v4069
        %v4071 = vlaneseq
        %v4072 = vshrl.u32 %v4071, 7
        %v4073 = vsub.s32 %v4042, %v4072
        %v4074 = vrot.slane %v4003, %v4073
        %v4075 = vsel %vm4047, %v4074, %v4070
        %v4076 = vlaneseq
        %v4077 = vshrl.u32 %v4076, 7
        %v4078 = vsub.s32 %v4037, %v4077
        %v4079 = vrot.slane %v4005, %v4078
        %v4080 = vlaneseq
        %v4081 = vshrl.u32 %v4080, 7
        %v4082 = vsub.s32 %v4042, %v4081
        %v4083 = vrot.slane %v4007, %v4082
        %v4084 = vsel %vm4047, %v4083, %v4079
        %v4085 = vlaneseq
        %v4086 = vshrl.u32 %v4085, 7
        %v4087 = vsub.s32 %v4037, %v4086
        %v4088 = vrot.slane %v4009, %v4087
        %v4089 = vlaneseq
        %v4090 = vshrl.u32 %v4089, 7
        %v4091 = vsub.s32 %v4042, %v4090
        %v4092 = vrot.slane %v4011, %v4091
        %v4093 = vsel %vm4047, %v4092, %v4088
        %v4094 = vlaneseq
        %v4095 = vshrl.u32 %v4094, 7
        %v4096 = vsub.s32 %v4037, %v4095
        %v4097 = vrot.slane %v4013, %v4096
        %v4098 = vlaneseq
        %v4099 = vshrl.u32 %v4098, 7
        %v4100 = vsub.s32 %v4042, %v4099
        %v4101 = vrot.slane %v4015, %v4100
        %v4102 = vsel %vm4047, %v4101, %v4097
        %v4103 = vlaneseq
        %v4104 = vshrl.u32 %v4103, 7
        %v4105 = vsub.s32 %v4037, %v4104
        %v4106 = vrot.slane %v4017, %v4105
        %v4107 = vlaneseq
        %v4108 = vshrl.u32 %v4107, 7
        %v4109 = vsub.s32 %v4042, %v4108
        %v4110 = vrot.slane %v4019, %v4109
        %v4111 = vsel %vm4047, %v4110, %v4106
        %vm4112 = vcmask 1041409
        %v4113 = vsel %vm4112, %v4057, %v4048
        %vm4114 = vcmask 1042434
        %v4115 = vsel %vm4114, %v4066, %v4113
        %vm4116 = vcmask 1043459
        %v4117 = vsel %vm4116, %v4075, %v4115
        %vm4118 = vcmask 1044484
        %v4119 = vsel %vm4118, %v4084, %v4117
        %vm4120 = vcmask 1045509
        %v4121 = vsel %vm4120, %v4093, %v4119
        %vm4122 = vcmask 1046534
        %v4123 = vsel %vm4122, %v4102, %v4121
        %vm4124 = vcmask 1047559
        %v4125 = vsel %vm4124, %v4111, %v4123
        %4127 = vst.msk [vmem:[%s273] sm:$0xff] %vm1238, %v4125
        %s4128 = sand.u32 %s183, 1
        %s4129 = scalar_lea.sflag [#allocation4], %s4128
        %s4130 = sand.u32 %s183, 1
        %s4131 = smul.addr %s4130, 8
        %s4132 = scalar_lea.vmem [#allocation3], %s4131
        // Predicated region
        $region49: #{bpb_forward.3} parent=47 // pred_check
          %p4133 = pneg %p193
        $region50: #{bpb_forward.3} parent=47 // pred_check_branch
          %4135 = sbr.rel (%p4133) target = $region52
        $region51: #{bpb_forward.3} parent=47 // pred_region
          %s4137 = ssub.s32 128, 128
          %4138 = vsyncadd %s4129, %s4137
          %s4139 = smul.addr %s23, 128
          %s4140 = scalar_lea.hbm %s7, %s4139
          %s4142 = sshll.u32 %s4132, 4
          %s4143 = int_to_ptr.vmem [resolvable:$true] %s4142
          %4145 = dma.vmem_to_hbm [thread:$0]  %s4143, 128, %s4140, %s4129
        $region52: #{bpb_forward.3} parent=47 // pred_fallthru
          _
      $region48: #{bpb_forward.3} parent=5 // pred_fallthru
        _
      %p4146 = scmp.le.s32.totalorder 2, %s18
      // Predicated region
      $region53: #{bpb_forward.3} parent=5 // pred_check
        %p4147 = pneg %p4146
      $region54: #{bpb_forward.3} parent=5 // pred_check_branch
        %4149 = sbr.rel (%p4147) target = $region56
      $region55: #{bpb_forward.3} parent=5 // pred_region
        %s4150 = ssub.s32 %s18, 2
        // Predicated region
        $region57: #{bpb_forward.3} parent=55 // pred_check
          %p4151 = pneg %p199
        $region58: #{bpb_forward.3} parent=55 // pred_check_branch
          %4153 = sbr.rel (%p4151) target = $region60
        $region59: #{bpb_forward.3} parent=55 // pred_region
          %s4154 = sand.u32 %s184, 1
          %s4155 = scalar_lea.sflag [#allocation4], %s4154
          %s4156 = sand.u32 %s184, 1
          %s4157 = smul.addr %s4156, 8
          %s4158 = scalar_lea.vmem [#allocation3], %s4157
          %4159 = dma.done %s4155, 128
        $region60: #{bpb_forward.3} parent=55 // pred_fallthru
          _
      $region56: #{bpb_forward.3} parent=5 // pred_fallthru
        _
    $region6: #{bpb_forward.3} parent=1 // loop_footer
      %s22 = sadd.s32 1, %s18
    $region7: #{bpb_forward.3} parent=1 // loop_footer_branch
      %17 = sbr.rel target = $region3
    $region8: #{bpb_forward.3} parent=1 // loop_exit
      _
    %4160 = vsyncpa [#allocation4], 1
    %s4161 = scalar_lea.sflag [#allocation4], 1
    %4162 = vsyncpa %s4161, 1

</llo_original>
